<compile_context>
chip_gen: v7x
topology: tpu7x:2x2x1
jax: 0.10.0
libtpu: 0.0.40
codegen_flags: <defaults>
</compile_context>

<pallas_src>
import functools

import jax
import jax.numpy as jnp
from jax.experimental import pallas as pl
from jax.experimental.pallas import tpu as pltpu

STEM_WIDTH = 8
STAGE_WIDTHS = (8, 16, 16, 32)
GROUP_WIDTH = 8
SE_RATIO = 0.25
BN_EPS = 1e-5

PARALLEL_N = pltpu.CompilerParams(dimension_semantics=("parallel",))

_BLOCK_WEIGHT_KEYS = ("wa4", "sa4", "ba4", "wb4", "sb", "bb",
                      "se_w1", "se_b1", "se_w2", "se_b2",
                      "wc", "sc", "bc", "wp", "sp", "bp")


# --------------------------------------------------------------------------
# BlockSpec helpers: one image per grid step; weights are shared (block index 0)
# --------------------------------------------------------------------------
def _img_spec(c, m):
    # (1, C, M): channels on sublanes, flattened spatial on lanes (lane-dense)
    return pl.BlockSpec((1, c, m), lambda n: (n, 0, 0))


def _shared_spec(shape):
    nd = len(shape)
    return pl.BlockSpec(shape, lambda n: (0,) * nd)


# --------------------------------------------------------------------------
# In-kernel helpers for the 3x3 / stride-2 / pad-1 conv (tap accumulation)
# --------------------------------------------------------------------------
def _shift_right_zero(v, k):
    """result[..., m] = v[..., m - k] for m >= k, else 0 (k is a static Python int)."""
    if k == 0:
        return v
    pad = jnp.zeros(v.shape[:-1] + (k,), v.dtype)
    return jnp.concatenate([pad, v[..., :-k]], axis=-1)


def _combine_shift_groups(g, ow):
    """Combine the 4 pre-shift partial sums of a packed 3x3/stride-2 convolution.

    g: (4*Cout, M) with row blocks [no-shift, col-shift, row-shift, row+col-shift],
    M = OH*OW flattened row-major.  Returns (Cout, M) in f32."""
    m = g.shape[-1]
    cout = g.shape[0] // 4
    lane = jax.lax.broadcasted_iota(jnp.int32, (1, m), 1)
    col_ok = (lane % ow) != 0                                   # ox != 0
    acc = g[0:cout]
    acc = acc + jnp.where(col_ok, _shift_right_zero(g[cout:2 * cout], 1), 0.0)
    acc = acc + _shift_right_zero(g[2 * cout:3 * cout], ow)
    acc = acc + jnp.where(col_ok, _shift_right_zero(g[3 * cout:4 * cout], ow + 1), 0.0)
    return acc


# --------------------------------------------------------------------------
# Pallas kernels
# --------------------------------------------------------------------------
def _stem_kernel(xph_ref, w_ref, s_ref, b_ref, o_ref, *, ow):
    """3x3 s2 conv (4-phase tap accumulation) + folded BN + ReLU."""
    x = xph_ref[0]                                                        # (4*Cin, M) bf16
    g = jnp.dot(w_ref[...], x, preferred_element_type=jnp.float32)       # (4*Cout, M)
    y = _combine_shift_groups(g, ow)
    y = jnp.maximum(y * s_ref[...] + b_ref[...], 0.0)
    o_ref[0] = y.astype(o_ref.dtype)


def _block_kernel(xph_ref, wa4_ref, sa4_ref, ba4_ref, wb4_ref, sb_ref, bb_ref,
                  w1_ref, b1_ref, w2_ref, b2_ref, wc_ref, sc_ref, bc_ref,
                  wp_ref, sp_ref, bp_ref, o_ref, *, ow):
    """Fully fused ResBottleneckBlock: conv-a -> grouped 3x3 s2 conv-b -> SE -> conv-c
    + 1x1/s2 projection shortcut + residual + ReLU, all in VMEM."""
    cin = xph_ref.shape[1] // 4
    x = xph_ref[0]                                                        # (4*Cin, M) bf16
    # 1x1 conv-a + BN + ReLU applied to all 4 spatial phases in one matmul
    y1 = jnp.dot(wa4_ref[...], x, preferred_element_type=jnp.float32)    # (4*Wb, M)
    y1 = jnp.maximum(y1 * sa4_ref[...] + ba4_ref[...], 0.0)
    # 3x3 grouped conv-b (stride 2, pad 1) via in-VMEM tap accumulation + BN + ReLU
    g = jnp.dot(wb4_ref[...], y1.astype(jnp.bfloat16),
                preferred_element_type=jnp.float32)                       # (4*Wb, M)
    y2 = _combine_shift_groups(g, ow)                                     # (Wb, M)
    y2 = jnp.maximum(y2 * sb_ref[...] + bb_ref[...], 0.0)
    # Squeeze-Excitation (full spatial plane is resident -> exact GAP), entirely in VMEM
    pooled = jnp.mean(y2, axis=1, keepdims=True)                          # (Wb, 1)
    h = jnp.dot(w1_ref[...], pooled, preferred_element_type=jnp.float32) + b1_ref[...]
    h = jnp.maximum(h, 0.0)
    gate = jax.nn.sigmoid(
        jnp.dot(w2_ref[...], h, preferred_element_type=jnp.float32) + b2_ref[...])
    y2 = y2 * gate
    # 1x1 conv-c + 1x1/stride-2 projection (= phase (0,0) of x, already in VMEM) + add + ReLU
    main = jnp.dot(wc_ref[...], y2.astype(jnp.bfloat16),
                   preferred_element_type=jnp.float32) * sc_ref[...] + bc_ref[...]
    proj = jnp.dot(wp_ref[...], x[0:cin],
                   preferred_element_type=jnp.float32) * sp_ref[...] + bp_ref[...]
    o_ref[0] = jnp.maximum(main + proj, 0.0).astype(o_ref.dtype)


# --------------------------------------------------------------------------
# pallas_call wrappers
# --------------------------------------------------------------------------
def stem_conv(xph, w4, scale, bias, ow, out_dtype):
    n, c4, m = xph.shape
    cout = scale.shape[0]
    return pl.pallas_call(
        functools.partial(_stem_kernel, ow=ow),
        grid=(n,),
        out_shape=jax.ShapeDtypeStruct((n, cout, m), out_dtype),
        in_specs=[_img_spec(c4, m), _shared_spec(w4.shape),
                  _shared_spec(scale.shape), _shared_spec(bias.shape)],
        out_specs=_img_spec(cout, m),
        compiler_params=PARALLEL_N,
    )(xph, w4, scale, bias)


def res_bottleneck_block(xph, p, ow, out_dtype):
    n, c4, m = xph.shape
    cout = p["sc"].shape[0]
    weights = [p[k] for k in _BLOCK_WEIGHT_KEYS]
    return pl.pallas_call(
        functools.partial(_block_kernel, ow=ow),
        grid=(n,),
        out_shape=jax.ShapeDtypeStruct((n, cout, m), out_dtype),
        in_specs=[_img_spec(c4, m)] + [_shared_spec(w.shape) for w in weights],
        out_specs=_img_spec(cout, m),
        compiler_params=PARALLEL_N,
    )(xph, *weights)


# --------------------------------------------------------------------------
# JAX glue: 4-phase split (pure re-layout, fused by XLA; 1.0x activation size)
# --------------------------------------------------------------------------
def to_phases(x_nchw):
    """(N, C, H, W) -> (N, 4*C, (H/2)*(W/2)), leading order (phase_y, phase_x, channel)."""
    n, c, h, w = x_nchw.shape
    oh, ow = h // 2, w // 2
    xr = x_nchw.reshape(n, c, oh, 2, ow, 2)
    xp = jnp.transpose(xr, (0, 3, 5, 1, 2, 4)).reshape(n, 4 * c, oh * ow)
    return xp, oh, ow


# --------------------------------------------------------------------------
# Weight packing (done once at init, outside the hot path)
# --------------------------------------------------------------------------
def _grouped_to_dense(w_oihw, groups):
    """Grouped conv weight -> block-diagonal dense (Cout, Cin, kh, kw)."""
    cout, cinpg, kh, kw = w_oihw.shape
    cgo = cout // groups
    wd = jnp.zeros((cout, cinpg * groups, kh, kw), jnp.float32)
    for g in range(groups):
        wd = wd.at[g * cgo:(g + 1) * cgo, g * cinpg:(g + 1) * cinpg].set(
            w_oihw[g * cgo:(g + 1) * cgo])
    return wd


def _pack_phase_conv3x3(w_dense):
    """Dense (Cout, Cin, 3, 3) stride-2/pad-1 conv weight -> (4*Cout, 4*Cin) matmul weight
    acting on the 4-phase input; output rows grouped by the spatial shift they need:
    [no-shift, col-shift, row-shift, row+col-shift]."""
    cout, cin = w_dense.shape[:2]
    w = jnp.zeros((4 * cout, 4 * cin), jnp.float32)
    for dy in range(3):
        for dx in range(3):
            py = 0 if dy == 1 else 1          # source phase row
            px = 0 if dx == 1 else 1          # source phase col
            grp = (2 if dy == 0 else 0) + (1 if dx == 0 else 0)
            ph = 2 * py + px
            w = w.at[grp * cout:(grp + 1) * cout, ph * cin:(ph + 1) * cin].add(
                w_dense[:, :, dy, dx])
    return w


# --------------------------------------------------------------------------
# Parameter init (deterministic, synthetic; inference BN folded into scale/bias)
# --------------------------------------------------------------------------
def _conv_bn_init(key, cout, cin_per_group, k):
    kw_, kg, kb = jax.random.split(key, 3)
    fan_in = cin_per_group * k * k
    w = jax.random.normal(kw_, (cout, cin_per_group, k, k), jnp.float32) / jnp.sqrt(fan_in)
    w = w.astype(jnp.bfloat16).astype(jnp.float32)    # identical rounding kernel vs. reference
    gamma = 1.0 + 0.1 * jax.random.normal(kg, (cout,), jnp.float32)
    beta = 0.1 * jax.random.normal(kb, (cout,), jnp.float32)
    # running_mean = 0, running_var = 1 for synthetic weights; fold into scale/bias.
    scale = (gamma / jnp.sqrt(1.0 + BN_EPS)).reshape(cout, 1)
    bias = beta.reshape(cout, 1)
    return w, scale, bias


def _block_init(key, w_in, w_out):
    w_b = w_out                                    # bottleneck multiplier 1.0
    groups = w_b // GROUP_WIDTH
    c_se = int(round(SE_RATIO * w_in))
    keys = jax.random.split(key, 8)
    wa, sa, ba = _conv_bn_init(keys[0], w_b, w_in, 1)
    wb, sb, bb = _conv_bn_init(keys[1], w_b, w_b // groups, 3)
    wc, sc, bc = _conv_bn_init(keys[2], w_out, w_b, 1)
    wp, sp, bp = _conv_bn_init(keys[3], w_out, w_in, 1)    # projection (stride 2 every stage)
    se_w1 = jax.random.normal(keys[4], (c_se, w_b), jnp.float32) / jnp.sqrt(w_b)
    se_b1 = 0.1 * jax.random.normal(keys[5], (c_se, 1), jnp.float32)
    se_w2 = jax.random.normal(keys[6], (w_b, c_se), jnp.float32) / jnp.sqrt(c_se)
    se_b2 = 0.1 * jax.random.normal(keys[7], (w_b, 1), jnp.float32)

    packed = {
        "wa4": jnp.kron(jnp.eye(4, dtype=jnp.float32),
                        wa.reshape(w_b, w_in)).astype(jnp.bfloat16),
        "sa4": jnp.tile(sa, (4, 1)), "ba4": jnp.tile(ba, (4, 1)),
        "wb4": _pack_phase_conv3x3(_grouped_to_dense(wb, groups)).astype(jnp.bfloat16),
        "sb": sb, "bb": bb,
        "se_w1": se_w1, "se_b1": se_b1, "se_w2": se_w2, "se_b2": se_b2,
        "wc": wc.reshape(w_out, w_b).astype(jnp.bfloat16), "sc": sc, "bc": bc,
        "wp": wp.reshape(w_out, w_in).astype(jnp.bfloat16), "sp": sp, "bp": bp,
    }
    raw = {"wa": wa, "sa": sa, "ba": ba, "wb": wb, "sb": sb, "bb": bb,
           "wc": wc, "sc": sc, "bc": bc, "wp": wp, "sp": sp, "bp": bp,
           "se_w1": se_w1, "se_b1": se_b1, "se_w2": se_w2, "se_b2": se_b2,
           "groups": groups}
    return packed, raw


def init_encoder_params(key):
    keys = jax.random.split(key, 5)
    w, s, b = _conv_bn_init(keys[0], STEM_WIDTH, 3, 3)
    params = {"stem": {"w4": _pack_phase_conv3x3(w).astype(jnp.bfloat16),
                       "scale": s, "bias": b}}
    raw = {"stem": {"w": w, "scale": s, "bias": b}}
    w_in = STEM_WIDTH
    for i, w_out in enumerate(STAGE_WIDTHS):
        packed_i, raw_i = _block_init(keys[i + 1], w_in, w_out)
        params[f"block{i + 1}"] = packed_i
        raw[f"block{i + 1}"] = raw_i
        w_in = w_out
    return params, raw


# --------------------------------------------------------------------------
# Forward (Pallas path)
# --------------------------------------------------------------------------
@jax.jit
def encoder_forward(x_nchw, params):
    x = x_nchw.astype(jnp.bfloat16)
    n = x.shape[0]
    # layer0: stem 3x3 s2 + BN + ReLU
    xp, h, w = to_phases(x)
    x = stem_conv(xp, params["stem"]["w4"], params["stem"]["scale"],
                  params["stem"]["bias"], w, jnp.bfloat16)               # (N, 8, h*w)
    c = STEM_WIDTH
    # layer1..layer4: one fused pallas_call per ResBottleneckBlock
    for i in range(4):
        p = params[f"block{i + 1}"]
        xp, oh, ow = to_phases(x.reshape(n, c, h, w))
        out_dtype = jnp.float32 if i == 3 else jnp.bfloat16
        x = res_bottleneck_block(xp, p, ow, out_dtype)                   # (N, Cout, oh*ow)
        h, w, c = oh, ow, STAGE_WIDTHS[i]
    return x.reshape(n, c, h, w)                                         # NCHW like PyTorch


# --------------------------------------------------------------------------
# Pure-JAX reference (same folded-BN synthetic weights) for a correctness check
# --------------------------------------------------------------------------
def _conv_ref(x, w, stride, pad, groups=1):
    return jax.lax.conv_general_dilated(
        x, w, window_strides=(stride, stride), padding=((pad, pad), (pad, pad)),
        dimension_numbers=("NCHW", "OIHW", "NCHW"), feature_group_count=groups)


def _bn(y, s, b):
    return y * s.reshape(1, -1, 1, 1) + b.reshape(1, -1, 1, 1)


def _block_ref(x, r):
    a = jax.nn.relu(_bn(_conv_ref(x, r["wa"], 1, 0), r["sa"], r["ba"]))
    b = jax.nn.relu(_bn(_conv_ref(a, r["wb"], 2, 1, r["groups"]), r["sb"], r["bb"]))
    pooled = jnp.mean(b, axis=(2, 3), keepdims=True)
    hdn = jax.nn.relu(jnp.einsum("nchw,kc->nkhw", pooled, r["se_w1"])
                      + r["se_b1"].reshape(1, -1, 1, 1))
    gate = jax.nn.sigmoid(jnp.einsum("nkhw,ck->nchw", hdn, r["se_w2"])
                          + r["se_b2"].reshape(1, -1, 1, 1))
    b = b * gate
    main = _bn(_conv_ref(b, r["wc"], 1, 0), r["sc"], r["bc"])
    proj = _bn(_conv_ref(x, r["wp"], 2, 0), r["sp"], r["bp"])
    return jax.nn.relu(main + proj)


def encoder_reference(x, raw):
    x = x.astype(jnp.bfloat16).astype(jnp.float32)
    y = jax.nn.relu(_bn(_conv_ref(x, raw["stem"]["w"], 2, 1),
                        raw["stem"]["scale"], raw["stem"]["bias"]))
    for i in range(4):
        y = _block_ref(y, raw[f"block{i + 1}"])
    return y


# --------------------------------------------------------------------------
if __name__ == "__main__":
    key = jax.random.PRNGKey(0)
    key_x, key_p = jax.random.split(key)

    params, raw = init_encoder_params(key_p)
    x = jax.random.normal(key_x, (2, 3, 64, 64), jnp.float32)   # NCHW, like PyTorch

    out = jax.block_until_ready(encoder_forward(x, params))

    assert out.shape == (2, STAGE_WIDTHS[-1], 2, 2), out.shape
    assert bool(jnp.all(jnp.isfinite(out)))

    # Correctness check against a pure-JAX reference (tolerance covers bf16 activation casts).
    ref = encoder_reference(x, raw)
    rel_err = float(jnp.max(jnp.abs(out - ref)) / (jnp.max(jnp.abs(ref)) + 1e-6))
    assert rel_err < 0.08, f"max relative error vs reference too large: {rel_err}"

    print("KERNEL_OK")
</pallas_src>

<mosaic_0001>
module attributes {stable_mosaic.version = 11 : i64} {
  func.func @_stem_kernel(%arg0: i32, %arg1: memref<1x12x1024xbf16, #tpu.memory_space<vmem>>, %arg2: memref<32x12xbf16, #tpu.memory_space<vmem>>, %arg3: memref<8x1xf32, #tpu.memory_space<vmem>>, %arg4: memref<8x1xf32, #tpu.memory_space<vmem>>, %arg5: memref<1x8x1024xbf16, #tpu.memory_space<vmem>>) attributes {dimension_semantics = [#tpu.dimension_semantics<parallel>], iteration_bounds = array<i64: 2>, scalar_prefetch = 0 : i64, scratch_operands = 0 : i64, tpu.core_type = #tpu.core_type<tc>, window_params = [{transform_indices = @transform_0, window_bounds = array<i64: 1, 12, 1024>}, {pipeline_mode = #tpu.pipeline_mode<synchronous>, transform_indices = @transform_1, window_bounds = array<i64: 32, 12>}, {pipeline_mode = #tpu.pipeline_mode<synchronous>, transform_indices = @transform_2, window_bounds = array<i64: 8, 1>}, {pipeline_mode = #tpu.pipeline_mode<synchronous>, transform_indices = @transform_3, window_bounds = array<i64: 8, 1>}, {transform_indices = @transform_4, window_bounds = array<i64: 1, 8, 1024>}]} {
    %c0 = arith.constant 0 : index
    %c0_0 = arith.constant 0 : index
    %c0_1 = arith.constant 0 : index
    %0 = vector.load %arg1[%c0, %c0_0, %c0_1] : memref<1x12x1024xbf16, #tpu.memory_space<vmem>>, vector<1x12x1024xbf16>
    %1 = vector.shape_cast %0 : vector<1x12x1024xbf16> to vector<12x1024xbf16>
    %c0_2 = arith.constant 0 : index
    %c0_3 = arith.constant 0 : index
    %2 = vector.load %arg2[%c0_2, %c0_3] : memref<32x12xbf16, #tpu.memory_space<vmem>>, vector<32x12xbf16>
    %cst = arith.constant dense<0.000000e+00> : vector<32x1024xf32>
    %3 = tpu.matmul %2, %1, %cst {dimension_numbers = #tpu.dot_dimension_numbers<[1], [0], [0], [1], [0, 0, 1, 1], [], []>} : vector<32x12xbf16>, vector<12x1024xbf16>, vector<32x1024xf32> -> vector<32x1024xf32>
    %4 = tpu.iota {dimensions = array<i32: 1>} : vector<1x1024xi32>
    %c32_i32 = arith.constant 32 : i32
    %c0_i32 = arith.constant 0 : i32
    %5 = arith.cmpi eq, %c32_i32, %c0_i32 : i32
    %c1_i32 = arith.constant 1 : i32
    %6 = arith.select %5, %c1_i32, %c32_i32 : i32
    %7 = vector.broadcast %6 : i32 to vector<1x1024xi32>
    %8 = arith.remsi %4, %7 : vector<1x1024xi32>
    %c0_i32_4 = arith.constant 0 : i32
    %9 = vector.broadcast %c0_i32_4 : i32 to vector<1x1024xi32>
    %10 = arith.cmpi ne, %8, %9 : vector<1x1024xi32>
    %c0_i32_5 = arith.constant 0 : i32
    %11 = vector.broadcast %c0_i32_5 : i32 to vector<1x1024xi32>
    %12 = arith.cmpi slt, %8, %11 : vector<1x1024xi32>
    %c0_i32_6 = arith.constant 0 : i32
    %13 = arith.cmpi slt, %6, %c0_i32_6 : i32
    %14 = vector.broadcast %13 : i1 to vector<1x1024xi1>
    %15 = vector.broadcast %14 : vector<1x1024xi1> to vector<1x1024xi1>
    %16 = arith.xori %12, %15 : vector<1x1024xi1>
    %17 = arith.andi %16, %10 : vector<1x1024xi1>
    %18 = vector.broadcast %6 : i32 to vector<1x1024xi32>
    %19 = arith.addi %8, %18 : vector<1x1024xi32>
    %20 = arith.select %17, %19, %8 : vector<1x1024xi1>, vector<1x1024xi32>
    %c0_i32_7 = arith.constant 0 : i32
    %21 = vector.broadcast %c0_i32_7 : i32 to vector<1x1024xi32>
    %22 = arith.cmpi ne, %20, %21 : vector<1x1024xi32>
    %23 = vector.extract_strided_slice %3 {offsets = [0, 0], sizes = [8, 1024], strides = [1, 1]} : vector<32x1024xf32> to vector<8x1024xf32>
    %24 = vector.extract_strided_slice %3 {offsets = [8, 0], sizes = [8, 1024], strides = [1, 1]} : vector<32x1024xf32> to vector<8x1024xf32>
    %cst_8 = arith.constant 0.000000e+00 : f32
    %25 = vector.broadcast %cst_8 : f32 to vector<8x1xf32>
    %26 = vector.extract_strided_slice %24 {offsets = [0, 0], sizes = [8, 1023], strides = [1, 1]} : vector<8x1024xf32> to vector<8x1023xf32>
    %27 = tpu.concatenate %25, %26 in 1 : vector<8x1xf32>, vector<8x1023xf32> -> vector<8x1024xf32>
    %cst_9 = arith.constant 0.000000e+00 : f32
    %28 = vector.shape_cast %22 : vector<1x1024xi1> to vector<1x1024xi1>
    %29 = vector.broadcast %28 : vector<1x1024xi1> to vector<8x1024xi1>
    %30 = vector.broadcast %cst_9 : f32 to vector<8x1024xf32>
    %31 = arith.select %29, %27, %30 : vector<8x1024xi1>, vector<8x1024xf32>
    %32 = arith.addf %23, %31 : vector<8x1024xf32>
    %33 = vector.extract_strided_slice %3 {offsets = [16, 0], sizes = [8, 1024], strides = [1, 1]} : vector<32x1024xf32> to vector<8x1024xf32>
    %cst_10 = arith.constant 0.000000e+00 : f32
    %34 = vector.broadcast %cst_10 : f32 to vector<8x32xf32>
    %35 = vector.extract_strided_slice %33 {offsets = [0, 0], sizes = [8, 992], strides = [1, 1]} : vector<8x1024xf32> to vector<8x992xf32>
    %36 = tpu.concatenate %34, %35 in 1 : vector<8x32xf32>, vector<8x992xf32> -> vector<8x1024xf32>
    %37 = arith.addf %32, %36 : vector<8x1024xf32>
    %38 = vector.extract_strided_slice %3 {offsets = [24, 0], sizes = [8, 1024], strides = [1, 1]} : vector<32x1024xf32> to vector<8x1024xf32>
    %cst_11 = arith.constant 0.000000e+00 : f32
    %39 = vector.broadcast %cst_11 : f32 to vector<8x33xf32>
    %40 = vector.extract_strided_slice %38 {offsets = [0, 0], sizes = [8, 991], strides = [1, 1]} : vector<8x1024xf32> to vector<8x991xf32>
    %41 = tpu.concatenate %39, %40 in 1 : vector<8x33xf32>, vector<8x991xf32> -> vector<8x1024xf32>
    %cst_12 = arith.constant 0.000000e+00 : f32
    %42 = vector.shape_cast %22 : vector<1x1024xi1> to vector<1x1024xi1>
    %43 = vector.broadcast %42 : vector<1x1024xi1> to vector<8x1024xi1>
    %44 = vector.broadcast %cst_12 : f32 to vector<8x1024xf32>
    %45 = arith.select %43, %41, %44 : vector<8x1024xi1>, vector<8x1024xf32>
    %46 = arith.addf %37, %45 : vector<8x1024xf32>
    %c0_13 = arith.constant 0 : index
    %c0_14 = arith.constant 0 : index
    %47 = vector.load %arg3[%c0_13, %c0_14] : memref<8x1xf32, #tpu.memory_space<vmem>>, vector<8x1xf32>
    %48 = vector.broadcast %47 : vector<8x1xf32> to vector<8x1024xf32>
    %49 = arith.mulf %46, %48 : vector<8x1024xf32>
    %c0_15 = arith.constant 0 : index
    %c0_16 = arith.constant 0 : index
    %50 = vector.load %arg4[%c0_15, %c0_16] : memref<8x1xf32, #tpu.memory_space<vmem>>, vector<8x1xf32>
    %51 = vector.broadcast %50 : vector<8x1xf32> to vector<8x1024xf32>
    %52 = arith.addf %49, %51 : vector<8x1024xf32>
    %cst_17 = arith.constant 0.000000e+00 : f32
    %53 = vector.broadcast %cst_17 : f32 to vector<8x1024xf32>
    %54 = arith.maximumf %52, %53 : vector<8x1024xf32>
    %55 = arith.truncf %54 : vector<8x1024xf32> to vector<8x1024xbf16>
    %c0_18 = arith.constant 0 : index
    %c0_19 = arith.constant 0 : index
    %c0_20 = arith.constant 0 : index
    %56 = vector.load %arg5[%c0_18, %c0_19, %c0_20] : memref<1x8x1024xbf16, #tpu.memory_space<vmem>>, vector<1x8x1024xbf16>
    %57 = vector.shape_cast %56 : vector<1x8x1024xbf16> to vector<8x1024xbf16>
    %58 = vector.shape_cast %55 : vector<8x1024xbf16> to vector<1x8x1024xbf16>
    tpu.vector_store %arg5[%c0_18, %c0_19, %c0_20], %58 {strides = array<i32>} : memref<1x8x1024xbf16, #tpu.memory_space<vmem>>, vector<1x8x1024xbf16>,
    return
  }
  func.func @transform_0(%arg0: i32) -> (i32, i32, i32) {
    %c0_i32 = arith.constant 0 : i32
    %c0_i32_0 = arith.constant 0 : i32
    %c0_i32_1 = arith.constant 0 : i32
    return %arg0, %c0_i32, %c0_i32_0 : i32, i32, i32
  }
  func.func @transform_1(%arg0: i32) -> (i32, i32) {
    %c0_i32 = arith.constant 0 : i32
    %c0_i32_0 = arith.constant 0 : i32
    %c0_i32_1 = arith.constant 0 : i32
    return %c0_i32, %c0_i32_0 : i32, i32
  }
  func.func @transform_2(%arg0: i32) -> (i32, i32) {
    %c0_i32 = arith.constant 0 : i32
    %c0_i32_0 = arith.constant 0 : i32
    %c0_i32_1 = arith.constant 0 : i32
    return %c0_i32, %c0_i32_0 : i32, i32
  }
  func.func @transform_3(%arg0: i32) -> (i32, i32) {
    %c0_i32 = arith.constant 0 : i32
    %c0_i32_0 = arith.constant 0 : i32
    %c0_i32_1 = arith.constant 0 : i32
    return %c0_i32, %c0_i32_0 : i32, i32
  }
  func.func @transform_4(%arg0: i32) -> (i32, i32, i32) {
    %c0_i32 = arith.constant 0 : i32
    %c0_i32_0 = arith.constant 0 : i32
    %c0_i32_1 = arith.constant 0 : i32
    return %arg0, %c0_i32, %c0_i32_0 : i32, i32, i32
  }
}

module attributes {stable_mosaic.version = 11 : i64} {
  func.func @_block_kernel(%arg0: i32, %arg1: memref<1x32x256xbf16, #tpu.memory_space<vmem>>, %arg2: memref<32x32xbf16, #tpu.memory_space<vmem>>, %arg3: memref<32x1xf32, #tpu.memory_space<vmem>>, %arg4: memref<32x1xf32, #tpu.memory_space<vmem>>, %arg5: memref<32x32xbf16, #tpu.memory_space<vmem>>, %arg6: memref<8x1xf32, #tpu.memory_space<vmem>>, %arg7: memref<8x1xf32, #tpu.memory_space<vmem>>, %arg8: memref<2x8xf32, #tpu.memory_space<vmem>>, %arg9: memref<2x1xf32, #tpu.memory_space<vmem>>, %arg10: memref<8x2xf32, #tpu.memory_space<vmem>>, %arg11: memref<8x1xf32, #tpu.memory_space<vmem>>, %arg12: memref<8x8xbf16, #tpu.memory_space<vmem>>, %arg13: memref<8x1xf32, #tpu.memory_space<vmem>>, %arg14: memref<8x1xf32, #tpu.memory_space<vmem>>, %arg15: memref<8x8xbf16, #tpu.memory_space<vmem>>, %arg16: memref<8x1xf32, #tpu.memory_space<vmem>>, %arg17: memref<8x1xf32, #tpu.memory_space<vmem>>, %arg18: memref<1x8x256xbf16, #tpu.memory_space<vmem>>) attributes {dimension_semantics = [#tpu.dimension_semantics<parallel>], iteration_bounds = array<i64: 2>, scalar_prefetch = 0 : i64, scratch_operands = 0 : i64, tpu.core_type = #tpu.core_type<tc>, window_params = [{transform_indices = @transform_0, window_bounds = array<i64: 1, 32, 256>}, {pipeline_mode = #tpu.pipeline_mode<synchronous>, transform_indices = @transform_1, window_bounds = array<i64: 32, 32>}, {pipeline_mode = #tpu.pipeline_mode<synchronous>, transform_indices = @transform_2, window_bounds = array<i64: 32, 1>}, {pipeline_mode = #tpu.pipeline_mode<synchronous>, transform_indices = @transform_3, window_bounds = array<i64: 32, 1>}, {pipeline_mode = #tpu.pipeline_mode<synchronous>, transform_indices = @transform_4, window_bounds = array<i64: 32, 32>}, {pipeline_mode = #tpu.pipeline_mode<synchronous>, transform_indices = @transform_5, window_bounds = array<i64: 8, 1>}, {pipeline_mode = #tpu.pipeline_mode<synchronous>, transform_indices = @transform_6, window_bounds = array<i64: 8, 1>}, {pipeline_mode = #tpu.pipeline_mode<synchronous>, transform_indices = @transform_7, window_bounds = array<i64: 2, 8>}, {pipeline_mode = #tpu.pipeline_mode<synchronous>, transform_indices = @transform_8, window_bounds = array<i64: 2, 1>}, {pipeline_mode = #tpu.pipeline_mode<synchronous>, transform_indices = @transform_9, window_bounds = array<i64: 8, 2>}, {pipeline_mode = #tpu.pipeline_mode<synchronous>, transform_indices = @transform_10, window_bounds = array<i64: 8, 1>}, {pipeline_mode = #tpu.pipeline_mode<synchronous>, transform_indices = @transform_11, window_bounds = array<i64: 8, 8>}, {pipeline_mode = #tpu.pipeline_mode<synchronous>, transform_indices = @transform_12, window_bounds = array<i64: 8, 1>}, {pipeline_mode = #tpu.pipeline_mode<synchronous>, transform_indices = @transform_13, window_bounds = array<i64: 8, 1>}, {pipeline_mode = #tpu.pipeline_mode<synchronous>, transform_indices = @transform_14, window_bounds = array<i64: 8, 8>}, {pipeline_mode = #tpu.pipeline_mode<synchronous>, transform_indices = @transform_15, window_bounds = array<i64: 8, 1>}, {pipeline_mode = #tpu.pipeline_mode<synchronous>, transform_indices = @transform_16, window_bounds = array<i64: 8, 1>}, {transform_indices = @transform_17, window_bounds = array<i64: 1, 8, 256>}]} {
    %c0 = arith.constant 0 : index
    %c0_0 = arith.constant 0 : index
    %c0_1 = arith.constant 0 : index
    %0 = vector.load %arg1[%c0, %c0_0, %c0_1] : memref<1x32x256xbf16, #tpu.memory_space<vmem>>, vector<1x32x256xbf16>
    %1 = vector.shape_cast %0 : vector<1x32x256xbf16> to vector<32x256xbf16>
    %c0_2 = arith.constant 0 : index
    %c0_3 = arith.constant 0 : index
    %2 = vector.load %arg2[%c0_2, %c0_3] : memref<32x32xbf16, #tpu.memory_space<vmem>>, vector<32x32xbf16>
    %cst = arith.constant dense<0.000000e+00> : vector<32x256xf32>
    %3 = tpu.matmul %2, %1, %cst {dimension_numbers = #tpu.dot_dimension_numbers<[1], [0], [0], [1], [0, 0, 1, 1], [], []>} : vector<32x32xbf16>, vector<32x256xbf16>, vector<32x256xf32> -> vector<32x256xf32>
    %c0_4 = arith.constant 0 : index
    %c0_5 = arith.constant 0 : index
    %4 = vector.load %arg3[%c0_4, %c0_5] : memref<32x1xf32, #tpu.memory_space<vmem>>, vector<32x1xf32>
    %5 = vector.broadcast %4 : vector<32x1xf32> to vector<32x256xf32>
    %6 = arith.mulf %3, %5 : vector<32x256xf32>
    %c0_6 = arith.constant 0 : index
    %c0_7 = arith.constant 0 : index
    %7 = vector.load %arg4[%c0_6, %c0_7] : memref<32x1xf32, #tpu.memory_space<vmem>>, vector<32x1xf32>
    %8 = vector.broadcast %7 : vector<32x1xf32> to vector<32x256xf32>
    %9 = arith.addf %6, %8 : vector<32x256xf32>
    %cst_8 = arith.constant 0.000000e+00 : f32
    %10 = vector.broadcast %cst_8 : f32 to vector<32x256xf32>
    %11 = arith.maximumf %9, %10 : vector<32x256xf32>
    %c0_9 = arith.constant 0 : index
    %c0_10 = arith.constant 0 : index
    %12 = vector.load %arg5[%c0_9, %c0_10] : memref<32x32xbf16, #tpu.memory_space<vmem>>, vector<32x32xbf16>
    %13 = arith.truncf %11 : vector<32x256xf32> to vector<32x256xbf16>
    %cst_11 = arith.constant dense<0.000000e+00> : vector<32x256xf32>
    %14 = tpu.matmul %12, %13, %cst_11 {dimension_numbers = #tpu.dot_dimension_numbers<[1], [0], [0], [1], [0, 0, 1, 1], [], []>} : vector<32x32xbf16>, vector<32x256xbf16>, vector<32x256xf32> -> vector<32x256xf32>
    %15 = tpu.iota {dimensions = array<i32: 1>} : vector<1x256xi32>
    %c16_i32 = arith.constant 16 : i32
    %c0_i32 = arith.constant 0 : i32
    %16 = arith.cmpi eq, %c16_i32, %c0_i32 : i32
    %c1_i32 = arith.constant 1 : i32
    %17 = arith.select %16, %c1_i32, %c16_i32 : i32
    %18 = vector.broadcast %17 : i32 to vector<1x256xi32>
    %19 = arith.remsi %15, %18 : vector<1x256xi32>
    %c0_i32_12 = arith.constant 0 : i32
    %20 = vector.broadcast %c0_i32_12 : i32 to vector<1x256xi32>
    %21 = arith.cmpi ne, %19, %20 : vector<1x256xi32>
    %c0_i32_13 = arith.constant 0 : i32
    %22 = vector.broadcast %c0_i32_13 : i32 to vector<1x256xi32>
    %23 = arith.cmpi slt, %19, %22 : vector<1x256xi32>
    %c0_i32_14 = arith.constant 0 : i32
    %24 = arith.cmpi slt, %17, %c0_i32_14 : i32
    %25 = vector.broadcast %24 : i1 to vector<1x256xi1>
    %26 = vector.broadcast %25 : vector<1x256xi1> to vector<1x256xi1>
    %27 = arith.xori %23, %26 : vector<1x256xi1>
    %28 = arith.andi %27, %21 : vector<1x256xi1>
    %29 = vector.broadcast %17 : i32 to vector<1x256xi32>
    %30 = arith.addi %19, %29 : vector<1x256xi32>
    %31 = arith.select %28, %30, %19 : vector<1x256xi1>, vector<1x256xi32>
    %c0_i32_15 = arith.constant 0 : i32
    %32 = vector.broadcast %c0_i32_15 : i32 to vector<1x256xi32>
    %33 = arith.cmpi ne, %31, %32 : vector<1x256xi32>
    %34 = vector.extract_strided_slice %14 {offsets = [0, 0], sizes = [8, 256], strides = [1, 1]} : vector<32x256xf32> to vector<8x256xf32>
    %35 = vector.extract_strided_slice %14 {offsets = [8, 0], sizes = [8, 256], strides = [1, 1]} : vector<32x256xf32> to vector<8x256xf32>
    %cst_16 = arith.constant 0.000000e+00 : f32
    %36 = vector.broadcast %cst_16 : f32 to vector<8x1xf32>
    %37 = vector.extract_strided_slice %35 {offsets = [0, 0], sizes = [8, 255], strides = [1, 1]} : vector<8x256xf32> to vector<8x255xf32>
    %38 = tpu.concatenate %36, %37 in 1 : vector<8x1xf32>, vector<8x255xf32> -> vector<8x256xf32>
    %cst_17 = arith.constant 0.000000e+00 : f32
    %39 = vector.shape_cast %33 : vector<1x256xi1> to vector<1x256xi1>
    %40 = vector.broadcast %39 : vector<1x256xi1> to vector<8x256xi1>
    %41 = vector.broadcast %cst_17 : f32 to vector<8x256xf32>
    %42 = arith.select %40, %38, %41 : vector<8x256xi1>, vector<8x256xf32>
    %43 = arith.addf %34, %42 : vector<8x256xf32>
    %44 = vector.extract_strided_slice %14 {offsets = [16, 0], sizes = [8, 256], strides = [1, 1]} : vector<32x256xf32> to vector<8x256xf32>
    %cst_18 = arith.constant 0.000000e+00 : f32
    %45 = vector.broadcast %cst_18 : f32 to vector<8x16xf32>
    %46 = vector.extract_strided_slice %44 {offsets = [0, 0], sizes = [8, 240], strides = [1, 1]} : vector<8x256xf32> to vector<8x240xf32>
    %47 = tpu.concatenate %45, %46 in 1 : vector<8x16xf32>, vector<8x240xf32> -> vector<8x256xf32>
    %48 = arith.addf %43, %47 : vector<8x256xf32>
    %49 = vector.extract_strided_slice %14 {offsets = [24, 0], sizes = [8, 256], strides = [1, 1]} : vector<32x256xf32> to vector<8x256xf32>
    %cst_19 = arith.constant 0.000000e+00 : f32
    %50 = vector.broadcast %cst_19 : f32 to vector<8x17xf32>
    %51 = vector.extract_strided_slice %49 {offsets = [0, 0], sizes = [8, 239], strides = [1, 1]} : vector<8x256xf32> to vector<8x239xf32>
    %52 = tpu.concatenate %50, %51 in 1 : vector<8x17xf32>, vector<8x239xf32> -> vector<8x256xf32>
    %cst_20 = arith.constant 0.000000e+00 : f32
    %53 = vector.shape_cast %33 : vector<1x256xi1> to vector<1x256xi1>
    %54 = vector.broadcast %53 : vector<1x256xi1> to vector<8x256xi1>
    %55 = vector.broadcast %cst_20 : f32 to vector<8x256xf32>
    %56 = arith.select %54, %52, %55 : vector<8x256xi1>, vector<8x256xf32>
    %57 = arith.addf %48, %56 : vector<8x256xf32>
    %c0_21 = arith.constant 0 : index
    %c0_22 = arith.constant 0 : index
    %58 = vector.load %arg6[%c0_21, %c0_22] : memref<8x1xf32, #tpu.memory_space<vmem>>, vector<8x1xf32>
    %59 = vector.broadcast %58 : vector<8x1xf32> to vector<8x256xf32>
    %60 = arith.mulf %57, %59 : vector<8x256xf32>
    %c0_23 = arith.constant 0 : index
    %c0_24 = arith.constant 0 : index
    %61 = vector.load %arg7[%c0_23, %c0_24] : memref<8x1xf32, #tpu.memory_space<vmem>>, vector<8x1xf32>
    %62 = vector.broadcast %61 : vector<8x1xf32> to vector<8x256xf32>
    %63 = arith.addf %60, %62 : vector<8x256xf32>
    %cst_25 = arith.constant 0.000000e+00 : f32
    %64 = vector.broadcast %cst_25 : f32 to vector<8x256xf32>
    %65 = arith.maximumf %63, %64 : vector<8x256xf32>
    %cst_26 = arith.constant dense<0.000000e+00> : vector<8xf32>
    %66 = vector.multi_reduction <add>, %65, %cst_26 [1] : vector<8x256xf32> to vector<8xf32>
    %67 = vector.shape_cast %66 : vector<8xf32> to vector<8x1xf32>
    %cst_27 = arith.constant 2.560000e+02 : f32
    %68 = vector.broadcast %cst_27 : f32 to vector<8x1xf32>
    %69 = arith.divf %67, %68 : vector<8x1xf32>
    %c0_28 = arith.constant 0 : index
    %c0_29 = arith.constant 0 : index
    %70 = vector.load %arg8[%c0_28, %c0_29] : memref<2x8xf32, #tpu.memory_space<vmem>>, vector<2x8xf32>
    %cst_30 = arith.constant dense<0.000000e+00> : vector<2x1xf32>
    %71 = tpu.matmul %70, %69, %cst_30 {dimension_numbers = #tpu.dot_dimension_numbers<[1], [0], [0], [1], [0, 0, 1, 1], [], []>} : vector<2x8xf32>, vector<8x1xf32>, vector<2x1xf32> -> vector<2x1xf32>
    %c0_31 = arith.constant 0 : index
    %c0_32 = arith.constant 0 : index
    %72 = vector.load %arg9[%c0_31, %c0_32] : memref<2x1xf32, #tpu.memory_space<vmem>>, vector<2x1xf32>
    %73 = arith.addf %71, %72 : vector<2x1xf32>
    %cst_33 = arith.constant 0.000000e+00 : f32
    %74 = vector.broadcast %cst_33 : f32 to vector<2x1xf32>
    %75 = arith.maximumf %73, %74 : vector<2x1xf32>
    %c0_34 = arith.constant 0 : index
    %c0_35 = arith.constant 0 : index
    %76 = vector.load %arg10[%c0_34, %c0_35] : memref<8x2xf32, #tpu.memory_space<vmem>>, vector<8x2xf32>
    %cst_36 = arith.constant dense<0.000000e+00> : vector<8x1xf32>
    %77 = tpu.matmul %76, %75, %cst_36 {dimension_numbers = #tpu.dot_dimension_numbers<[1], [0], [0], [1], [0, 0, 1, 1], [], []>} : vector<8x2xf32>, vector<2x1xf32>, vector<8x1xf32> -> vector<8x1xf32>
    %c0_37 = arith.constant 0 : index
    %c0_38 = arith.constant 0 : index
    %78 = vector.load %arg11[%c0_37, %c0_38] : memref<8x1xf32, #tpu.memory_space<vmem>>, vector<8x1xf32>
    %79 = arith.addf %77, %78 : vector<8x1xf32>
    %80 = arith.negf %79 : vector<8x1xf32>
    %81 = math.exp %80 : vector<8x1xf32>
    %cst_39 = arith.constant 1.000000e+00 : f32
    %82 = vector.broadcast %cst_39 : f32 to vector<8x1xf32>
    %83 = arith.addf %82, %81 : vector<8x1xf32>
    %84 = arith.divf %82, %83 : vector<8x1xf32>
    %85 = vector.broadcast %84 : vector<8x1xf32> to vector<8x256xf32>
    %86 = arith.mulf %65, %85 : vector<8x256xf32>
    %c0_40 = arith.constant 0 : index
    %c0_41 = arith.constant 0 : index
    %87 = vector.load %arg12[%c0_40, %c0_41] : memref<8x8xbf16, #tpu.memory_space<vmem>>, vector<8x8xbf16>
    %88 = arith.truncf %86 : vector<8x256xf32> to vector<8x256xbf16>
    %cst_42 = arith.constant dense<0.000000e+00> : vector<8x256xf32>
    %89 = tpu.matmul %87, %88, %cst_42 {dimension_numbers = #tpu.dot_dimension_numbers<[1], [0], [0], [1], [0, 0, 1, 1], [], []>} : vector<8x8xbf16>, vector<8x256xbf16>, vector<8x256xf32> -> vector<8x256xf32>
    %c0_43 = arith.constant 0 : index
    %c0_44 = arith.constant 0 : index
    %90 = vector.load %arg13[%c0_43, %c0_44] : memref<8x1xf32, #tpu.memory_space<vmem>>, vector<8x1xf32>
    %91 = vector.broadcast %90 : vector<8x1xf32> to vector<8x256xf32>
    %92 = arith.mulf %89, %91 : vector<8x256xf32>
    %c0_45 = arith.constant 0 : index
    %c0_46 = arith.constant 0 : index
    %93 = vector.load %arg14[%c0_45, %c0_46] : memref<8x1xf32, #tpu.memory_space<vmem>>, vector<8x1xf32>
    %94 = vector.broadcast %93 : vector<8x1xf32> to vector<8x256xf32>
    %95 = arith.addf %92, %94 : vector<8x256xf32>
    %c0_47 = arith.constant 0 : index
    %c0_48 = arith.constant 0 : index
    %96 = vector.load %arg15[%c0_47, %c0_48] : memref<8x8xbf16, #tpu.memory_space<vmem>>, vector<8x8xbf16>
    %97 = vector.extract_strided_slice %1 {offsets = [0, 0], sizes = [8, 256], strides = [1, 1]} : vector<32x256xbf16> to vector<8x256xbf16>
    %cst_49 = arith.constant dense<0.000000e+00> : vector<8x256xf32>
    %98 = tpu.matmul %96, %97, %cst_49 {dimension_numbers = #tpu.dot_dimension_numbers<[1], [0], [0], [1], [0, 0, 1, 1], [], []>} : vector<8x8xbf16>, vector<8x256xbf16>, vector<8x256xf32> -> vector<8x256xf32>
    %c0_50 = arith.constant 0 : index
    %c0_51 = arith.constant 0 : index
    %99 = vector.load %arg16[%c0_50, %c0_51] : memref<8x1xf32, #tpu.memory_space<vmem>>, vector<8x1xf32>
    %100 = vector.broadcast %99 : vector<8x1xf32> to vector<8x256xf32>
    %101 = arith.mulf %98, %100 : vector<8x256xf32>
    %c0_52 = arith.constant 0 : index
    %c0_53 = arith.constant 0 : index
    %102 = vector.load %arg17[%c0_52, %c0_53] : memref<8x1xf32, #tpu.memory_space<vmem>>, vector<8x1xf32>
    %103 = vector.broadcast %102 : vector<8x1xf32> to vector<8x256xf32>
    %104 = arith.addf %101, %103 : vector<8x256xf32>
    %105 = arith.addf %95, %104 : vector<8x256xf32>
    %cst_54 = arith.constant 0.000000e+00 : f32
    %106 = vector.broadcast %cst_54 : f32 to vector<8x256xf32>
    %107 = arith.maximumf %105, %106 : vector<8x256xf32>
    %108 = arith.truncf %107 : vector<8x256xf32> to vector<8x256xbf16>
    %c0_55 = arith.constant 0 : index
    %c0_56 = arith.constant 0 : index
    %c0_57 = arith.constant 0 : index
    %109 = vector.load %arg18[%c0_55, %c0_56, %c0_57] : memref<1x8x256xbf16, #tpu.memory_space<vmem>>, vector<1x8x256xbf16>
    %110 = vector.shape_cast %109 : vector<1x8x256xbf16> to vector<8x256xbf16>
    %111 = vector.shape_cast %108 : vector<8x256xbf16> to vector<1x8x256xbf16>
    tpu.vector_store %arg18[%c0_55, %c0_56, %c0_57], %111 {strides = array<i32>} : memref<1x8x256xbf16, #tpu.memory_space<vmem>>, vector<1x8x256xbf16>,
    return
  }
  func.func @transform_0(%arg0: i32) -> (i32, i32, i32) {
    %c0_i32 = arith.constant 0 : i32
    %c0_i32_0 = arith.constant 0 : i32
    %c0_i32_1 = arith.constant 0 : i32
    return %arg0, %c0_i32, %c0_i32_0 : i32, i32, i32
  }
  func.func @transform_1(%arg0: i32) -> (i32, i32) {
    %c0_i32 = arith.constant 0 : i32
    %c0_i32_0 = arith.constant 0 : i32
    %c0_i32_1 = arith.constant 0 : i32
    return %c0_i32, %c0_i32_0 : i32, i32
  }
  func.func @transform_2(%arg0: i32) -> (i32, i32) {
    %c0_i32 = arith.constant 0 : i32
    %c0_i32_0 = arith.constant 0 : i32
    %c0_i32_1 = arith.constant 0 : i32
    return %c0_i32, %c0_i32_0 : i32, i32
  }
  func.func @transform_3(%arg0: i32) -> (i32, i32) {
    %c0_i32 = arith.constant 0 : i32
    %c0_i32_0 = arith.constant 0 : i32
    %c0_i32_1 = arith.constant 0 : i32
    return %c0_i32, %c0_i32_0 : i32, i32
  }
  func.func @transform_4(%arg0: i32) -> (i32, i32) {
    %c0_i32 = arith.constant 0 : i32
    %c0_i32_0 = arith.constant 0 : i32
    %c0_i32_1 = arith.constant 0 : i32
    return %c0_i32, %c0_i32_0 : i32, i32
  }
  func.func @transform_5(%arg0: i32) -> (i32, i32) {
    %c0_i32 = arith.constant 0 : i32
    %c0_i32_0 = arith.constant 0 : i32
    %c0_i32_1 = arith.constant 0 : i32
    return %c0_i32, %c0_i32_0 : i32, i32
  }
  func.func @transform_6(%arg0: i32) -> (i32, i32) {
    %c0_i32 = arith.constant 0 : i32
    %c0_i32_0 = arith.constant 0 : i32
    %c0_i32_1 = arith.constant 0 : i32
    return %c0_i32, %c0_i32_0 : i32, i32
  }
  func.func @transform_7(%arg0: i32) -> (i32, i32) {
    %c0_i32 = arith.constant 0 : i32
    %c0_i32_0 = arith.constant 0 : i32
    %c0_i32_1 = arith.constant 0 : i32
    return %c0_i32, %c0_i32_0 : i32, i32
  }
  func.func @transform_8(%arg0: i32) -> (i32, i32) {
    %c0_i32 = arith.constant 0 : i32
    %c0_i32_0 = arith.constant 0 : i32
    %c0_i32_1 = arith.constant 0 : i32
    return %c0_i32, %c0_i32_0 : i32, i32
  }
  func.func @transform_9(%arg0: i32) -> (i32, i32) {
    %c0_i32 = arith.constant 0 : i32
    %c0_i32_0 = arith.constant 0 : i32
    %c0_i32_1 = arith.constant 0 : i32
    return %c0_i32, %c0_i32_0 : i32, i32
  }
  func.func @transform_10(%arg0: i32) -> (i32, i32) {
    %c0_i32 = arith.constant 0 : i32
    %c0_i32_0 = arith.constant 0 : i32
    %c0_i32_1 = arith.constant 0 : i32
    return %c0_i32, %c0_i32_0 : i32, i32
  }
  func.func @transform_11(%arg0: i32) -> (i32, i32) {
    %c0_i32 = arith.constant 0 : i32
    %c0_i32_0 = arith.constant 0 : i32
    %c0_i32_1 = arith.constant 0 : i32
    return %c0_i32, %c0_i32_0 : i32, i32
  }
  func.func @transform_12(%arg0: i32) -> (i32, i32) {
    %c0_i32 = arith.constant 0 : i32
    %c0_i32_0 = arith.constant 0 : i32
    %c0_i32_1 = arith.constant 0 : i32
    return %c0_i32, %c0_i32_0 : i32, i32
  }
  func.func @transform_13(%arg0: i32) -> (i32, i32) {
    %c0_i32 = arith.constant 0 : i32
    %c0_i32_0 = arith.constant 0 : i32
    %c0_i32_1 = arith.constant 0 : i32
    return %c0_i32, %c0_i32_0 : i32, i32
  }
  func.func @transform_14(%arg0: i32) -> (i32, i32) {
    %c0_i32 = arith.constant 0 : i32
    %c0_i32_0 = arith.constant 0 : i32
    %c0_i32_1 = arith.constant 0 : i32
    return %c0_i32, %c0_i32_0 : i32, i32
  }
  func.func @transform_15(%arg0: i32) -> (i32, i32) {
    %c0_i32 = arith.constant 0 : i32
    %c0_i32_0 = arith.constant 0 : i32
    %c0_i32_1 = arith.constant 0 : i32
    return %c0_i32, %c0_i32_0 : i32, i32
  }
  func.func @transform_16(%arg0: i32) -> (i32, i32) {
    %c0_i32 = arith.constant 0 : i32
    %c0_i32_0 = arith.constant 0 : i32
    %c0_i32_1 = arith.constant 0 : i32
    return %c0_i32, %c0_i32_0 : i32, i32
  }
  func.func @transform_17(%arg0: i32) -> (i32, i32, i32) {
    %c0_i32 = arith.constant 0 : i32
    %c0_i32_0 = arith.constant 0 : i32
    %c0_i32_1 = arith.constant 0 : i32
    return %arg0, %c0_i32, %c0_i32_0 : i32, i32, i32
  }
}

module attributes {stable_mosaic.version = 11 : i64} {
  func.func @_block_kernel(%arg0: i32, %arg1: memref<1x32x64xbf16, #tpu.memory_space<vmem>>, %arg2: memref<64x32xbf16, #tpu.memory_space<vmem>>, %arg3: memref<64x1xf32, #tpu.memory_space<vmem>>, %arg4: memref<64x1xf32, #tpu.memory_space<vmem>>, %arg5: memref<64x64xbf16, #tpu.memory_space<vmem>>, %arg6: memref<16x1xf32, #tpu.memory_space<vmem>>, %arg7: memref<16x1xf32, #tpu.memory_space<vmem>>, %arg8: memref<2x16xf32, #tpu.memory_space<vmem>>, %arg9: memref<2x1xf32, #tpu.memory_space<vmem>>, %arg10: memref<16x2xf32, #tpu.memory_space<vmem>>, %arg11: memref<16x1xf32, #tpu.memory_space<vmem>>, %arg12: memref<16x16xbf16, #tpu.memory_space<vmem>>, %arg13: memref<16x1xf32, #tpu.memory_space<vmem>>, %arg14: memref<16x1xf32, #tpu.memory_space<vmem>>, %arg15: memref<16x8xbf16, #tpu.memory_space<vmem>>, %arg16: memref<16x1xf32, #tpu.memory_space<vmem>>, %arg17: memref<16x1xf32, #tpu.memory_space<vmem>>, %arg18: memref<1x16x64xbf16, #tpu.memory_space<vmem>>) attributes {dimension_semantics = [#tpu.dimension_semantics<parallel>], iteration_bounds = array<i64: 2>, scalar_prefetch = 0 : i64, scratch_operands = 0 : i64, tpu.core_type = #tpu.core_type<tc>, window_params = [{transform_indices = @transform_0, window_bounds = array<i64: 1, 32, 64>}, {pipeline_mode = #tpu.pipeline_mode<synchronous>, transform_indices = @transform_1, window_bounds = array<i64: 64, 32>}, {pipeline_mode = #tpu.pipeline_mode<synchronous>, transform_indices = @transform_2, window_bounds = array<i64: 64, 1>}, {pipeline_mode = #tpu.pipeline_mode<synchronous>, transform_indices = @transform_3, window_bounds = array<i64: 64, 1>}, {pipeline_mode = #tpu.pipeline_mode<synchronous>, transform_indices = @transform_4, window_bounds = array<i64: 64, 64>}, {pipeline_mode = #tpu.pipeline_mode<synchronous>, transform_indices = @transform_5, window_bounds = array<i64: 16, 1>}, {pipeline_mode = #tpu.pipeline_mode<synchronous>, transform_indices = @transform_6, window_bounds = array<i64: 16, 1>}, {pipeline_mode = #tpu.pipeline_mode<synchronous>, transform_indices = @transform_7, window_bounds = array<i64: 2, 16>}, {pipeline_mode = #tpu.pipeline_mode<synchronous>, transform_indices = @transform_8, window_bounds = array<i64: 2, 1>}, {pipeline_mode = #tpu.pipeline_mode<synchronous>, transform_indices = @transform_9, window_bounds = array<i64: 16, 2>}, {pipeline_mode = #tpu.pipeline_mode<synchronous>, transform_indices = @transform_10, window_bounds = array<i64: 16, 1>}, {pipeline_mode = #tpu.pipeline_mode<synchronous>, transform_indices = @transform_11, window_bounds = array<i64: 16, 16>}, {pipeline_mode = #tpu.pipeline_mode<synchronous>, transform_indices = @transform_12, window_bounds = array<i64: 16, 1>}, {pipeline_mode = #tpu.pipeline_mode<synchronous>, transform_indices = @transform_13, window_bounds = array<i64: 16, 1>}, {pipeline_mode = #tpu.pipeline_mode<synchronous>, transform_indices = @transform_14, window_bounds = array<i64: 16, 8>}, {pipeline_mode = #tpu.pipeline_mode<synchronous>, transform_indices = @transform_15, window_bounds = array<i64: 16, 1>}, {pipeline_mode = #tpu.pipeline_mode<synchronous>, transform_indices = @transform_16, window_bounds = array<i64: 16, 1>}, {transform_indices = @transform_17, window_bounds = array<i64: 1, 16, 64>}]} {
    %c0 = arith.constant 0 : index
    %c0_0 = arith.constant 0 : index
    %c0_1 = arith.constant 0 : index
    %0 = vector.load %arg1[%c0, %c0_0, %c0_1] : memref<1x32x64xbf16, #tpu.memory_space<vmem>>, vector<1x32x64xbf16>
    %1 = vector.shape_cast %0 : vector<1x32x64xbf16> to vector<32x64xbf16>
    %c0_2 = arith.constant 0 : index
    %c0_3 = arith.constant 0 : index
    %2 = vector.load %arg2[%c0_2, %c0_3] : memref<64x32xbf16, #tpu.memory_space<vmem>>, vector<64x32xbf16>
    %cst = arith.constant dense<0.000000e+00> : vector<64x64xf32>
    %3 = tpu.matmul %2, %1, %cst {dimension_numbers = #tpu.dot_dimension_numbers<[1], [0], [0], [1], [0, 0, 1, 1], [], []>} : vector<64x32xbf16>, vector<32x64xbf16>, vector<64x64xf32> -> vector<64x64xf32>
    %c0_4 = arith.constant 0 : index
    %c0_5 = arith.constant 0 : index
    %4 = vector.load %arg3[%c0_4, %c0_5] : memref<64x1xf32, #tpu.memory_space<vmem>>, vector<64x1xf32>
    %5 = vector.broadcast %4 : vector<64x1xf32> to vector<64x64xf32>
    %6 = arith.mulf %3, %5 : vector<64x64xf32>
    %c0_6 = arith.constant 0 : index
    %c0_7 = arith.constant 0 : index
    %7 = vector.load %arg4[%c0_6, %c0_7] : memref<64x1xf32, #tpu.memory_space<vmem>>, vector<64x1xf32>
    %8 = vector.broadcast %7 : vector<64x1xf32> to vector<64x64xf32>
    %9 = arith.addf %6, %8 : vector<64x64xf32>
    %cst_8 = arith.constant 0.000000e+00 : f32
    %10 = vector.broadcast %cst_8 : f32 to vector<64x64xf32>
    %11 = arith.maximumf %9, %10 : vector<64x64xf32>
    %c0_9 = arith.constant 0 : index
    %c0_10 = arith.constant 0 : index
    %12 = vector.load %arg5[%c0_9, %c0_10] : memref<64x64xbf16, #tpu.memory_space<vmem>>, vector<64x64xbf16>
    %13 = arith.truncf %11 : vector<64x64xf32> to vector<64x64xbf16>
    %cst_11 = arith.constant dense<0.000000e+00> : vector<64x64xf32>
    %14 = tpu.matmul %12, %13, %cst_11 {dimension_numbers = #tpu.dot_dimension_numbers<[1], [0], [0], [1], [0, 0, 1, 1], [], []>} : vector<64x64xbf16>, vector<64x64xbf16>, vector<64x64xf32> -> vector<64x64xf32>
    %15 = tpu.iota {dimensions = array<i32: 1>} : vector<1x64xi32>
    %c8_i32 = arith.constant 8 : i32
    %c0_i32 = arith.constant 0 : i32
    %16 = arith.cmpi eq, %c8_i32, %c0_i32 : i32
    %c1_i32 = arith.constant 1 : i32
    %17 = arith.select %16, %c1_i32, %c8_i32 : i32
    %18 = vector.broadcast %17 : i32 to vector<1x64xi32>
    %19 = arith.remsi %15, %18 : vector<1x64xi32>
    %c0_i32_12 = arith.constant 0 : i32
    %20 = vector.broadcast %c0_i32_12 : i32 to vector<1x64xi32>
    %21 = arith.cmpi ne, %19, %20 : vector<1x64xi32>
    %c0_i32_13 = arith.constant 0 : i32
    %22 = vector.broadcast %c0_i32_13 : i32 to vector<1x64xi32>
    %23 = arith.cmpi slt, %19, %22 : vector<1x64xi32>
    %c0_i32_14 = arith.constant 0 : i32
    %24 = arith.cmpi slt, %17, %c0_i32_14 : i32
    %25 = vector.broadcast %24 : i1 to vector<1x64xi1>
    %26 = vector.broadcast %25 : vector<1x64xi1> to vector<1x64xi1>
    %27 = arith.xori %23, %26 : vector<1x64xi1>
    %28 = arith.andi %27, %21 : vector<1x64xi1>
    %29 = vector.broadcast %17 : i32 to vector<1x64xi32>
    %30 = arith.addi %19, %29 : vector<1x64xi32>
    %31 = arith.select %28, %30, %19 : vector<1x64xi1>, vector<1x64xi32>
    %c0_i32_15 = arith.constant 0 : i32
    %32 = vector.broadcast %c0_i32_15 : i32 to vector<1x64xi32>
    %33 = arith.cmpi ne, %31, %32 : vector<1x64xi32>
    %34 = vector.extract_strided_slice %14 {offsets = [0, 0], sizes = [16, 64], strides = [1, 1]} : vector<64x64xf32> to vector<16x64xf32>
    %35 = vector.extract_strided_slice %14 {offsets = [16, 0], sizes = [16, 64], strides = [1, 1]} : vector<64x64xf32> to vector<16x64xf32>
    %cst_16 = arith.constant 0.000000e+00 : f32
    %36 = vector.broadcast %cst_16 : f32 to vector<16x1xf32>
    %37 = vector.extract_strided_slice %35 {offsets = [0, 0], sizes = [16, 63], strides = [1, 1]} : vector<16x64xf32> to vector<16x63xf32>
    %38 = tpu.concatenate %36, %37 in 1 : vector<16x1xf32>, vector<16x63xf32> -> vector<16x64xf32>
    %cst_17 = arith.constant 0.000000e+00 : f32
    %39 = vector.shape_cast %33 : vector<1x64xi1> to vector<1x64xi1>
    %40 = vector.broadcast %39 : vector<1x64xi1> to vector<16x64xi1>
    %41 = vector.broadcast %cst_17 : f32 to vector<16x64xf32>
    %42 = arith.select %40, %38, %41 : vector<16x64xi1>, vector<16x64xf32>
    %43 = arith.addf %34, %42 : vector<16x64xf32>
    %44 = vector.extract_strided_slice %14 {offsets = [32, 0], sizes = [16, 64], strides = [1, 1]} : vector<64x64xf32> to vector<16x64xf32>
    %cst_18 = arith.constant 0.000000e+00 : f32
    %45 = vector.broadcast %cst_18 : f32 to vector<16x8xf32>
    %46 = vector.extract_strided_slice %44 {offsets = [0, 0], sizes = [16, 56], strides = [1, 1]} : vector<16x64xf32> to vector<16x56xf32>
    %47 = tpu.concatenate %45, %46 in 1 : vector<16x8xf32>, vector<16x56xf32> -> vector<16x64xf32>
    %48 = arith.addf %43, %47 : vector<16x64xf32>
    %49 = vector.extract_strided_slice %14 {offsets = [48, 0], sizes = [16, 64], strides = [1, 1]} : vector<64x64xf32> to vector<16x64xf32>
    %cst_19 = arith.constant 0.000000e+00 : f32
    %50 = vector.broadcast %cst_19 : f32 to vector<16x9xf32>
    %51 = vector.extract_strided_slice %49 {offsets = [0, 0], sizes = [16, 55], strides = [1, 1]} : vector<16x64xf32> to vector<16x55xf32>
    %52 = tpu.concatenate %50, %51 in 1 : vector<16x9xf32>, vector<16x55xf32> -> vector<16x64xf32>
    %cst_20 = arith.constant 0.000000e+00 : f32
    %53 = vector.shape_cast %33 : vector<1x64xi1> to vector<1x64xi1>
    %54 = vector.broadcast %53 : vector<1x64xi1> to vector<16x64xi1>
    %55 = vector.broadcast %cst_20 : f32 to vector<16x64xf32>
    %56 = arith.select %54, %52, %55 : vector<16x64xi1>, vector<16x64xf32>
    %57 = arith.addf %48, %56 : vector<16x64xf32>
    %c0_21 = arith.constant 0 : index
    %c0_22 = arith.constant 0 : index
    %58 = vector.load %arg6[%c0_21, %c0_22] : memref<16x1xf32, #tpu.memory_space<vmem>>, vector<16x1xf32>
    %59 = vector.broadcast %58 : vector<16x1xf32> to vector<16x64xf32>
    %60 = arith.mulf %57, %59 : vector<16x64xf32>
    %c0_23 = arith.constant 0 : index
    %c0_24 = arith.constant 0 : index
    %61 = vector.load %arg7[%c0_23, %c0_24] : memref<16x1xf32, #tpu.memory_space<vmem>>, vector<16x1xf32>
    %62 = vector.broadcast %61 : vector<16x1xf32> to vector<16x64xf32>
    %63 = arith.addf %60, %62 : vector<16x64xf32>
    %cst_25 = arith.constant 0.000000e+00 : f32
    %64 = vector.broadcast %cst_25 : f32 to vector<16x64xf32>
    %65 = arith.maximumf %63, %64 : vector<16x64xf32>
    %cst_26 = arith.constant dense<0.000000e+00> : vector<16xf32>
    %66 = vector.multi_reduction <add>, %65, %cst_26 [1] : vector<16x64xf32> to vector<16xf32>
    %67 = vector.shape_cast %66 : vector<16xf32> to vector<16x1xf32>
    %cst_27 = arith.constant 6.400000e+01 : f32
    %68 = vector.broadcast %cst_27 : f32 to vector<16x1xf32>
    %69 = arith.divf %67, %68 : vector<16x1xf32>
    %c0_28 = arith.constant 0 : index
    %c0_29 = arith.constant 0 : index
    %70 = vector.load %arg8[%c0_28, %c0_29] : memref<2x16xf32, #tpu.memory_space<vmem>>, vector<2x16xf32>
    %cst_30 = arith.constant dense<0.000000e+00> : vector<2x1xf32>
    %71 = tpu.matmul %70, %69, %cst_30 {dimension_numbers = #tpu.dot_dimension_numbers<[1], [0], [0], [1], [0, 0, 1, 1], [], []>} : vector<2x16xf32>, vector<16x1xf32>, vector<2x1xf32> -> vector<2x1xf32>
    %c0_31 = arith.constant 0 : index
    %c0_32 = arith.constant 0 : index
    %72 = vector.load %arg9[%c0_31, %c0_32] : memref<2x1xf32, #tpu.memory_space<vmem>>, vector<2x1xf32>
    %73 = arith.addf %71, %72 : vector<2x1xf32>
    %cst_33 = arith.constant 0.000000e+00 : f32
    %74 = vector.broadcast %cst_33 : f32 to vector<2x1xf32>
    %75 = arith.maximumf %73, %74 : vector<2x1xf32>
    %c0_34 = arith.constant 0 : index
    %c0_35 = arith.constant 0 : index
    %76 = vector.load %arg10[%c0_34, %c0_35] : memref<16x2xf32, #tpu.memory_space<vmem>>, vector<16x2xf32>
    %cst_36 = arith.constant dense<0.000000e+00> : vector<16x1xf32>
    %77 = tpu.matmul %76, %75, %cst_36 {dimension_numbers = #tpu.dot_dimension_numbers<[1], [0], [0], [1], [0, 0, 1, 1], [], []>} : vector<16x2xf32>, vector<2x1xf32>, vector<16x1xf32> -> vector<16x1xf32>
    %c0_37 = arith.constant 0 : index
    %c0_38 = arith.constant 0 : index
    %78 = vector.load %arg11[%c0_37, %c0_38] : memref<16x1xf32, #tpu.memory_space<vmem>>, vector<16x1xf32>
    %79 = arith.addf %77, %78 : vector<16x1xf32>
    %80 = arith.negf %79 : vector<16x1xf32>
    %81 = math.exp %80 : vector<16x1xf32>
    %cst_39 = arith.constant 1.000000e+00 : f32
    %82 = vector.broadcast %cst_39 : f32 to vector<16x1xf32>
    %83 = arith.addf %82, %81 : vector<16x1xf32>
    %84 = arith.divf %82, %83 : vector<16x1xf32>
    %85 = vector.broadcast %84 : vector<16x1xf32> to vector<16x64xf32>
    %86 = arith.mulf %65, %85 : vector<16x64xf32>
    %c0_40 = arith.constant 0 : index
    %c0_41 = arith.constant 0 : index
    %87 = vector.load %arg12[%c0_40, %c0_41] : memref<16x16xbf16, #tpu.memory_space<vmem>>, vector<16x16xbf16>
    %88 = arith.truncf %86 : vector<16x64xf32> to vector<16x64xbf16>
    %cst_42 = arith.constant dense<0.000000e+00> : vector<16x64xf32>
    %89 = tpu.matmul %87, %88, %cst_42 {dimension_numbers = #tpu.dot_dimension_numbers<[1], [0], [0], [1], [0, 0, 1, 1], [], []>} : vector<16x16xbf16>, vector<16x64xbf16>, vector<16x64xf32> -> vector<16x64xf32>
    %c0_43 = arith.constant 0 : index
    %c0_44 = arith.constant 0 : index
    %90 = vector.load %arg13[%c0_43, %c0_44] : memref<16x1xf32, #tpu.memory_space<vmem>>, vector<16x1xf32>
    %91 = vector.broadcast %90 : vector<16x1xf32> to vector<16x64xf32>
    %92 = arith.mulf %89, %91 : vector<16x64xf32>
    %c0_45 = arith.constant 0 : index
    %c0_46 = arith.constant 0 : index
    %93 = vector.load %arg14[%c0_45, %c0_46] : memref<16x1xf32, #tpu.memory_space<vmem>>, vector<16x1xf32>
    %94 = vector.broadcast %93 : vector<16x1xf32> to vector<16x64xf32>
    %95 = arith.addf %92, %94 : vector<16x64xf32>
    %c0_47 = arith.constant 0 : index
    %c0_48 = arith.constant 0 : index
    %96 = vector.load %arg15[%c0_47, %c0_48] : memref<16x8xbf16, #tpu.memory_space<vmem>>, vector<16x8xbf16>
    %97 = vector.extract_strided_slice %1 {offsets = [0, 0], sizes = [8, 64], strides = [1, 1]} : vector<32x64xbf16> to vector<8x64xbf16>
    %cst_49 = arith.constant dense<0.000000e+00> : vector<16x64xf32>
    %98 = tpu.matmul %96, %97, %cst_49 {dimension_numbers = #tpu.dot_dimension_numbers<[1], [0], [0], [1], [0, 0, 1, 1], [], []>} : vector<16x8xbf16>, vector<8x64xbf16>, vector<16x64xf32> -> vector<16x64xf32>
    %c0_50 = arith.constant 0 : index
    %c0_51 = arith.constant 0 : index
    %99 = vector.load %arg16[%c0_50, %c0_51] : memref<16x1xf32, #tpu.memory_space<vmem>>, vector<16x1xf32>
    %100 = vector.broadcast %99 : vector<16x1xf32> to vector<16x64xf32>
    %101 = arith.mulf %98, %100 : vector<16x64xf32>
    %c0_52 = arith.constant 0 : index
    %c0_53 = arith.constant 0 : index
    %102 = vector.load %arg17[%c0_52, %c0_53] : memref<16x1xf32, #tpu.memory_space<vmem>>, vector<16x1xf32>
    %103 = vector.broadcast %102 : vector<16x1xf32> to vector<16x64xf32>
    %104 = arith.addf %101, %103 : vector<16x64xf32>
    %105 = arith.addf %95, %104 : vector<16x64xf32>
    %cst_54 = arith.constant 0.000000e+00 : f32
    %106 = vector.broadcast %cst_54 : f32 to vector<16x64xf32>
    %107 = arith.maximumf %105, %106 : vector<16x64xf32>
    %108 = arith.truncf %107 : vector<16x64xf32> to vector<16x64xbf16>
    %c0_55 = arith.constant 0 : index
    %c0_56 = arith.constant 0 : index
    %c0_57 = arith.constant 0 : index
    %109 = vector.load %arg18[%c0_55, %c0_56, %c0_57] : memref<1x16x64xbf16, #tpu.memory_space<vmem>>, vector<1x16x64xbf16>
    %110 = vector.shape_cast %109 : vector<1x16x64xbf16> to vector<16x64xbf16>
    %111 = vector.shape_cast %108 : vector<16x64xbf16> to vector<1x16x64xbf16>
    tpu.vector_store %arg18[%c0_55, %c0_56, %c0_57], %111 {strides = array<i32>} : memref<1x16x64xbf16, #tpu.memory_space<vmem>>, vector<1x16x64xbf16>,
    return
  }
  func.func @transform_0(%arg0: i32) -> (i32, i32, i32) {
    %c0_i32 = arith.constant 0 : i32
    %c0_i32_0 = arith.constant 0 : i32
    %c0_i32_1 = arith.constant 0 : i32
    return %arg0, %c0_i32, %c0_i32_0 : i32, i32, i32
  }
  func.func @transform_1(%arg0: i32) -> (i32, i32) {
    %c0_i32 = arith.constant 0 : i32
    %c0_i32_0 = arith.constant 0 : i32
    %c0_i32_1 = arith.constant 0 : i32
    return %c0_i32, %c0_i32_0 : i32, i32
  }
  func.func @transform_2(%arg0: i32) -> (i32, i32) {
    %c0_i32 = arith.constant 0 : i32
    %c0_i32_0 = arith.constant 0 : i32
    %c0_i32_1 = arith.constant 0 : i32
    return %c0_i32, %c0_i32_0 : i32, i32
  }
  func.func @transform_3(%arg0: i32) -> (i32, i32) {
    %c0_i32 = arith.constant 0 : i32
    %c0_i32_0 = arith.constant 0 : i32
    %c0_i32_1 = arith.constant 0 : i32
    return %c0_i32, %c0_i32_0 : i32, i32
  }
  func.func @transform_4(%arg0: i32) -> (i32, i32) {
    %c0_i32 = arith.constant 0 : i32
    %c0_i32_0 = arith.constant 0 : i32
    %c0_i32_1 = arith.constant 0 : i32
    return %c0_i32, %c0_i32_0 : i32, i32
  }
  func.func @transform_5(%arg0: i32) -> (i32, i32) {
    %c0_i32 = arith.constant 0 : i32
    %c0_i32_0 = arith.constant 0 : i32
    %c0_i32_1 = arith.constant 0 : i32
    return %c0_i32, %c0_i32_0 : i32, i32
  }
  func.func @transform_6(%arg0: i32) -> (i32, i32) {
    %c0_i32 = arith.constant 0 : i32
    %c0_i32_0 = arith.constant 0 : i32
    %c0_i32_1 = arith.constant 0 : i32
    return %c0_i32, %c0_i32_0 : i32, i32
  }
  func.func @transform_7(%arg0: i32) -> (i32, i32) {
    %c0_i32 = arith.constant 0 : i32
    %c0_i32_0 = arith.constant 0 : i32
    %c0_i32_1 = arith.constant 0 : i32
    return %c0_i32, %c0_i32_0 : i32, i32
  }
  func.func @transform_8(%arg0: i32) -> (i32, i32) {
    %c0_i32 = arith.constant 0 : i32
    %c0_i32_0 = arith.constant 0 : i32
    %c0_i32_1 = arith.constant 0 : i32
    return %c0_i32, %c0_i32_0 : i32, i32
  }
  func.func @transform_9(%arg0: i32) -> (i32, i32) {
    %c0_i32 = arith.constant 0 : i32
    %c0_i32_0 = arith.constant 0 : i32
    %c0_i32_1 = arith.constant 0 : i32
    return %c0_i32, %c0_i32_0 : i32, i32
  }
  func.func @transform_10(%arg0: i32) -> (i32, i32) {
    %c0_i32 = arith.constant 0 : i32
    %c0_i32_0 = arith.constant 0 : i32
    %c0_i32_1 = arith.constant 0 : i32
    return %c0_i32, %c0_i32_0 : i32, i32
  }
  func.func @transform_11(%arg0: i32) -> (i32, i32) {
    %c0_i32 = arith.constant 0 : i32
    %c0_i32_0 = arith.constant 0 : i32
    %c0_i32_1 = arith.constant 0 : i32
    return %c0_i32, %c0_i32_0 : i32, i32
  }
  func.func @transform_12(%arg0: i32) -> (i32, i32) {
    %c0_i32 = arith.constant 0 : i32
    %c0_i32_0 = arith.constant 0 : i32
    %c0_i32_1 = arith.constant 0 : i32
    return %c0_i32, %c0_i32_0 : i32, i32
  }
  func.func @transform_13(%arg0: i32) -> (i32, i32) {
    %c0_i32 = arith.constant 0 : i32
    %c0_i32_0 = arith.constant 0 : i32
    %c0_i32_1 = arith.constant 0 : i32
    return %c0_i32, %c0_i32_0 : i32, i32
  }
  func.func @transform_14(%arg0: i32) -> (i32, i32) {
    %c0_i32 = arith.constant 0 : i32
    %c0_i32_0 = arith.constant 0 : i32
    %c0_i32_1 = arith.constant 0 : i32
    return %c0_i32, %c0_i32_0 : i32, i32
  }
  func.func @transform_15(%arg0: i32) -> (i32, i32) {
    %c0_i32 = arith.constant 0 : i32
    %c0_i32_0 = arith.constant 0 : i32
    %c0_i32_1 = arith.constant 0 : i32
    return %c0_i32, %c0_i32_0 : i32, i32
  }
  func.func @transform_16(%arg0: i32) -> (i32, i32) {
    %c0_i32 = arith.constant 0 : i32
    %c0_i32_0 = arith.constant 0 : i32
    %c0_i32_1 = arith.constant 0 : i32
    return %c0_i32, %c0_i32_0 : i32, i32
  }
  func.func @transform_17(%arg0: i32) -> (i32, i32, i32) {
    %c0_i32 = arith.constant 0 : i32
    %c0_i32_0 = arith.constant 0 : i32
    %c0_i32_1 = arith.constant 0 : i32
    return %arg0, %c0_i32, %c0_i32_0 : i32, i32, i32
  }
}

module attributes {stable_mosaic.version = 11 : i64} {
  func.func @_block_kernel(%arg0: i32, %arg1: memref<1x64x16xbf16, #tpu.memory_space<vmem>>, %arg2: memref<64x64xbf16, #tpu.memory_space<vmem>>, %arg3: memref<64x1xf32, #tpu.memory_space<vmem>>, %arg4: memref<64x1xf32, #tpu.memory_space<vmem>>, %arg5: memref<64x64xbf16, #tpu.memory_space<vmem>>, %arg6: memref<16x1xf32, #tpu.memory_space<vmem>>, %arg7: memref<16x1xf32, #tpu.memory_space<vmem>>, %arg8: memref<4x16xf32, #tpu.memory_space<vmem>>, %arg9: memref<4x1xf32, #tpu.memory_space<vmem>>, %arg10: memref<16x4xf32, #tpu.memory_space<vmem>>, %arg11: memref<16x1xf32, #tpu.memory_space<vmem>>, %arg12: memref<16x16xbf16, #tpu.memory_space<vmem>>, %arg13: memref<16x1xf32, #tpu.memory_space<vmem>>, %arg14: memref<16x1xf32, #tpu.memory_space<vmem>>, %arg15: memref<16x16xbf16, #tpu.memory_space<vmem>>, %arg16: memref<16x1xf32, #tpu.memory_space<vmem>>, %arg17: memref<16x1xf32, #tpu.memory_space<vmem>>, %arg18: memref<1x16x16xbf16, #tpu.memory_space<vmem>>) attributes {dimension_semantics = [#tpu.dimension_semantics<parallel>], iteration_bounds = array<i64: 2>, scalar_prefetch = 0 : i64, scratch_operands = 0 : i64, tpu.core_type = #tpu.core_type<tc>, window_params = [{transform_indices = @transform_0, window_bounds = array<i64: 1, 64, 16>}, {pipeline_mode = #tpu.pipeline_mode<synchronous>, transform_indices = @transform_1, window_bounds = array<i64: 64, 64>}, {pipeline_mode = #tpu.pipeline_mode<synchronous>, transform_indices = @transform_2, window_bounds = array<i64: 64, 1>}, {pipeline_mode = #tpu.pipeline_mode<synchronous>, transform_indices = @transform_3, window_bounds = array<i64: 64, 1>}, {pipeline_mode = #tpu.pipeline_mode<synchronous>, transform_indices = @transform_4, window_bounds = array<i64: 64, 64>}, {pipeline_mode = #tpu.pipeline_mode<synchronous>, transform_indices = @transform_5, window_bounds = array<i64: 16, 1>}, {pipeline_mode = #tpu.pipeline_mode<synchronous>, transform_indices = @transform_6, window_bounds = array<i64: 16, 1>}, {pipeline_mode = #tpu.pipeline_mode<synchronous>, transform_indices = @transform_7, window_bounds = array<i64: 4, 16>}, {pipeline_mode = #tpu.pipeline_mode<synchronous>, transform_indices = @transform_8, window_bounds = array<i64: 4, 1>}, {pipeline_mode = #tpu.pipeline_mode<synchronous>, transform_indices = @transform_9, window_bounds = array<i64: 16, 4>}, {pipeline_mode = #tpu.pipeline_mode<synchronous>, transform_indices = @transform_10, window_bounds = array<i64: 16, 1>}, {pipeline_mode = #tpu.pipeline_mode<synchronous>, transform_indices = @transform_11, window_bounds = array<i64: 16, 16>}, {pipeline_mode = #tpu.pipeline_mode<synchronous>, transform_indices = @transform_12, window_bounds = array<i64: 16, 1>}, {pipeline_mode = #tpu.pipeline_mode<synchronous>, transform_indices = @transform_13, window_bounds = array<i64: 16, 1>}, {pipeline_mode = #tpu.pipeline_mode<synchronous>, transform_indices = @transform_14, window_bounds = array<i64: 16, 16>}, {pipeline_mode = #tpu.pipeline_mode<synchronous>, transform_indices = @transform_15, window_bounds = array<i64: 16, 1>}, {pipeline_mode = #tpu.pipeline_mode<synchronous>, transform_indices = @transform_16, window_bounds = array<i64: 16, 1>}, {transform_indices = @transform_17, window_bounds = array<i64: 1, 16, 16>}]} {
    %c0 = arith.constant 0 : index
    %c0_0 = arith.constant 0 : index
    %c0_1 = arith.constant 0 : index
    %0 = vector.load %arg1[%c0, %c0_0, %c0_1] : memref<1x64x16xbf16, #tpu.memory_space<vmem>>, vector<1x64x16xbf16>
    %1 = vector.shape_cast %0 : vector<1x64x16xbf16> to vector<64x16xbf16>
    %c0_2 = arith.constant 0 : index
    %c0_3 = arith.constant 0 : index
    %2 = vector.load %arg2[%c0_2, %c0_3] : memref<64x64xbf16, #tpu.memory_space<vmem>>, vector<64x64xbf16>
    %cst = arith.constant dense<0.000000e+00> : vector<64x16xf32>
    %3 = tpu.matmul %2, %1, %cst {dimension_numbers = #tpu.dot_dimension_numbers<[1], [0], [0], [1], [0, 0, 1, 1], [], []>} : vector<64x64xbf16>, vector<64x16xbf16>, vector<64x16xf32> -> vector<64x16xf32>
    %c0_4 = arith.constant 0 : index
    %c0_5 = arith.constant 0 : index
    %4 = vector.load %arg3[%c0_4, %c0_5] : memref<64x1xf32, #tpu.memory_space<vmem>>, vector<64x1xf32>
    %5 = vector.broadcast %4 : vector<64x1xf32> to vector<64x16xf32>
    %6 = arith.mulf %3, %5 : vector<64x16xf32>
    %c0_6 = arith.constant 0 : index
    %c0_7 = arith.constant 0 : index
    %7 = vector.load %arg4[%c0_6, %c0_7] : memref<64x1xf32, #tpu.memory_space<vmem>>, vector<64x1xf32>
    %8 = vector.broadcast %7 : vector<64x1xf32> to vector<64x16xf32>
    %9 = arith.addf %6, %8 : vector<64x16xf32>
    %cst_8 = arith.constant 0.000000e+00 : f32
    %10 = vector.broadcast %cst_8 : f32 to vector<64x16xf32>
    %11 = arith.maximumf %9, %10 : vector<64x16xf32>
    %c0_9 = arith.constant 0 : index
    %c0_10 = arith.constant 0 : index
    %12 = vector.load %arg5[%c0_9, %c0_10] : memref<64x64xbf16, #tpu.memory_space<vmem>>, vector<64x64xbf16>
    %13 = arith.truncf %11 : vector<64x16xf32> to vector<64x16xbf16>
    %cst_11 = arith.constant dense<0.000000e+00> : vector<64x16xf32>
    %14 = tpu.matmul %12, %13, %cst_11 {dimension_numbers = #tpu.dot_dimension_numbers<[1], [0], [0], [1], [0, 0, 1, 1], [], []>} : vector<64x64xbf16>, vector<64x16xbf16>, vector<64x16xf32> -> vector<64x16xf32>
    %15 = tpu.iota {dimensions = array<i32: 1>} : vector<1x16xi32>
    %c4_i32 = arith.constant 4 : i32
    %c0_i32 = arith.constant 0 : i32
    %16 = arith.cmpi eq, %c4_i32, %c0_i32 : i32
    %c1_i32 = arith.constant 1 : i32
    %17 = arith.select %16, %c1_i32, %c4_i32 : i32
    %18 = vector.broadcast %17 : i32 to vector<1x16xi32>
    %19 = arith.remsi %15, %18 : vector<1x16xi32>
    %c0_i32_12 = arith.constant 0 : i32
    %20 = vector.broadcast %c0_i32_12 : i32 to vector<1x16xi32>
    %21 = arith.cmpi ne, %19, %20 : vector<1x16xi32>
    %c0_i32_13 = arith.constant 0 : i32
    %22 = vector.broadcast %c0_i32_13 : i32 to vector<1x16xi32>
    %23 = arith.cmpi slt, %19, %22 : vector<1x16xi32>
    %c0_i32_14 = arith.constant 0 : i32
    %24 = arith.cmpi slt, %17, %c0_i32_14 : i32
    %25 = vector.broadcast %24 : i1 to vector<1x16xi1>
    %26 = vector.broadcast %25 : vector<1x16xi1> to vector<1x16xi1>
    %27 = arith.xori %23, %26 : vector<1x16xi1>
    %28 = arith.andi %27, %21 : vector<1x16xi1>
    %29 = vector.broadcast %17 : i32 to vector<1x16xi32>
    %30 = arith.addi %19, %29 : vector<1x16xi32>
    %31 = arith.select %28, %30, %19 : vector<1x16xi1>, vector<1x16xi32>
    %c0_i32_15 = arith.constant 0 : i32
    %32 = vector.broadcast %c0_i32_15 : i32 to vector<1x16xi32>
    %33 = arith.cmpi ne, %31, %32 : vector<1x16xi32>
    %34 = vector.extract_strided_slice %14 {offsets = [0, 0], sizes = [16, 16], strides = [1, 1]} : vector<64x16xf32> to vector<16x16xf32>
    %35 = vector.extract_strided_slice %14 {offsets = [16, 0], sizes = [16, 16], strides = [1, 1]} : vector<64x16xf32> to vector<16x16xf32>
    %cst_16 = arith.constant 0.000000e+00 : f32
    %36 = vector.broadcast %cst_16 : f32 to vector<16x1xf32>
    %37 = vector.extract_strided_slice %35 {offsets = [0, 0], sizes = [16, 15], strides = [1, 1]} : vector<16x16xf32> to vector<16x15xf32>
    %38 = tpu.concatenate %36, %37 in 1 : vector<16x1xf32>, vector<16x15xf32> -> vector<16x16xf32>
    %cst_17 = arith.constant 0.000000e+00 : f32
    %39 = vector.shape_cast %33 : vector<1x16xi1> to vector<1x16xi1>
    %40 = vector.broadcast %39 : vector<1x16xi1> to vector<16x16xi1>
    %41 = vector.broadcast %cst_17 : f32 to vector<16x16xf32>
    %42 = arith.select %40, %38, %41 : vector<16x16xi1>, vector<16x16xf32>
    %43 = arith.addf %34, %42 : vector<16x16xf32>
    %44 = vector.extract_strided_slice %14 {offsets = [32, 0], sizes = [16, 16], strides = [1, 1]} : vector<64x16xf32> to vector<16x16xf32>
    %cst_18 = arith.constant 0.000000e+00 : f32
    %45 = vector.broadcast %cst_18 : f32 to vector<16x4xf32>
    %46 = vector.extract_strided_slice %44 {offsets = [0, 0], sizes = [16, 12], strides = [1, 1]} : vector<16x16xf32> to vector<16x12xf32>
    %47 = tpu.concatenate %45, %46 in 1 : vector<16x4xf32>, vector<16x12xf32> -> vector<16x16xf32>
    %48 = arith.addf %43, %47 : vector<16x16xf32>
    %49 = vector.extract_strided_slice %14 {offsets = [48, 0], sizes = [16, 16], strides = [1, 1]} : vector<64x16xf32> to vector<16x16xf32>
    %cst_19 = arith.constant 0.000000e+00 : f32
    %50 = vector.broadcast %cst_19 : f32 to vector<16x5xf32>
    %51 = vector.extract_strided_slice %49 {offsets = [0, 0], sizes = [16, 11], strides = [1, 1]} : vector<16x16xf32> to vector<16x11xf32>
    %52 = tpu.concatenate %50, %51 in 1 : vector<16x5xf32>, vector<16x11xf32> -> vector<16x16xf32>
    %cst_20 = arith.constant 0.000000e+00 : f32
    %53 = vector.shape_cast %33 : vector<1x16xi1> to vector<1x16xi1>
    %54 = vector.broadcast %53 : vector<1x16xi1> to vector<16x16xi1>
    %55 = vector.broadcast %cst_20 : f32 to vector<16x16xf32>
    %56 = arith.select %54, %52, %55 : vector<16x16xi1>, vector<16x16xf32>
    %57 = arith.addf %48, %56 : vector<16x16xf32>
    %c0_21 = arith.constant 0 : index
    %c0_22 = arith.constant 0 : index
    %58 = vector.load %arg6[%c0_21, %c0_22] : memref<16x1xf32, #tpu.memory_space<vmem>>, vector<16x1xf32>
    %59 = vector.broadcast %58 : vector<16x1xf32> to vector<16x16xf32>
    %60 = arith.mulf %57, %59 : vector<16x16xf32>
    %c0_23 = arith.constant 0 : index
    %c0_24 = arith.constant 0 : index
    %61 = vector.load %arg7[%c0_23, %c0_24] : memref<16x1xf32, #tpu.memory_space<vmem>>, vector<16x1xf32>
    %62 = vector.broadcast %61 : vector<16x1xf32> to vector<16x16xf32>
    %63 = arith.addf %60, %62 : vector<16x16xf32>
    %cst_25 = arith.constant 0.000000e+00 : f32
    %64 = vector.broadcast %cst_25 : f32 to vector<16x16xf32>
    %65 = arith.maximumf %63, %64 : vector<16x16xf32>
    %cst_26 = arith.constant dense<0.000000e+00> : vector<16xf32>
    %66 = vector.multi_reduction <add>, %65, %cst_26 [1] : vector<16x16xf32> to vector<16xf32>
    %67 = vector.shape_cast %66 : vector<16xf32> to vector<16x1xf32>
    %cst_27 = arith.constant 1.600000e+01 : f32
    %68 = vector.broadcast %cst_27 : f32 to vector<16x1xf32>
    %69 = arith.divf %67, %68 : vector<16x1xf32>
    %c0_28 = arith.constant 0 : index
    %c0_29 = arith.constant 0 : index
    %70 = vector.load %arg8[%c0_28, %c0_29] : memref<4x16xf32, #tpu.memory_space<vmem>>, vector<4x16xf32>
    %cst_30 = arith.constant dense<0.000000e+00> : vector<4x1xf32>
    %71 = tpu.matmul %70, %69, %cst_30 {dimension_numbers = #tpu.dot_dimension_numbers<[1], [0], [0], [1], [0, 0, 1, 1], [], []>} : vector<4x16xf32>, vector<16x1xf32>, vector<4x1xf32> -> vector<4x1xf32>
    %c0_31 = arith.constant 0 : index
    %c0_32 = arith.constant 0 : index
    %72 = vector.load %arg9[%c0_31, %c0_32] : memref<4x1xf32, #tpu.memory_space<vmem>>, vector<4x1xf32>
    %73 = arith.addf %71, %72 : vector<4x1xf32>
    %cst_33 = arith.constant 0.000000e+00 : f32
    %74 = vector.broadcast %cst_33 : f32 to vector<4x1xf32>
    %75 = arith.maximumf %73, %74 : vector<4x1xf32>
    %c0_34 = arith.constant 0 : index
    %c0_35 = arith.constant 0 : index
    %76 = vector.load %arg10[%c0_34, %c0_35] : memref<16x4xf32, #tpu.memory_space<vmem>>, vector<16x4xf32>
    %cst_36 = arith.constant dense<0.000000e+00> : vector<16x1xf32>
    %77 = tpu.matmul %76, %75, %cst_36 {dimension_numbers = #tpu.dot_dimension_numbers<[1], [0], [0], [1], [0, 0, 1, 1], [], []>} : vector<16x4xf32>, vector<4x1xf32>, vector<16x1xf32> -> vector<16x1xf32>
    %c0_37 = arith.constant 0 : index
    %c0_38 = arith.constant 0 : index
    %78 = vector.load %arg11[%c0_37, %c0_38] : memref<16x1xf32, #tpu.memory_space<vmem>>, vector<16x1xf32>
    %79 = arith.addf %77, %78 : vector<16x1xf32>
    %80 = arith.negf %79 : vector<16x1xf32>
    %81 = math.exp %80 : vector<16x1xf32>
    %cst_39 = arith.constant 1.000000e+00 : f32
    %82 = vector.broadcast %cst_39 : f32 to vector<16x1xf32>
    %83 = arith.addf %82, %81 : vector<16x1xf32>
    %84 = arith.divf %82, %83 : vector<16x1xf32>
    %85 = vector.broadcast %84 : vector<16x1xf32> to vector<16x16xf32>
    %86 = arith.mulf %65, %85 : vector<16x16xf32>
    %c0_40 = arith.constant 0 : index
    %c0_41 = arith.constant 0 : index
    %87 = vector.load %arg12[%c0_40, %c0_41] : memref<16x16xbf16, #tpu.memory_space<vmem>>, vector<16x16xbf16>
    %88 = arith.truncf %86 : vector<16x16xf32> to vector<16x16xbf16>
    %cst_42 = arith.constant dense<0.000000e+00> : vector<16x16xf32>
    %89 = tpu.matmul %87, %88, %cst_42 {dimension_numbers = #tpu.dot_dimension_numbers<[1], [0], [0], [1], [0, 0, 1, 1], [], []>} : vector<16x16xbf16>, vector<16x16xbf16>, vector<16x16xf32> -> vector<16x16xf32>
    %c0_43 = arith.constant 0 : index
    %c0_44 = arith.constant 0 : index
    %90 = vector.load %arg13[%c0_43, %c0_44] : memref<16x1xf32, #tpu.memory_space<vmem>>, vector<16x1xf32>
    %91 = vector.broadcast %90 : vector<16x1xf32> to vector<16x16xf32>
    %92 = arith.mulf %89, %91 : vector<16x16xf32>
    %c0_45 = arith.constant 0 : index
    %c0_46 = arith.constant 0 : index
    %93 = vector.load %arg14[%c0_45, %c0_46] : memref<16x1xf32, #tpu.memory_space<vmem>>, vector<16x1xf32>
    %94 = vector.broadcast %93 : vector<16x1xf32> to vector<16x16xf32>
    %95 = arith.addf %92, %94 : vector<16x16xf32>
    %c0_47 = arith.constant 0 : index
    %c0_48 = arith.constant 0 : index
    %96 = vector.load %arg15[%c0_47, %c0_48] : memref<16x16xbf16, #tpu.memory_space<vmem>>, vector<16x16xbf16>
    %97 = vector.extract_strided_slice %1 {offsets = [0, 0], sizes = [16, 16], strides = [1, 1]} : vector<64x16xbf16> to vector<16x16xbf16>
    %cst_49 = arith.constant dense<0.000000e+00> : vector<16x16xf32>
    %98 = tpu.matmul %96, %97, %cst_49 {dimension_numbers = #tpu.dot_dimension_numbers<[1], [0], [0], [1], [0, 0, 1, 1], [], []>} : vector<16x16xbf16>, vector<16x16xbf16>, vector<16x16xf32> -> vector<16x16xf32>
    %c0_50 = arith.constant 0 : index
    %c0_51 = arith.constant 0 : index
    %99 = vector.load %arg16[%c0_50, %c0_51] : memref<16x1xf32, #tpu.memory_space<vmem>>, vector<16x1xf32>
    %100 = vector.broadcast %99 : vector<16x1xf32> to vector<16x16xf32>
    %101 = arith.mulf %98, %100 : vector<16x16xf32>
    %c0_52 = arith.constant 0 : index
    %c0_53 = arith.constant 0 : index
    %102 = vector.load %arg17[%c0_52, %c0_53] : memref<16x1xf32, #tpu.memory_space<vmem>>, vector<16x1xf32>
    %103 = vector.broadcast %102 : vector<16x1xf32> to vector<16x16xf32>
    %104 = arith.addf %101, %103 : vector<16x16xf32>
    %105 = arith.addf %95, %104 : vector<16x16xf32>
    %cst_54 = arith.constant 0.000000e+00 : f32
    %106 = vector.broadcast %cst_54 : f32 to vector<16x16xf32>
    %107 = arith.maximumf %105, %106 : vector<16x16xf32>
    %108 = arith.truncf %107 : vector<16x16xf32> to vector<16x16xbf16>
    %c0_55 = arith.constant 0 : index
    %c0_56 = arith.constant 0 : index
    %c0_57 = arith.constant 0 : index
    %109 = vector.load %arg18[%c0_55, %c0_56, %c0_57] : memref<1x16x16xbf16, #tpu.memory_space<vmem>>, vector<1x16x16xbf16>
    %110 = vector.shape_cast %109 : vector<1x16x16xbf16> to vector<16x16xbf16>
    %111 = vector.shape_cast %108 : vector<16x16xbf16> to vector<1x16x16xbf16>
    tpu.vector_store %arg18[%c0_55, %c0_56, %c0_57], %111 {strides = array<i32>} : memref<1x16x16xbf16, #tpu.memory_space<vmem>>, vector<1x16x16xbf16>,
    return
  }
  func.func @transform_0(%arg0: i32) -> (i32, i32, i32) {
    %c0_i32 = arith.constant 0 : i32
    %c0_i32_0 = arith.constant 0 : i32
    %c0_i32_1 = arith.constant 0 : i32
    return %arg0, %c0_i32, %c0_i32_0 : i32, i32, i32
  }
  func.func @transform_1(%arg0: i32) -> (i32, i32) {
    %c0_i32 = arith.constant 0 : i32
    %c0_i32_0 = arith.constant 0 : i32
    %c0_i32_1 = arith.constant 0 : i32
    return %c0_i32, %c0_i32_0 : i32, i32
  }
  func.func @transform_2(%arg0: i32) -> (i32, i32) {
    %c0_i32 = arith.constant 0 : i32
    %c0_i32_0 = arith.constant 0 : i32
    %c0_i32_1 = arith.constant 0 : i32
    return %c0_i32, %c0_i32_0 : i32, i32
  }
  func.func @transform_3(%arg0: i32) -> (i32, i32) {
    %c0_i32 = arith.constant 0 : i32
    %c0_i32_0 = arith.constant 0 : i32
    %c0_i32_1 = arith.constant 0 : i32
    return %c0_i32, %c0_i32_0 : i32, i32
  }
  func.func @transform_4(%arg0: i32) -> (i32, i32) {
    %c0_i32 = arith.constant 0 : i32
    %c0_i32_0 = arith.constant 0 : i32
    %c0_i32_1 = arith.constant 0 : i32
    return %c0_i32, %c0_i32_0 : i32, i32
  }
  func.func @transform_5(%arg0: i32) -> (i32, i32) {
    %c0_i32 = arith.constant 0 : i32
    %c0_i32_0 = arith.constant 0 : i32
    %c0_i32_1 = arith.constant 0 : i32
    return %c0_i32, %c0_i32_0 : i32, i32
  }
  func.func @transform_6(%arg0: i32) -> (i32, i32) {
    %c0_i32 = arith.constant 0 : i32
    %c0_i32_0 = arith.constant 0 : i32
    %c0_i32_1 = arith.constant 0 : i32
    return %c0_i32, %c0_i32_0 : i32, i32
  }
  func.func @transform_7(%arg0: i32) -> (i32, i32) {
    %c0_i32 = arith.constant 0 : i32
    %c0_i32_0 = arith.constant 0 : i32
    %c0_i32_1 = arith.constant 0 : i32
    return %c0_i32, %c0_i32_0 : i32, i32
  }
  func.func @transform_8(%arg0: i32) -> (i32, i32) {
    %c0_i32 = arith.constant 0 : i32
    %c0_i32_0 = arith.constant 0 : i32
    %c0_i32_1 = arith.constant 0 : i32
    return %c0_i32, %c0_i32_0 : i32, i32
  }
  func.func @transform_9(%arg0: i32) -> (i32, i32) {
    %c0_i32 = arith.constant 0 : i32
    %c0_i32_0 = arith.constant 0 : i32
    %c0_i32_1 = arith.constant 0 : i32
    return %c0_i32, %c0_i32_0 : i32, i32
  }
  func.func @transform_10(%arg0: i32) -> (i32, i32) {
    %c0_i32 = arith.constant 0 : i32
    %c0_i32_0 = arith.constant 0 : i32
    %c0_i32_1 = arith.constant 0 : i32
    return %c0_i32, %c0_i32_0 : i32, i32
  }
  func.func @transform_11(%arg0: i32) -> (i32, i32) {
    %c0_i32 = arith.constant 0 : i32
    %c0_i32_0 = arith.constant 0 : i32
    %c0_i32_1 = arith.constant 0 : i32
    return %c0_i32, %c0_i32_0 : i32, i32
  }
  func.func @transform_12(%arg0: i32) -> (i32, i32) {
    %c0_i32 = arith.constant 0 : i32
    %c0_i32_0 = arith.constant 0 : i32
    %c0_i32_1 = arith.constant 0 : i32
    return %c0_i32, %c0_i32_0 : i32, i32
  }
  func.func @transform_13(%arg0: i32) -> (i32, i32) {
    %c0_i32 = arith.constant 0 : i32
    %c0_i32_0 = arith.constant 0 : i32
    %c0_i32_1 = arith.constant 0 : i32
    return %c0_i32, %c0_i32_0 : i32, i32
  }
  func.func @transform_14(%arg0: i32) -> (i32, i32) {
    %c0_i32 = arith.constant 0 : i32
    %c0_i32_0 = arith.constant 0 : i32
    %c0_i32_1 = arith.constant 0 : i32
    return %c0_i32, %c0_i32_0 : i32, i32
  }
  func.func @transform_15(%arg0: i32) -> (i32, i32) {
    %c0_i32 = arith.constant 0 : i32
    %c0_i32_0 = arith.constant 0 : i32
    %c0_i32_1 = arith.constant 0 : i32
    return %c0_i32, %c0_i32_0 : i32, i32
  }
  func.func @transform_16(%arg0: i32) -> (i32, i32) {
    %c0_i32 = arith.constant 0 : i32
    %c0_i32_0 = arith.constant 0 : i32
    %c0_i32_1 = arith.constant 0 : i32
    return %c0_i32, %c0_i32_0 : i32, i32
  }
  func.func @transform_17(%arg0: i32) -> (i32, i32, i32) {
    %c0_i32 = arith.constant 0 : i32
    %c0_i32_0 = arith.constant 0 : i32
    %c0_i32_1 = arith.constant 0 : i32
    return %arg0, %c0_i32, %c0_i32_0 : i32, i32, i32
  }
}

module attributes {stable_mosaic.version = 11 : i64} {
  func.func @_block_kernel(%arg0: i32, %arg1: memref<1x64x4xbf16, #tpu.memory_space<vmem>>, %arg2: memref<128x64xbf16, #tpu.memory_space<vmem>>, %arg3: memref<128x1xf32, #tpu.memory_space<vmem>>, %arg4: memref<128x1xf32, #tpu.memory_space<vmem>>, %arg5: memref<128x128xbf16, #tpu.memory_space<vmem>>, %arg6: memref<32x1xf32, #tpu.memory_space<vmem>>, %arg7: memref<32x1xf32, #tpu.memory_space<vmem>>, %arg8: memref<4x32xf32, #tpu.memory_space<vmem>>, %arg9: memref<4x1xf32, #tpu.memory_space<vmem>>, %arg10: memref<32x4xf32, #tpu.memory_space<vmem>>, %arg11: memref<32x1xf32, #tpu.memory_space<vmem>>, %arg12: memref<32x32xbf16, #tpu.memory_space<vmem>>, %arg13: memref<32x1xf32, #tpu.memory_space<vmem>>, %arg14: memref<32x1xf32, #tpu.memory_space<vmem>>, %arg15: memref<32x16xbf16, #tpu.memory_space<vmem>>, %arg16: memref<32x1xf32, #tpu.memory_space<vmem>>, %arg17: memref<32x1xf32, #tpu.memory_space<vmem>>, %arg18: memref<1x32x4xf32, #tpu.memory_space<vmem>>) attributes {dimension_semantics = [#tpu.dimension_semantics<parallel>], iteration_bounds = array<i64: 2>, scalar_prefetch = 0 : i64, scratch_operands = 0 : i64, tpu.core_type = #tpu.core_type<tc>, window_params = [{transform_indices = @transform_0, window_bounds = array<i64: 1, 64, 4>}, {pipeline_mode = #tpu.pipeline_mode<synchronous>, transform_indices = @transform_1, window_bounds = array<i64: 128, 64>}, {pipeline_mode = #tpu.pipeline_mode<synchronous>, transform_indices = @transform_2, window_bounds = array<i64: 128, 1>}, {pipeline_mode = #tpu.pipeline_mode<synchronous>, transform_indices = @transform_3, window_bounds = array<i64: 128, 1>}, {pipeline_mode = #tpu.pipeline_mode<synchronous>, transform_indices = @transform_4, window_bounds = array<i64: 128, 128>}, {pipeline_mode = #tpu.pipeline_mode<synchronous>, transform_indices = @transform_5, window_bounds = array<i64: 32, 1>}, {pipeline_mode = #tpu.pipeline_mode<synchronous>, transform_indices = @transform_6, window_bounds = array<i64: 32, 1>}, {pipeline_mode = #tpu.pipeline_mode<synchronous>, transform_indices = @transform_7, window_bounds = array<i64: 4, 32>}, {pipeline_mode = #tpu.pipeline_mode<synchronous>, transform_indices = @transform_8, window_bounds = array<i64: 4, 1>}, {pipeline_mode = #tpu.pipeline_mode<synchronous>, transform_indices = @transform_9, window_bounds = array<i64: 32, 4>}, {pipeline_mode = #tpu.pipeline_mode<synchronous>, transform_indices = @transform_10, window_bounds = array<i64: 32, 1>}, {pipeline_mode = #tpu.pipeline_mode<synchronous>, transform_indices = @transform_11, window_bounds = array<i64: 32, 32>}, {pipeline_mode = #tpu.pipeline_mode<synchronous>, transform_indices = @transform_12, window_bounds = array<i64: 32, 1>}, {pipeline_mode = #tpu.pipeline_mode<synchronous>, transform_indices = @transform_13, window_bounds = array<i64: 32, 1>}, {pipeline_mode = #tpu.pipeline_mode<synchronous>, transform_indices = @transform_14, window_bounds = array<i64: 32, 16>}, {pipeline_mode = #tpu.pipeline_mode<synchronous>, transform_indices = @transform_15, window_bounds = array<i64: 32, 1>}, {pipeline_mode = #tpu.pipeline_mode<synchronous>, transform_indices = @transform_16, window_bounds = array<i64: 32, 1>}, {transform_indices = @transform_17, window_bounds = array<i64: 1, 32, 4>}]} {
    %c0 = arith.constant 0 : index
    %c0_0 = arith.constant 0 : index
    %c0_1 = arith.constant 0 : index
    %0 = vector.load %arg1[%c0, %c0_0, %c0_1] : memref<1x64x4xbf16, #tpu.memory_space<vmem>>, vector<1x64x4xbf16>
    %1 = vector.shape_cast %0 : vector<1x64x4xbf16> to vector<64x4xbf16>
    %c0_2 = arith.constant 0 : index
    %c0_3 = arith.constant 0 : index
    %2 = vector.load %arg2[%c0_2, %c0_3] : memref<128x64xbf16, #tpu.memory_space<vmem>>, vector<128x64xbf16>
    %cst = arith.constant dense<0.000000e+00> : vector<128x4xf32>
    %3 = tpu.matmul %2, %1, %cst {dimension_numbers = #tpu.dot_dimension_numbers<[1], [0], [0], [1], [0, 0, 1, 1], [], []>} : vector<128x64xbf16>, vector<64x4xbf16>, vector<128x4xf32> -> vector<128x4xf32>
    %c0_4 = arith.constant 0 : index
    %c0_5 = arith.constant 0 : index
    %4 = vector.load %arg3[%c0_4, %c0_5] : memref<128x1xf32, #tpu.memory_space<vmem>>, vector<128x1xf32>
    %5 = vector.broadcast %4 : vector<128x1xf32> to vector<128x4xf32>
    %6 = arith.mulf %3, %5 : vector<128x4xf32>
    %c0_6 = arith.constant 0 : index
    %c0_7 = arith.constant 0 : index
    %7 = vector.load %arg4[%c0_6, %c0_7] : memref<128x1xf32, #tpu.memory_space<vmem>>, vector<128x1xf32>
    %8 = vector.broadcast %7 : vector<128x1xf32> to vector<128x4xf32>
    %9 = arith.addf %6, %8 : vector<128x4xf32>
    %cst_8 = arith.constant 0.000000e+00 : f32
    %10 = vector.broadcast %cst_8 : f32 to vector<128x4xf32>
    %11 = arith.maximumf %9, %10 : vector<128x4xf32>
    %c0_9 = arith.constant 0 : index
    %c0_10 = arith.constant 0 : index
    %12 = vector.load %arg5[%c0_9, %c0_10] : memref<128x128xbf16, #tpu.memory_space<vmem>>, vector<128x128xbf16>
    %13 = arith.truncf %11 : vector<128x4xf32> to vector<128x4xbf16>
    %cst_11 = arith.constant dense<0.000000e+00> : vector<128x4xf32>
    %14 = tpu.matmul %12, %13, %cst_11 {dimension_numbers = #tpu.dot_dimension_numbers<[1], [0], [0], [1], [0, 0, 1, 1], [], []>} : vector<128x128xbf16>, vector<128x4xbf16>, vector<128x4xf32> -> vector<128x4xf32>
    %15 = tpu.iota {dimensions = array<i32: 1>} : vector<1x4xi32>
    %c2_i32 = arith.constant 2 : i32
    %c0_i32 = arith.constant 0 : i32
    %16 = arith.cmpi eq, %c2_i32, %c0_i32 : i32
    %c1_i32 = arith.constant 1 : i32
    %17 = arith.select %16, %c1_i32, %c2_i32 : i32
    %18 = vector.broadcast %17 : i32 to vector<1x4xi32>
    %19 = arith.remsi %15, %18 : vector<1x4xi32>
    %c0_i32_12 = arith.constant 0 : i32
    %20 = vector.broadcast %c0_i32_12 : i32 to vector<1x4xi32>
    %21 = arith.cmpi ne, %19, %20 : vector<1x4xi32>
    %c0_i32_13 = arith.constant 0 : i32
    %22 = vector.broadcast %c0_i32_13 : i32 to vector<1x4xi32>
    %23 = arith.cmpi slt, %19, %22 : vector<1x4xi32>
    %c0_i32_14 = arith.constant 0 : i32
    %24 = arith.cmpi slt, %17, %c0_i32_14 : i32
    %25 = vector.broadcast %24 : i1 to vector<1x4xi1>
    %26 = vector.broadcast %25 : vector<1x4xi1> to vector<1x4xi1>
    %27 = arith.xori %23, %26 : vector<1x4xi1>
    %28 = arith.andi %27, %21 : vector<1x4xi1>
    %29 = vector.broadcast %17 : i32 to vector<1x4xi32>
    %30 = arith.addi %19, %29 : vector<1x4xi32>
    %31 = arith.select %28, %30, %19 : vector<1x4xi1>, vector<1x4xi32>
    %c0_i32_15 = arith.constant 0 : i32
    %32 = vector.broadcast %c0_i32_15 : i32 to vector<1x4xi32>
    %33 = arith.cmpi ne, %31, %32 : vector<1x4xi32>
    %34 = vector.extract_strided_slice %14 {offsets = [0, 0], sizes = [32, 4], strides = [1, 1]} : vector<128x4xf32> to vector<32x4xf32>
    %35 = vector.extract_strided_slice %14 {offsets = [32, 0], sizes = [32, 4], strides = [1, 1]} : vector<128x4xf32> to vector<32x4xf32>
    %cst_16 = arith.constant 0.000000e+00 : f32
    %36 = vector.broadcast %cst_16 : f32 to vector<32x1xf32>
    %37 = vector.extract_strided_slice %35 {offsets = [0, 0], sizes = [32, 3], strides = [1, 1]} : vector<32x4xf32> to vector<32x3xf32>
    %38 = tpu.concatenate %36, %37 in 1 : vector<32x1xf32>, vector<32x3xf32> -> vector<32x4xf32>
    %cst_17 = arith.constant 0.000000e+00 : f32
    %39 = vector.shape_cast %33 : vector<1x4xi1> to vector<1x4xi1>
    %40 = vector.broadcast %39 : vector<1x4xi1> to vector<32x4xi1>
    %41 = vector.broadcast %cst_17 : f32 to vector<32x4xf32>
    %42 = arith.select %40, %38, %41 : vector<32x4xi1>, vector<32x4xf32>
    %43 = arith.addf %34, %42 : vector<32x4xf32>
    %44 = vector.extract_strided_slice %14 {offsets = [64, 0], sizes = [32, 4], strides = [1, 1]} : vector<128x4xf32> to vector<32x4xf32>
    %cst_18 = arith.constant 0.000000e+00 : f32
    %45 = vector.broadcast %cst_18 : f32 to vector<32x2xf32>
    %46 = vector.extract_strided_slice %44 {offsets = [0, 0], sizes = [32, 2], strides = [1, 1]} : vector<32x4xf32> to vector<32x2xf32>
    %47 = tpu.concatenate %45, %46 in 1 : vector<32x2xf32>, vector<32x2xf32> -> vector<32x4xf32>
    %48 = arith.addf %43, %47 : vector<32x4xf32>
    %49 = vector.extract_strided_slice %14 {offsets = [96, 0], sizes = [32, 4], strides = [1, 1]} : vector<128x4xf32> to vector<32x4xf32>
    %cst_19 = arith.constant 0.000000e+00 : f32
    %50 = vector.broadcast %cst_19 : f32 to vector<32x3xf32>
    %51 = vector.extract_strided_slice %49 {offsets = [0, 0], sizes = [32, 1], strides = [1, 1]} : vector<32x4xf32> to vector<32x1xf32>
    %52 = tpu.concatenate %50, %51 in 1 : vector<32x3xf32>, vector<32x1xf32> -> vector<32x4xf32>
    %cst_20 = arith.constant 0.000000e+00 : f32
    %53 = vector.shape_cast %33 : vector<1x4xi1> to vector<1x4xi1>
    %54 = vector.broadcast %53 : vector<1x4xi1> to vector<32x4xi1>
    %55 = vector.broadcast %cst_20 : f32 to vector<32x4xf32>
    %56 = arith.select %54, %52, %55 : vector<32x4xi1>, vector<32x4xf32>
    %57 = arith.addf %48, %56 : vector<32x4xf32>
    %c0_21 = arith.constant 0 : index
    %c0_22 = arith.constant 0 : index
    %58 = vector.load %arg6[%c0_21, %c0_22] : memref<32x1xf32, #tpu.memory_space<vmem>>, vector<32x1xf32>
    %59 = vector.broadcast %58 : vector<32x1xf32> to vector<32x4xf32>
    %60 = arith.mulf %57, %59 : vector<32x4xf32>
    %c0_23 = arith.constant 0 : index
    %c0_24 = arith.constant 0 : index
    %61 = vector.load %arg7[%c0_23, %c0_24] : memref<32x1xf32, #tpu.memory_space<vmem>>, vector<32x1xf32>
    %62 = vector.broadcast %61 : vector<32x1xf32> to vector<32x4xf32>
    %63 = arith.addf %60, %62 : vector<32x4xf32>
    %cst_25 = arith.constant 0.000000e+00 : f32
    %64 = vector.broadcast %cst_25 : f32 to vector<32x4xf32>
    %65 = arith.maximumf %63, %64 : vector<32x4xf32>
    %cst_26 = arith.constant dense<0.000000e+00> : vector<32xf32>
    %66 = vector.multi_reduction <add>, %65, %cst_26 [1] : vector<32x4xf32> to vector<32xf32>
    %67 = vector.shape_cast %66 : vector<32xf32> to vector<32x1xf32>
    %cst_27 = arith.constant 4.000000e+00 : f32
    %68 = vector.broadcast %cst_27 : f32 to vector<32x1xf32>
    %69 = arith.divf %67, %68 : vector<32x1xf32>
    %c0_28 = arith.constant 0 : index
    %c0_29 = arith.constant 0 : index
    %70 = vector.load %arg8[%c0_28, %c0_29] : memref<4x32xf32, #tpu.memory_space<vmem>>, vector<4x32xf32>
    %cst_30 = arith.constant dense<0.000000e+00> : vector<4x1xf32>
    %71 = tpu.matmul %70, %69, %cst_30 {dimension_numbers = #tpu.dot_dimension_numbers<[1], [0], [0], [1], [0, 0, 1, 1], [], []>} : vector<4x32xf32>, vector<32x1xf32>, vector<4x1xf32> -> vector<4x1xf32>
    %c0_31 = arith.constant 0 : index
    %c0_32 = arith.constant 0 : index
    %72 = vector.load %arg9[%c0_31, %c0_32] : memref<4x1xf32, #tpu.memory_space<vmem>>, vector<4x1xf32>
    %73 = arith.addf %71, %72 : vector<4x1xf32>
    %cst_33 = arith.constant 0.000000e+00 : f32
    %74 = vector.broadcast %cst_33 : f32 to vector<4x1xf32>
    %75 = arith.maximumf %73, %74 : vector<4x1xf32>
    %c0_34 = arith.constant 0 : index
    %c0_35 = arith.constant 0 : index
    %76 = vector.load %arg10[%c0_34, %c0_35] : memref<32x4xf32, #tpu.memory_space<vmem>>, vector<32x4xf32>
    %cst_36 = arith.constant dense<0.000000e+00> : vector<32x1xf32>
    %77 = tpu.matmul %76, %75, %cst_36 {dimension_numbers = #tpu.dot_dimension_numbers<[1], [0], [0], [1], [0, 0, 1, 1], [], []>} : vector<32x4xf32>, vector<4x1xf32>, vector<32x1xf32> -> vector<32x1xf32>
    %c0_37 = arith.constant 0 : index
    %c0_38 = arith.constant 0 : index
    %78 = vector.load %arg11[%c0_37, %c0_38] : memref<32x1xf32, #tpu.memory_space<vmem>>, vector<32x1xf32>
    %79 = arith.addf %77, %78 : vector<32x1xf32>
    %80 = arith.negf %79 : vector<32x1xf32>
    %81 = math.exp %80 : vector<32x1xf32>
    %cst_39 = arith.constant 1.000000e+00 : f32
    %82 = vector.broadcast %cst_39 : f32 to vector<32x1xf32>
    %83 = arith.addf %82, %81 : vector<32x1xf32>
    %84 = arith.divf %82, %83 : vector<32x1xf32>
    %85 = vector.broadcast %84 : vector<32x1xf32> to vector<32x4xf32>
    %86 = arith.mulf %65, %85 : vector<32x4xf32>
    %c0_40 = arith.constant 0 : index
    %c0_41 = arith.constant 0 : index
    %87 = vector.load %arg12[%c0_40, %c0_41] : memref<32x32xbf16, #tpu.memory_space<vmem>>, vector<32x32xbf16>
    %88 = arith.truncf %86 : vector<32x4xf32> to vector<32x4xbf16>
    %cst_42 = arith.constant dense<0.000000e+00> : vector<32x4xf32>
    %89 = tpu.matmul %87, %88, %cst_42 {dimension_numbers = #tpu.dot_dimension_numbers<[1], [0], [0], [1], [0, 0, 1, 1], [], []>} : vector<32x32xbf16>, vector<32x4xbf16>, vector<32x4xf32> -> vector<32x4xf32>
    %c0_43 = arith.constant 0 : index
    %c0_44 = arith.constant 0 : index
    %90 = vector.load %arg13[%c0_43, %c0_44] : memref<32x1xf32, #tpu.memory_space<vmem>>, vector<32x1xf32>
    %91 = vector.broadcast %90 : vector<32x1xf32> to vector<32x4xf32>
    %92 = arith.mulf %89, %91 : vector<32x4xf32>
    %c0_45 = arith.constant 0 : index
    %c0_46 = arith.constant 0 : index
    %93 = vector.load %arg14[%c0_45, %c0_46] : memref<32x1xf32, #tpu.memory_space<vmem>>, vector<32x1xf32>
    %94 = vector.broadcast %93 : vector<32x1xf32> to vector<32x4xf32>
    %95 = arith.addf %92, %94 : vector<32x4xf32>
    %c0_47 = arith.constant 0 : index
    %c0_48 = arith.constant 0 : index
    %96 = vector.load %arg15[%c0_47, %c0_48] : memref<32x16xbf16, #tpu.memory_space<vmem>>, vector<32x16xbf16>
    %97 = vector.extract_strided_slice %1 {offsets = [0, 0], sizes = [16, 4], strides = [1, 1]} : vector<64x4xbf16> to vector<16x4xbf16>
    %cst_49 = arith.constant dense<0.000000e+00> : vector<32x4xf32>
    %98 = tpu.matmul %96, %97, %cst_49 {dimension_numbers = #tpu.dot_dimension_numbers<[1], [0], [0], [1], [0, 0, 1, 1], [], []>} : vector<32x16xbf16>, vector<16x4xbf16>, vector<32x4xf32> -> vector<32x4xf32>
    %c0_50 = arith.constant 0 : index
    %c0_51 = arith.constant 0 : index
    %99 = vector.load %arg16[%c0_50, %c0_51] : memref<32x1xf32, #tpu.memory_space<vmem>>, vector<32x1xf32>
    %100 = vector.broadcast %99 : vector<32x1xf32> to vector<32x4xf32>
    %101 = arith.mulf %98, %100 : vector<32x4xf32>
    %c0_52 = arith.constant 0 : index
    %c0_53 = arith.constant 0 : index
    %102 = vector.load %arg17[%c0_52, %c0_53] : memref<32x1xf32, #tpu.memory_space<vmem>>, vector<32x1xf32>
    %103 = vector.broadcast %102 : vector<32x1xf32> to vector<32x4xf32>
    %104 = arith.addf %101, %103 : vector<32x4xf32>
    %105 = arith.addf %95, %104 : vector<32x4xf32>
    %cst_54 = arith.constant 0.000000e+00 : f32
    %106 = vector.broadcast %cst_54 : f32 to vector<32x4xf32>
    %107 = arith.maximumf %105, %106 : vector<32x4xf32>
    %c0_55 = arith.constant 0 : index
    %c0_56 = arith.constant 0 : index
    %c0_57 = arith.constant 0 : index
    %108 = vector.load %arg18[%c0_55, %c0_56, %c0_57] : memref<1x32x4xf32, #tpu.memory_space<vmem>>, vector<1x32x4xf32>
    %109 = vector.shape_cast %108 : vector<1x32x4xf32> to vector<32x4xf32>
    %110 = vector.shape_cast %107 : vector<32x4xf32> to vector<1x32x4xf32>
    tpu.vector_store %arg18[%c0_55, %c0_56, %c0_57], %110 {strides = array<i32>} : memref<1x32x4xf32, #tpu.memory_space<vmem>>, vector<1x32x4xf32>,
    return
  }
  func.func @transform_0(%arg0: i32) -> (i32, i32, i32) {
    %c0_i32 = arith.constant 0 : i32
    %c0_i32_0 = arith.constant 0 : i32
    %c0_i32_1 = arith.constant 0 : i32
    return %arg0, %c0_i32, %c0_i32_0 : i32, i32, i32
  }
  func.func @transform_1(%arg0: i32) -> (i32, i32) {
    %c0_i32 = arith.constant 0 : i32
    %c0_i32_0 = arith.constant 0 : i32
    %c0_i32_1 = arith.constant 0 : i32
    return %c0_i32, %c0_i32_0 : i32, i32
  }
  func.func @transform_2(%arg0: i32) -> (i32, i32) {
    %c0_i32 = arith.constant 0 : i32
    %c0_i32_0 = arith.constant 0 : i32
    %c0_i32_1 = arith.constant 0 : i32
    return %c0_i32, %c0_i32_0 : i32, i32
  }
  func.func @transform_3(%arg0: i32) -> (i32, i32) {
    %c0_i32 = arith.constant 0 : i32
    %c0_i32_0 = arith.constant 0 : i32
    %c0_i32_1 = arith.constant 0 : i32
    return %c0_i32, %c0_i32_0 : i32, i32
  }
  func.func @transform_4(%arg0: i32) -> (i32, i32) {
    %c0_i32 = arith.constant 0 : i32
    %c0_i32_0 = arith.constant 0 : i32
    %c0_i32_1 = arith.constant 0 : i32
    return %c0_i32, %c0_i32_0 : i32, i32
  }
  func.func @transform_5(%arg0: i32) -> (i32, i32) {
    %c0_i32 = arith.constant 0 : i32
    %c0_i32_0 = arith.constant 0 : i32
    %c0_i32_1 = arith.constant 0 : i32
    return %c0_i32, %c0_i32_0 : i32, i32
  }
  func.func @transform_6(%arg0: i32) -> (i32, i32) {
    %c0_i32 = arith.constant 0 : i32
    %c0_i32_0 = arith.constant 0 : i32
    %c0_i32_1 = arith.constant 0 : i32
    return %c0_i32, %c0_i32_0 : i32, i32
  }
  func.func @transform_7(%arg0: i32) -> (i32, i32) {
    %c0_i32 = arith.constant 0 : i32
    %c0_i32_0 = arith.constant 0 : i32
    %c0_i32_1 = arith.constant 0 : i32
    return %c0_i32, %c0_i32_0 : i32, i32
  }
  func.func @transform_8(%arg0: i32) -> (i32, i32) {
    %c0_i32 = arith.constant 0 : i32
    %c0_i32_0 = arith.constant 0 : i32
    %c0_i32_1 = arith.constant 0 : i32
    return %c0_i32, %c0_i32_0 : i32, i32
  }
  func.func @transform_9(%arg0: i32) -> (i32, i32) {
    %c0_i32 = arith.constant 0 : i32
    %c0_i32_0 = arith.constant 0 : i32
    %c0_i32_1 = arith.constant 0 : i32
    return %c0_i32, %c0_i32_0 : i32, i32
  }
  func.func @transform_10(%arg0: i32) -> (i32, i32) {
    %c0_i32 = arith.constant 0 : i32
    %c0_i32_0 = arith.constant 0 : i32
    %c0_i32_1 = arith.constant 0 : i32
    return %c0_i32, %c0_i32_0 : i32, i32
  }
  func.func @transform_11(%arg0: i32) -> (i32, i32) {
    %c0_i32 = arith.constant 0 : i32
    %c0_i32_0 = arith.constant 0 : i32
    %c0_i32_1 = arith.constant 0 : i32
    return %c0_i32, %c0_i32_0 : i32, i32
  }
  func.func @transform_12(%arg0: i32) -> (i32, i32) {
    %c0_i32 = arith.constant 0 : i32
    %c0_i32_0 = arith.constant 0 : i32
    %c0_i32_1 = arith.constant 0 : i32
    return %c0_i32, %c0_i32_0 : i32, i32
  }
  func.func @transform_13(%arg0: i32) -> (i32, i32) {
    %c0_i32 = arith.constant 0 : i32
    %c0_i32_0 = arith.constant 0 : i32
    %c0_i32_1 = arith.constant 0 : i32
    return %c0_i32, %c0_i32_0 : i32, i32
  }
  func.func @transform_14(%arg0: i32) -> (i32, i32) {
    %c0_i32 = arith.constant 0 : i32
    %c0_i32_0 = arith.constant 0 : i32
    %c0_i32_1 = arith.constant 0 : i32
    return %c0_i32, %c0_i32_0 : i32, i32
  }
  func.func @transform_15(%arg0: i32) -> (i32, i32) {
    %c0_i32 = arith.constant 0 : i32
    %c0_i32_0 = arith.constant 0 : i32
    %c0_i32_1 = arith.constant 0 : i32
    return %c0_i32, %c0_i32_0 : i32, i32
  }
  func.func @transform_16(%arg0: i32) -> (i32, i32) {
    %c0_i32 = arith.constant 0 : i32
    %c0_i32_0 = arith.constant 0 : i32
    %c0_i32_1 = arith.constant 0 : i32
    return %c0_i32, %c0_i32_0 : i32, i32
  }
  func.func @transform_17(%arg0: i32) -> (i32, i32, i32) {
    %c0_i32 = arith.constant 0 : i32
    %c0_i32_0 = arith.constant 0 : i32
    %c0_i32_1 = arith.constant 0 : i32
    return %arg0, %c0_i32, %c0_i32_0 : i32, i32, i32
  }
}

</mosaic_0001>

<llo_original>
// kernel: encoder_forward.5
$region0: #{encoder_forward.5}
  #allocation0 [shape = 'u32[]', space=smem, size = 0x4, offset = 0x4, fixed_abs, tag = 'smem constant byte address 0x4 - core index']
  #allocation1 [shape = 'u32[144,128]{1,0:T(1,128)}', space=vmem, size = 0x12000, scoped, tag = 'internal scratch']
  %s0 = inlined_call_operand.vmem [shape: bf16[2,12,1024], index: 0, kind: input, shape index: {}]
  %s1 = inlined_call_operand.vmem [shape: bf16[32,12], index: 1, kind: input, shape index: {}]
  %s2 = inlined_call_operand.vmem [shape: f32[8,1], index: 2, kind: input, shape index: {}]
  %s3 = inlined_call_operand.vmem [shape: f32[8,1], index: 3, kind: input, shape index: {}]
  %s4 = inlined_call_operand.vmem [shape: bf16[2,8,1024], index: 4, kind: output, shape index: {}]
  %s5 = sld [smem:[#allocation0]]
  $region49: #{encoder_forward.5} parent=0
    _
  %s7 = ssub.s32 1, %s5
  %s8 = scalar_select 0, %s7, %s5
  loop: start=0, step=1, limit=4
  $region2: #{encoder_forward.5} parent=0 // loop_pre_header
    _
  $region3: #{encoder_forward.5} parent=0 // loop_header
    %s10 = sphi 0, %s14
    %p11 = scmp.ge.s32.totalorder %s10, 4
    %s20 = sphi 0, %s22
    %s23 = sphi 0, %s20
    %s24 = sphi 0, %s23
    %s40 = sphi 0, %s24
    %s44 = sphi 0, %s44
    %s46 = sphi 0, %s44
    %s47 = sphi 0, %s46
    %s61 = sphi 0, %s47
    %s65 = sphi 0, %s65
    %s67 = sphi 0, %s65
    %s68 = sphi 0, %s67
    %s82 = sphi 0, %s68
    %s86 = sphi 0, %s86
    %s88 = sphi 0, %s86
    %s89 = sphi 0, %s88
    %s103 = sphi 0, %s89
    %s109 = sphi 0, %s111
    %s112 = sphi 0, %s109
    %s113 = sphi 0, %s112
    %s129 = sphi 0, %s113
  $region4: #{encoder_forward.5} parent=0 // loop_header_branch
    %13 = sbr.rel (%p11) target = $region8
  $region5: #{encoder_forward.5} parent=0 // loop_body
    %s15 = ssub.s32 %s10, 1
    %s16 = ssub.s32 %s10, 2
    %s17 = sadd.s32 %s10, 1
    %s18 = ssub.s32 %s10, %s17
    %p19 = scmp.eq.s32.totalorder %s18, 0
    %s21 = sadd.s32 %s20, 1
    %s22 = scalar_select %p19, %s20, %s21
    %p25 = pneg %p19
    %p26 = scmp.eq.s32.totalorder %s10, 1
    %p27 = por %p25, %p26
    %p28 = scmp.ne.s32.totalorder %s20, %s23
    %p29 = scmp.eq.s32.totalorder %s10, 0
    %p30 = por %p28, %p29
    %p31 = scmp.ne.s32.totalorder %s20, %s23
    %p32 = scmp.eq.s32.totalorder %s15, 1
    %p33 = por %p31, %p32
    %p34 = scmp.ne.s32.totalorder %s23, %s24
    %p35 = scmp.eq.s32.totalorder %s15, 0
    %p36 = por %p34, %p35
    %p37 = scmp.ne.s32.totalorder %s23, %s24
    %p38 = scmp.eq.s32.totalorder %s16, 1
    %p39 = por %p37, %p38
    %p41 = scmp.ne.s32.totalorder %s24, %s40
    %p42 = scmp.eq.s32.totalorder %s16, 0
    %p43 = por %p41, %p42
    %s45 = sadd.s32 %s44, 1
    %p48 = scmp.eq.s32.totalorder %s10, 1
    %p49 = scmp.ne.s32.totalorder %s44, %s46
    %p50 = scmp.eq.s32.totalorder %s10, 0
    %p51 = por %p49, %p50
    %p52 = scmp.ne.s32.totalorder %s44, %s46
    %p53 = scmp.eq.s32.totalorder %s15, 1
    %p54 = por %p52, %p53
    %p55 = scmp.ne.s32.totalorder %s46, %s47
    %p56 = scmp.eq.s32.totalorder %s15, 0
    %p57 = por %p55, %p56
    %p58 = scmp.ne.s32.totalorder %s46, %s47
    %p59 = scmp.eq.s32.totalorder %s16, 1
    %p60 = por %p58, %p59
    %p62 = scmp.ne.s32.totalorder %s47, %s61
    %p63 = scmp.eq.s32.totalorder %s16, 0
    %p64 = por %p62, %p63
    %s66 = sadd.s32 %s65, 1
    %p69 = scmp.eq.s32.totalorder %s10, 1
    %p70 = scmp.ne.s32.totalorder %s65, %s67
    %p71 = scmp.eq.s32.totalorder %s10, 0
    %p72 = por %p70, %p71
    %p73 = scmp.ne.s32.totalorder %s65, %s67
    %p74 = scmp.eq.s32.totalorder %s15, 1
    %p75 = por %p73, %p74
    %p76 = scmp.ne.s32.totalorder %s67, %s68
    %p77 = scmp.eq.s32.totalorder %s15, 0
    %p78 = por %p76, %p77
    %p79 = scmp.ne.s32.totalorder %s67, %s68
    %p80 = scmp.eq.s32.totalorder %s16, 1
    %p81 = por %p79, %p80
    %p83 = scmp.ne.s32.totalorder %s68, %s82
    %p84 = scmp.eq.s32.totalorder %s16, 0
    %p85 = por %p83, %p84
    %s87 = sadd.s32 %s86, 1
    %p90 = scmp.eq.s32.totalorder %s10, 1
    %p91 = scmp.ne.s32.totalorder %s86, %s88
    %p92 = scmp.eq.s32.totalorder %s10, 0
    %p93 = por %p91, %p92
    %p94 = scmp.ne.s32.totalorder %s86, %s88
    %p95 = scmp.eq.s32.totalorder %s15, 1
    %p96 = por %p94, %p95
    %p97 = scmp.ne.s32.totalorder %s88, %s89
    %p98 = scmp.eq.s32.totalorder %s15, 0
    %p99 = por %p97, %p98
    %p100 = scmp.ne.s32.totalorder %s88, %s89
    %p101 = scmp.eq.s32.totalorder %s16, 1
    %p102 = por %p100, %p101
    %p104 = scmp.ne.s32.totalorder %s89, %s103
    %p105 = scmp.eq.s32.totalorder %s16, 0
    %p106 = por %p104, %p105
    %s107 = ssub.s32 %s10, %s17
    %p108 = scmp.eq.s32.totalorder %s107, 0
    %s110 = sadd.s32 %s109, 1
    %s111 = scalar_select %p108, %s109, %s110
    %p114 = pneg %p108
    %p115 = scmp.eq.s32.totalorder %s10, 1
    %p116 = por %p114, %p115
    %p117 = scmp.ne.s32.totalorder %s109, %s112
    %p118 = scmp.eq.s32.totalorder %s10, 0
    %p119 = por %p117, %p118
    %p120 = scmp.ne.s32.totalorder %s109, %s112
    %p121 = scmp.eq.s32.totalorder %s15, 1
    %p122 = por %p120, %p121
    %p123 = scmp.ne.s32.totalorder %s112, %s113
    %p124 = scmp.eq.s32.totalorder %s15, 0
    %p125 = por %p123, %p124
    %p126 = scmp.ne.s32.totalorder %s112, %s113
    %p127 = scmp.eq.s32.totalorder %s16, 1
    %p128 = por %p126, %p127
    %p130 = scmp.ne.s32.totalorder %s113, %s129
    %p131 = scmp.eq.s32.totalorder %s16, 0
    %p132 = por %p130, %p131
    %p133 = scmp.le.s32.totalorder 1, %s10
    %p134 = scmp.lt.s32.totalorder %s10, 3
    %p135 = pnand %p133, %p134
    %p136 = pneg %p135
    // Predicated region
    $region9: #{encoder_forward.5} parent=5 // pred_check
      _
    $region10: #{encoder_forward.5} parent=5 // pred_check_branch
      %138 = sbr.rel (%p135) target = $region12
    $region11: #{encoder_forward.5} parent=5 // pred_region
      %s139 = ssub.s32 %s10, 1
      // Predicated region
      $region13: #{encoder_forward.5} parent=11 // pred_check
        %p140 = pneg %p57
      $region14: #{encoder_forward.5} parent=11 // pred_check_branch
        %142 = sbr.rel (%p140) target = $region16
      $region15: #{encoder_forward.5} parent=11 // pred_region
        _
      $region16: #{encoder_forward.5} parent=11 // pred_fallthru
        _
      // Predicated region
      $region17: #{encoder_forward.5} parent=11 // pred_check
        %p143 = pneg %p78
      $region18: #{encoder_forward.5} parent=11 // pred_check_branch
        %145 = sbr.rel (%p143) target = $region20
      $region19: #{encoder_forward.5} parent=11 // pred_region
        _
      $region20: #{encoder_forward.5} parent=11 // pred_fallthru
        _
      // Predicated region
      $region21: #{encoder_forward.5} parent=11 // pred_check
        %p146 = pneg %p99
      $region22: #{encoder_forward.5} parent=11 // pred_check_branch
        %148 = sbr.rel (%p146) target = $region24
      $region23: #{encoder_forward.5} parent=11 // pred_region
        _
      $region24: #{encoder_forward.5} parent=11 // pred_fallthru
        _
    $region12: #{encoder_forward.5} parent=5 // pred_fallthru
      _
    %p149 = scmp.lt.s32.totalorder %s10, 2
    // Predicated region
    $region25: #{encoder_forward.5} parent=5 // pred_check
      %p150 = pneg %p149
    $region26: #{encoder_forward.5} parent=5 // pred_check_branch
      %152 = sbr.rel (%p150) target = $region28
    $region27: #{encoder_forward.5} parent=5 // pred_region
      // Predicated region
      $region29: #{encoder_forward.5} parent=27 // pred_check
        %p153 = pneg %p30
      $region30: #{encoder_forward.5} parent=27 // pred_check_branch
        %155 = sbr.rel (%p153) target = $region32
      $region31: #{encoder_forward.5} parent=27 // pred_region
        %p156 = scmp.lt.s32.totalorder %s10, 1
        %s157 = scalar_select %p156, %s10, 1
        %s158 = smul.addr %s157, 16
        %s159 = smul.addr %s158, 4
        %s160 = scalar_lea.vmem %s0, %s159
      $region32: #{encoder_forward.5} parent=27 // pred_fallthru
        _
    $region28: #{encoder_forward.5} parent=5 // pred_fallthru
      _
    %p161 = scmp.le.s32.totalorder 1, %s10
    %p162 = scmp.lt.s32.totalorder %s10, 3
    %p163 = pnand %p161, %p162
    %p164 = pneg %p163
    // Predicated region
    $region33: #{encoder_forward.5} parent=5 // pred_check
      _
    $region34: #{encoder_forward.5} parent=5 // pred_check_branch
      %166 = sbr.rel (%p163) target = $region36
    $region35: #{encoder_forward.5} parent=5 // pred_region
      %s167 = ssub.s32 %s10, 1
      %p168 = scmp.lt.s32.totalorder %s15, 1
      %s169 = scalar_select %p168, %s15, 1
      %s170 = smul.addr %s169, 16
      %s171 = smul.addr %s170, 4
      %s172 = scalar_lea.vmem %s0, %s171
      %p173 = pneg %p36
      %p174 = pneg %p33
      %p175 = pneg %p57
      %p176 = pneg %p54
      %p177 = pneg %p78
      %p178 = pneg %p75
      %p179 = pneg %p99
      %p180 = pneg %p96
      %p181 = pneg %p125
      %p182 = pneg %p122
      %p183 = scmp.lt.s32.totalorder %s15, 1
      %s184 = scalar_select %p183, %s15, 1
      %s185 = smul.addr %s184, 8
      %s186 = smul.addr %s185, 4
      %s187 = scalar_lea.vmem %s4, %s186
      %p188 = scmp.lt.s32.totalorder %s15, 1
      %s189 = scalar_select %p188, %s15, 1
      %s190 = smul.addr %s189, 16
      %s191 = smul.addr %s190, 4
      %s192 = scalar_lea.vmem %s0, %s191
      %p193 = scmp.lt.s32.totalorder %s15, 1
      %s194 = scalar_select %p193, %s15, 1
      %s195 = smul.addr %s194, 8
      %s196 = smul.addr %s195, 4
      %s197 = scalar_lea.vmem %s4, %s196
      %v199 = vld [vmem:[%s192] sm:$0xff]
      %v200 = vld [vmem:[%s192 + $0x8] sm:$0xff]
      %v201 = vld [vmem:[%s192 + $0x10] sm:$0xff]
      %v202 = vld [vmem:[%s192 + $0x18] sm:$0xff]
      %v203 = vld [vmem:[%s192 + $0x20] sm:$0x33]
      %v204 = vld [vmem:[%s192 + $0x28] sm:$0x33]
      %v205 = vld [vmem:[%s192 + $0x30] sm:$0x33]
      %v206 = vld [vmem:[%s192 + $0x38] sm:$0x33]
      %v207 = vld [vmem:[%s1] sm:$0xf]
      %v208 = vld [vmem:[%s1 + $0x4] sm:$0xf]
      %v209 = vld [vmem:[%s1 + $0x8] sm:$0xf]
      %v210 = vld [vmem:[%s1 + $0xc] sm:$0xf]
      %v215 = vunpack.c.l.b16 %v207
      %v216 = vunpack.c.l.b16 %v208
      %v217 = vunpack.c.l.b16 %v209
      %v218 = vunpack.c.l.b16 %v210
      %v219 = vpack.c.b16 %v216, %v215
      %v220 = vpack.c.b16 %v218, %v217
      %v229 = vunpack.c.l.b16 %v199
      %v230 = vunpack.c.h.b16 %v199
      %v231 = vunpack.c.l.b16 %v200
      %v232 = vunpack.c.h.b16 %v200
      %v233 = vunpack.c.l.b16 %v201
      %v234 = vunpack.c.h.b16 %v201
      %v235 = vunpack.c.l.b16 %v202
      %v236 = vunpack.c.h.b16 %v202
      %v237 = vunpack.c.l.b16 %v203
      %v238 = vunpack.c.h.b16 %v203
      %v239 = vunpack.c.l.b16 %v204
      %v240 = vunpack.c.h.b16 %v204
      %v241 = vunpack.c.l.b16 %v205
      %v242 = vunpack.c.h.b16 %v205
      %v243 = vunpack.c.l.b16 %v206
      %v244 = vunpack.c.h.b16 %v206
      %v245 = vpack.c.b16 %v237, %v229
      %v246 = vpack.c.b16 %v238, %v230
      %v247 = vpack.c.b16 %v239, %v231
      %v248 = vpack.c.b16 %v240, %v232
      %v249 = vpack.c.b16 %v241, %v233
      %v250 = vpack.c.b16 %v242, %v234
      %v251 = vpack.c.b16 %v243, %v235
      %v252 = vpack.c.b16 %v244, %v236
      %vm253 = vcmask 97280
      %v255 = vsel %vm253, %v219, 0
      %v258 = vsel %vm253, %v220, 0
      %vm260 = vcmask 1045504
      %v262 = vsel %vm260, %v245, 0
      %v265 = vsel %vm260, %v246, 0
      %v268 = vsel %vm260, %v247, 0
      %v271 = vsel %vm260, %v248, 0
      %v274 = vsel %vm260, %v249, 0
      %v277 = vsel %vm260, %v250, 0
      %v280 = vsel %vm260, %v251, 0
      %v283 = vsel %vm260, %v252, 0
      %285 = vmatprep.subr.bf16.mxu0 %v265
      %286 = vmatpush1.bf16.msra.mxu0 %v262
      %287 = vmatprep.subr.bf16.mxu0 0
      %288 = vmatpush1.bf16.msra.mxu0 0
      %289 = vmatprep.subr.bf16.mxu0 0
      %290 = vmatpush1.bf16.msra.mxu0 0
      %291 = vmatprep.subr.bf16.mxu0 0
      %292 = vmatpush1.bf16.msra.mxu0 0
      %293 = vmatprep.subr.bf16.mxu0 0
      %294 = vmatpush1.bf16.msra.mxu0 0
      %295 = vmatprep.subr.bf16.mxu0 0
      %296 = vmatpush1.bf16.msra.mxu0 0
      %297 = vmatprep.subr.bf16.mxu0 0
      %298 = vmatpush1.bf16.msra.mxu0 0
      %299 = vmatprep.subr.bf16.mxu0 0
      %300 = vmatpush1.bf16.msra.mxu0 0
      %301 = vmatprep.subr.bf16.mxu0 0
      %302 = vmatpush1.bf16.msra.mxu0 0
      %303 = vmatprep.subr.bf16.mxu0 0
      %304 = vmatpush1.bf16.msra.mxu0 0
      %305 = vmatprep.subr.bf16.mxu0 0
      %306 = vmatpush1.bf16.msra.mxu0 0
      %307 = vmatprep.subr.bf16.mxu0 0
      %308 = vmatpush1.bf16.msra.mxu0 0
      %309 = vmatprep.subr.bf16.mxu0 0
      %310 = vmatpush1.bf16.msra.mxu0 0
      %311 = vmatprep.subr.bf16.mxu0 0
      %312 = vmatpush1.bf16.msra.mxu0 0
      %313 = vmatprep.subr.bf16.mxu0 0
      %314 = vmatpush1.bf16.msra.mxu0 0
      %315 = vmatprep.subr.bf16.mxu0 0
      %316 = vmatpush1.bf16.msra.mxu0 0
      %317 = vmatprep.mubr.bf16.mxu0 0
      %318 = vmatmul.mubr.bf16.gmra.mrb[0].mxu0 %v255
      %v319 = vpop.f32.mrb[0].mxu0
      %v320 = vadd.f32 0.0, %v319
      %v321 = vpop.f32.mrb[0].mxu0
      %v322 = vadd.f32 0.0, %v321
      %v323 = vpop.f32.mrb[0].mxu0
      %v324 = vadd.f32 0.0, %v323
      %v325 = vpop.f32.mrb[0].mxu0
      %v326 = vadd.f32 0.0, %v325
      %327 = vmatprep.mubr.bf16.mxu0 0
      %328 = vmatmul.mubr.bf16.gmra.mrb[0].mxu0 %v258
      %v329 = vpop.f32.mrb[0].mxu0
      %v330 = vadd.f32 0.0, %v329
      %v331 = vpop.f32.mrb[0].mxu0
      %v332 = vadd.f32 0.0, %v331
      %v333 = vpop.f32.mrb[0].mxu0
      %v334 = vadd.f32 0.0, %v333
      %v335 = vpop.f32.mrb[0].mxu0
      %v336 = vadd.f32 0.0, %v335
      %337 = vdwg.mxu0
      %338 = vmatprep.subr.bf16.mxu0 %v271
      %339 = vmatpush1.bf16.msra.mxu0 %v268
      %340 = vmatprep.subr.bf16.mxu0 0
      %341 = vmatpush1.bf16.msra.mxu0 0
      %342 = vmatprep.subr.bf16.mxu0 0
      %343 = vmatpush1.bf16.msra.mxu0 0
      %344 = vmatprep.subr.bf16.mxu0 0
      %345 = vmatpush1.bf16.msra.mxu0 0
      %346 = vmatprep.subr.bf16.mxu0 0
      %347 = vmatpush1.bf16.msra.mxu0 0
      %348 = vmatprep.subr.bf16.mxu0 0
      %349 = vmatpush1.bf16.msra.mxu0 0
      %350 = vmatprep.subr.bf16.mxu0 0
      %351 = vmatpush1.bf16.msra.mxu0 0
      %352 = vmatprep.subr.bf16.mxu0 0
      %353 = vmatpush1.bf16.msra.mxu0 0
      %354 = vmatprep.subr.bf16.mxu0 0
      %355 = vmatpush1.bf16.msra.mxu0 0
      %356 = vmatprep.subr.bf16.mxu0 0
      %357 = vmatpush1.bf16.msra.mxu0 0
      %358 = vmatprep.subr.bf16.mxu0 0
      %359 = vmatpush1.bf16.msra.mxu0 0
      %360 = vmatprep.subr.bf16.mxu0 0
      %361 = vmatpush1.bf16.msra.mxu0 0
      %362 = vmatprep.subr.bf16.mxu0 0
      %363 = vmatpush1.bf16.msra.mxu0 0
      %364 = vmatprep.subr.bf16.mxu0 0
      %365 = vmatpush1.bf16.msra.mxu0 0
      %366 = vmatprep.subr.bf16.mxu0 0
      %367 = vmatpush1.bf16.msra.mxu0 0
      %368 = vmatprep.subr.bf16.mxu0 0
      %369 = vmatpush1.bf16.msra.mxu0 0
      %370 = vmatprep.mubr.bf16.mxu0 0
      %371 = vmatmul.mubr.bf16.gmra.mrb[0].mxu0 %v255
      %v372 = vpop.f32.mrb[0].mxu0
      %v373 = vadd.f32 0.0, %v372
      %v374 = vpop.f32.mrb[0].mxu0
      %v375 = vadd.f32 0.0, %v374
      %v376 = vpop.f32.mrb[0].mxu0
      %v377 = vadd.f32 0.0, %v376
      %v378 = vpop.f32.mrb[0].mxu0
      %v379 = vadd.f32 0.0, %v378
      %380 = vmatprep.mubr.bf16.mxu0 0
      %381 = vmatmul.mubr.bf16.gmra.mrb[0].mxu0 %v258
      %v382 = vpop.f32.mrb[0].mxu0
      %v383 = vadd.f32 0.0, %v382
      %v384 = vpop.f32.mrb[0].mxu0
      %v385 = vadd.f32 0.0, %v384
      %v386 = vpop.f32.mrb[0].mxu0
      %v387 = vadd.f32 0.0, %v386
      %v388 = vpop.f32.mrb[0].mxu0
      %v389 = vadd.f32 0.0, %v388
      %390 = vdwg.mxu0
      %391 = vmatprep.subr.bf16.mxu0 %v277
      %392 = vmatpush1.bf16.msra.mxu0 %v274
      %393 = vmatprep.subr.bf16.mxu0 0
      %394 = vmatpush1.bf16.msra.mxu0 0
      %395 = vmatprep.subr.bf16.mxu0 0
      %396 = vmatpush1.bf16.msra.mxu0 0
      %397 = vmatprep.subr.bf16.mxu0 0
      %398 = vmatpush1.bf16.msra.mxu0 0
      %399 = vmatprep.subr.bf16.mxu0 0
      %400 = vmatpush1.bf16.msra.mxu0 0
      %401 = vmatprep.subr.bf16.mxu0 0
      %402 = vmatpush1.bf16.msra.mxu0 0
      %403 = vmatprep.subr.bf16.mxu0 0
      %404 = vmatpush1.bf16.msra.mxu0 0
      %405 = vmatprep.subr.bf16.mxu0 0
      %406 = vmatpush1.bf16.msra.mxu0 0
      %407 = vmatprep.subr.bf16.mxu0 0
      %408 = vmatpush1.bf16.msra.mxu0 0
      %409 = vmatprep.subr.bf16.mxu0 0
      %410 = vmatpush1.bf16.msra.mxu0 0
      %411 = vmatprep.subr.bf16.mxu0 0
      %412 = vmatpush1.bf16.msra.mxu0 0
      %413 = vmatprep.subr.bf16.mxu0 0
      %414 = vmatpush1.bf16.msra.mxu0 0
      %415 = vmatprep.subr.bf16.mxu0 0
      %416 = vmatpush1.bf16.msra.mxu0 0
      %417 = vmatprep.subr.bf16.mxu0 0
      %418 = vmatpush1.bf16.msra.mxu0 0
      %419 = vmatprep.subr.bf16.mxu0 0
      %420 = vmatpush1.bf16.msra.mxu0 0
      %421 = vmatprep.subr.bf16.mxu0 0
      %422 = vmatpush1.bf16.msra.mxu0 0
      %423 = vmatprep.mubr.bf16.mxu0 0
      %424 = vmatmul.mubr.bf16.gmra.mrb[0].mxu0 %v255
      %v425 = vpop.f32.mrb[0].mxu0
      %v426 = vadd.f32 0.0, %v425
      %v427 = vpop.f32.mrb[0].mxu0
      %v428 = vadd.f32 0.0, %v427
      %v429 = vpop.f32.mrb[0].mxu0
      %v430 = vadd.f32 0.0, %v429
      %v431 = vpop.f32.mrb[0].mxu0
      %v432 = vadd.f32 0.0, %v431
      %433 = vmatprep.mubr.bf16.mxu0 0
      %434 = vmatmul.mubr.bf16.gmra.mrb[0].mxu0 %v258
      %v435 = vpop.f32.mrb[0].mxu0
      %v436 = vadd.f32 0.0, %v435
      %v437 = vpop.f32.mrb[0].mxu0
      %v438 = vadd.f32 0.0, %v437
      %v439 = vpop.f32.mrb[0].mxu0
      %v440 = vadd.f32 0.0, %v439
      %v441 = vpop.f32.mrb[0].mxu0
      %v442 = vadd.f32 0.0, %v441
      %443 = vdwg.mxu0
      %444 = vmatprep.subr.bf16.mxu0 %v283
      %445 = vmatpush1.bf16.msra.mxu0 %v280
      %446 = vmatprep.subr.bf16.mxu0 0
      %447 = vmatpush1.bf16.msra.mxu0 0
      %448 = vmatprep.subr.bf16.mxu0 0
      %449 = vmatpush1.bf16.msra.mxu0 0
      %450 = vmatprep.subr.bf16.mxu0 0
      %451 = vmatpush1.bf16.msra.mxu0 0
      %452 = vmatprep.subr.bf16.mxu0 0
      %453 = vmatpush1.bf16.msra.mxu0 0
      %454 = vmatprep.subr.bf16.mxu0 0
      %455 = vmatpush1.bf16.msra.mxu0 0
      %456 = vmatprep.subr.bf16.mxu0 0
      %457 = vmatpush1.bf16.msra.mxu0 0
      %458 = vmatprep.subr.bf16.mxu0 0
      %459 = vmatpush1.bf16.msra.mxu0 0
      %460 = vmatprep.subr.bf16.mxu0 0
      %461 = vmatpush1.bf16.msra.mxu0 0
      %462 = vmatprep.subr.bf16.mxu0 0
      %463 = vmatpush1.bf16.msra.mxu0 0
      %464 = vmatprep.subr.bf16.mxu0 0
      %465 = vmatpush1.bf16.msra.mxu0 0
      %466 = vmatprep.subr.bf16.mxu0 0
      %467 = vmatpush1.bf16.msra.mxu0 0
      %468 = vmatprep.subr.bf16.mxu0 0
      %469 = vmatpush1.bf16.msra.mxu0 0
      %470 = vmatprep.subr.bf16.mxu0 0
      %471 = vmatpush1.bf16.msra.mxu0 0
      %472 = vmatprep.subr.bf16.mxu0 0
      %473 = vmatpush1.bf16.msra.mxu0 0
      %474 = vmatprep.subr.bf16.mxu0 0
      %475 = vmatpush1.bf16.msra.mxu0 0
      %476 = vmatprep.mubr.bf16.mxu0 0
      %477 = vmatmul.mubr.bf16.gmra.mrb[0].mxu0 %v255
      %v478 = vpop.f32.mrb[0].mxu0
      %v479 = vadd.f32 0.0, %v478
      %v480 = vpop.f32.mrb[0].mxu0
      %v481 = vadd.f32 0.0, %v480
      %v482 = vpop.f32.mrb[0].mxu0
      %v483 = vadd.f32 0.0, %v482
      %v484 = vpop.f32.mrb[0].mxu0
      %v485 = vadd.f32 0.0, %v484
      %486 = vmatprep.mubr.bf16.mxu0 0
      %487 = vmatmul.mubr.bf16.gmra.mrb[0].mxu0 %v258
      %v488 = vpop.f32.mrb[0].mxu0
      %v489 = vadd.f32 0.0, %v488
      %v490 = vpop.f32.mrb[0].mxu0
      %v491 = vadd.f32 0.0, %v490
      %v492 = vpop.f32.mrb[0].mxu0
      %v493 = vadd.f32 0.0, %v492
      %v494 = vpop.f32.mrb[0].mxu0
      %v495 = vadd.f32 0.0, %v494
      %496 = vdwg.mxu0
      %v497 = vlaneseq
      %v498 = vand.u32 %v497, 127
      %v499 = vadd.s32 %v498, 128
      %v500 = vadd.s32 %v498, 256
      %v501 = vadd.s32 %v498, 384
      %v502 = vadd.s32 %v498, 512
      %v503 = vadd.s32 %v498, 640
      %v504 = vadd.s32 %v498, 768
      %v505 = vadd.s32 %v498, 896
      %vm506 = vcmp.lt.s32.totalorder %v498, 0
      %v507 = vsub.s32 0, %v498
      %v508 = vsel %vm506, %v507, %v498
      %v509 = vshrl.u32 %v508, 5
      %v510 = vand.u32 %v508, 31
      %v511 = vsub.s32 0, %v510
      %v512 = vsel %vm506, %v511, %v510
      %vm513 = vcmp.lt.s32.totalorder %v499, 0
      %v514 = vsub.s32 0, %v499
      %v515 = vsel %vm513, %v514, %v499
      %v516 = vshrl.u32 %v515, 5
      %v517 = vand.u32 %v515, 31
      %v518 = vsub.s32 0, %v517
      %v519 = vsel %vm513, %v518, %v517
      %vm520 = vcmp.lt.s32.totalorder %v500, 0
      %v521 = vsub.s32 0, %v500
      %v522 = vsel %vm520, %v521, %v500
      %v523 = vshrl.u32 %v522, 5
      %v524 = vand.u32 %v522, 31
      %v525 = vsub.s32 0, %v524
      %v526 = vsel %vm520, %v525, %v524
      %vm527 = vcmp.lt.s32.totalorder %v501, 0
      %v528 = vsub.s32 0, %v501
      %v529 = vsel %vm527, %v528, %v501
      %v530 = vshrl.u32 %v529, 5
      %v531 = vand.u32 %v529, 31
      %v532 = vsub.s32 0, %v531
      %v533 = vsel %vm527, %v532, %v531
      %vm534 = vcmp.lt.s32.totalorder %v502, 0
      %v535 = vsub.s32 0, %v502
      %v536 = vsel %vm534, %v535, %v502
      %v537 = vshrl.u32 %v536, 5
      %v538 = vand.u32 %v536, 31
      %v539 = vsub.s32 0, %v538
      %v540 = vsel %vm534, %v539, %v538
      %vm541 = vcmp.lt.s32.totalorder %v503, 0
      %v542 = vsub.s32 0, %v503
      %v543 = vsel %vm541, %v542, %v503
      %v544 = vshrl.u32 %v543, 5
      %v545 = vand.u32 %v543, 31
      %v546 = vsub.s32 0, %v545
      %v547 = vsel %vm541, %v546, %v545
      %vm548 = vcmp.lt.s32.totalorder %v504, 0
      %v549 = vsub.s32 0, %v504
      %v550 = vsel %vm548, %v549, %v504
      %v551 = vshrl.u32 %v550, 5
      %v552 = vand.u32 %v550, 31
      %v553 = vsub.s32 0, %v552
      %v554 = vsel %vm548, %v553, %v552
      %vm555 = vcmp.lt.s32.totalorder %v505, 0
      %v556 = vsub.s32 0, %v505
      %v557 = vsel %vm555, %v556, %v505
      %v558 = vshrl.u32 %v557, 5
      %v559 = vand.u32 %v557, 31
      %v560 = vsub.s32 0, %v559
      %v561 = vsel %vm555, %v560, %v559
      %vm562 = vcmp.ne.s32.totalorder %v512, 0
      %vm563 = vcmp.ne.s32.totalorder %v519, 0
      %vm564 = vcmp.ne.s32.totalorder %v526, 0
      %vm565 = vcmp.ne.s32.totalorder %v533, 0
      %vm566 = vcmp.ne.s32.totalorder %v540, 0
      %vm567 = vcmp.ne.s32.totalorder %v547, 0
      %vm568 = vcmp.ne.s32.totalorder %v554, 0
      %vm569 = vcmp.ne.s32.totalorder %v561, 0
      %vm570 = vcmp.lt.s32.totalorder %v512, 0
      %vm571 = vcmp.lt.s32.totalorder %v519, 0
      %vm572 = vcmp.lt.s32.totalorder %v526, 0
      %vm573 = vcmp.lt.s32.totalorder %v533, 0
      %vm574 = vcmp.lt.s32.totalorder %v540, 0
      %vm575 = vcmp.lt.s32.totalorder %v547, 0
      %vm576 = vcmp.lt.s32.totalorder %v554, 0
      %vm577 = vcmp.lt.s32.totalorder %v561, 0
      %vm578 = vmand %vm570, %vm562
      %vm579 = vmand %vm571, %vm563
      %vm580 = vmand %vm572, %vm564
      %vm581 = vmand %vm573, %vm565
      %vm582 = vmand %vm574, %vm566
      %vm583 = vmand %vm575, %vm567
      %vm584 = vmand %vm576, %vm568
      %vm585 = vmand %vm577, %vm569
      %v586 = vadd.s32 %v512, 32
      %v587 = vadd.s32 %v519, 32
      %v588 = vadd.s32 %v526, 32
      %v589 = vadd.s32 %v533, 32
      %v590 = vadd.s32 %v540, 32
      %v591 = vadd.s32 %v547, 32
      %v592 = vadd.s32 %v554, 32
      %v593 = vadd.s32 %v561, 32
      %v594 = vsel %vm578, %v586, %v512
      %v595 = vsel %vm579, %v587, %v519
      %v596 = vsel %vm580, %v588, %v526
      %v597 = vsel %vm581, %v589, %v533
      %v598 = vsel %vm582, %v590, %v540
      %v599 = vsel %vm583, %v591, %v547
      %v600 = vsel %vm584, %v592, %v554
      %v601 = vsel %vm585, %v593, %v561
      %vm602 = vcmp.ne.s32.totalorder %v594, 0
      %vm603 = vcmp.ne.s32.totalorder %v595, 0
      %vm604 = vcmp.ne.s32.totalorder %v596, 0
      %vm605 = vcmp.ne.s32.totalorder %v597, 0
      %vm606 = vcmp.ne.s32.totalorder %v598, 0
      %vm607 = vcmp.ne.s32.totalorder %v599, 0
      %vm608 = vcmp.ne.s32.totalorder %v600, 0
      %vm609 = vcmp.ne.s32.totalorder %v601, 0
      %618 = vrot.lane.b32.xlu0 %v324, 1
      %v619 = vpop.permute.xlu0 %618
      %620 = vrot.lane.b32.xlu0 %v326, 1
      %v621 = vpop.permute.xlu0 %620
      %622 = vrot.lane.b32.xlu0 %v377, 1
      %v623 = vpop.permute.xlu0 %622
      %624 = vrot.lane.b32.xlu0 %v379, 1
      %v625 = vpop.permute.xlu0 %624
      %626 = vrot.lane.b32.xlu0 %v430, 1
      %v627 = vpop.permute.xlu0 %626
      %628 = vrot.lane.b32.xlu0 %v432, 1
      %v629 = vpop.permute.xlu0 %628
      %630 = vrot.lane.b32.xlu0 %v483, 1
      %v631 = vpop.permute.xlu0 %630
      %632 = vrot.lane.b32.xlu0 %v485, 1
      %v633 = vpop.permute.xlu0 %632
      %vm634 = vcmask 7168
      %v635 = vsel %vm634, %v619, %v621
      %v636 = vsel %vm634, %v621, %v623
      %v637 = vsel %vm634, %v623, %v625
      %v638 = vsel %vm634, %v625, %v627
      %v639 = vsel %vm634, %v627, %v629
      %v640 = vsel %vm634, %v629, %v631
      %v641 = vsel %vm634, %v631, %v633
      %v650 = vsel %vm634, 0.0, %v619
      %v651 = vsel %vm602, 1, 0
      %v652 = vsel %vm603, 1, 0
      %v653 = vsel %vm604, 1, 0
      %v654 = vsel %vm605, 1, 0
      %v655 = vsel %vm606, 1, 0
      %v656 = vsel %vm607, 1, 0
      %v657 = vsel %vm608, 1, 0
      %v658 = vsel %vm609, 1, 0
      %vm659 = vcmp.eq.s32.totalorder %v651, 1
      %vm660 = vcmp.eq.s32.totalorder %v652, 1
      %vm661 = vcmp.eq.s32.totalorder %v653, 1
      %vm662 = vcmp.eq.s32.totalorder %v654, 1
      %vm663 = vcmp.eq.s32.totalorder %v655, 1
      %vm664 = vcmp.eq.s32.totalorder %v656, 1
      %vm665 = vcmp.eq.s32.totalorder %v657, 1
      %vm666 = vcmp.eq.s32.totalorder %v658, 1
      %v667 = vsel %vm659, %v650, 0.0
      %v668 = vsel %vm660, %v635, 0.0
      %v669 = vsel %vm661, %v636, 0.0
      %v670 = vsel %vm662, %v637, 0.0
      %v671 = vsel %vm663, %v638, 0.0
      %v672 = vsel %vm664, %v639, 0.0
      %v673 = vsel %vm665, %v640, 0.0
      %v674 = vsel %vm666, %v641, 0.0
      %v675 = vadd.f32 %v320, %v667
      %v676 = vadd.f32 %v322, %v668
      %v677 = vadd.f32 %v373, %v669
      %v678 = vadd.f32 %v375, %v670
      %v679 = vadd.f32 %v426, %v671
      %v680 = vadd.f32 %v428, %v672
      %v681 = vadd.f32 %v479, %v673
      %v682 = vadd.f32 %v481, %v674
      %691 = vrot.lane.b32.xlu0 %v330, 32
      %v692 = vpop.permute.xlu0 %691
      %693 = vrot.lane.b32.xlu0 %v332, 32
      %v694 = vpop.permute.xlu0 %693
      %695 = vrot.lane.b32.xlu0 %v383, 32
      %v696 = vpop.permute.xlu0 %695
      %697 = vrot.lane.b32.xlu0 %v385, 32
      %v698 = vpop.permute.xlu0 %697
      %699 = vrot.lane.b32.xlu0 %v436, 32
      %v700 = vpop.permute.xlu0 %699
      %701 = vrot.lane.b32.xlu0 %v438, 32
      %v702 = vpop.permute.xlu0 %701
      %703 = vrot.lane.b32.xlu0 %v489, 32
      %v704 = vpop.permute.xlu0 %703
      %705 = vrot.lane.b32.xlu0 %v491, 32
      %v706 = vpop.permute.xlu0 %705
      %vm707 = vcmask 261120
      %v708 = vsel %vm707, %v692, %v694
      %v709 = vsel %vm707, %v694, %v696
      %v710 = vsel %vm707, %v696, %v698
      %v711 = vsel %vm707, %v698, %v700
      %v712 = vsel %vm707, %v700, %v702
      %v713 = vsel %vm707, %v702, %v704
      %v714 = vsel %vm707, %v704, %v706
      %v723 = vsel %vm707, 0.0, %v692
      %v724 = vadd.f32 %v675, %v723
      %v725 = vadd.f32 %v676, %v708
      %v726 = vadd.f32 %v677, %v709
      %v727 = vadd.f32 %v678, %v710
      %v728 = vadd.f32 %v679, %v711
      %v729 = vadd.f32 %v680, %v712
      %v730 = vadd.f32 %v681, %v713
      %v731 = vadd.f32 %v682, %v714
      %740 = vrot.lane.b32.xlu0 %v334, 33
      %v741 = vpop.permute.xlu0 %740
      %742 = vrot.lane.b32.xlu0 %v336, 33
      %v743 = vpop.permute.xlu0 %742
      %744 = vrot.lane.b32.xlu0 %v387, 33
      %v745 = vpop.permute.xlu0 %744
      %746 = vrot.lane.b32.xlu0 %v389, 33
      %v747 = vpop.permute.xlu0 %746
      %748 = vrot.lane.b32.xlu0 %v440, 33
      %v749 = vpop.permute.xlu0 %748
      %750 = vrot.lane.b32.xlu0 %v442, 33
      %v751 = vpop.permute.xlu0 %750
      %752 = vrot.lane.b32.xlu0 %v493, 33
      %v753 = vpop.permute.xlu0 %752
      %754 = vrot.lane.b32.xlu0 %v495, 33
      %v755 = vpop.permute.xlu0 %754
      %vm756 = vcmask 269312
      %v757 = vsel %vm756, %v741, %v743
      %v758 = vsel %vm756, %v743, %v745
      %v759 = vsel %vm756, %v745, %v747
      %v760 = vsel %vm756, %v747, %v749
      %v761 = vsel %vm756, %v749, %v751
      %v762 = vsel %vm756, %v751, %v753
      %v763 = vsel %vm756, %v753, %v755
      %v772 = vsel %vm756, 0.0, %v741
      %v773 = vsel %vm659, %v772, 0.0
      %v774 = vsel %vm660, %v757, 0.0
      %v775 = vsel %vm661, %v758, 0.0
      %v776 = vsel %vm662, %v759, 0.0
      %v777 = vsel %vm663, %v760, 0.0
      %v778 = vsel %vm664, %v761, 0.0
      %v779 = vsel %vm665, %v762, 0.0
      %v780 = vsel %vm666, %v763, 0.0
      %v781 = vadd.f32 %v724, %v773
      %v782 = vadd.f32 %v725, %v774
      %v783 = vadd.f32 %v726, %v775
      %v784 = vadd.f32 %v727, %v776
      %v785 = vadd.f32 %v728, %v777
      %v786 = vadd.f32 %v729, %v778
      %v787 = vadd.f32 %v730, %v779
      %v788 = vadd.f32 %v731, %v780
      %v789 = vld [vmem:[%s2] sm:$0xff]
      %791 = vset.pattern.permute.xlu0 0
      %792 = vperm.xlu0 %791, %v789
      %v793 = vpop.permute.xlu0 %792
      %v795 = vmul.f32 %v781, %v793
      %v796 = vmul.f32 %v782, %v793
      %v797 = vmul.f32 %v783, %v793
      %v798 = vmul.f32 %v784, %v793
      %v799 = vmul.f32 %v785, %v793
      %v800 = vmul.f32 %v786, %v793
      %v801 = vmul.f32 %v787, %v793
      %v802 = vmul.f32 %v788, %v793
      %v803 = vld [vmem:[%s3] sm:$0xff]
      %805 = vset.pattern.permute.xlu0 0
      %806 = vperm.xlu0 %805, %v803
      %v807 = vpop.permute.xlu0 %806
      %v809 = vadd.f32 %v795, %v807
      %v810 = vadd.f32 %v796, %v807
      %v811 = vadd.f32 %v797, %v807
      %v812 = vadd.f32 %v798, %v807
      %v813 = vadd.f32 %v799, %v807
      %v814 = vadd.f32 %v800, %v807
      %v815 = vadd.f32 %v801, %v807
      %v816 = vadd.f32 %v802, %v807
      %v817 = vmax.f32 %v809, 0.0
      %v818 = vmax.f32 %v810, 0.0
      %v819 = vmax.f32 %v811, 0.0
      %v820 = vmax.f32 %v812, 0.0
      %v821 = vmax.f32 %v813, 0.0
      %v822 = vmax.f32 %v814, 0.0
      %v823 = vmax.f32 %v815, 0.0
      %v824 = vmax.f32 %v816, 0.0
      %v825 = vpack.c.bf16 %v817, %v817
      %v826 = vpack.c.bf16 %v818, %v818
      %v827 = vpack.c.bf16 %v819, %v819
      %v828 = vpack.c.bf16 %v820, %v820
      %v829 = vpack.c.bf16 %v821, %v821
      %v830 = vpack.c.bf16 %v822, %v822
      %v831 = vpack.c.bf16 %v823, %v823
      %v832 = vpack.c.bf16 %v824, %v824
      %v841 = vunpack.c.l.b16 %v825
      %v842 = vunpack.c.l.b16 %v826
      %v843 = vunpack.c.l.b16 %v827
      %v844 = vunpack.c.l.b16 %v828
      %v845 = vunpack.c.l.b16 %v829
      %v846 = vunpack.c.l.b16 %v830
      %v847 = vunpack.c.l.b16 %v831
      %v848 = vunpack.c.l.b16 %v832
      %v849 = vpack.c.b16 %v842, %v841
      %v850 = vpack.c.b16 %v844, %v843
      %v851 = vpack.c.b16 %v846, %v845
      %v852 = vpack.c.b16 %v848, %v847
      %857 = vst [vmem:[%s197] sm:$0xff] %v849
      %858 = vst [vmem:[%s197 + $0x8] sm:$0xff] %v850
      %859 = vst [vmem:[%s197 + $0x10] sm:$0xff] %v851
      %860 = vst [vmem:[%s197 + $0x18] sm:$0xff] %v852
      %p861 = scmp.lt.s32.totalorder %s15, 1
      %s862 = scalar_select %p861, %s15, 1
      %s863 = smul.addr %s862, 8
      %s864 = smul.addr %s863, 4
      %s865 = scalar_lea.vmem %s4, %s864
      // Predicated region
      $region37: #{encoder_forward.5} parent=35 // pred_check
        %p866 = pneg %p122
      $region38: #{encoder_forward.5} parent=35 // pred_check_branch
        %868 = sbr.rel (%p866) target = $region40
      $region39: #{encoder_forward.5} parent=35 // pred_region
        _
      $region40: #{encoder_forward.5} parent=35 // pred_fallthru
        _
    $region36: #{encoder_forward.5} parent=5 // pred_fallthru
      _
    %p869 = scmp.le.s32.totalorder 2, %s10
    // Predicated region
    $region41: #{encoder_forward.5} parent=5 // pred_check
      %p870 = pneg %p869
    $region42: #{encoder_forward.5} parent=5 // pred_check_branch
      %872 = sbr.rel (%p870) target = $region44
    $region43: #{encoder_forward.5} parent=5 // pred_region
      %s873 = ssub.s32 %s10, 2
      // Predicated region
      $region45: #{encoder_forward.5} parent=43 // pred_check
        %p874 = pneg %p128
      $region46: #{encoder_forward.5} parent=43 // pred_check_branch
        %876 = sbr.rel (%p874) target = $region48
      $region47: #{encoder_forward.5} parent=43 // pred_region
        %p877 = scmp.lt.s32.totalorder %s16, 1
        %s878 = scalar_select %p877, %s16, 1
        %s879 = smul.addr %s878, 8
        %s880 = smul.addr %s879, 4
        %s881 = scalar_lea.vmem %s4, %s880
      $region48: #{encoder_forward.5} parent=43 // pred_fallthru
        _
    $region44: #{encoder_forward.5} parent=5 // pred_fallthru
      _
  $region6: #{encoder_forward.5} parent=0 // loop_footer
    %s14 = sadd.s32 1, %s10
  $region7: #{encoder_forward.5} parent=0 // loop_footer_branch
    %9 = sbr.rel target = $region3
  $region8: #{encoder_forward.5} parent=0 // loop_exit
    _

// kernel: encoder_forward.6
$region0: #{encoder_forward.6}
  #allocation0 [shape = 'u32[]', space=smem, size = 0x4, offset = 0x4, fixed_abs, tag = 'smem constant byte address 0x4 - core index']
  #allocation1 [shape = 'u32[144,128]{1,0:T(1,128)}', space=vmem, size = 0x12000, scoped, tag = 'internal scratch']
  %s0 = inlined_call_operand.vmem [shape: bf16[2,32,256], index: 0, kind: input, shape index: {}]
  %s1 = inlined_call_operand.vmem [shape: bf16[32,32], index: 1, kind: input, shape index: {}]
  %s2 = inlined_call_operand.vmem [shape: f32[32,1], index: 2, kind: input, shape index: {}]
  %s3 = inlined_call_operand.vmem [shape: f32[32,1], index: 3, kind: input, shape index: {}]
  %s4 = inlined_call_operand.vmem [shape: bf16[32,32], index: 4, kind: input, shape index: {}]
  %s5 = inlined_call_operand.vmem [shape: f32[8,1], index: 5, kind: input, shape index: {}]
  %s6 = inlined_call_operand.vmem [shape: f32[8,1], index: 6, kind: input, shape index: {}]
  %s7 = inlined_call_operand.vmem [shape: f32[2,8], index: 7, kind: input, shape index: {}]
  %s8 = inlined_call_operand.vmem [shape: f32[2,1], index: 8, kind: input, shape index: {}]
  %s9 = inlined_call_operand.vmem [shape: f32[8,2], index: 9, kind: input, shape index: {}]
  %s10 = inlined_call_operand.vmem [shape: f32[8,1], index: 10, kind: input, shape index: {}]
  %s11 = inlined_call_operand.vmem [shape: bf16[8,8], index: 11, kind: input, shape index: {}]
  %s12 = inlined_call_operand.vmem [shape: f32[8,1], index: 12, kind: input, shape index: {}]
  %s13 = inlined_call_operand.vmem [shape: f32[8,1], index: 13, kind: input, shape index: {}]
  %s14 = inlined_call_operand.vmem [shape: bf16[8,8], index: 14, kind: input, shape index: {}]
  %s15 = inlined_call_operand.vmem [shape: f32[8,1], index: 15, kind: input, shape index: {}]
  %s16 = inlined_call_operand.vmem [shape: f32[8,1], index: 16, kind: input, shape index: {}]
  %s17 = inlined_call_operand.vmem [shape: bf16[2,8,256], index: 17, kind: output, shape index: {}]
  %s18 = sld [smem:[#allocation0]]
  $region101: #{encoder_forward.6} parent=0
    _
  %s20 = ssub.s32 1, %s18
  %s21 = scalar_select 0, %s20, %s18
  loop: start=0, step=1, limit=4
  $region2: #{encoder_forward.6} parent=0 // loop_pre_header
    _
  $region3: #{encoder_forward.6} parent=0 // loop_header
    %s23 = sphi 0, %s27
    %p24 = scmp.ge.s32.totalorder %s23, 4
    %s33 = sphi 0, %s35
    %s36 = sphi 0, %s33
    %s37 = sphi 0, %s36
    %s53 = sphi 0, %s37
    %s57 = sphi 0, %s57
    %s59 = sphi 0, %s57
    %s60 = sphi 0, %s59
    %s74 = sphi 0, %s60
    %s78 = sphi 0, %s78
    %s80 = sphi 0, %s78
    %s81 = sphi 0, %s80
    %s95 = sphi 0, %s81
    %s99 = sphi 0, %s99
    %s101 = sphi 0, %s99
    %s102 = sphi 0, %s101
    %s116 = sphi 0, %s102
    %s120 = sphi 0, %s120
    %s122 = sphi 0, %s120
    %s123 = sphi 0, %s122
    %s137 = sphi 0, %s123
    %s141 = sphi 0, %s141
    %s143 = sphi 0, %s141
    %s144 = sphi 0, %s143
    %s158 = sphi 0, %s144
    %s162 = sphi 0, %s162
    %s164 = sphi 0, %s162
    %s165 = sphi 0, %s164
    %s179 = sphi 0, %s165
    %s183 = sphi 0, %s183
    %s185 = sphi 0, %s183
    %s186 = sphi 0, %s185
    %s200 = sphi 0, %s186
    %s204 = sphi 0, %s204
    %s206 = sphi 0, %s204
    %s207 = sphi 0, %s206
    %s221 = sphi 0, %s207
    %s225 = sphi 0, %s225
    %s227 = sphi 0, %s225
    %s228 = sphi 0, %s227
    %s242 = sphi 0, %s228
    %s246 = sphi 0, %s246
    %s248 = sphi 0, %s246
    %s249 = sphi 0, %s248
    %s263 = sphi 0, %s249
    %s267 = sphi 0, %s267
    %s269 = sphi 0, %s267
    %s270 = sphi 0, %s269
    %s284 = sphi 0, %s270
    %s288 = sphi 0, %s288
    %s290 = sphi 0, %s288
    %s291 = sphi 0, %s290
    %s305 = sphi 0, %s291
    %s309 = sphi 0, %s309
    %s311 = sphi 0, %s309
    %s312 = sphi 0, %s311
    %s326 = sphi 0, %s312
    %s330 = sphi 0, %s330
    %s332 = sphi 0, %s330
    %s333 = sphi 0, %s332
    %s347 = sphi 0, %s333
    %s351 = sphi 0, %s351
    %s353 = sphi 0, %s351
    %s354 = sphi 0, %s353
    %s368 = sphi 0, %s354
    %s372 = sphi 0, %s372
    %s374 = sphi 0, %s372
    %s375 = sphi 0, %s374
    %s389 = sphi 0, %s375
    %s395 = sphi 0, %s397
    %s398 = sphi 0, %s395
    %s399 = sphi 0, %s398
    %s415 = sphi 0, %s399
  $region4: #{encoder_forward.6} parent=0 // loop_header_branch
    %26 = sbr.rel (%p24) target = $region8
  $region5: #{encoder_forward.6} parent=0 // loop_body
    %s28 = ssub.s32 %s23, 1
    %s29 = ssub.s32 %s23, 2
    %s30 = sadd.s32 %s23, 1
    %s31 = ssub.s32 %s23, %s30
    %p32 = scmp.eq.s32.totalorder %s31, 0
    %s34 = sadd.s32 %s33, 1
    %s35 = scalar_select %p32, %s33, %s34
    %p38 = pneg %p32
    %p39 = scmp.eq.s32.totalorder %s23, 1
    %p40 = por %p38, %p39
    %p41 = scmp.ne.s32.totalorder %s33, %s36
    %p42 = scmp.eq.s32.totalorder %s23, 0
    %p43 = por %p41, %p42
    %p44 = scmp.ne.s32.totalorder %s33, %s36
    %p45 = scmp.eq.s32.totalorder %s28, 1
    %p46 = por %p44, %p45
    %p47 = scmp.ne.s32.totalorder %s36, %s37
    %p48 = scmp.eq.s32.totalorder %s28, 0
    %p49 = por %p47, %p48
    %p50 = scmp.ne.s32.totalorder %s36, %s37
    %p51 = scmp.eq.s32.totalorder %s29, 1
    %p52 = por %p50, %p51
    %p54 = scmp.ne.s32.totalorder %s37, %s53
    %p55 = scmp.eq.s32.totalorder %s29, 0
    %p56 = por %p54, %p55
    %s58 = sadd.s32 %s57, 1
    %p61 = scmp.eq.s32.totalorder %s23, 1
    %p62 = scmp.ne.s32.totalorder %s57, %s59
    %p63 = scmp.eq.s32.totalorder %s23, 0
    %p64 = por %p62, %p63
    %p65 = scmp.ne.s32.totalorder %s57, %s59
    %p66 = scmp.eq.s32.totalorder %s28, 1
    %p67 = por %p65, %p66
    %p68 = scmp.ne.s32.totalorder %s59, %s60
    %p69 = scmp.eq.s32.totalorder %s28, 0
    %p70 = por %p68, %p69
    %p71 = scmp.ne.s32.totalorder %s59, %s60
    %p72 = scmp.eq.s32.totalorder %s29, 1
    %p73 = por %p71, %p72
    %p75 = scmp.ne.s32.totalorder %s60, %s74
    %p76 = scmp.eq.s32.totalorder %s29, 0
    %p77 = por %p75, %p76
    %s79 = sadd.s32 %s78, 1
    %p82 = scmp.eq.s32.totalorder %s23, 1
    %p83 = scmp.ne.s32.totalorder %s78, %s80
    %p84 = scmp.eq.s32.totalorder %s23, 0
    %p85 = por %p83, %p84
    %p86 = scmp.ne.s32.totalorder %s78, %s80
    %p87 = scmp.eq.s32.totalorder %s28, 1
    %p88 = por %p86, %p87
    %p89 = scmp.ne.s32.totalorder %s80, %s81
    %p90 = scmp.eq.s32.totalorder %s28, 0
    %p91 = por %p89, %p90
    %p92 = scmp.ne.s32.totalorder %s80, %s81
    %p93 = scmp.eq.s32.totalorder %s29, 1
    %p94 = por %p92, %p93
    %p96 = scmp.ne.s32.totalorder %s81, %s95
    %p97 = scmp.eq.s32.totalorder %s29, 0
    %p98 = por %p96, %p97
    %s100 = sadd.s32 %s99, 1
    %p103 = scmp.eq.s32.totalorder %s23, 1
    %p104 = scmp.ne.s32.totalorder %s99, %s101
    %p105 = scmp.eq.s32.totalorder %s23, 0
    %p106 = por %p104, %p105
    %p107 = scmp.ne.s32.totalorder %s99, %s101
    %p108 = scmp.eq.s32.totalorder %s28, 1
    %p109 = por %p107, %p108
    %p110 = scmp.ne.s32.totalorder %s101, %s102
    %p111 = scmp.eq.s32.totalorder %s28, 0
    %p112 = por %p110, %p111
    %p113 = scmp.ne.s32.totalorder %s101, %s102
    %p114 = scmp.eq.s32.totalorder %s29, 1
    %p115 = por %p113, %p114
    %p117 = scmp.ne.s32.totalorder %s102, %s116
    %p118 = scmp.eq.s32.totalorder %s29, 0
    %p119 = por %p117, %p118
    %s121 = sadd.s32 %s120, 1
    %p124 = scmp.eq.s32.totalorder %s23, 1
    %p125 = scmp.ne.s32.totalorder %s120, %s122
    %p126 = scmp.eq.s32.totalorder %s23, 0
    %p127 = por %p125, %p126
    %p128 = scmp.ne.s32.totalorder %s120, %s122
    %p129 = scmp.eq.s32.totalorder %s28, 1
    %p130 = por %p128, %p129
    %p131 = scmp.ne.s32.totalorder %s122, %s123
    %p132 = scmp.eq.s32.totalorder %s28, 0
    %p133 = por %p131, %p132
    %p134 = scmp.ne.s32.totalorder %s122, %s123
    %p135 = scmp.eq.s32.totalorder %s29, 1
    %p136 = por %p134, %p135
    %p138 = scmp.ne.s32.totalorder %s123, %s137
    %p139 = scmp.eq.s32.totalorder %s29, 0
    %p140 = por %p138, %p139
    %s142 = sadd.s32 %s141, 1
    %p145 = scmp.eq.s32.totalorder %s23, 1
    %p146 = scmp.ne.s32.totalorder %s141, %s143
    %p147 = scmp.eq.s32.totalorder %s23, 0
    %p148 = por %p146, %p147
    %p149 = scmp.ne.s32.totalorder %s141, %s143
    %p150 = scmp.eq.s32.totalorder %s28, 1
    %p151 = por %p149, %p150
    %p152 = scmp.ne.s32.totalorder %s143, %s144
    %p153 = scmp.eq.s32.totalorder %s28, 0
    %p154 = por %p152, %p153
    %p155 = scmp.ne.s32.totalorder %s143, %s144
    %p156 = scmp.eq.s32.totalorder %s29, 1
    %p157 = por %p155, %p156
    %p159 = scmp.ne.s32.totalorder %s144, %s158
    %p160 = scmp.eq.s32.totalorder %s29, 0
    %p161 = por %p159, %p160
    %s163 = sadd.s32 %s162, 1
    %p166 = scmp.eq.s32.totalorder %s23, 1
    %p167 = scmp.ne.s32.totalorder %s162, %s164
    %p168 = scmp.eq.s32.totalorder %s23, 0
    %p169 = por %p167, %p168
    %p170 = scmp.ne.s32.totalorder %s162, %s164
    %p171 = scmp.eq.s32.totalorder %s28, 1
    %p172 = por %p170, %p171
    %p173 = scmp.ne.s32.totalorder %s164, %s165
    %p174 = scmp.eq.s32.totalorder %s28, 0
    %p175 = por %p173, %p174
    %p176 = scmp.ne.s32.totalorder %s164, %s165
    %p177 = scmp.eq.s32.totalorder %s29, 1
    %p178 = por %p176, %p177
    %p180 = scmp.ne.s32.totalorder %s165, %s179
    %p181 = scmp.eq.s32.totalorder %s29, 0
    %p182 = por %p180, %p181
    %s184 = sadd.s32 %s183, 1
    %p187 = scmp.eq.s32.totalorder %s23, 1
    %p188 = scmp.ne.s32.totalorder %s183, %s185
    %p189 = scmp.eq.s32.totalorder %s23, 0
    %p190 = por %p188, %p189
    %p191 = scmp.ne.s32.totalorder %s183, %s185
    %p192 = scmp.eq.s32.totalorder %s28, 1
    %p193 = por %p191, %p192
    %p194 = scmp.ne.s32.totalorder %s185, %s186
    %p195 = scmp.eq.s32.totalorder %s28, 0
    %p196 = por %p194, %p195
    %p197 = scmp.ne.s32.totalorder %s185, %s186
    %p198 = scmp.eq.s32.totalorder %s29, 1
    %p199 = por %p197, %p198
    %p201 = scmp.ne.s32.totalorder %s186, %s200
    %p202 = scmp.eq.s32.totalorder %s29, 0
    %p203 = por %p201, %p202
    %s205 = sadd.s32 %s204, 1
    %p208 = scmp.eq.s32.totalorder %s23, 1
    %p209 = scmp.ne.s32.totalorder %s204, %s206
    %p210 = scmp.eq.s32.totalorder %s23, 0
    %p211 = por %p209, %p210
    %p212 = scmp.ne.s32.totalorder %s204, %s206
    %p213 = scmp.eq.s32.totalorder %s28, 1
    %p214 = por %p212, %p213
    %p215 = scmp.ne.s32.totalorder %s206, %s207
    %p216 = scmp.eq.s32.totalorder %s28, 0
    %p217 = por %p215, %p216
    %p218 = scmp.ne.s32.totalorder %s206, %s207
    %p219 = scmp.eq.s32.totalorder %s29, 1
    %p220 = por %p218, %p219
    %p222 = scmp.ne.s32.totalorder %s207, %s221
    %p223 = scmp.eq.s32.totalorder %s29, 0
    %p224 = por %p222, %p223
    %s226 = sadd.s32 %s225, 1
    %p229 = scmp.eq.s32.totalorder %s23, 1
    %p230 = scmp.ne.s32.totalorder %s225, %s227
    %p231 = scmp.eq.s32.totalorder %s23, 0
    %p232 = por %p230, %p231
    %p233 = scmp.ne.s32.totalorder %s225, %s227
    %p234 = scmp.eq.s32.totalorder %s28, 1
    %p235 = por %p233, %p234
    %p236 = scmp.ne.s32.totalorder %s227, %s228
    %p237 = scmp.eq.s32.totalorder %s28, 0
    %p238 = por %p236, %p237
    %p239 = scmp.ne.s32.totalorder %s227, %s228
    %p240 = scmp.eq.s32.totalorder %s29, 1
    %p241 = por %p239, %p240
    %p243 = scmp.ne.s32.totalorder %s228, %s242
    %p244 = scmp.eq.s32.totalorder %s29, 0
    %p245 = por %p243, %p244
    %s247 = sadd.s32 %s246, 1
    %p250 = scmp.eq.s32.totalorder %s23, 1
    %p251 = scmp.ne.s32.totalorder %s246, %s248
    %p252 = scmp.eq.s32.totalorder %s23, 0
    %p253 = por %p251, %p252
    %p254 = scmp.ne.s32.totalorder %s246, %s248
    %p255 = scmp.eq.s32.totalorder %s28, 1
    %p256 = por %p254, %p255
    %p257 = scmp.ne.s32.totalorder %s248, %s249
    %p258 = scmp.eq.s32.totalorder %s28, 0
    %p259 = por %p257, %p258
    %p260 = scmp.ne.s32.totalorder %s248, %s249
    %p261 = scmp.eq.s32.totalorder %s29, 1
    %p262 = por %p260, %p261
    %p264 = scmp.ne.s32.totalorder %s249, %s263
    %p265 = scmp.eq.s32.totalorder %s29, 0
    %p266 = por %p264, %p265
    %s268 = sadd.s32 %s267, 1
    %p271 = scmp.eq.s32.totalorder %s23, 1
    %p272 = scmp.ne.s32.totalorder %s267, %s269
    %p273 = scmp.eq.s32.totalorder %s23, 0
    %p274 = por %p272, %p273
    %p275 = scmp.ne.s32.totalorder %s267, %s269
    %p276 = scmp.eq.s32.totalorder %s28, 1
    %p277 = por %p275, %p276
    %p278 = scmp.ne.s32.totalorder %s269, %s270
    %p279 = scmp.eq.s32.totalorder %s28, 0
    %p280 = por %p278, %p279
    %p281 = scmp.ne.s32.totalorder %s269, %s270
    %p282 = scmp.eq.s32.totalorder %s29, 1
    %p283 = por %p281, %p282
    %p285 = scmp.ne.s32.totalorder %s270, %s284
    %p286 = scmp.eq.s32.totalorder %s29, 0
    %p287 = por %p285, %p286
    %s289 = sadd.s32 %s288, 1
    %p292 = scmp.eq.s32.totalorder %s23, 1
    %p293 = scmp.ne.s32.totalorder %s288, %s290
    %p294 = scmp.eq.s32.totalorder %s23, 0
    %p295 = por %p293, %p294
    %p296 = scmp.ne.s32.totalorder %s288, %s290
    %p297 = scmp.eq.s32.totalorder %s28, 1
    %p298 = por %p296, %p297
    %p299 = scmp.ne.s32.totalorder %s290, %s291
    %p300 = scmp.eq.s32.totalorder %s28, 0
    %p301 = por %p299, %p300
    %p302 = scmp.ne.s32.totalorder %s290, %s291
    %p303 = scmp.eq.s32.totalorder %s29, 1
    %p304 = por %p302, %p303
    %p306 = scmp.ne.s32.totalorder %s291, %s305
    %p307 = scmp.eq.s32.totalorder %s29, 0
    %p308 = por %p306, %p307
    %s310 = sadd.s32 %s309, 1
    %p313 = scmp.eq.s32.totalorder %s23, 1
    %p314 = scmp.ne.s32.totalorder %s309, %s311
    %p315 = scmp.eq.s32.totalorder %s23, 0
    %p316 = por %p314, %p315
    %p317 = scmp.ne.s32.totalorder %s309, %s311
    %p318 = scmp.eq.s32.totalorder %s28, 1
    %p319 = por %p317, %p318
    %p320 = scmp.ne.s32.totalorder %s311, %s312
    %p321 = scmp.eq.s32.totalorder %s28, 0
    %p322 = por %p320, %p321
    %p323 = scmp.ne.s32.totalorder %s311, %s312
    %p324 = scmp.eq.s32.totalorder %s29, 1
    %p325 = por %p323, %p324
    %p327 = scmp.ne.s32.totalorder %s312, %s326
    %p328 = scmp.eq.s32.totalorder %s29, 0
    %p329 = por %p327, %p328
    %s331 = sadd.s32 %s330, 1
    %p334 = scmp.eq.s32.totalorder %s23, 1
    %p335 = scmp.ne.s32.totalorder %s330, %s332
    %p336 = scmp.eq.s32.totalorder %s23, 0
    %p337 = por %p335, %p336
    %p338 = scmp.ne.s32.totalorder %s330, %s332
    %p339 = scmp.eq.s32.totalorder %s28, 1
    %p340 = por %p338, %p339
    %p341 = scmp.ne.s32.totalorder %s332, %s333
    %p342 = scmp.eq.s32.totalorder %s28, 0
    %p343 = por %p341, %p342
    %p344 = scmp.ne.s32.totalorder %s332, %s333
    %p345 = scmp.eq.s32.totalorder %s29, 1
    %p346 = por %p344, %p345
    %p348 = scmp.ne.s32.totalorder %s333, %s347
    %p349 = scmp.eq.s32.totalorder %s29, 0
    %p350 = por %p348, %p349
    %s352 = sadd.s32 %s351, 1
    %p355 = scmp.eq.s32.totalorder %s23, 1
    %p356 = scmp.ne.s32.totalorder %s351, %s353
    %p357 = scmp.eq.s32.totalorder %s23, 0
    %p358 = por %p356, %p357
    %p359 = scmp.ne.s32.totalorder %s351, %s353
    %p360 = scmp.eq.s32.totalorder %s28, 1
    %p361 = por %p359, %p360
    %p362 = scmp.ne.s32.totalorder %s353, %s354
    %p363 = scmp.eq.s32.totalorder %s28, 0
    %p364 = por %p362, %p363
    %p365 = scmp.ne.s32.totalorder %s353, %s354
    %p366 = scmp.eq.s32.totalorder %s29, 1
    %p367 = por %p365, %p366
    %p369 = scmp.ne.s32.totalorder %s354, %s368
    %p370 = scmp.eq.s32.totalorder %s29, 0
    %p371 = por %p369, %p370
    %s373 = sadd.s32 %s372, 1
    %p376 = scmp.eq.s32.totalorder %s23, 1
    %p377 = scmp.ne.s32.totalorder %s372, %s374
    %p378 = scmp.eq.s32.totalorder %s23, 0
    %p379 = por %p377, %p378
    %p380 = scmp.ne.s32.totalorder %s372, %s374
    %p381 = scmp.eq.s32.totalorder %s28, 1
    %p382 = por %p380, %p381
    %p383 = scmp.ne.s32.totalorder %s374, %s375
    %p384 = scmp.eq.s32.totalorder %s28, 0
    %p385 = por %p383, %p384
    %p386 = scmp.ne.s32.totalorder %s374, %s375
    %p387 = scmp.eq.s32.totalorder %s29, 1
    %p388 = por %p386, %p387
    %p390 = scmp.ne.s32.totalorder %s375, %s389
    %p391 = scmp.eq.s32.totalorder %s29, 0
    %p392 = por %p390, %p391
    %s393 = ssub.s32 %s23, %s30
    %p394 = scmp.eq.s32.totalorder %s393, 0
    %s396 = sadd.s32 %s395, 1
    %s397 = scalar_select %p394, %s395, %s396
    %p400 = pneg %p394
    %p401 = scmp.eq.s32.totalorder %s23, 1
    %p402 = por %p400, %p401
    %p403 = scmp.ne.s32.totalorder %s395, %s398
    %p404 = scmp.eq.s32.totalorder %s23, 0
    %p405 = por %p403, %p404
    %p406 = scmp.ne.s32.totalorder %s395, %s398
    %p407 = scmp.eq.s32.totalorder %s28, 1
    %p408 = por %p406, %p407
    %p409 = scmp.ne.s32.totalorder %s398, %s399
    %p410 = scmp.eq.s32.totalorder %s28, 0
    %p411 = por %p409, %p410
    %p412 = scmp.ne.s32.totalorder %s398, %s399
    %p413 = scmp.eq.s32.totalorder %s29, 1
    %p414 = por %p412, %p413
    %p416 = scmp.ne.s32.totalorder %s399, %s415
    %p417 = scmp.eq.s32.totalorder %s29, 0
    %p418 = por %p416, %p417
    %p419 = scmp.le.s32.totalorder 1, %s23
    %p420 = scmp.lt.s32.totalorder %s23, 3
    %p421 = pnand %p419, %p420
    %p422 = pneg %p421
    // Predicated region
    $region9: #{encoder_forward.6} parent=5 // pred_check
      _
    $region10: #{encoder_forward.6} parent=5 // pred_check_branch
      %424 = sbr.rel (%p421) target = $region12
    $region11: #{encoder_forward.6} parent=5 // pred_region
      %s425 = ssub.s32 %s23, 1
      // Predicated region
      $region13: #{encoder_forward.6} parent=11 // pred_check
        %p426 = pneg %p70
      $region14: #{encoder_forward.6} parent=11 // pred_check_branch
        %428 = sbr.rel (%p426) target = $region16
      $region15: #{encoder_forward.6} parent=11 // pred_region
        _
      $region16: #{encoder_forward.6} parent=11 // pred_fallthru
        _
      // Predicated region
      $region17: #{encoder_forward.6} parent=11 // pred_check
        %p429 = pneg %p91
      $region18: #{encoder_forward.6} parent=11 // pred_check_branch
        %431 = sbr.rel (%p429) target = $region20
      $region19: #{encoder_forward.6} parent=11 // pred_region
        _
      $region20: #{encoder_forward.6} parent=11 // pred_fallthru
        _
      // Predicated region
      $region21: #{encoder_forward.6} parent=11 // pred_check
        %p432 = pneg %p112
      $region22: #{encoder_forward.6} parent=11 // pred_check_branch
        %434 = sbr.rel (%p432) target = $region24
      $region23: #{encoder_forward.6} parent=11 // pred_region
        _
      $region24: #{encoder_forward.6} parent=11 // pred_fallthru
        _
      // Predicated region
      $region25: #{encoder_forward.6} parent=11 // pred_check
        %p435 = pneg %p133
      $region26: #{encoder_forward.6} parent=11 // pred_check_branch
        %437 = sbr.rel (%p435) target = $region28
      $region27: #{encoder_forward.6} parent=11 // pred_region
        _
      $region28: #{encoder_forward.6} parent=11 // pred_fallthru
        _
      // Predicated region
      $region29: #{encoder_forward.6} parent=11 // pred_check
        %p438 = pneg %p154
      $region30: #{encoder_forward.6} parent=11 // pred_check_branch
        %440 = sbr.rel (%p438) target = $region32
      $region31: #{encoder_forward.6} parent=11 // pred_region
        _
      $region32: #{encoder_forward.6} parent=11 // pred_fallthru
        _
      // Predicated region
      $region33: #{encoder_forward.6} parent=11 // pred_check
        %p441 = pneg %p175
      $region34: #{encoder_forward.6} parent=11 // pred_check_branch
        %443 = sbr.rel (%p441) target = $region36
      $region35: #{encoder_forward.6} parent=11 // pred_region
        _
      $region36: #{encoder_forward.6} parent=11 // pred_fallthru
        _
      // Predicated region
      $region37: #{encoder_forward.6} parent=11 // pred_check
        %p444 = pneg %p196
      $region38: #{encoder_forward.6} parent=11 // pred_check_branch
        %446 = sbr.rel (%p444) target = $region40
      $region39: #{encoder_forward.6} parent=11 // pred_region
        _
      $region40: #{encoder_forward.6} parent=11 // pred_fallthru
        _
      // Predicated region
      $region41: #{encoder_forward.6} parent=11 // pred_check
        %p447 = pneg %p217
      $region42: #{encoder_forward.6} parent=11 // pred_check_branch
        %449 = sbr.rel (%p447) target = $region44
      $region43: #{encoder_forward.6} parent=11 // pred_region
        _
      $region44: #{encoder_forward.6} parent=11 // pred_fallthru
        _
      // Predicated region
      $region45: #{encoder_forward.6} parent=11 // pred_check
        %p450 = pneg %p238
      $region46: #{encoder_forward.6} parent=11 // pred_check_branch
        %452 = sbr.rel (%p450) target = $region48
      $region47: #{encoder_forward.6} parent=11 // pred_region
        _
      $region48: #{encoder_forward.6} parent=11 // pred_fallthru
        _
      // Predicated region
      $region49: #{encoder_forward.6} parent=11 // pred_check
        %p453 = pneg %p259
      $region50: #{encoder_forward.6} parent=11 // pred_check_branch
        %455 = sbr.rel (%p453) target = $region52
      $region51: #{encoder_forward.6} parent=11 // pred_region
        _
      $region52: #{encoder_forward.6} parent=11 // pred_fallthru
        _
      // Predicated region
      $region53: #{encoder_forward.6} parent=11 // pred_check
        %p456 = pneg %p280
      $region54: #{encoder_forward.6} parent=11 // pred_check_branch
        %458 = sbr.rel (%p456) target = $region56
      $region55: #{encoder_forward.6} parent=11 // pred_region
        _
      $region56: #{encoder_forward.6} parent=11 // pred_fallthru
        _
      // Predicated region
      $region57: #{encoder_forward.6} parent=11 // pred_check
        %p459 = pneg %p301
      $region58: #{encoder_forward.6} parent=11 // pred_check_branch
        %461 = sbr.rel (%p459) target = $region60
      $region59: #{encoder_forward.6} parent=11 // pred_region
        _
      $region60: #{encoder_forward.6} parent=11 // pred_fallthru
        _
      // Predicated region
      $region61: #{encoder_forward.6} parent=11 // pred_check
        %p462 = pneg %p322
      $region62: #{encoder_forward.6} parent=11 // pred_check_branch
        %464 = sbr.rel (%p462) target = $region64
      $region63: #{encoder_forward.6} parent=11 // pred_region
        _
      $region64: #{encoder_forward.6} parent=11 // pred_fallthru
        _
      // Predicated region
      $region65: #{encoder_forward.6} parent=11 // pred_check
        %p465 = pneg %p343
      $region66: #{encoder_forward.6} parent=11 // pred_check_branch
        %467 = sbr.rel (%p465) target = $region68
      $region67: #{encoder_forward.6} parent=11 // pred_region
        _
      $region68: #{encoder_forward.6} parent=11 // pred_fallthru
        _
      // Predicated region
      $region69: #{encoder_forward.6} parent=11 // pred_check
        %p468 = pneg %p364
      $region70: #{encoder_forward.6} parent=11 // pred_check_branch
        %470 = sbr.rel (%p468) target = $region72
      $region71: #{encoder_forward.6} parent=11 // pred_region
        _
      $region72: #{encoder_forward.6} parent=11 // pred_fallthru
        _
      // Predicated region
      $region73: #{encoder_forward.6} parent=11 // pred_check
        %p471 = pneg %p385
      $region74: #{encoder_forward.6} parent=11 // pred_check_branch
        %473 = sbr.rel (%p471) target = $region76
      $region75: #{encoder_forward.6} parent=11 // pred_region
        _
      $region76: #{encoder_forward.6} parent=11 // pred_fallthru
        _
    $region12: #{encoder_forward.6} parent=5 // pred_fallthru
      _
    %p474 = scmp.lt.s32.totalorder %s23, 2
    // Predicated region
    $region77: #{encoder_forward.6} parent=5 // pred_check
      %p475 = pneg %p474
    $region78: #{encoder_forward.6} parent=5 // pred_check_branch
      %477 = sbr.rel (%p475) target = $region80
    $region79: #{encoder_forward.6} parent=5 // pred_region
      // Predicated region
      $region81: #{encoder_forward.6} parent=79 // pred_check
        %p478 = pneg %p43
      $region82: #{encoder_forward.6} parent=79 // pred_check_branch
        %480 = sbr.rel (%p478) target = $region84
      $region83: #{encoder_forward.6} parent=79 // pred_region
        %p481 = scmp.lt.s32.totalorder %s23, 1
        %s482 = scalar_select %p481, %s23, 1
        %s483 = smul.addr %s482, 8
        %s484 = smul.addr %s483, 4
        %s485 = scalar_lea.vmem %s0, %s484
      $region84: #{encoder_forward.6} parent=79 // pred_fallthru
        _
    $region80: #{encoder_forward.6} parent=5 // pred_fallthru
      _
    %p486 = scmp.le.s32.totalorder 1, %s23
    %p487 = scmp.lt.s32.totalorder %s23, 3
    %p488 = pnand %p486, %p487
    %p489 = pneg %p488
    // Predicated region
    $region85: #{encoder_forward.6} parent=5 // pred_check
      _
    $region86: #{encoder_forward.6} parent=5 // pred_check_branch
      %491 = sbr.rel (%p488) target = $region88
    $region87: #{encoder_forward.6} parent=5 // pred_region
      %s492 = ssub.s32 %s23, 1
      %p493 = scmp.lt.s32.totalorder %s28, 1
      %s494 = scalar_select %p493, %s28, 1
      %s495 = smul.addr %s494, 8
      %s496 = smul.addr %s495, 4
      %s497 = scalar_lea.vmem %s0, %s496
      %p498 = pneg %p49
      %p499 = pneg %p46
      %p500 = pneg %p70
      %p501 = pneg %p67
      %p502 = pneg %p91
      %p503 = pneg %p88
      %p504 = pneg %p112
      %p505 = pneg %p109
      %p506 = pneg %p133
      %p507 = pneg %p130
      %p508 = pneg %p154
      %p509 = pneg %p151
      %p510 = pneg %p175
      %p511 = pneg %p172
      %p512 = pneg %p196
      %p513 = pneg %p193
      %p514 = pneg %p217
      %p515 = pneg %p214
      %p516 = pneg %p238
      %p517 = pneg %p235
      %p518 = pneg %p259
      %p519 = pneg %p256
      %p520 = pneg %p280
      %p521 = pneg %p277
      %p522 = pneg %p301
      %p523 = pneg %p298
      %p524 = pneg %p322
      %p525 = pneg %p319
      %p526 = pneg %p343
      %p527 = pneg %p340
      %p528 = pneg %p364
      %p529 = pneg %p361
      %p530 = pneg %p385
      %p531 = pneg %p382
      %p532 = pneg %p411
      %p533 = pneg %p408
      %p534 = scmp.lt.s32.totalorder %s28, 1
      %s535 = scalar_select %p534, %s28, 1
      %s536 = smul.addr %s535, 2
      %s537 = smul.addr %s536, 4
      %s538 = scalar_lea.vmem %s17, %s537
      %p539 = scmp.lt.s32.totalorder %s28, 1
      %s540 = scalar_select %p539, %s28, 1
      %s541 = smul.addr %s540, 8
      %s542 = smul.addr %s541, 4
      %s543 = scalar_lea.vmem %s0, %s542
      %p544 = scmp.lt.s32.totalorder %s28, 1
      %s545 = scalar_select %p544, %s28, 1
      %s546 = smul.addr %s545, 2
      %s547 = smul.addr %s546, 4
      %s548 = scalar_lea.vmem %s17, %s547
      %v550 = vld [vmem:[%s543] sm:$0xff]
      %v551 = vld [vmem:[%s543 + $0x8] sm:$0xff]
      %v552 = vld [vmem:[%s543 + $0x10] sm:$0xff]
      %v553 = vld [vmem:[%s543 + $0x18] sm:$0xff]
      %v554 = vld [vmem:[%s1] sm:$0xf]
      %v555 = vld [vmem:[%s1 + $0x4] sm:$0xf]
      %v556 = vld [vmem:[%s1 + $0x8] sm:$0xf]
      %v557 = vld [vmem:[%s1 + $0xc] sm:$0xf]
      %v562 = vunpack.c.l.b16 %v554
      %v563 = vunpack.c.l.b16 %v555
      %v564 = vunpack.c.l.b16 %v556
      %v565 = vunpack.c.l.b16 %v557
      %v566 = vpack.c.b16 %v563, %v562
      %v567 = vpack.c.b16 %v565, %v564
      %v572 = vunpack.c.l.b16 %v550
      %v573 = vunpack.c.h.b16 %v550
      %v574 = vunpack.c.l.b16 %v551
      %v575 = vunpack.c.h.b16 %v551
      %v576 = vunpack.c.l.b16 %v552
      %v577 = vunpack.c.h.b16 %v552
      %v578 = vunpack.c.l.b16 %v553
      %v579 = vunpack.c.h.b16 %v553
      %v580 = vpack.c.b16 %v574, %v572
      %v581 = vpack.c.b16 %v575, %v573
      %v582 = vpack.c.b16 %v578, %v576
      %v583 = vpack.c.b16 %v579, %v577
      %vm588 = vcmask 261120
      %v590 = vsel %vm588, %v566, 0
      %v593 = vsel %vm588, %v567, 0
      %595 = vmatprep.subr.bf16.mxu0 %v581
      %596 = vmatpush1.bf16.msra.mxu0 %v580
      %597 = vmatprep.subr.bf16.mxu0 %v583
      %598 = vmatpush1.bf16.msra.mxu0 %v582
      %599 = vmatprep.subr.bf16.mxu0 0
      %600 = vmatpush1.bf16.msra.mxu0 0
      %601 = vmatprep.subr.bf16.mxu0 0
      %602 = vmatpush1.bf16.msra.mxu0 0
      %603 = vmatprep.subr.bf16.mxu0 0
      %604 = vmatpush1.bf16.msra.mxu0 0
      %605 = vmatprep.subr.bf16.mxu0 0
      %606 = vmatpush1.bf16.msra.mxu0 0
      %607 = vmatprep.subr.bf16.mxu0 0
      %608 = vmatpush1.bf16.msra.mxu0 0
      %609 = vmatprep.subr.bf16.mxu0 0
      %610 = vmatpush1.bf16.msra.mxu0 0
      %611 = vmatprep.subr.bf16.mxu0 0
      %612 = vmatpush1.bf16.msra.mxu0 0
      %613 = vmatprep.subr.bf16.mxu0 0
      %614 = vmatpush1.bf16.msra.mxu0 0
      %615 = vmatprep.subr.bf16.mxu0 0
      %616 = vmatpush1.bf16.msra.mxu0 0
      %617 = vmatprep.subr.bf16.mxu0 0
      %618 = vmatpush1.bf16.msra.mxu0 0
      %619 = vmatprep.subr.bf16.mxu0 0
      %620 = vmatpush1.bf16.msra.mxu0 0
      %621 = vmatprep.subr.bf16.mxu0 0
      %622 = vmatpush1.bf16.msra.mxu0 0
      %623 = vmatprep.subr.bf16.mxu0 0
      %624 = vmatpush1.bf16.msra.mxu0 0
      %625 = vmatprep.subr.bf16.mxu0 0
      %626 = vmatpush1.bf16.msra.mxu0 0
      %627 = vmatprep.mubr.bf16.mxu0 0
      %628 = vmatmul.mubr.bf16.gmra.mrb[0].mxu0 %v590
      %v629 = vpop.f32.mrb[0].mxu0
      %v630 = vadd.f32 0.0, %v629
      %v631 = vpop.f32.mrb[0].mxu0
      %v632 = vadd.f32 0.0, %v631
      %v633 = vpop.f32.mrb[0].mxu0
      %v634 = vadd.f32 0.0, %v633
      %v635 = vpop.f32.mrb[0].mxu0
      %v636 = vadd.f32 0.0, %v635
      %637 = vmatprep.mubr.bf16.mxu0 0
      %638 = vmatmul.mubr.bf16.gmra.mrb[0].mxu0 %v593
      %v639 = vpop.f32.mrb[0].mxu0
      %v640 = vadd.f32 0.0, %v639
      %v641 = vpop.f32.mrb[0].mxu0
      %v642 = vadd.f32 0.0, %v641
      %v643 = vpop.f32.mrb[0].mxu0
      %v644 = vadd.f32 0.0, %v643
      %v645 = vpop.f32.mrb[0].mxu0
      %v646 = vadd.f32 0.0, %v645
      %647 = vdwg.mxu0
      %v648 = vld [vmem:[%s2] sm:$0xff]
      %v649 = vld [vmem:[%s2 + $0x8] sm:$0xff]
      %v650 = vld [vmem:[%s2 + $0x10] sm:$0xff]
      %v651 = vld [vmem:[%s2 + $0x18] sm:$0xff]
      %653 = vset.pattern.permute.xlu0 0
      %654 = vperm.xlu0 %653, %v648
      %v655 = vpop.permute.xlu0 %654
      %658 = vset.pattern.permute.xlu0 0
      %659 = vperm.xlu0 %658, %v649
      %v660 = vpop.permute.xlu0 %659
      %663 = vset.pattern.permute.xlu0 0
      %664 = vperm.xlu0 %663, %v650
      %v665 = vpop.permute.xlu0 %664
      %668 = vset.pattern.permute.xlu0 0
      %669 = vperm.xlu0 %668, %v651
      %v670 = vpop.permute.xlu0 %669
      %v672 = vmul.f32 %v630, %v655
      %v673 = vmul.f32 %v632, %v655
      %v674 = vmul.f32 %v634, %v660
      %v675 = vmul.f32 %v636, %v660
      %v676 = vmul.f32 %v640, %v665
      %v677 = vmul.f32 %v642, %v665
      %v678 = vmul.f32 %v644, %v670
      %v679 = vmul.f32 %v646, %v670
      %v680 = vld [vmem:[%s3] sm:$0xff]
      %v681 = vld [vmem:[%s3 + $0x8] sm:$0xff]
      %v682 = vld [vmem:[%s3 + $0x10] sm:$0xff]
      %v683 = vld [vmem:[%s3 + $0x18] sm:$0xff]
      %685 = vset.pattern.permute.xlu0 0
      %686 = vperm.xlu0 %685, %v680
      %v687 = vpop.permute.xlu0 %686
      %690 = vset.pattern.permute.xlu0 0
      %691 = vperm.xlu0 %690, %v681
      %v692 = vpop.permute.xlu0 %691
      %695 = vset.pattern.permute.xlu0 0
      %696 = vperm.xlu0 %695, %v682
      %v697 = vpop.permute.xlu0 %696
      %700 = vset.pattern.permute.xlu0 0
      %701 = vperm.xlu0 %700, %v683
      %v702 = vpop.permute.xlu0 %701
      %v704 = vadd.f32 %v672, %v687
      %v705 = vadd.f32 %v673, %v687
      %v706 = vadd.f32 %v674, %v692
      %v707 = vadd.f32 %v675, %v692
      %v708 = vadd.f32 %v676, %v697
      %v709 = vadd.f32 %v677, %v697
      %v710 = vadd.f32 %v678, %v702
      %v711 = vadd.f32 %v679, %v702
      %v712 = vmax.f32 %v704, 0.0
      %v713 = vmax.f32 %v705, 0.0
      %v714 = vmax.f32 %v706, 0.0
      %v715 = vmax.f32 %v707, 0.0
      %v716 = vmax.f32 %v708, 0.0
      %v717 = vmax.f32 %v709, 0.0
      %v718 = vmax.f32 %v710, 0.0
      %v719 = vmax.f32 %v711, 0.0
      %v720 = vld [vmem:[%s4] sm:$0xf]
      %v721 = vld [vmem:[%s4 + $0x4] sm:$0xf]
      %v722 = vld [vmem:[%s4 + $0x8] sm:$0xf]
      %v723 = vld [vmem:[%s4 + $0xc] sm:$0xf]
      %v724 = vpack.c.bf16 %v714, %v712
      %v725 = vpack.c.bf16 %v715, %v713
      %v726 = vpack.c.bf16 %v718, %v716
      %v727 = vpack.c.bf16 %v719, %v717
      %v732 = vunpack.c.l.b16 %v720
      %v733 = vunpack.c.l.b16 %v721
      %v734 = vunpack.c.l.b16 %v722
      %v735 = vunpack.c.l.b16 %v723
      %v736 = vpack.c.b16 %v733, %v732
      %v737 = vpack.c.b16 %v735, %v734
      %v739 = vsel %vm588, %v736, 0
      %v742 = vsel %vm588, %v737, 0
      %744 = vmatprep.subr.bf16.mxu0 %v725
      %745 = vmatpush1.bf16.msra.mxu0 %v724
      %746 = vmatprep.subr.bf16.mxu0 %v727
      %747 = vmatpush1.bf16.msra.mxu0 %v726
      %748 = vmatprep.subr.bf16.mxu0 0
      %749 = vmatpush1.bf16.msra.mxu0 0
      %750 = vmatprep.subr.bf16.mxu0 0
      %751 = vmatpush1.bf16.msra.mxu0 0
      %752 = vmatprep.subr.bf16.mxu0 0
      %753 = vmatpush1.bf16.msra.mxu0 0
      %754 = vmatprep.subr.bf16.mxu0 0
      %755 = vmatpush1.bf16.msra.mxu0 0
      %756 = vmatprep.subr.bf16.mxu0 0
      %757 = vmatpush1.bf16.msra.mxu0 0
      %758 = vmatprep.subr.bf16.mxu0 0
      %759 = vmatpush1.bf16.msra.mxu0 0
      %760 = vmatprep.subr.bf16.mxu0 0
      %761 = vmatpush1.bf16.msra.mxu0 0
      %762 = vmatprep.subr.bf16.mxu0 0
      %763 = vmatpush1.bf16.msra.mxu0 0
      %764 = vmatprep.subr.bf16.mxu0 0
      %765 = vmatpush1.bf16.msra.mxu0 0
      %766 = vmatprep.subr.bf16.mxu0 0
      %767 = vmatpush1.bf16.msra.mxu0 0
      %768 = vmatprep.subr.bf16.mxu0 0
      %769 = vmatpush1.bf16.msra.mxu0 0
      %770 = vmatprep.subr.bf16.mxu0 0
      %771 = vmatpush1.bf16.msra.mxu0 0
      %772 = vmatprep.subr.bf16.mxu0 0
      %773 = vmatpush1.bf16.msra.mxu0 0
      %774 = vmatprep.subr.bf16.mxu0 0
      %775 = vmatpush1.bf16.msra.mxu0 0
      %776 = vmatprep.mubr.bf16.mxu0 0
      %777 = vmatmul.mubr.bf16.gmra.mrb[0].mxu0 %v739
      %v778 = vpop.f32.mrb[0].mxu0
      %v779 = vadd.f32 0.0, %v778
      %v780 = vpop.f32.mrb[0].mxu0
      %v781 = vadd.f32 0.0, %v780
      %v782 = vpop.f32.mrb[0].mxu0
      %v783 = vadd.f32 0.0, %v782
      %v784 = vpop.f32.mrb[0].mxu0
      %v785 = vadd.f32 0.0, %v784
      %786 = vmatprep.mubr.bf16.mxu0 0
      %787 = vmatmul.mubr.bf16.gmra.mrb[0].mxu0 %v742
      %v788 = vpop.f32.mrb[0].mxu0
      %v789 = vadd.f32 0.0, %v788
      %v790 = vpop.f32.mrb[0].mxu0
      %v791 = vadd.f32 0.0, %v790
      %v792 = vpop.f32.mrb[0].mxu0
      %v793 = vadd.f32 0.0, %v792
      %v794 = vpop.f32.mrb[0].mxu0
      %v795 = vadd.f32 0.0, %v794
      %796 = vdwg.mxu0
      %v797 = vlaneseq
      %v798 = vand.u32 %v797, 127
      %v799 = vadd.s32 %v798, 128
      %vm800 = vcmp.lt.s32.totalorder %v798, 0
      %v801 = vsub.s32 0, %v798
      %v802 = vsel %vm800, %v801, %v798
      %v803 = vshrl.u32 %v802, 4
      %v804 = vand.u32 %v802, 15
      %v805 = vsub.s32 0, %v804
      %v806 = vsel %vm800, %v805, %v804
      %vm807 = vcmp.lt.s32.totalorder %v799, 0
      %v808 = vsub.s32 0, %v799
      %v809 = vsel %vm807, %v808, %v799
      %v810 = vshrl.u32 %v809, 4
      %v811 = vand.u32 %v809, 15
      %v812 = vsub.s32 0, %v811
      %v813 = vsel %vm807, %v812, %v811
      %vm814 = vcmp.ne.s32.totalorder %v806, 0
      %vm815 = vcmp.ne.s32.totalorder %v813, 0
      %vm816 = vcmp.lt.s32.totalorder %v806, 0
      %vm817 = vcmp.lt.s32.totalorder %v813, 0
      %vm818 = vmand %vm816, %vm814
      %vm819 = vmand %vm817, %vm815
      %v820 = vadd.s32 %v806, 16
      %v821 = vadd.s32 %v813, 16
      %v822 = vsel %vm818, %v820, %v806
      %v823 = vsel %vm819, %v821, %v813
      %vm824 = vcmp.ne.s32.totalorder %v822, 0
      %vm825 = vcmp.ne.s32.totalorder %v823, 0
      %828 = vrot.lane.b32.xlu0 %v783, 1
      %v829 = vpop.permute.xlu0 %828
      %830 = vrot.lane.b32.xlu0 %v785, 1
      %v831 = vpop.permute.xlu0 %830
      %vm832 = vcmask 7168
      %v833 = vsel %vm832, %v829, %v831
      %v836 = vsel %vm832, 0.0, %v829
      %v837 = vsel %vm824, 1, 0
      %v838 = vsel %vm825, 1, 0
      %vm839 = vcmp.eq.s32.totalorder %v837, 1
      %vm840 = vcmp.eq.s32.totalorder %v838, 1
      %v841 = vsel %vm839, %v836, 0.0
      %v842 = vsel %vm840, %v833, 0.0
      %v843 = vadd.f32 %v779, %v841
      %v844 = vadd.f32 %v781, %v842
      %847 = vrot.lane.b32.xlu0 %v789, 16
      %v848 = vpop.permute.xlu0 %847
      %849 = vrot.lane.b32.xlu0 %v791, 16
      %v850 = vpop.permute.xlu0 %849
      %vm851 = vcmask 130048
      %v852 = vsel %vm851, %v848, %v850
      %v855 = vsel %vm851, 0.0, %v848
      %v856 = vadd.f32 %v843, %v855
      %v857 = vadd.f32 %v844, %v852
      %860 = vrot.lane.b32.xlu0 %v793, 17
      %v861 = vpop.permute.xlu0 %860
      %862 = vrot.lane.b32.xlu0 %v795, 17
      %v863 = vpop.permute.xlu0 %862
      %vm864 = vcmask 138240
      %v865 = vsel %vm864, %v861, %v863
      %v868 = vsel %vm864, 0.0, %v861
      %v869 = vsel %vm839, %v868, 0.0
      %v870 = vsel %vm840, %v865, 0.0
      %v871 = vadd.f32 %v856, %v869
      %v872 = vadd.f32 %v857, %v870
      %v873 = vld [vmem:[%s5] sm:$0xff]
      %875 = vset.pattern.permute.xlu0 0
      %876 = vperm.xlu0 %875, %v873
      %v877 = vpop.permute.xlu0 %876
      %v879 = vmul.f32 %v871, %v877
      %v880 = vmul.f32 %v872, %v877
      %v881 = vld [vmem:[%s6] sm:$0xff]
      %883 = vset.pattern.permute.xlu0 0
      %884 = vperm.xlu0 %883, %v881
      %v885 = vpop.permute.xlu0 %884
      %v887 = vadd.f32 %v879, %v885
      %v888 = vadd.f32 %v880, %v885
      %v889 = vmax.f32 %v887, 0.0
      %v890 = vmax.f32 %v888, 0.0
      %v891 = vadd.f32 %v889, %v890
      %892 = vadd.xlane.f32.xlu0 %v891
      %v893 = vpop.xlane.xlu0 %892
      %v894 = vrcp.pop 256.0
      %v895 = vmul.f32 %v893, %v894
      %v896 = vld [vmem:[%s7] sm:$0x3]
      %v897 = vld [vmem:[%s8] sm:$0x3]
      %vm898 = vcmask 64512
      %v900 = vsel %vm898, %v896, 0
      %902 = vmatprep.subr.mxu0 0.0
      %903 = vmatpush1.msra.mxu0 %v895
      %904 = vmatprep.subr.mxu0 0.0
      %905 = vmatpush1.msra.mxu0 0.0
      %906 = vmatprep.subr.mxu0 0.0
      %907 = vmatpush1.msra.mxu0 0.0
      %908 = vmatprep.subr.mxu0 0.0
      %909 = vmatpush1.msra.mxu0 0.0
      %910 = vmatprep.subr.mxu0 0.0
      %911 = vmatpush1.msra.mxu0 0.0
      %912 = vmatprep.subr.mxu0 0.0
      %913 = vmatpush1.msra.mxu0 0.0
      %914 = vmatprep.subr.mxu0 0.0
      %915 = vmatpush1.msra.mxu0 0.0
      %916 = vmatprep.subr.mxu0 0.0
      %917 = vmatpush1.msra.mxu0 0.0
      %918 = vmatprep.subr.mxu0 0.0
      %919 = vmatpush1.msra.mxu0 0.0
      %920 = vmatprep.subr.mxu0 0.0
      %921 = vmatpush1.msra.mxu0 0.0
      %922 = vmatprep.subr.mxu0 0.0
      %923 = vmatpush1.msra.mxu0 0.0
      %924 = vmatprep.subr.mxu0 0.0
      %925 = vmatpush1.msra.mxu0 0.0
      %926 = vmatprep.subr.mxu0 0.0
      %927 = vmatpush1.msra.mxu0 0.0
      %928 = vmatprep.subr.mxu0 0.0
      %929 = vmatpush1.msra.mxu0 0.0
      %930 = vmatprep.subr.mxu0 0.0
      %931 = vmatpush1.msra.mxu0 0.0
      %932 = vmatprep.subr.mxu0 0.0
      %933 = vmatpush1.msra.mxu0 0.0
      %934 = vmatprep.subr.mxu0 0.0
      %935 = vmatpush1.msra.mxu0 0.0
      %936 = vmatprep.subr.mxu0 0.0
      %937 = vmatpush1.msra.mxu0 0.0
      %938 = vmatprep.subr.mxu0 0.0
      %939 = vmatpush1.msra.mxu0 0.0
      %940 = vmatprep.subr.mxu0 0.0
      %941 = vmatpush1.msra.mxu0 0.0
      %942 = vmatprep.subr.mxu0 0.0
      %943 = vmatpush1.msra.mxu0 0.0
      %944 = vmatprep.subr.mxu0 0.0
      %945 = vmatpush1.msra.mxu0 0.0
      %946 = vmatprep.subr.mxu0 0.0
      %947 = vmatpush1.msra.mxu0 0.0
      %948 = vmatprep.subr.mxu0 0.0
      %949 = vmatpush1.msra.mxu0 0.0
      %950 = vmatprep.subr.mxu0 0.0
      %951 = vmatpush1.msra.mxu0 0.0
      %952 = vmatprep.subr.mxu0 0.0
      %953 = vmatpush1.msra.mxu0 0.0
      %954 = vmatprep.subr.mxu0 0.0
      %955 = vmatpush1.msra.mxu0 0.0
      %956 = vmatprep.subr.mxu0 0.0
      %957 = vmatpush1.msra.mxu0 0.0
      %958 = vmatprep.subr.mxu0 0.0
      %959 = vmatpush1.msra.mxu0 0.0
      %960 = vmatprep.subr.mxu0 0.0
      %961 = vmatpush1.msra.mxu0 0.0
      %962 = vmatprep.subr.mxu0 0.0
      %963 = vmatpush1.msra.mxu0 0.0
      %964 = vmatprep.subr.mxu0 0.0
      %965 = vmatpush1.msra.mxu0 0.0
      %966 = vmatprep.mubr.f32.mxu0 0.0
      %967 = vmatmul.mubr.f32.gmra.mrb[0].mxu0 %v900
      %v968 = vpop.f32.mrb[0].mxu0
      %v969 = vadd.f32 %v897, %v968
      %v970 = vpop.f32.mrb[0].mxu0
      %971 = vdwg.mxu0
      %v972 = vmax.f32 %v969, 0.0
      %v973 = vld [vmem:[%s9] sm:$0xff]
      %v974 = vld [vmem:[%s10] sm:$0xff]
      %vm975 = vcmask 15360
      %v977 = vsel %vm975, %v973, 0
      %vm979 = vcmask 1041408
      %v981 = vsel %vm979, %v972, 0
      %983 = vmatprep.subr.mxu0 0.0
      %984 = vmatpush1.msra.mxu0 %v981
      %985 = vmatprep.subr.mxu0 0.0
      %986 = vmatpush1.msra.mxu0 0.0
      %987 = vmatprep.subr.mxu0 0.0
      %988 = vmatpush1.msra.mxu0 0.0
      %989 = vmatprep.subr.mxu0 0.0
      %990 = vmatpush1.msra.mxu0 0.0
      %991 = vmatprep.subr.mxu0 0.0
      %992 = vmatpush1.msra.mxu0 0.0
      %993 = vmatprep.subr.mxu0 0.0
      %994 = vmatpush1.msra.mxu0 0.0
      %995 = vmatprep.subr.mxu0 0.0
      %996 = vmatpush1.msra.mxu0 0.0
      %997 = vmatprep.subr.mxu0 0.0
      %998 = vmatpush1.msra.mxu0 0.0
      %999 = vmatprep.subr.mxu0 0.0
      %1000 = vmatpush1.msra.mxu0 0.0
      %1001 = vmatprep.subr.mxu0 0.0
      %1002 = vmatpush1.msra.mxu0 0.0
      %1003 = vmatprep.subr.mxu0 0.0
      %1004 = vmatpush1.msra.mxu0 0.0
      %1005 = vmatprep.subr.mxu0 0.0
      %1006 = vmatpush1.msra.mxu0 0.0
      %1007 = vmatprep.subr.mxu0 0.0
      %1008 = vmatpush1.msra.mxu0 0.0
      %1009 = vmatprep.subr.mxu0 0.0
      %1010 = vmatpush1.msra.mxu0 0.0
      %1011 = vmatprep.subr.mxu0 0.0
      %1012 = vmatpush1.msra.mxu0 0.0
      %1013 = vmatprep.subr.mxu0 0.0
      %1014 = vmatpush1.msra.mxu0 0.0
      %1015 = vmatprep.subr.mxu0 0.0
      %1016 = vmatpush1.msra.mxu0 0.0
      %1017 = vmatprep.subr.mxu0 0.0
      %1018 = vmatpush1.msra.mxu0 0.0
      %1019 = vmatprep.subr.mxu0 0.0
      %1020 = vmatpush1.msra.mxu0 0.0
      %1021 = vmatprep.subr.mxu0 0.0
      %1022 = vmatpush1.msra.mxu0 0.0
      %1023 = vmatprep.subr.mxu0 0.0
      %1024 = vmatpush1.msra.mxu0 0.0
      %1025 = vmatprep.subr.mxu0 0.0
      %1026 = vmatpush1.msra.mxu0 0.0
      %1027 = vmatprep.subr.mxu0 0.0
      %1028 = vmatpush1.msra.mxu0 0.0
      %1029 = vmatprep.subr.mxu0 0.0
      %1030 = vmatpush1.msra.mxu0 0.0
      %1031 = vmatprep.subr.mxu0 0.0
      %1032 = vmatpush1.msra.mxu0 0.0
      %1033 = vmatprep.subr.mxu0 0.0
      %1034 = vmatpush1.msra.mxu0 0.0
      %1035 = vmatprep.subr.mxu0 0.0
      %1036 = vmatpush1.msra.mxu0 0.0
      %1037 = vmatprep.subr.mxu0 0.0
      %1038 = vmatpush1.msra.mxu0 0.0
      %1039 = vmatprep.subr.mxu0 0.0
      %1040 = vmatpush1.msra.mxu0 0.0
      %1041 = vmatprep.subr.mxu0 0.0
      %1042 = vmatpush1.msra.mxu0 0.0
      %1043 = vmatprep.subr.mxu0 0.0
      %1044 = vmatpush1.msra.mxu0 0.0
      %1045 = vmatprep.subr.mxu0 0.0
      %1046 = vmatpush1.msra.mxu0 0.0
      %1047 = vmatprep.mubr.f32.mxu0 0.0
      %1048 = vmatmul.mubr.f32.gmra.mrb[0].mxu0 %v977
      %v1049 = vpop.f32.mrb[0].mxu0
      %v1050 = vadd.f32 %v974, %v1049
      %v1051 = vpop.f32.mrb[0].mxu0
      %1052 = vdwg.mxu0
      %v1053 = vxor.u32 %v1050, 2147483648
      %v1054 = vmul.f32 %v1053, 1.442695
      %v1055 = vpow.pop %v1054
      %v1056 = vadd.f32 %v1055, 1.0
      %v1057 = vrcp.pop %v1056
      %v1058 = vmul.f32 1.0, %v1057
      %1060 = vset.pattern.permute.xlu0 0
      %1061 = vperm.xlu0 %1060, %v1058
      %v1062 = vpop.permute.xlu0 %1061
      %v1064 = vmul.f32 %v889, %v1062
      %v1065 = vmul.f32 %v890, %v1062
      %v1066 = vld [vmem:[%s11] sm:$0xf]
      %v1067 = vpack.c.bf16 %v1064, %v1064
      %v1068 = vpack.c.bf16 %v1065, %v1065
      %v1070 = vsel %vm898, %v1066, 0
      %vm1072 = vcmask 1043456
      %v1074 = vsel %vm1072, %v1067, 0
      %v1077 = vsel %vm1072, %v1068, 0
      %1079 = vmatprep.subr.bf16.mxu0 %v1077
      %1080 = vmatpush1.bf16.msra.mxu0 %v1074
      %1081 = vmatprep.subr.bf16.mxu0 0
      %1082 = vmatpush1.bf16.msra.mxu0 0
      %1083 = vmatprep.subr.bf16.mxu0 0
      %1084 = vmatpush1.bf16.msra.mxu0 0
      %1085 = vmatprep.subr.bf16.mxu0 0
      %1086 = vmatpush1.bf16.msra.mxu0 0
      %1087 = vmatprep.subr.bf16.mxu0 0
      %1088 = vmatpush1.bf16.msra.mxu0 0
      %1089 = vmatprep.subr.bf16.mxu0 0
      %1090 = vmatpush1.bf16.msra.mxu0 0
      %1091 = vmatprep.subr.bf16.mxu0 0
      %1092 = vmatpush1.bf16.msra.mxu0 0
      %1093 = vmatprep.subr.bf16.mxu0 0
      %1094 = vmatpush1.bf16.msra.mxu0 0
      %1095 = vmatprep.subr.bf16.mxu0 0
      %1096 = vmatpush1.bf16.msra.mxu0 0
      %1097 = vmatprep.subr.bf16.mxu0 0
      %1098 = vmatpush1.bf16.msra.mxu0 0
      %1099 = vmatprep.subr.bf16.mxu0 0
      %1100 = vmatpush1.bf16.msra.mxu0 0
      %1101 = vmatprep.subr.bf16.mxu0 0
      %1102 = vmatpush1.bf16.msra.mxu0 0
      %1103 = vmatprep.subr.bf16.mxu0 0
      %1104 = vmatpush1.bf16.msra.mxu0 0
      %1105 = vmatprep.subr.bf16.mxu0 0
      %1106 = vmatpush1.bf16.msra.mxu0 0
      %1107 = vmatprep.subr.bf16.mxu0 0
      %1108 = vmatpush1.bf16.msra.mxu0 0
      %1109 = vmatprep.subr.bf16.mxu0 0
      %1110 = vmatpush1.bf16.msra.mxu0 0
      %1111 = vmatprep.mubr.bf16.mxu0 0
      %1112 = vmatmul.mubr.bf16.gmra.mrb[0].mxu0 %v1070
      %v1113 = vpop.f32.mrb[0].mxu0
      %v1114 = vadd.f32 0.0, %v1113
      %v1115 = vpop.f32.mrb[0].mxu0
      %v1116 = vadd.f32 0.0, %v1115
      %v1117 = vpop.f32.mrb[0].mxu0
      %v1118 = vpop.f32.mrb[0].mxu0
      %1119 = vdwg.mxu0
      %v1120 = vld [vmem:[%s12] sm:$0xff]
      %1122 = vset.pattern.permute.xlu0 0
      %1123 = vperm.xlu0 %1122, %v1120
      %v1124 = vpop.permute.xlu0 %1123
      %v1126 = vmul.f32 %v1114, %v1124
      %v1127 = vmul.f32 %v1116, %v1124
      %v1128 = vld [vmem:[%s13] sm:$0xff]
      %1130 = vset.pattern.permute.xlu0 0
      %1131 = vperm.xlu0 %1130, %v1128
      %v1132 = vpop.permute.xlu0 %1131
      %v1134 = vadd.f32 %v1126, %v1132
      %v1135 = vadd.f32 %v1127, %v1132
      %v1136 = vld [vmem:[%s14] sm:$0xf]
      %v1137 = vpack.c.b16 %v572, %v572
      %v1138 = vpack.c.b16 %v573, %v573
      %v1140 = vsel %vm898, %v1136, 0
      %v1143 = vsel %vm1072, %v1137, 0
      %v1146 = vsel %vm1072, %v1138, 0
      %1148 = vmatprep.subr.bf16.mxu0 %v1146
      %1149 = vmatpush1.bf16.msra.mxu0 %v1143
      %1150 = vmatprep.subr.bf16.mxu0 0
      %1151 = vmatpush1.bf16.msra.mxu0 0
      %1152 = vmatprep.subr.bf16.mxu0 0
      %1153 = vmatpush1.bf16.msra.mxu0 0
      %1154 = vmatprep.subr.bf16.mxu0 0
      %1155 = vmatpush1.bf16.msra.mxu0 0
      %1156 = vmatprep.subr.bf16.mxu0 0
      %1157 = vmatpush1.bf16.msra.mxu0 0
      %1158 = vmatprep.subr.bf16.mxu0 0
      %1159 = vmatpush1.bf16.msra.mxu0 0
      %1160 = vmatprep.subr.bf16.mxu0 0
      %1161 = vmatpush1.bf16.msra.mxu0 0
      %1162 = vmatprep.subr.bf16.mxu0 0
      %1163 = vmatpush1.bf16.msra.mxu0 0
      %1164 = vmatprep.subr.bf16.mxu0 0
      %1165 = vmatpush1.bf16.msra.mxu0 0
      %1166 = vmatprep.subr.bf16.mxu0 0
      %1167 = vmatpush1.bf16.msra.mxu0 0
      %1168 = vmatprep.subr.bf16.mxu0 0
      %1169 = vmatpush1.bf16.msra.mxu0 0
      %1170 = vmatprep.subr.bf16.mxu0 0
      %1171 = vmatpush1.bf16.msra.mxu0 0
      %1172 = vmatprep.subr.bf16.mxu0 0
      %1173 = vmatpush1.bf16.msra.mxu0 0
      %1174 = vmatprep.subr.bf16.mxu0 0
      %1175 = vmatpush1.bf16.msra.mxu0 0
      %1176 = vmatprep.subr.bf16.mxu0 0
      %1177 = vmatpush1.bf16.msra.mxu0 0
      %1178 = vmatprep.subr.bf16.mxu0 0
      %1179 = vmatpush1.bf16.msra.mxu0 0
      %1180 = vmatprep.mubr.bf16.mxu0 0
      %1181 = vmatmul.mubr.bf16.gmra.mrb[0].mxu0 %v1140
      %v1182 = vpop.f32.mrb[0].mxu0
      %v1183 = vadd.f32 0.0, %v1182
      %v1184 = vpop.f32.mrb[0].mxu0
      %v1185 = vadd.f32 0.0, %v1184
      %v1186 = vpop.f32.mrb[0].mxu0
      %v1187 = vpop.f32.mrb[0].mxu0
      %1188 = vdwg.mxu0
      %v1189 = vld [vmem:[%s15] sm:$0xff]
      %1191 = vset.pattern.permute.xlu0 0
      %1192 = vperm.xlu0 %1191, %v1189
      %v1193 = vpop.permute.xlu0 %1192
      %v1195 = vmul.f32 %v1183, %v1193
      %v1196 = vmul.f32 %v1185, %v1193
      %v1197 = vld [vmem:[%s16] sm:$0xff]
      %1199 = vset.pattern.permute.xlu0 0
      %1200 = vperm.xlu0 %1199, %v1197
      %v1201 = vpop.permute.xlu0 %1200
      %v1203 = vadd.f32 %v1195, %v1201
      %v1204 = vadd.f32 %v1196, %v1201
      %v1205 = vadd.f32 %v1134, %v1203
      %v1206 = vadd.f32 %v1135, %v1204
      %v1207 = vmax.f32 %v1205, 0.0
      %v1208 = vmax.f32 %v1206, 0.0
      %v1209 = vpack.c.bf16 %v1207, %v1207
      %v1210 = vpack.c.bf16 %v1208, %v1208
      %v1213 = vunpack.c.l.b16 %v1209
      %v1214 = vunpack.c.l.b16 %v1210
      %v1215 = vpack.c.b16 %v1214, %v1213
      %1217 = vst [vmem:[%s548] sm:$0xff] %v1215
      %p1218 = scmp.lt.s32.totalorder %s28, 1
      %s1219 = scalar_select %p1218, %s28, 1
      %s1220 = smul.addr %s1219, 2
      %s1221 = smul.addr %s1220, 4
      %s1222 = scalar_lea.vmem %s17, %s1221
      // Predicated region
      $region89: #{encoder_forward.6} parent=87 // pred_check
        %p1223 = pneg %p408
      $region90: #{encoder_forward.6} parent=87 // pred_check_branch
        %1225 = sbr.rel (%p1223) target = $region92
      $region91: #{encoder_forward.6} parent=87 // pred_region
        _
      $region92: #{encoder_forward.6} parent=87 // pred_fallthru
        _
    $region88: #{encoder_forward.6} parent=5 // pred_fallthru
      _
    %p1226 = scmp.le.s32.totalorder 2, %s23
    // Predicated region
    $region93: #{encoder_forward.6} parent=5 // pred_check
      %p1227 = pneg %p1226
    $region94: #{encoder_forward.6} parent=5 // pred_check_branch
      %1229 = sbr.rel (%p1227) target = $region96
    $region95: #{encoder_forward.6} parent=5 // pred_region
      %s1230 = ssub.s32 %s23, 2
      // Predicated region
      $region97: #{encoder_forward.6} parent=95 // pred_check
        %p1231 = pneg %p414
      $region98: #{encoder_forward.6} parent=95 // pred_check_branch
        %1233 = sbr.rel (%p1231) target = $region100
      $region99: #{encoder_forward.6} parent=95 // pred_region
        %p1234 = scmp.lt.s32.totalorder %s29, 1
        %s1235 = scalar_select %p1234, %s29, 1
        %s1236 = smul.addr %s1235, 2
        %s1237 = smul.addr %s1236, 4
        %s1238 = scalar_lea.vmem %s17, %s1237
      $region100: #{encoder_forward.6} parent=95 // pred_fallthru
        _
    $region96: #{encoder_forward.6} parent=5 // pred_fallthru
      _
  $region6: #{encoder_forward.6} parent=0 // loop_footer
    %s27 = sadd.s32 1, %s23
  $region7: #{encoder_forward.6} parent=0 // loop_footer_branch
    %22 = sbr.rel target = $region3
  $region8: #{encoder_forward.6} parent=0 // loop_exit
    _

// kernel: encoder_forward.7
$region0: #{encoder_forward.7}
  #allocation0 [shape = 'u32[]', space=smem, size = 0x4, offset = 0x4, fixed_abs, tag = 'smem constant byte address 0x4 - core index']
  #allocation1 [shape = 'u32[144,128]{1,0:T(1,128)}', space=vmem, size = 0x12000, scoped, tag = 'internal scratch']
  %s0 = inlined_call_operand.vmem [shape: bf16[2,32,64], index: 0, kind: input, shape index: {}]
  %s1 = inlined_call_operand.vmem [shape: bf16[64,32], index: 1, kind: input, shape index: {}]
  %s2 = inlined_call_operand.vmem [shape: f32[64,1], index: 2, kind: input, shape index: {}]
  %s3 = inlined_call_operand.vmem [shape: f32[64,1], index: 3, kind: input, shape index: {}]
  %s4 = inlined_call_operand.vmem [shape: bf16[64,64], index: 4, kind: input, shape index: {}]
  %s5 = inlined_call_operand.vmem [shape: f32[16,1], index: 5, kind: input, shape index: {}]
  %s6 = inlined_call_operand.vmem [shape: f32[16,1], index: 6, kind: input, shape index: {}]
  %s7 = inlined_call_operand.vmem [shape: f32[2,16], index: 7, kind: input, shape index: {}]
  %s8 = inlined_call_operand.vmem [shape: f32[2,1], index: 8, kind: input, shape index: {}]
  %s9 = inlined_call_operand.vmem [shape: f32[16,2], index: 9, kind: input, shape index: {}]
  %s10 = inlined_call_operand.vmem [shape: f32[16,1], index: 10, kind: input, shape index: {}]
  %s11 = inlined_call_operand.vmem [shape: bf16[16,16], index: 11, kind: input, shape index: {}]
  %s12 = inlined_call_operand.vmem [shape: f32[16,1], index: 12, kind: input, shape index: {}]
  %s13 = inlined_call_operand.vmem [shape: f32[16,1], index: 13, kind: input, shape index: {}]
  %s14 = inlined_call_operand.vmem [shape: bf16[16,8], index: 14, kind: input, shape index: {}]
  %s15 = inlined_call_operand.vmem [shape: f32[16,1], index: 15, kind: input, shape index: {}]
  %s16 = inlined_call_operand.vmem [shape: f32[16,1], index: 16, kind: input, shape index: {}]
  %s17 = inlined_call_operand.vmem [shape: bf16[2,16,64], index: 17, kind: output, shape index: {}]
  %s18 = sld [smem:[#allocation0]]
  $region101: #{encoder_forward.7} parent=0
    _
  %s20 = ssub.s32 1, %s18
  %s21 = scalar_select 0, %s20, %s18
  loop: start=0, step=1, limit=4
  $region2: #{encoder_forward.7} parent=0 // loop_pre_header
    _
  $region3: #{encoder_forward.7} parent=0 // loop_header
    %s23 = sphi 0, %s27
    %p24 = scmp.ge.s32.totalorder %s23, 4
    %s33 = sphi 0, %s35
    %s36 = sphi 0, %s33
    %s37 = sphi 0, %s36
    %s53 = sphi 0, %s37
    %s57 = sphi 0, %s57
    %s59 = sphi 0, %s57
    %s60 = sphi 0, %s59
    %s74 = sphi 0, %s60
    %s78 = sphi 0, %s78
    %s80 = sphi 0, %s78
    %s81 = sphi 0, %s80
    %s95 = sphi 0, %s81
    %s99 = sphi 0, %s99
    %s101 = sphi 0, %s99
    %s102 = sphi 0, %s101
    %s116 = sphi 0, %s102
    %s120 = sphi 0, %s120
    %s122 = sphi 0, %s120
    %s123 = sphi 0, %s122
    %s137 = sphi 0, %s123
    %s141 = sphi 0, %s141
    %s143 = sphi 0, %s141
    %s144 = sphi 0, %s143
    %s158 = sphi 0, %s144
    %s162 = sphi 0, %s162
    %s164 = sphi 0, %s162
    %s165 = sphi 0, %s164
    %s179 = sphi 0, %s165
    %s183 = sphi 0, %s183
    %s185 = sphi 0, %s183
    %s186 = sphi 0, %s185
    %s200 = sphi 0, %s186
    %s204 = sphi 0, %s204
    %s206 = sphi 0, %s204
    %s207 = sphi 0, %s206
    %s221 = sphi 0, %s207
    %s225 = sphi 0, %s225
    %s227 = sphi 0, %s225
    %s228 = sphi 0, %s227
    %s242 = sphi 0, %s228
    %s246 = sphi 0, %s246
    %s248 = sphi 0, %s246
    %s249 = sphi 0, %s248
    %s263 = sphi 0, %s249
    %s267 = sphi 0, %s267
    %s269 = sphi 0, %s267
    %s270 = sphi 0, %s269
    %s284 = sphi 0, %s270
    %s288 = sphi 0, %s288
    %s290 = sphi 0, %s288
    %s291 = sphi 0, %s290
    %s305 = sphi 0, %s291
    %s309 = sphi 0, %s309
    %s311 = sphi 0, %s309
    %s312 = sphi 0, %s311
    %s326 = sphi 0, %s312
    %s330 = sphi 0, %s330
    %s332 = sphi 0, %s330
    %s333 = sphi 0, %s332
    %s347 = sphi 0, %s333
    %s351 = sphi 0, %s351
    %s353 = sphi 0, %s351
    %s354 = sphi 0, %s353
    %s368 = sphi 0, %s354
    %s372 = sphi 0, %s372
    %s374 = sphi 0, %s372
    %s375 = sphi 0, %s374
    %s389 = sphi 0, %s375
    %s395 = sphi 0, %s397
    %s398 = sphi 0, %s395
    %s399 = sphi 0, %s398
    %s415 = sphi 0, %s399
  $region4: #{encoder_forward.7} parent=0 // loop_header_branch
    %26 = sbr.rel (%p24) target = $region8
  $region5: #{encoder_forward.7} parent=0 // loop_body
    %s28 = ssub.s32 %s23, 1
    %s29 = ssub.s32 %s23, 2
    %s30 = sadd.s32 %s23, 1
    %s31 = ssub.s32 %s23, %s30
    %p32 = scmp.eq.s32.totalorder %s31, 0
    %s34 = sadd.s32 %s33, 1
    %s35 = scalar_select %p32, %s33, %s34
    %p38 = pneg %p32
    %p39 = scmp.eq.s32.totalorder %s23, 1
    %p40 = por %p38, %p39
    %p41 = scmp.ne.s32.totalorder %s33, %s36
    %p42 = scmp.eq.s32.totalorder %s23, 0
    %p43 = por %p41, %p42
    %p44 = scmp.ne.s32.totalorder %s33, %s36
    %p45 = scmp.eq.s32.totalorder %s28, 1
    %p46 = por %p44, %p45
    %p47 = scmp.ne.s32.totalorder %s36, %s37
    %p48 = scmp.eq.s32.totalorder %s28, 0
    %p49 = por %p47, %p48
    %p50 = scmp.ne.s32.totalorder %s36, %s37
    %p51 = scmp.eq.s32.totalorder %s29, 1
    %p52 = por %p50, %p51
    %p54 = scmp.ne.s32.totalorder %s37, %s53
    %p55 = scmp.eq.s32.totalorder %s29, 0
    %p56 = por %p54, %p55
    %s58 = sadd.s32 %s57, 1
    %p61 = scmp.eq.s32.totalorder %s23, 1
    %p62 = scmp.ne.s32.totalorder %s57, %s59
    %p63 = scmp.eq.s32.totalorder %s23, 0
    %p64 = por %p62, %p63
    %p65 = scmp.ne.s32.totalorder %s57, %s59
    %p66 = scmp.eq.s32.totalorder %s28, 1
    %p67 = por %p65, %p66
    %p68 = scmp.ne.s32.totalorder %s59, %s60
    %p69 = scmp.eq.s32.totalorder %s28, 0
    %p70 = por %p68, %p69
    %p71 = scmp.ne.s32.totalorder %s59, %s60
    %p72 = scmp.eq.s32.totalorder %s29, 1
    %p73 = por %p71, %p72
    %p75 = scmp.ne.s32.totalorder %s60, %s74
    %p76 = scmp.eq.s32.totalorder %s29, 0
    %p77 = por %p75, %p76
    %s79 = sadd.s32 %s78, 1
    %p82 = scmp.eq.s32.totalorder %s23, 1
    %p83 = scmp.ne.s32.totalorder %s78, %s80
    %p84 = scmp.eq.s32.totalorder %s23, 0
    %p85 = por %p83, %p84
    %p86 = scmp.ne.s32.totalorder %s78, %s80
    %p87 = scmp.eq.s32.totalorder %s28, 1
    %p88 = por %p86, %p87
    %p89 = scmp.ne.s32.totalorder %s80, %s81
    %p90 = scmp.eq.s32.totalorder %s28, 0
    %p91 = por %p89, %p90
    %p92 = scmp.ne.s32.totalorder %s80, %s81
    %p93 = scmp.eq.s32.totalorder %s29, 1
    %p94 = por %p92, %p93
    %p96 = scmp.ne.s32.totalorder %s81, %s95
    %p97 = scmp.eq.s32.totalorder %s29, 0
    %p98 = por %p96, %p97
    %s100 = sadd.s32 %s99, 1
    %p103 = scmp.eq.s32.totalorder %s23, 1
    %p104 = scmp.ne.s32.totalorder %s99, %s101
    %p105 = scmp.eq.s32.totalorder %s23, 0
    %p106 = por %p104, %p105
    %p107 = scmp.ne.s32.totalorder %s99, %s101
    %p108 = scmp.eq.s32.totalorder %s28, 1
    %p109 = por %p107, %p108
    %p110 = scmp.ne.s32.totalorder %s101, %s102
    %p111 = scmp.eq.s32.totalorder %s28, 0
    %p112 = por %p110, %p111
    %p113 = scmp.ne.s32.totalorder %s101, %s102
    %p114 = scmp.eq.s32.totalorder %s29, 1
    %p115 = por %p113, %p114
    %p117 = scmp.ne.s32.totalorder %s102, %s116
    %p118 = scmp.eq.s32.totalorder %s29, 0
    %p119 = por %p117, %p118
    %s121 = sadd.s32 %s120, 1
    %p124 = scmp.eq.s32.totalorder %s23, 1
    %p125 = scmp.ne.s32.totalorder %s120, %s122
    %p126 = scmp.eq.s32.totalorder %s23, 0
    %p127 = por %p125, %p126
    %p128 = scmp.ne.s32.totalorder %s120, %s122
    %p129 = scmp.eq.s32.totalorder %s28, 1
    %p130 = por %p128, %p129
    %p131 = scmp.ne.s32.totalorder %s122, %s123
    %p132 = scmp.eq.s32.totalorder %s28, 0
    %p133 = por %p131, %p132
    %p134 = scmp.ne.s32.totalorder %s122, %s123
    %p135 = scmp.eq.s32.totalorder %s29, 1
    %p136 = por %p134, %p135
    %p138 = scmp.ne.s32.totalorder %s123, %s137
    %p139 = scmp.eq.s32.totalorder %s29, 0
    %p140 = por %p138, %p139
    %s142 = sadd.s32 %s141, 1
    %p145 = scmp.eq.s32.totalorder %s23, 1
    %p146 = scmp.ne.s32.totalorder %s141, %s143
    %p147 = scmp.eq.s32.totalorder %s23, 0
    %p148 = por %p146, %p147
    %p149 = scmp.ne.s32.totalorder %s141, %s143
    %p150 = scmp.eq.s32.totalorder %s28, 1
    %p151 = por %p149, %p150
    %p152 = scmp.ne.s32.totalorder %s143, %s144
    %p153 = scmp.eq.s32.totalorder %s28, 0
    %p154 = por %p152, %p153
    %p155 = scmp.ne.s32.totalorder %s143, %s144
    %p156 = scmp.eq.s32.totalorder %s29, 1
    %p157 = por %p155, %p156
    %p159 = scmp.ne.s32.totalorder %s144, %s158
    %p160 = scmp.eq.s32.totalorder %s29, 0
    %p161 = por %p159, %p160
    %s163 = sadd.s32 %s162, 1
    %p166 = scmp.eq.s32.totalorder %s23, 1
    %p167 = scmp.ne.s32.totalorder %s162, %s164
    %p168 = scmp.eq.s32.totalorder %s23, 0
    %p169 = por %p167, %p168
    %p170 = scmp.ne.s32.totalorder %s162, %s164
    %p171 = scmp.eq.s32.totalorder %s28, 1
    %p172 = por %p170, %p171
    %p173 = scmp.ne.s32.totalorder %s164, %s165
    %p174 = scmp.eq.s32.totalorder %s28, 0
    %p175 = por %p173, %p174
    %p176 = scmp.ne.s32.totalorder %s164, %s165
    %p177 = scmp.eq.s32.totalorder %s29, 1
    %p178 = por %p176, %p177
    %p180 = scmp.ne.s32.totalorder %s165, %s179
    %p181 = scmp.eq.s32.totalorder %s29, 0
    %p182 = por %p180, %p181
    %s184 = sadd.s32 %s183, 1
    %p187 = scmp.eq.s32.totalorder %s23, 1
    %p188 = scmp.ne.s32.totalorder %s183, %s185
    %p189 = scmp.eq.s32.totalorder %s23, 0
    %p190 = por %p188, %p189
    %p191 = scmp.ne.s32.totalorder %s183, %s185
    %p192 = scmp.eq.s32.totalorder %s28, 1
    %p193 = por %p191, %p192
    %p194 = scmp.ne.s32.totalorder %s185, %s186
    %p195 = scmp.eq.s32.totalorder %s28, 0
    %p196 = por %p194, %p195
    %p197 = scmp.ne.s32.totalorder %s185, %s186
    %p198 = scmp.eq.s32.totalorder %s29, 1
    %p199 = por %p197, %p198
    %p201 = scmp.ne.s32.totalorder %s186, %s200
    %p202 = scmp.eq.s32.totalorder %s29, 0
    %p203 = por %p201, %p202
    %s205 = sadd.s32 %s204, 1
    %p208 = scmp.eq.s32.totalorder %s23, 1
    %p209 = scmp.ne.s32.totalorder %s204, %s206
    %p210 = scmp.eq.s32.totalorder %s23, 0
    %p211 = por %p209, %p210
    %p212 = scmp.ne.s32.totalorder %s204, %s206
    %p213 = scmp.eq.s32.totalorder %s28, 1
    %p214 = por %p212, %p213
    %p215 = scmp.ne.s32.totalorder %s206, %s207
    %p216 = scmp.eq.s32.totalorder %s28, 0
    %p217 = por %p215, %p216
    %p218 = scmp.ne.s32.totalorder %s206, %s207
    %p219 = scmp.eq.s32.totalorder %s29, 1
    %p220 = por %p218, %p219
    %p222 = scmp.ne.s32.totalorder %s207, %s221
    %p223 = scmp.eq.s32.totalorder %s29, 0
    %p224 = por %p222, %p223
    %s226 = sadd.s32 %s225, 1
    %p229 = scmp.eq.s32.totalorder %s23, 1
    %p230 = scmp.ne.s32.totalorder %s225, %s227
    %p231 = scmp.eq.s32.totalorder %s23, 0
    %p232 = por %p230, %p231
    %p233 = scmp.ne.s32.totalorder %s225, %s227
    %p234 = scmp.eq.s32.totalorder %s28, 1
    %p235 = por %p233, %p234
    %p236 = scmp.ne.s32.totalorder %s227, %s228
    %p237 = scmp.eq.s32.totalorder %s28, 0
    %p238 = por %p236, %p237
    %p239 = scmp.ne.s32.totalorder %s227, %s228
    %p240 = scmp.eq.s32.totalorder %s29, 1
    %p241 = por %p239, %p240
    %p243 = scmp.ne.s32.totalorder %s228, %s242
    %p244 = scmp.eq.s32.totalorder %s29, 0
    %p245 = por %p243, %p244
    %s247 = sadd.s32 %s246, 1
    %p250 = scmp.eq.s32.totalorder %s23, 1
    %p251 = scmp.ne.s32.totalorder %s246, %s248
    %p252 = scmp.eq.s32.totalorder %s23, 0
    %p253 = por %p251, %p252
    %p254 = scmp.ne.s32.totalorder %s246, %s248
    %p255 = scmp.eq.s32.totalorder %s28, 1
    %p256 = por %p254, %p255
    %p257 = scmp.ne.s32.totalorder %s248, %s249
    %p258 = scmp.eq.s32.totalorder %s28, 0
    %p259 = por %p257, %p258
    %p260 = scmp.ne.s32.totalorder %s248, %s249
    %p261 = scmp.eq.s32.totalorder %s29, 1
    %p262 = por %p260, %p261
    %p264 = scmp.ne.s32.totalorder %s249, %s263
    %p265 = scmp.eq.s32.totalorder %s29, 0
    %p266 = por %p264, %p265
    %s268 = sadd.s32 %s267, 1
    %p271 = scmp.eq.s32.totalorder %s23, 1
    %p272 = scmp.ne.s32.totalorder %s267, %s269
    %p273 = scmp.eq.s32.totalorder %s23, 0
    %p274 = por %p272, %p273
    %p275 = scmp.ne.s32.totalorder %s267, %s269
    %p276 = scmp.eq.s32.totalorder %s28, 1
    %p277 = por %p275, %p276
    %p278 = scmp.ne.s32.totalorder %s269, %s270
    %p279 = scmp.eq.s32.totalorder %s28, 0
    %p280 = por %p278, %p279
    %p281 = scmp.ne.s32.totalorder %s269, %s270
    %p282 = scmp.eq.s32.totalorder %s29, 1
    %p283 = por %p281, %p282
    %p285 = scmp.ne.s32.totalorder %s270, %s284
    %p286 = scmp.eq.s32.totalorder %s29, 0
    %p287 = por %p285, %p286
    %s289 = sadd.s32 %s288, 1
    %p292 = scmp.eq.s32.totalorder %s23, 1
    %p293 = scmp.ne.s32.totalorder %s288, %s290
    %p294 = scmp.eq.s32.totalorder %s23, 0
    %p295 = por %p293, %p294
    %p296 = scmp.ne.s32.totalorder %s288, %s290
    %p297 = scmp.eq.s32.totalorder %s28, 1
    %p298 = por %p296, %p297
    %p299 = scmp.ne.s32.totalorder %s290, %s291
    %p300 = scmp.eq.s32.totalorder %s28, 0
    %p301 = por %p299, %p300
    %p302 = scmp.ne.s32.totalorder %s290, %s291
    %p303 = scmp.eq.s32.totalorder %s29, 1
    %p304 = por %p302, %p303
    %p306 = scmp.ne.s32.totalorder %s291, %s305
    %p307 = scmp.eq.s32.totalorder %s29, 0
    %p308 = por %p306, %p307
    %s310 = sadd.s32 %s309, 1
    %p313 = scmp.eq.s32.totalorder %s23, 1
    %p314 = scmp.ne.s32.totalorder %s309, %s311
    %p315 = scmp.eq.s32.totalorder %s23, 0
    %p316 = por %p314, %p315
    %p317 = scmp.ne.s32.totalorder %s309, %s311
    %p318 = scmp.eq.s32.totalorder %s28, 1
    %p319 = por %p317, %p318
    %p320 = scmp.ne.s32.totalorder %s311, %s312
    %p321 = scmp.eq.s32.totalorder %s28, 0
    %p322 = por %p320, %p321
    %p323 = scmp.ne.s32.totalorder %s311, %s312
    %p324 = scmp.eq.s32.totalorder %s29, 1
    %p325 = por %p323, %p324
    %p327 = scmp.ne.s32.totalorder %s312, %s326
    %p328 = scmp.eq.s32.totalorder %s29, 0
    %p329 = por %p327, %p328
    %s331 = sadd.s32 %s330, 1
    %p334 = scmp.eq.s32.totalorder %s23, 1
    %p335 = scmp.ne.s32.totalorder %s330, %s332
    %p336 = scmp.eq.s32.totalorder %s23, 0
    %p337 = por %p335, %p336
    %p338 = scmp.ne.s32.totalorder %s330, %s332
    %p339 = scmp.eq.s32.totalorder %s28, 1
    %p340 = por %p338, %p339
    %p341 = scmp.ne.s32.totalorder %s332, %s333
    %p342 = scmp.eq.s32.totalorder %s28, 0
    %p343 = por %p341, %p342
    %p344 = scmp.ne.s32.totalorder %s332, %s333
    %p345 = scmp.eq.s32.totalorder %s29, 1
    %p346 = por %p344, %p345
    %p348 = scmp.ne.s32.totalorder %s333, %s347
    %p349 = scmp.eq.s32.totalorder %s29, 0
    %p350 = por %p348, %p349
    %s352 = sadd.s32 %s351, 1
    %p355 = scmp.eq.s32.totalorder %s23, 1
    %p356 = scmp.ne.s32.totalorder %s351, %s353
    %p357 = scmp.eq.s32.totalorder %s23, 0
    %p358 = por %p356, %p357
    %p359 = scmp.ne.s32.totalorder %s351, %s353
    %p360 = scmp.eq.s32.totalorder %s28, 1
    %p361 = por %p359, %p360
    %p362 = scmp.ne.s32.totalorder %s353, %s354
    %p363 = scmp.eq.s32.totalorder %s28, 0
    %p364 = por %p362, %p363
    %p365 = scmp.ne.s32.totalorder %s353, %s354
    %p366 = scmp.eq.s32.totalorder %s29, 1
    %p367 = por %p365, %p366
    %p369 = scmp.ne.s32.totalorder %s354, %s368
    %p370 = scmp.eq.s32.totalorder %s29, 0
    %p371 = por %p369, %p370
    %s373 = sadd.s32 %s372, 1
    %p376 = scmp.eq.s32.totalorder %s23, 1
    %p377 = scmp.ne.s32.totalorder %s372, %s374
    %p378 = scmp.eq.s32.totalorder %s23, 0
    %p379 = por %p377, %p378
    %p380 = scmp.ne.s32.totalorder %s372, %s374
    %p381 = scmp.eq.s32.totalorder %s28, 1
    %p382 = por %p380, %p381
    %p383 = scmp.ne.s32.totalorder %s374, %s375
    %p384 = scmp.eq.s32.totalorder %s28, 0
    %p385 = por %p383, %p384
    %p386 = scmp.ne.s32.totalorder %s374, %s375
    %p387 = scmp.eq.s32.totalorder %s29, 1
    %p388 = por %p386, %p387
    %p390 = scmp.ne.s32.totalorder %s375, %s389
    %p391 = scmp.eq.s32.totalorder %s29, 0
    %p392 = por %p390, %p391
    %s393 = ssub.s32 %s23, %s30
    %p394 = scmp.eq.s32.totalorder %s393, 0
    %s396 = sadd.s32 %s395, 1
    %s397 = scalar_select %p394, %s395, %s396
    %p400 = pneg %p394
    %p401 = scmp.eq.s32.totalorder %s23, 1
    %p402 = por %p400, %p401
    %p403 = scmp.ne.s32.totalorder %s395, %s398
    %p404 = scmp.eq.s32.totalorder %s23, 0
    %p405 = por %p403, %p404
    %p406 = scmp.ne.s32.totalorder %s395, %s398
    %p407 = scmp.eq.s32.totalorder %s28, 1
    %p408 = por %p406, %p407
    %p409 = scmp.ne.s32.totalorder %s398, %s399
    %p410 = scmp.eq.s32.totalorder %s28, 0
    %p411 = por %p409, %p410
    %p412 = scmp.ne.s32.totalorder %s398, %s399
    %p413 = scmp.eq.s32.totalorder %s29, 1
    %p414 = por %p412, %p413
    %p416 = scmp.ne.s32.totalorder %s399, %s415
    %p417 = scmp.eq.s32.totalorder %s29, 0
    %p418 = por %p416, %p417
    %p419 = scmp.le.s32.totalorder 1, %s23
    %p420 = scmp.lt.s32.totalorder %s23, 3
    %p421 = pnand %p419, %p420
    %p422 = pneg %p421
    // Predicated region
    $region9: #{encoder_forward.7} parent=5 // pred_check
      _
    $region10: #{encoder_forward.7} parent=5 // pred_check_branch
      %424 = sbr.rel (%p421) target = $region12
    $region11: #{encoder_forward.7} parent=5 // pred_region
      %s425 = ssub.s32 %s23, 1
      // Predicated region
      $region13: #{encoder_forward.7} parent=11 // pred_check
        %p426 = pneg %p70
      $region14: #{encoder_forward.7} parent=11 // pred_check_branch
        %428 = sbr.rel (%p426) target = $region16
      $region15: #{encoder_forward.7} parent=11 // pred_region
        _
      $region16: #{encoder_forward.7} parent=11 // pred_fallthru
        _
      // Predicated region
      $region17: #{encoder_forward.7} parent=11 // pred_check
        %p429 = pneg %p91
      $region18: #{encoder_forward.7} parent=11 // pred_check_branch
        %431 = sbr.rel (%p429) target = $region20
      $region19: #{encoder_forward.7} parent=11 // pred_region
        _
      $region20: #{encoder_forward.7} parent=11 // pred_fallthru
        _
      // Predicated region
      $region21: #{encoder_forward.7} parent=11 // pred_check
        %p432 = pneg %p112
      $region22: #{encoder_forward.7} parent=11 // pred_check_branch
        %434 = sbr.rel (%p432) target = $region24
      $region23: #{encoder_forward.7} parent=11 // pred_region
        _
      $region24: #{encoder_forward.7} parent=11 // pred_fallthru
        _
      // Predicated region
      $region25: #{encoder_forward.7} parent=11 // pred_check
        %p435 = pneg %p133
      $region26: #{encoder_forward.7} parent=11 // pred_check_branch
        %437 = sbr.rel (%p435) target = $region28
      $region27: #{encoder_forward.7} parent=11 // pred_region
        _
      $region28: #{encoder_forward.7} parent=11 // pred_fallthru
        _
      // Predicated region
      $region29: #{encoder_forward.7} parent=11 // pred_check
        %p438 = pneg %p154
      $region30: #{encoder_forward.7} parent=11 // pred_check_branch
        %440 = sbr.rel (%p438) target = $region32
      $region31: #{encoder_forward.7} parent=11 // pred_region
        _
      $region32: #{encoder_forward.7} parent=11 // pred_fallthru
        _
      // Predicated region
      $region33: #{encoder_forward.7} parent=11 // pred_check
        %p441 = pneg %p175
      $region34: #{encoder_forward.7} parent=11 // pred_check_branch
        %443 = sbr.rel (%p441) target = $region36
      $region35: #{encoder_forward.7} parent=11 // pred_region
        _
      $region36: #{encoder_forward.7} parent=11 // pred_fallthru
        _
      // Predicated region
      $region37: #{encoder_forward.7} parent=11 // pred_check
        %p444 = pneg %p196
      $region38: #{encoder_forward.7} parent=11 // pred_check_branch
        %446 = sbr.rel (%p444) target = $region40
      $region39: #{encoder_forward.7} parent=11 // pred_region
        _
      $region40: #{encoder_forward.7} parent=11 // pred_fallthru
        _
      // Predicated region
      $region41: #{encoder_forward.7} parent=11 // pred_check
        %p447 = pneg %p217
      $region42: #{encoder_forward.7} parent=11 // pred_check_branch
        %449 = sbr.rel (%p447) target = $region44
      $region43: #{encoder_forward.7} parent=11 // pred_region
        _
      $region44: #{encoder_forward.7} parent=11 // pred_fallthru
        _
      // Predicated region
      $region45: #{encoder_forward.7} parent=11 // pred_check
        %p450 = pneg %p238
      $region46: #{encoder_forward.7} parent=11 // pred_check_branch
        %452 = sbr.rel (%p450) target = $region48
      $region47: #{encoder_forward.7} parent=11 // pred_region
        _
      $region48: #{encoder_forward.7} parent=11 // pred_fallthru
        _
      // Predicated region
      $region49: #{encoder_forward.7} parent=11 // pred_check
        %p453 = pneg %p259
      $region50: #{encoder_forward.7} parent=11 // pred_check_branch
        %455 = sbr.rel (%p453) target = $region52
      $region51: #{encoder_forward.7} parent=11 // pred_region
        _
      $region52: #{encoder_forward.7} parent=11 // pred_fallthru
        _
      // Predicated region
      $region53: #{encoder_forward.7} parent=11 // pred_check
        %p456 = pneg %p280
      $region54: #{encoder_forward.7} parent=11 // pred_check_branch
        %458 = sbr.rel (%p456) target = $region56
      $region55: #{encoder_forward.7} parent=11 // pred_region
        _
      $region56: #{encoder_forward.7} parent=11 // pred_fallthru
        _
      // Predicated region
      $region57: #{encoder_forward.7} parent=11 // pred_check
        %p459 = pneg %p301
      $region58: #{encoder_forward.7} parent=11 // pred_check_branch
        %461 = sbr.rel (%p459) target = $region60
      $region59: #{encoder_forward.7} parent=11 // pred_region
        _
      $region60: #{encoder_forward.7} parent=11 // pred_fallthru
        _
      // Predicated region
      $region61: #{encoder_forward.7} parent=11 // pred_check
        %p462 = pneg %p322
      $region62: #{encoder_forward.7} parent=11 // pred_check_branch
        %464 = sbr.rel (%p462) target = $region64
      $region63: #{encoder_forward.7} parent=11 // pred_region
        _
      $region64: #{encoder_forward.7} parent=11 // pred_fallthru
        _
      // Predicated region
      $region65: #{encoder_forward.7} parent=11 // pred_check
        %p465 = pneg %p343
      $region66: #{encoder_forward.7} parent=11 // pred_check_branch
        %467 = sbr.rel (%p465) target = $region68
      $region67: #{encoder_forward.7} parent=11 // pred_region
        _
      $region68: #{encoder_forward.7} parent=11 // pred_fallthru
        _
      // Predicated region
      $region69: #{encoder_forward.7} parent=11 // pred_check
        %p468 = pneg %p364
      $region70: #{encoder_forward.7} parent=11 // pred_check_branch
        %470 = sbr.rel (%p468) target = $region72
      $region71: #{encoder_forward.7} parent=11 // pred_region
        _
      $region72: #{encoder_forward.7} parent=11 // pred_fallthru
        _
      // Predicated region
      $region73: #{encoder_forward.7} parent=11 // pred_check
        %p471 = pneg %p385
      $region74: #{encoder_forward.7} parent=11 // pred_check_branch
        %473 = sbr.rel (%p471) target = $region76
      $region75: #{encoder_forward.7} parent=11 // pred_region
        _
      $region76: #{encoder_forward.7} parent=11 // pred_fallthru
        _
    $region12: #{encoder_forward.7} parent=5 // pred_fallthru
      _
    %p474 = scmp.lt.s32.totalorder %s23, 2
    // Predicated region
    $region77: #{encoder_forward.7} parent=5 // pred_check
      %p475 = pneg %p474
    $region78: #{encoder_forward.7} parent=5 // pred_check_branch
      %477 = sbr.rel (%p475) target = $region80
    $region79: #{encoder_forward.7} parent=5 // pred_region
      // Predicated region
      $region81: #{encoder_forward.7} parent=79 // pred_check
        %p478 = pneg %p43
      $region82: #{encoder_forward.7} parent=79 // pred_check_branch
        %480 = sbr.rel (%p478) target = $region84
      $region83: #{encoder_forward.7} parent=79 // pred_region
        %p481 = scmp.lt.s32.totalorder %s23, 1
        %s482 = scalar_select %p481, %s23, 1
        %s483 = smul.addr %s482, 4
        %s484 = smul.addr %s483, 4
        %s485 = scalar_lea.vmem %s0, %s484
      $region84: #{encoder_forward.7} parent=79 // pred_fallthru
        _
    $region80: #{encoder_forward.7} parent=5 // pred_fallthru
      _
    %p486 = scmp.le.s32.totalorder 1, %s23
    %p487 = scmp.lt.s32.totalorder %s23, 3
    %p488 = pnand %p486, %p487
    %p489 = pneg %p488
    // Predicated region
    $region85: #{encoder_forward.7} parent=5 // pred_check
      _
    $region86: #{encoder_forward.7} parent=5 // pred_check_branch
      %491 = sbr.rel (%p488) target = $region88
    $region87: #{encoder_forward.7} parent=5 // pred_region
      %s492 = ssub.s32 %s23, 1
      %p493 = scmp.lt.s32.totalorder %s28, 1
      %s494 = scalar_select %p493, %s28, 1
      %s495 = smul.addr %s494, 4
      %s496 = smul.addr %s495, 4
      %s497 = scalar_lea.vmem %s0, %s496
      %p498 = pneg %p49
      %p499 = pneg %p46
      %p500 = pneg %p70
      %p501 = pneg %p67
      %p502 = pneg %p91
      %p503 = pneg %p88
      %p504 = pneg %p112
      %p505 = pneg %p109
      %p506 = pneg %p133
      %p507 = pneg %p130
      %p508 = pneg %p154
      %p509 = pneg %p151
      %p510 = pneg %p175
      %p511 = pneg %p172
      %p512 = pneg %p196
      %p513 = pneg %p193
      %p514 = pneg %p217
      %p515 = pneg %p214
      %p516 = pneg %p238
      %p517 = pneg %p235
      %p518 = pneg %p259
      %p519 = pneg %p256
      %p520 = pneg %p280
      %p521 = pneg %p277
      %p522 = pneg %p301
      %p523 = pneg %p298
      %p524 = pneg %p322
      %p525 = pneg %p319
      %p526 = pneg %p343
      %p527 = pneg %p340
      %p528 = pneg %p364
      %p529 = pneg %p361
      %p530 = pneg %p385
      %p531 = pneg %p382
      %p532 = pneg %p411
      %p533 = pneg %p408
      %p534 = scmp.lt.s32.totalorder %s28, 1
      %s535 = scalar_select %p534, %s28, 1
      %s536 = smul.addr %s535, 2
      %s537 = smul.addr %s536, 4
      %s538 = scalar_lea.vmem %s17, %s537
      %p539 = scmp.lt.s32.totalorder %s28, 1
      %s540 = scalar_select %p539, %s28, 1
      %s541 = smul.addr %s540, 4
      %s542 = smul.addr %s541, 4
      %s543 = scalar_lea.vmem %s0, %s542
      %p544 = scmp.lt.s32.totalorder %s28, 1
      %s545 = scalar_select %p544, %s28, 1
      %s546 = smul.addr %s545, 2
      %s547 = smul.addr %s546, 4
      %s548 = scalar_lea.vmem %s17, %s547
      %v550 = vld [vmem:[%s543] sm:$0xf]
      %v551 = vld [vmem:[%s543 + $0x4] sm:$0xf]
      %v552 = vld [vmem:[%s543 + $0x8] sm:$0xf]
      %v553 = vld [vmem:[%s543 + $0xc] sm:$0xf]
      %v554 = vld [vmem:[%s1] sm:$0xf]
      %v555 = vld [vmem:[%s1 + $0x4] sm:$0xf]
      %v556 = vld [vmem:[%s1 + $0x8] sm:$0xf]
      %v557 = vld [vmem:[%s1 + $0xc] sm:$0xf]
      %v558 = vld [vmem:[%s1 + $0x10] sm:$0xf]
      %v559 = vld [vmem:[%s1 + $0x14] sm:$0xf]
      %v560 = vld [vmem:[%s1 + $0x18] sm:$0xf]
      %v561 = vld [vmem:[%s1 + $0x1c] sm:$0xf]
      %v570 = vunpack.c.l.b16 %v554
      %v571 = vunpack.c.l.b16 %v555
      %v572 = vunpack.c.l.b16 %v556
      %v573 = vunpack.c.l.b16 %v557
      %v574 = vunpack.c.l.b16 %v558
      %v575 = vunpack.c.l.b16 %v559
      %v576 = vunpack.c.l.b16 %v560
      %v577 = vunpack.c.l.b16 %v561
      %v578 = vpack.c.b16 %v571, %v570
      %v579 = vpack.c.b16 %v573, %v572
      %v580 = vpack.c.b16 %v575, %v574
      %v581 = vpack.c.b16 %v577, %v576
      %v586 = vunpack.c.l.b16 %v550
      %v587 = vunpack.c.l.b16 %v551
      %v588 = vunpack.c.l.b16 %v552
      %v589 = vunpack.c.l.b16 %v553
      %v590 = vpack.c.b16 %v587, %v586
      %v591 = vpack.c.b16 %v589, %v588
      %vm594 = vcmask 261120
      %v596 = vsel %vm594, %v578, 0
      %v599 = vsel %vm594, %v579, 0
      %v602 = vsel %vm594, %v580, 0
      %v605 = vsel %vm594, %v581, 0
      %607 = vmatprep.subr.bf16.mxu0 0
      %608 = vmatpush1.bf16.msra.mxu0 %v590
      %609 = vmatprep.subr.bf16.mxu0 0
      %610 = vmatpush1.bf16.msra.mxu0 %v591
      %611 = vmatprep.subr.bf16.mxu0 0
      %612 = vmatpush1.bf16.msra.mxu0 0
      %613 = vmatprep.subr.bf16.mxu0 0
      %614 = vmatpush1.bf16.msra.mxu0 0
      %615 = vmatprep.subr.bf16.mxu0 0
      %616 = vmatpush1.bf16.msra.mxu0 0
      %617 = vmatprep.subr.bf16.mxu0 0
      %618 = vmatpush1.bf16.msra.mxu0 0
      %619 = vmatprep.subr.bf16.mxu0 0
      %620 = vmatpush1.bf16.msra.mxu0 0
      %621 = vmatprep.subr.bf16.mxu0 0
      %622 = vmatpush1.bf16.msra.mxu0 0
      %623 = vmatprep.subr.bf16.mxu0 0
      %624 = vmatpush1.bf16.msra.mxu0 0
      %625 = vmatprep.subr.bf16.mxu0 0
      %626 = vmatpush1.bf16.msra.mxu0 0
      %627 = vmatprep.subr.bf16.mxu0 0
      %628 = vmatpush1.bf16.msra.mxu0 0
      %629 = vmatprep.subr.bf16.mxu0 0
      %630 = vmatpush1.bf16.msra.mxu0 0
      %631 = vmatprep.subr.bf16.mxu0 0
      %632 = vmatpush1.bf16.msra.mxu0 0
      %633 = vmatprep.subr.bf16.mxu0 0
      %634 = vmatpush1.bf16.msra.mxu0 0
      %635 = vmatprep.subr.bf16.mxu0 0
      %636 = vmatpush1.bf16.msra.mxu0 0
      %637 = vmatprep.subr.bf16.mxu0 0
      %638 = vmatpush1.bf16.msra.mxu0 0
      %639 = vmatprep.mubr.bf16.mxu0 0
      %640 = vmatmul.mubr.bf16.gmra.mrb[0].mxu0 %v596
      %v641 = vpop.f32.mrb[0].mxu0
      %v642 = vadd.f32 0.0, %v641
      %v643 = vpop.f32.mrb[0].mxu0
      %v644 = vpop.f32.mrb[0].mxu0
      %v645 = vadd.f32 0.0, %v644
      %v646 = vpop.f32.mrb[0].mxu0
      %647 = vmatprep.mubr.bf16.mxu0 0
      %648 = vmatmul.mubr.bf16.gmra.mrb[0].mxu0 %v599
      %v649 = vpop.f32.mrb[0].mxu0
      %v650 = vadd.f32 0.0, %v649
      %v651 = vpop.f32.mrb[0].mxu0
      %v652 = vpop.f32.mrb[0].mxu0
      %v653 = vadd.f32 0.0, %v652
      %v654 = vpop.f32.mrb[0].mxu0
      %655 = vmatprep.mubr.bf16.mxu0 0
      %656 = vmatmul.mubr.bf16.gmra.mrb[0].mxu0 %v602
      %v657 = vpop.f32.mrb[0].mxu0
      %v658 = vadd.f32 0.0, %v657
      %v659 = vpop.f32.mrb[0].mxu0
      %v660 = vpop.f32.mrb[0].mxu0
      %v661 = vadd.f32 0.0, %v660
      %v662 = vpop.f32.mrb[0].mxu0
      %663 = vmatprep.mubr.bf16.mxu0 0
      %664 = vmatmul.mubr.bf16.gmra.mrb[0].mxu0 %v605
      %v665 = vpop.f32.mrb[0].mxu0
      %v666 = vadd.f32 0.0, %v665
      %v667 = vpop.f32.mrb[0].mxu0
      %v668 = vpop.f32.mrb[0].mxu0
      %v669 = vadd.f32 0.0, %v668
      %v670 = vpop.f32.mrb[0].mxu0
      %671 = vdwg.mxu0
      %v672 = vld [vmem:[%s2] sm:$0xff]
      %v673 = vld [vmem:[%s2 + $0x8] sm:$0xff]
      %v674 = vld [vmem:[%s2 + $0x10] sm:$0xff]
      %v675 = vld [vmem:[%s2 + $0x18] sm:$0xff]
      %v676 = vld [vmem:[%s2 + $0x20] sm:$0xff]
      %v677 = vld [vmem:[%s2 + $0x28] sm:$0xff]
      %v678 = vld [vmem:[%s2 + $0x30] sm:$0xff]
      %v679 = vld [vmem:[%s2 + $0x38] sm:$0xff]
      %681 = vset.pattern.permute.xlu0 0
      %682 = vperm.xlu0 %681, %v672
      %v683 = vpop.permute.xlu0 %682
      %686 = vset.pattern.permute.xlu0 0
      %687 = vperm.xlu0 %686, %v673
      %v688 = vpop.permute.xlu0 %687
      %691 = vset.pattern.permute.xlu0 0
      %692 = vperm.xlu0 %691, %v674
      %v693 = vpop.permute.xlu0 %692
      %696 = vset.pattern.permute.xlu0 0
      %697 = vperm.xlu0 %696, %v675
      %v698 = vpop.permute.xlu0 %697
      %701 = vset.pattern.permute.xlu0 0
      %702 = vperm.xlu0 %701, %v676
      %v703 = vpop.permute.xlu0 %702
      %706 = vset.pattern.permute.xlu0 0
      %707 = vperm.xlu0 %706, %v677
      %v708 = vpop.permute.xlu0 %707
      %711 = vset.pattern.permute.xlu0 0
      %712 = vperm.xlu0 %711, %v678
      %v713 = vpop.permute.xlu0 %712
      %716 = vset.pattern.permute.xlu0 0
      %717 = vperm.xlu0 %716, %v679
      %v718 = vpop.permute.xlu0 %717
      %v720 = vmul.f32 %v642, %v683
      %v721 = vmul.f32 %v645, %v688
      %v722 = vmul.f32 %v650, %v693
      %v723 = vmul.f32 %v653, %v698
      %v724 = vmul.f32 %v658, %v703
      %v725 = vmul.f32 %v661, %v708
      %v726 = vmul.f32 %v666, %v713
      %v727 = vmul.f32 %v669, %v718
      %v728 = vld [vmem:[%s3] sm:$0xff]
      %v729 = vld [vmem:[%s3 + $0x8] sm:$0xff]
      %v730 = vld [vmem:[%s3 + $0x10] sm:$0xff]
      %v731 = vld [vmem:[%s3 + $0x18] sm:$0xff]
      %v732 = vld [vmem:[%s3 + $0x20] sm:$0xff]
      %v733 = vld [vmem:[%s3 + $0x28] sm:$0xff]
      %v734 = vld [vmem:[%s3 + $0x30] sm:$0xff]
      %v735 = vld [vmem:[%s3 + $0x38] sm:$0xff]
      %737 = vset.pattern.permute.xlu0 0
      %738 = vperm.xlu0 %737, %v728
      %v739 = vpop.permute.xlu0 %738
      %742 = vset.pattern.permute.xlu0 0
      %743 = vperm.xlu0 %742, %v729
      %v744 = vpop.permute.xlu0 %743
      %747 = vset.pattern.permute.xlu0 0
      %748 = vperm.xlu0 %747, %v730
      %v749 = vpop.permute.xlu0 %748
      %752 = vset.pattern.permute.xlu0 0
      %753 = vperm.xlu0 %752, %v731
      %v754 = vpop.permute.xlu0 %753
      %757 = vset.pattern.permute.xlu0 0
      %758 = vperm.xlu0 %757, %v732
      %v759 = vpop.permute.xlu0 %758
      %762 = vset.pattern.permute.xlu0 0
      %763 = vperm.xlu0 %762, %v733
      %v764 = vpop.permute.xlu0 %763
      %767 = vset.pattern.permute.xlu0 0
      %768 = vperm.xlu0 %767, %v734
      %v769 = vpop.permute.xlu0 %768
      %772 = vset.pattern.permute.xlu0 0
      %773 = vperm.xlu0 %772, %v735
      %v774 = vpop.permute.xlu0 %773
      %v776 = vadd.f32 %v720, %v739
      %v777 = vadd.f32 %v721, %v744
      %v778 = vadd.f32 %v722, %v749
      %v779 = vadd.f32 %v723, %v754
      %v780 = vadd.f32 %v724, %v759
      %v781 = vadd.f32 %v725, %v764
      %v782 = vadd.f32 %v726, %v769
      %v783 = vadd.f32 %v727, %v774
      %v784 = vmax.f32 %v776, 0.0
      %v785 = vmax.f32 %v777, 0.0
      %v786 = vmax.f32 %v778, 0.0
      %v787 = vmax.f32 %v779, 0.0
      %v788 = vmax.f32 %v780, 0.0
      %v789 = vmax.f32 %v781, 0.0
      %v790 = vmax.f32 %v782, 0.0
      %v791 = vmax.f32 %v783, 0.0
      %v792 = vld [vmem:[%s4] sm:$0xf]
      %v793 = vld [vmem:[%s4 + $0x4] sm:$0xf]
      %v794 = vld [vmem:[%s4 + $0x8] sm:$0xf]
      %v795 = vld [vmem:[%s4 + $0xc] sm:$0xf]
      %v796 = vld [vmem:[%s4 + $0x10] sm:$0xf]
      %v797 = vld [vmem:[%s4 + $0x14] sm:$0xf]
      %v798 = vld [vmem:[%s4 + $0x18] sm:$0xf]
      %v799 = vld [vmem:[%s4 + $0x1c] sm:$0xf]
      %v800 = vpack.c.bf16 %v785, %v784
      %v801 = vpack.c.bf16 %v787, %v786
      %v802 = vpack.c.bf16 %v789, %v788
      %v803 = vpack.c.bf16 %v791, %v790
      %v812 = vunpack.c.l.b16 %v792
      %v813 = vunpack.c.l.b16 %v793
      %v814 = vunpack.c.l.b16 %v794
      %v815 = vunpack.c.l.b16 %v795
      %v816 = vunpack.c.l.b16 %v796
      %v817 = vunpack.c.l.b16 %v797
      %v818 = vunpack.c.l.b16 %v798
      %v819 = vunpack.c.l.b16 %v799
      %v820 = vpack.c.b16 %v813, %v812
      %v821 = vpack.c.b16 %v815, %v814
      %v822 = vpack.c.b16 %v817, %v816
      %v823 = vpack.c.b16 %v819, %v818
      %vm824 = vcmask 523264
      %v826 = vsel %vm824, %v820, 0
      %v829 = vsel %vm824, %v821, 0
      %v832 = vsel %vm824, %v822, 0
      %v835 = vsel %vm824, %v823, 0
      %837 = vmatprep.subr.bf16.mxu0 0
      %838 = vmatpush1.bf16.msra.mxu0 %v800
      %839 = vmatprep.subr.bf16.mxu0 0
      %840 = vmatpush1.bf16.msra.mxu0 %v801
      %841 = vmatprep.subr.bf16.mxu0 0
      %842 = vmatpush1.bf16.msra.mxu0 %v802
      %843 = vmatprep.subr.bf16.mxu0 0
      %844 = vmatpush1.bf16.msra.mxu0 %v803
      %845 = vmatprep.subr.bf16.mxu0 0
      %846 = vmatpush1.bf16.msra.mxu0 0
      %847 = vmatprep.subr.bf16.mxu0 0
      %848 = vmatpush1.bf16.msra.mxu0 0
      %849 = vmatprep.subr.bf16.mxu0 0
      %850 = vmatpush1.bf16.msra.mxu0 0
      %851 = vmatprep.subr.bf16.mxu0 0
      %852 = vmatpush1.bf16.msra.mxu0 0
      %853 = vmatprep.subr.bf16.mxu0 0
      %854 = vmatpush1.bf16.msra.mxu0 0
      %855 = vmatprep.subr.bf16.mxu0 0
      %856 = vmatpush1.bf16.msra.mxu0 0
      %857 = vmatprep.subr.bf16.mxu0 0
      %858 = vmatpush1.bf16.msra.mxu0 0
      %859 = vmatprep.subr.bf16.mxu0 0
      %860 = vmatpush1.bf16.msra.mxu0 0
      %861 = vmatprep.subr.bf16.mxu0 0
      %862 = vmatpush1.bf16.msra.mxu0 0
      %863 = vmatprep.subr.bf16.mxu0 0
      %864 = vmatpush1.bf16.msra.mxu0 0
      %865 = vmatprep.subr.bf16.mxu0 0
      %866 = vmatpush1.bf16.msra.mxu0 0
      %867 = vmatprep.subr.bf16.mxu0 0
      %868 = vmatpush1.bf16.msra.mxu0 0
      %869 = vmatprep.mubr.bf16.mxu0 0
      %870 = vmatmul.mubr.bf16.gmra.mrb[0].mxu0 %v826
      %v871 = vpop.f32.mrb[0].mxu0
      %v872 = vadd.f32 0.0, %v871
      %v873 = vpop.f32.mrb[0].mxu0
      %v874 = vpop.f32.mrb[0].mxu0
      %v875 = vadd.f32 0.0, %v874
      %v876 = vpop.f32.mrb[0].mxu0
      %877 = vmatprep.mubr.bf16.mxu0 0
      %878 = vmatmul.mubr.bf16.gmra.mrb[0].mxu0 %v829
      %v879 = vpop.f32.mrb[0].mxu0
      %v880 = vadd.f32 0.0, %v879
      %v881 = vpop.f32.mrb[0].mxu0
      %v882 = vpop.f32.mrb[0].mxu0
      %v883 = vadd.f32 0.0, %v882
      %v884 = vpop.f32.mrb[0].mxu0
      %885 = vmatprep.mubr.bf16.mxu0 0
      %886 = vmatmul.mubr.bf16.gmra.mrb[0].mxu0 %v832
      %v887 = vpop.f32.mrb[0].mxu0
      %v888 = vadd.f32 0.0, %v887
      %v889 = vpop.f32.mrb[0].mxu0
      %v890 = vpop.f32.mrb[0].mxu0
      %v891 = vadd.f32 0.0, %v890
      %v892 = vpop.f32.mrb[0].mxu0
      %893 = vmatprep.mubr.bf16.mxu0 0
      %894 = vmatmul.mubr.bf16.gmra.mrb[0].mxu0 %v835
      %v895 = vpop.f32.mrb[0].mxu0
      %v896 = vadd.f32 0.0, %v895
      %v897 = vpop.f32.mrb[0].mxu0
      %v898 = vpop.f32.mrb[0].mxu0
      %v899 = vadd.f32 0.0, %v898
      %v900 = vpop.f32.mrb[0].mxu0
      %901 = vdwg.mxu0
      %v902 = vlaneseq
      %v903 = vand.u32 %v902, 127
      %vm904 = vcmp.lt.s32.totalorder %v903, 0
      %v905 = vsub.s32 0, %v903
      %v906 = vsel %vm904, %v905, %v903
      %v907 = vshrl.u32 %v906, 3
      %v908 = vand.u32 %v906, 7
      %v909 = vsub.s32 0, %v908
      %v910 = vsel %vm904, %v909, %v908
      %vm911 = vcmp.ne.s32.totalorder %v910, 0
      %vm912 = vcmp.lt.s32.totalorder %v910, 0
      %vm913 = vmand %vm912, %vm911
      %v914 = vadd.s32 %v910, 8
      %v915 = vsel %vm913, %v914, %v910
      %vm916 = vcmp.ne.s32.totalorder %v915, 0
      %919 = vrot.lane.b32.xlu0 %v880, 1
      %v920 = vpop.permute.xlu0 %919
      %921 = vrot.lane.b32.xlu0 %v883, 1
      %v922 = vpop.permute.xlu0 %921
      %vm925 = vcmask 7168
      %v926 = vsel %vm925, 0.0, %v920
      %v927 = vsel %vm925, 0.0, %v922
      %v928 = vsel %vm916, 1, 0
      %vm929 = vcmp.eq.s32.totalorder %v928, 1
      %v930 = vsel %vm929, %v926, 0.0
      %v931 = vsel %vm929, %v927, 0.0
      %v932 = vadd.f32 %v872, %v930
      %v933 = vadd.f32 %v875, %v931
      %936 = vrot.lane.b32.xlu0 %v888, 8
      %v937 = vpop.permute.xlu0 %936
      %938 = vrot.lane.b32.xlu0 %v891, 8
      %v939 = vpop.permute.xlu0 %938
      %vm942 = vcmask 64512
      %v943 = vsel %vm942, 0.0, %v937
      %v944 = vsel %vm942, 0.0, %v939
      %v945 = vadd.f32 %v932, %v943
      %v946 = vadd.f32 %v933, %v944
      %949 = vrot.lane.b32.xlu0 %v896, 9
      %v950 = vpop.permute.xlu0 %949
      %951 = vrot.lane.b32.xlu0 %v899, 9
      %v952 = vpop.permute.xlu0 %951
      %vm955 = vcmask 72704
      %v956 = vsel %vm955, 0.0, %v950
      %v957 = vsel %vm955, 0.0, %v952
      %v958 = vsel %vm929, %v956, 0.0
      %v959 = vsel %vm929, %v957, 0.0
      %v960 = vadd.f32 %v945, %v958
      %v961 = vadd.f32 %v946, %v959
      %v962 = vld [vmem:[%s5] sm:$0xff]
      %v963 = vld [vmem:[%s5 + $0x8] sm:$0xff]
      %965 = vset.pattern.permute.xlu0 0
      %966 = vperm.xlu0 %965, %v962
      %v967 = vpop.permute.xlu0 %966
      %970 = vset.pattern.permute.xlu0 0
      %971 = vperm.xlu0 %970, %v963
      %v972 = vpop.permute.xlu0 %971
      %v974 = vmul.f32 %v960, %v967
      %v975 = vmul.f32 %v961, %v972
      %v976 = vld [vmem:[%s6] sm:$0xff]
      %v977 = vld [vmem:[%s6 + $0x8] sm:$0xff]
      %979 = vset.pattern.permute.xlu0 0
      %980 = vperm.xlu0 %979, %v976
      %v981 = vpop.permute.xlu0 %980
      %984 = vset.pattern.permute.xlu0 0
      %985 = vperm.xlu0 %984, %v977
      %v986 = vpop.permute.xlu0 %985
      %v988 = vadd.f32 %v974, %v981
      %v989 = vadd.f32 %v975, %v986
      %v990 = vmax.f32 %v988, 0.0
      %v991 = vmax.f32 %v989, 0.0
      %v992 = vsel %vm824, %v990, 0.0
      %993 = vadd.xlane.f32.xlu0 %v992
      %v994 = vpop.xlane.xlu0 %993
      %v995 = vsel %vm824, %v991, 0.0
      %996 = vadd.xlane.f32.xlu0 %v995
      %v997 = vpop.xlane.xlu0 %996
      %v998 = vrcp.pop 64.0
      %v999 = vmul.f32 %v994, %v998
      %v1000 = vmul.f32 %v997, %v998
      %v1001 = vld [vmem:[%s7] sm:$0x3]
      %v1002 = vld [vmem:[%s8] sm:$0x3]
      %vm1003 = vcmask 130048
      %v1005 = vsel %vm1003, %v1001, 0
      %1007 = vmatprep.subr.mxu0 0.0
      %1008 = vmatpush1.msra.mxu0 %v999
      %1009 = vmatprep.subr.mxu0 0.0
      %1010 = vmatpush1.msra.mxu0 %v1000
      %1011 = vmatprep.subr.mxu0 0.0
      %1012 = vmatpush1.msra.mxu0 0.0
      %1013 = vmatprep.subr.mxu0 0.0
      %1014 = vmatpush1.msra.mxu0 0.0
      %1015 = vmatprep.subr.mxu0 0.0
      %1016 = vmatpush1.msra.mxu0 0.0
      %1017 = vmatprep.subr.mxu0 0.0
      %1018 = vmatpush1.msra.mxu0 0.0
      %1019 = vmatprep.subr.mxu0 0.0
      %1020 = vmatpush1.msra.mxu0 0.0
      %1021 = vmatprep.subr.mxu0 0.0
      %1022 = vmatpush1.msra.mxu0 0.0
      %1023 = vmatprep.subr.mxu0 0.0
      %1024 = vmatpush1.msra.mxu0 0.0
      %1025 = vmatprep.subr.mxu0 0.0
      %1026 = vmatpush1.msra.mxu0 0.0
      %1027 = vmatprep.subr.mxu0 0.0
      %1028 = vmatpush1.msra.mxu0 0.0
      %1029 = vmatprep.subr.mxu0 0.0
      %1030 = vmatpush1.msra.mxu0 0.0
      %1031 = vmatprep.subr.mxu0 0.0
      %1032 = vmatpush1.msra.mxu0 0.0
      %1033 = vmatprep.subr.mxu0 0.0
      %1034 = vmatpush1.msra.mxu0 0.0
      %1035 = vmatprep.subr.mxu0 0.0
      %1036 = vmatpush1.msra.mxu0 0.0
      %1037 = vmatprep.subr.mxu0 0.0
      %1038 = vmatpush1.msra.mxu0 0.0
      %1039 = vmatprep.subr.mxu0 0.0
      %1040 = vmatpush1.msra.mxu0 0.0
      %1041 = vmatprep.subr.mxu0 0.0
      %1042 = vmatpush1.msra.mxu0 0.0
      %1043 = vmatprep.subr.mxu0 0.0
      %1044 = vmatpush1.msra.mxu0 0.0
      %1045 = vmatprep.subr.mxu0 0.0
      %1046 = vmatpush1.msra.mxu0 0.0
      %1047 = vmatprep.subr.mxu0 0.0
      %1048 = vmatpush1.msra.mxu0 0.0
      %1049 = vmatprep.subr.mxu0 0.0
      %1050 = vmatpush1.msra.mxu0 0.0
      %1051 = vmatprep.subr.mxu0 0.0
      %1052 = vmatpush1.msra.mxu0 0.0
      %1053 = vmatprep.subr.mxu0 0.0
      %1054 = vmatpush1.msra.mxu0 0.0
      %1055 = vmatprep.subr.mxu0 0.0
      %1056 = vmatpush1.msra.mxu0 0.0
      %1057 = vmatprep.subr.mxu0 0.0
      %1058 = vmatpush1.msra.mxu0 0.0
      %1059 = vmatprep.subr.mxu0 0.0
      %1060 = vmatpush1.msra.mxu0 0.0
      %1061 = vmatprep.subr.mxu0 0.0
      %1062 = vmatpush1.msra.mxu0 0.0
      %1063 = vmatprep.subr.mxu0 0.0
      %1064 = vmatpush1.msra.mxu0 0.0
      %1065 = vmatprep.subr.mxu0 0.0
      %1066 = vmatpush1.msra.mxu0 0.0
      %1067 = vmatprep.subr.mxu0 0.0
      %1068 = vmatpush1.msra.mxu0 0.0
      %1069 = vmatprep.subr.mxu0 0.0
      %1070 = vmatpush1.msra.mxu0 0.0
      %1071 = vmatprep.mubr.f32.mxu0 0.0
      %1072 = vmatmul.mubr.f32.gmra.mrb[0].mxu0 %v1005
      %v1073 = vpop.f32.mrb[0].mxu0
      %v1074 = vadd.f32 %v1002, %v1073
      %v1075 = vpop.f32.mrb[0].mxu0
      %1076 = vdwg.mxu0
      %v1077 = vmax.f32 %v1074, 0.0
      %v1078 = vld [vmem:[%s9] sm:$0xff]
      %v1079 = vld [vmem:[%s9 + $0x8] sm:$0xff]
      %v1080 = vld [vmem:[%s10] sm:$0xff]
      %v1081 = vld [vmem:[%s10 + $0x8] sm:$0xff]
      %vm1082 = vcmask 15360
      %v1084 = vsel %vm1082, %v1078, 0
      %v1087 = vsel %vm1082, %v1079, 0
      %vm1089 = vcmask 1041408
      %v1091 = vsel %vm1089, %v1077, 0
      %1093 = vmatprep.subr.mxu0 0.0
      %1094 = vmatpush1.msra.mxu0 %v1091
      %1095 = vmatprep.subr.mxu0 0.0
      %1096 = vmatpush1.msra.mxu0 0.0
      %1097 = vmatprep.subr.mxu0 0.0
      %1098 = vmatpush1.msra.mxu0 0.0
      %1099 = vmatprep.subr.mxu0 0.0
      %1100 = vmatpush1.msra.mxu0 0.0
      %1101 = vmatprep.subr.mxu0 0.0
      %1102 = vmatpush1.msra.mxu0 0.0
      %1103 = vmatprep.subr.mxu0 0.0
      %1104 = vmatpush1.msra.mxu0 0.0
      %1105 = vmatprep.subr.mxu0 0.0
      %1106 = vmatpush1.msra.mxu0 0.0
      %1107 = vmatprep.subr.mxu0 0.0
      %1108 = vmatpush1.msra.mxu0 0.0
      %1109 = vmatprep.subr.mxu0 0.0
      %1110 = vmatpush1.msra.mxu0 0.0
      %1111 = vmatprep.subr.mxu0 0.0
      %1112 = vmatpush1.msra.mxu0 0.0
      %1113 = vmatprep.subr.mxu0 0.0
      %1114 = vmatpush1.msra.mxu0 0.0
      %1115 = vmatprep.subr.mxu0 0.0
      %1116 = vmatpush1.msra.mxu0 0.0
      %1117 = vmatprep.subr.mxu0 0.0
      %1118 = vmatpush1.msra.mxu0 0.0
      %1119 = vmatprep.subr.mxu0 0.0
      %1120 = vmatpush1.msra.mxu0 0.0
      %1121 = vmatprep.subr.mxu0 0.0
      %1122 = vmatpush1.msra.mxu0 0.0
      %1123 = vmatprep.subr.mxu0 0.0
      %1124 = vmatpush1.msra.mxu0 0.0
      %1125 = vmatprep.subr.mxu0 0.0
      %1126 = vmatpush1.msra.mxu0 0.0
      %1127 = vmatprep.subr.mxu0 0.0
      %1128 = vmatpush1.msra.mxu0 0.0
      %1129 = vmatprep.subr.mxu0 0.0
      %1130 = vmatpush1.msra.mxu0 0.0
      %1131 = vmatprep.subr.mxu0 0.0
      %1132 = vmatpush1.msra.mxu0 0.0
      %1133 = vmatprep.subr.mxu0 0.0
      %1134 = vmatpush1.msra.mxu0 0.0
      %1135 = vmatprep.subr.mxu0 0.0
      %1136 = vmatpush1.msra.mxu0 0.0
      %1137 = vmatprep.subr.mxu0 0.0
      %1138 = vmatpush1.msra.mxu0 0.0
      %1139 = vmatprep.subr.mxu0 0.0
      %1140 = vmatpush1.msra.mxu0 0.0
      %1141 = vmatprep.subr.mxu0 0.0
      %1142 = vmatpush1.msra.mxu0 0.0
      %1143 = vmatprep.subr.mxu0 0.0
      %1144 = vmatpush1.msra.mxu0 0.0
      %1145 = vmatprep.subr.mxu0 0.0
      %1146 = vmatpush1.msra.mxu0 0.0
      %1147 = vmatprep.subr.mxu0 0.0
      %1148 = vmatpush1.msra.mxu0 0.0
      %1149 = vmatprep.subr.mxu0 0.0
      %1150 = vmatpush1.msra.mxu0 0.0
      %1151 = vmatprep.subr.mxu0 0.0
      %1152 = vmatpush1.msra.mxu0 0.0
      %1153 = vmatprep.subr.mxu0 0.0
      %1154 = vmatpush1.msra.mxu0 0.0
      %1155 = vmatprep.subr.mxu0 0.0
      %1156 = vmatpush1.msra.mxu0 0.0
      %1157 = vmatprep.mubr.f32.mxu0 0.0
      %1158 = vmatmul.mubr.f32.gmra.mrb[0].mxu0 %v1084
      %v1159 = vpop.f32.mrb[0].mxu0
      %v1160 = vadd.f32 %v1080, %v1159
      %v1161 = vpop.f32.mrb[0].mxu0
      %1162 = vmatprep.mubr.f32.mxu0 0.0
      %1163 = vmatmul.mubr.f32.gmra.mrb[0].mxu0 %v1087
      %v1164 = vpop.f32.mrb[0].mxu0
      %v1165 = vadd.f32 %v1081, %v1164
      %v1166 = vpop.f32.mrb[0].mxu0
      %1167 = vdwg.mxu0
      %v1168 = vxor.u32 %v1160, 2147483648
      %v1169 = vxor.u32 %v1165, 2147483648
      %v1170 = vmul.f32 %v1168, 1.442695
      %v1171 = vpow.pop %v1170
      %v1172 = vmul.f32 %v1169, 1.442695
      %v1173 = vpow.pop %v1172
      %v1174 = vadd.f32 %v1171, 1.0
      %v1175 = vadd.f32 %v1173, 1.0
      %v1176 = vrcp.pop %v1174
      %v1177 = vmul.f32 1.0, %v1176
      %v1178 = vrcp.pop %v1175
      %v1179 = vmul.f32 1.0, %v1178
      %1181 = vset.pattern.permute.xlu0 0
      %1182 = vperm.xlu0 %1181, %v1177
      %v1183 = vpop.permute.xlu0 %1182
      %1186 = vset.pattern.permute.xlu0 0
      %1187 = vperm.xlu0 %1186, %v1179
      %v1188 = vpop.permute.xlu0 %1187
      %v1190 = vmul.f32 %v990, %v1183
      %v1191 = vmul.f32 %v991, %v1188
      %v1192 = vld [vmem:[%s11] sm:$0xf]
      %v1193 = vld [vmem:[%s11 + $0x4] sm:$0xf]
      %v1194 = vpack.c.bf16 %v1191, %v1190
      %v1197 = vunpack.c.l.b16 %v1192
      %v1198 = vunpack.c.l.b16 %v1193
      %v1199 = vpack.c.b16 %v1198, %v1197
      %v1201 = vsel %vm1003, %v1199, 0
      %1203 = vmatprep.subr.bf16.mxu0 0
      %1204 = vmatpush1.bf16.msra.mxu0 %v1194
      %1205 = vmatprep.subr.bf16.mxu0 0
      %1206 = vmatpush1.bf16.msra.mxu0 0
      %1207 = vmatprep.subr.bf16.mxu0 0
      %1208 = vmatpush1.bf16.msra.mxu0 0
      %1209 = vmatprep.subr.bf16.mxu0 0
      %1210 = vmatpush1.bf16.msra.mxu0 0
      %1211 = vmatprep.subr.bf16.mxu0 0
      %1212 = vmatpush1.bf16.msra.mxu0 0
      %1213 = vmatprep.subr.bf16.mxu0 0
      %1214 = vmatpush1.bf16.msra.mxu0 0
      %1215 = vmatprep.subr.bf16.mxu0 0
      %1216 = vmatpush1.bf16.msra.mxu0 0
      %1217 = vmatprep.subr.bf16.mxu0 0
      %1218 = vmatpush1.bf16.msra.mxu0 0
      %1219 = vmatprep.subr.bf16.mxu0 0
      %1220 = vmatpush1.bf16.msra.mxu0 0
      %1221 = vmatprep.subr.bf16.mxu0 0
      %1222 = vmatpush1.bf16.msra.mxu0 0
      %1223 = vmatprep.subr.bf16.mxu0 0
      %1224 = vmatpush1.bf16.msra.mxu0 0
      %1225 = vmatprep.subr.bf16.mxu0 0
      %1226 = vmatpush1.bf16.msra.mxu0 0
      %1227 = vmatprep.subr.bf16.mxu0 0
      %1228 = vmatpush1.bf16.msra.mxu0 0
      %1229 = vmatprep.subr.bf16.mxu0 0
      %1230 = vmatpush1.bf16.msra.mxu0 0
      %1231 = vmatprep.subr.bf16.mxu0 0
      %1232 = vmatpush1.bf16.msra.mxu0 0
      %1233 = vmatprep.subr.bf16.mxu0 0
      %1234 = vmatpush1.bf16.msra.mxu0 0
      %1235 = vmatprep.mubr.bf16.mxu0 0
      %1236 = vmatmul.mubr.bf16.gmra.mrb[0].mxu0 %v1201
      %v1237 = vpop.f32.mrb[0].mxu0
      %v1238 = vadd.f32 0.0, %v1237
      %v1239 = vpop.f32.mrb[0].mxu0
      %v1240 = vpop.f32.mrb[0].mxu0
      %v1241 = vadd.f32 0.0, %v1240
      %v1242 = vpop.f32.mrb[0].mxu0
      %1243 = vdwg.mxu0
      %v1244 = vld [vmem:[%s12] sm:$0xff]
      %v1245 = vld [vmem:[%s12 + $0x8] sm:$0xff]
      %1247 = vset.pattern.permute.xlu0 0
      %1248 = vperm.xlu0 %1247, %v1244
      %v1249 = vpop.permute.xlu0 %1248
      %1252 = vset.pattern.permute.xlu0 0
      %1253 = vperm.xlu0 %1252, %v1245
      %v1254 = vpop.permute.xlu0 %1253
      %v1256 = vmul.f32 %v1238, %v1249
      %v1257 = vmul.f32 %v1241, %v1254
      %v1258 = vld [vmem:[%s13] sm:$0xff]
      %v1259 = vld [vmem:[%s13 + $0x8] sm:$0xff]
      %1261 = vset.pattern.permute.xlu0 0
      %1262 = vperm.xlu0 %1261, %v1258
      %v1263 = vpop.permute.xlu0 %1262
      %1266 = vset.pattern.permute.xlu0 0
      %1267 = vperm.xlu0 %1266, %v1259
      %v1268 = vpop.permute.xlu0 %1267
      %v1270 = vadd.f32 %v1256, %v1263
      %v1271 = vadd.f32 %v1257, %v1268
      %v1272 = vld [vmem:[%s14] sm:$0xf]
      %v1273 = vld [vmem:[%s14 + $0x4] sm:$0xf]
      %v1276 = vunpack.c.l.b16 %v1272
      %v1277 = vunpack.c.l.b16 %v1273
      %v1278 = vpack.c.b16 %v1277, %v1276
      %v1280 = vsel %vm942, %v1278, 0
      %vm1282 = vcmask 1043456
      %v1284 = vsel %vm1282, %v550, 0
      %1286 = vmatprep.subr.bf16.mxu0 0
      %1287 = vmatpush1.bf16.msra.mxu0 %v1284
      %1288 = vmatprep.subr.bf16.mxu0 0
      %1289 = vmatpush1.bf16.msra.mxu0 0
      %1290 = vmatprep.subr.bf16.mxu0 0
      %1291 = vmatpush1.bf16.msra.mxu0 0
      %1292 = vmatprep.subr.bf16.mxu0 0
      %1293 = vmatpush1.bf16.msra.mxu0 0
      %1294 = vmatprep.subr.bf16.mxu0 0
      %1295 = vmatpush1.bf16.msra.mxu0 0
      %1296 = vmatprep.subr.bf16.mxu0 0
      %1297 = vmatpush1.bf16.msra.mxu0 0
      %1298 = vmatprep.subr.bf16.mxu0 0
      %1299 = vmatpush1.bf16.msra.mxu0 0
      %1300 = vmatprep.subr.bf16.mxu0 0
      %1301 = vmatpush1.bf16.msra.mxu0 0
      %1302 = vmatprep.subr.bf16.mxu0 0
      %1303 = vmatpush1.bf16.msra.mxu0 0
      %1304 = vmatprep.subr.bf16.mxu0 0
      %1305 = vmatpush1.bf16.msra.mxu0 0
      %1306 = vmatprep.subr.bf16.mxu0 0
      %1307 = vmatpush1.bf16.msra.mxu0 0
      %1308 = vmatprep.subr.bf16.mxu0 0
      %1309 = vmatpush1.bf16.msra.mxu0 0
      %1310 = vmatprep.subr.bf16.mxu0 0
      %1311 = vmatpush1.bf16.msra.mxu0 0
      %1312 = vmatprep.subr.bf16.mxu0 0
      %1313 = vmatpush1.bf16.msra.mxu0 0
      %1314 = vmatprep.subr.bf16.mxu0 0
      %1315 = vmatpush1.bf16.msra.mxu0 0
      %1316 = vmatprep.subr.bf16.mxu0 0
      %1317 = vmatpush1.bf16.msra.mxu0 0
      %1318 = vmatprep.mubr.bf16.mxu0 0
      %1319 = vmatmul.mubr.bf16.gmra.mrb[0].mxu0 %v1280
      %v1320 = vpop.f32.mrb[0].mxu0
      %v1321 = vadd.f32 0.0, %v1320
      %v1322 = vpop.f32.mrb[0].mxu0
      %v1323 = vpop.f32.mrb[0].mxu0
      %v1324 = vadd.f32 0.0, %v1323
      %v1325 = vpop.f32.mrb[0].mxu0
      %1326 = vdwg.mxu0
      %v1327 = vld [vmem:[%s15] sm:$0xff]
      %v1328 = vld [vmem:[%s15 + $0x8] sm:$0xff]
      %1330 = vset.pattern.permute.xlu0 0
      %1331 = vperm.xlu0 %1330, %v1327
      %v1332 = vpop.permute.xlu0 %1331
      %1335 = vset.pattern.permute.xlu0 0
      %1336 = vperm.xlu0 %1335, %v1328
      %v1337 = vpop.permute.xlu0 %1336
      %v1339 = vmul.f32 %v1321, %v1332
      %v1340 = vmul.f32 %v1324, %v1337
      %v1341 = vld [vmem:[%s16] sm:$0xff]
      %v1342 = vld [vmem:[%s16 + $0x8] sm:$0xff]
      %1344 = vset.pattern.permute.xlu0 0
      %1345 = vperm.xlu0 %1344, %v1341
      %v1346 = vpop.permute.xlu0 %1345
      %1349 = vset.pattern.permute.xlu0 0
      %1350 = vperm.xlu0 %1349, %v1342
      %v1351 = vpop.permute.xlu0 %1350
      %v1353 = vadd.f32 %v1339, %v1346
      %v1354 = vadd.f32 %v1340, %v1351
      %v1355 = vadd.f32 %v1270, %v1353
      %v1356 = vadd.f32 %v1271, %v1354
      %v1357 = vmax.f32 %v1355, 0.0
      %v1358 = vmax.f32 %v1356, 0.0
      %v1359 = vpack.c.bf16 %v1358, %v1357
      %v1361 = vunpack.c.l.b16 %v1359
      %v1362 = vunpack.c.h.b16 %v1359
      %v1363 = vpack.c.b16 %v1361, %v1361
      %v1364 = vpack.c.b16 %v1362, %v1362
      %vm1367 = vcmask 519168
      %1368 = vst.msk [vmem:[%s548] sm:$0xf] %vm1367, %v1363
      %1369 = vst.msk [vmem:[%s548 + $0x4] sm:$0xf] %vm1367, %v1364
      %p1370 = scmp.lt.s32.totalorder %s28, 1
      %s1371 = scalar_select %p1370, %s28, 1
      %s1372 = smul.addr %s1371, 2
      %s1373 = smul.addr %s1372, 4
      %s1374 = scalar_lea.vmem %s17, %s1373
      // Predicated region
      $region89: #{encoder_forward.7} parent=87 // pred_check
        %p1375 = pneg %p408
      $region90: #{encoder_forward.7} parent=87 // pred_check_branch
        %1377 = sbr.rel (%p1375) target = $region92
      $region91: #{encoder_forward.7} parent=87 // pred_region
        _
      $region92: #{encoder_forward.7} parent=87 // pred_fallthru
        _
    $region88: #{encoder_forward.7} parent=5 // pred_fallthru
      _
    %p1378 = scmp.le.s32.totalorder 2, %s23
    // Predicated region
    $region93: #{encoder_forward.7} parent=5 // pred_check
      %p1379 = pneg %p1378
    $region94: #{encoder_forward.7} parent=5 // pred_check_branch
      %1381 = sbr.rel (%p1379) target = $region96
    $region95: #{encoder_forward.7} parent=5 // pred_region
      %s1382 = ssub.s32 %s23, 2
      // Predicated region
      $region97: #{encoder_forward.7} parent=95 // pred_check
        %p1383 = pneg %p414
      $region98: #{encoder_forward.7} parent=95 // pred_check_branch
        %1385 = sbr.rel (%p1383) target = $region100
      $region99: #{encoder_forward.7} parent=95 // pred_region
        %p1386 = scmp.lt.s32.totalorder %s29, 1
        %s1387 = scalar_select %p1386, %s29, 1
        %s1388 = smul.addr %s1387, 2
        %s1389 = smul.addr %s1388, 4
        %s1390 = scalar_lea.vmem %s17, %s1389
      $region100: #{encoder_forward.7} parent=95 // pred_fallthru
        _
    $region96: #{encoder_forward.7} parent=5 // pred_fallthru
      _
  $region6: #{encoder_forward.7} parent=0 // loop_footer
    %s27 = sadd.s32 1, %s23
  $region7: #{encoder_forward.7} parent=0 // loop_footer_branch
    %22 = sbr.rel target = $region3
  $region8: #{encoder_forward.7} parent=0 // loop_exit
    _

// kernel: encoder_forward.8
$region0: #{encoder_forward.8}
  #allocation0 [shape = 'u32[]', space=smem, size = 0x4, offset = 0x4, fixed_abs, tag = 'smem constant byte address 0x4 - core index']
  #allocation1 [shape = 'u32[144,128]{1,0:T(1,128)}', space=vmem, size = 0x12000, scoped, tag = 'internal scratch']
  %s0 = inlined_call_operand.vmem [shape: bf16[2,64,16], index: 0, kind: input, shape index: {}]
  %s1 = inlined_call_operand.vmem [shape: bf16[64,64], index: 1, kind: input, shape index: {}]
  %s2 = inlined_call_operand.vmem [shape: f32[64,1], index: 2, kind: input, shape index: {}]
  %s3 = inlined_call_operand.vmem [shape: f32[64,1], index: 3, kind: input, shape index: {}]
  %s4 = inlined_call_operand.vmem [shape: bf16[64,64], index: 4, kind: input, shape index: {}]
  %s5 = inlined_call_operand.vmem [shape: f32[16,1], index: 5, kind: input, shape index: {}]
  %s6 = inlined_call_operand.vmem [shape: f32[16,1], index: 6, kind: input, shape index: {}]
  %s7 = inlined_call_operand.vmem [shape: f32[4,16], index: 7, kind: input, shape index: {}]
  %s8 = inlined_call_operand.vmem [shape: f32[4,1], index: 8, kind: input, shape index: {}]
  %s9 = inlined_call_operand.vmem [shape: f32[16,4], index: 9, kind: input, shape index: {}]
  %s10 = inlined_call_operand.vmem [shape: f32[16,1], index: 10, kind: input, shape index: {}]
  %s11 = inlined_call_operand.vmem [shape: bf16[16,16], index: 11, kind: input, shape index: {}]
  %s12 = inlined_call_operand.vmem [shape: f32[16,1], index: 12, kind: input, shape index: {}]
  %s13 = inlined_call_operand.vmem [shape: f32[16,1], index: 13, kind: input, shape index: {}]
  %s14 = inlined_call_operand.vmem [shape: bf16[16,16], index: 14, kind: input, shape index: {}]
  %s15 = inlined_call_operand.vmem [shape: f32[16,1], index: 15, kind: input, shape index: {}]
  %s16 = inlined_call_operand.vmem [shape: f32[16,1], index: 16, kind: input, shape index: {}]
  %s17 = inlined_call_operand.vmem [shape: bf16[2,16,16], index: 17, kind: output, shape index: {}]
  %s18 = sld [smem:[#allocation0]]
  $region101: #{encoder_forward.8} parent=0
    _
  %s20 = ssub.s32 1, %s18
  %s21 = scalar_select 0, %s20, %s18
  loop: start=0, step=1, limit=4
  $region2: #{encoder_forward.8} parent=0 // loop_pre_header
    _
  $region3: #{encoder_forward.8} parent=0 // loop_header
    %s23 = sphi 0, %s27
    %p24 = scmp.ge.s32.totalorder %s23, 4
    %s33 = sphi 0, %s35
    %s36 = sphi 0, %s33
    %s37 = sphi 0, %s36
    %s53 = sphi 0, %s37
    %s57 = sphi 0, %s57
    %s59 = sphi 0, %s57
    %s60 = sphi 0, %s59
    %s74 = sphi 0, %s60
    %s78 = sphi 0, %s78
    %s80 = sphi 0, %s78
    %s81 = sphi 0, %s80
    %s95 = sphi 0, %s81
    %s99 = sphi 0, %s99
    %s101 = sphi 0, %s99
    %s102 = sphi 0, %s101
    %s116 = sphi 0, %s102
    %s120 = sphi 0, %s120
    %s122 = sphi 0, %s120
    %s123 = sphi 0, %s122
    %s137 = sphi 0, %s123
    %s141 = sphi 0, %s141
    %s143 = sphi 0, %s141
    %s144 = sphi 0, %s143
    %s158 = sphi 0, %s144
    %s162 = sphi 0, %s162
    %s164 = sphi 0, %s162
    %s165 = sphi 0, %s164
    %s179 = sphi 0, %s165
    %s183 = sphi 0, %s183
    %s185 = sphi 0, %s183
    %s186 = sphi 0, %s185
    %s200 = sphi 0, %s186
    %s204 = sphi 0, %s204
    %s206 = sphi 0, %s204
    %s207 = sphi 0, %s206
    %s221 = sphi 0, %s207
    %s225 = sphi 0, %s225
    %s227 = sphi 0, %s225
    %s228 = sphi 0, %s227
    %s242 = sphi 0, %s228
    %s246 = sphi 0, %s246
    %s248 = sphi 0, %s246
    %s249 = sphi 0, %s248
    %s263 = sphi 0, %s249
    %s267 = sphi 0, %s267
    %s269 = sphi 0, %s267
    %s270 = sphi 0, %s269
    %s284 = sphi 0, %s270
    %s288 = sphi 0, %s288
    %s290 = sphi 0, %s288
    %s291 = sphi 0, %s290
    %s305 = sphi 0, %s291
    %s309 = sphi 0, %s309
    %s311 = sphi 0, %s309
    %s312 = sphi 0, %s311
    %s326 = sphi 0, %s312
    %s330 = sphi 0, %s330
    %s332 = sphi 0, %s330
    %s333 = sphi 0, %s332
    %s347 = sphi 0, %s333
    %s351 = sphi 0, %s351
    %s353 = sphi 0, %s351
    %s354 = sphi 0, %s353
    %s368 = sphi 0, %s354
    %s372 = sphi 0, %s372
    %s374 = sphi 0, %s372
    %s375 = sphi 0, %s374
    %s389 = sphi 0, %s375
    %s395 = sphi 0, %s397
    %s398 = sphi 0, %s395
    %s399 = sphi 0, %s398
    %s415 = sphi 0, %s399
  $region4: #{encoder_forward.8} parent=0 // loop_header_branch
    %26 = sbr.rel (%p24) target = $region8
  $region5: #{encoder_forward.8} parent=0 // loop_body
    %s28 = ssub.s32 %s23, 1
    %s29 = ssub.s32 %s23, 2
    %s30 = sadd.s32 %s23, 1
    %s31 = ssub.s32 %s23, %s30
    %p32 = scmp.eq.s32.totalorder %s31, 0
    %s34 = sadd.s32 %s33, 1
    %s35 = scalar_select %p32, %s33, %s34
    %p38 = pneg %p32
    %p39 = scmp.eq.s32.totalorder %s23, 1
    %p40 = por %p38, %p39
    %p41 = scmp.ne.s32.totalorder %s33, %s36
    %p42 = scmp.eq.s32.totalorder %s23, 0
    %p43 = por %p41, %p42
    %p44 = scmp.ne.s32.totalorder %s33, %s36
    %p45 = scmp.eq.s32.totalorder %s28, 1
    %p46 = por %p44, %p45
    %p47 = scmp.ne.s32.totalorder %s36, %s37
    %p48 = scmp.eq.s32.totalorder %s28, 0
    %p49 = por %p47, %p48
    %p50 = scmp.ne.s32.totalorder %s36, %s37
    %p51 = scmp.eq.s32.totalorder %s29, 1
    %p52 = por %p50, %p51
    %p54 = scmp.ne.s32.totalorder %s37, %s53
    %p55 = scmp.eq.s32.totalorder %s29, 0
    %p56 = por %p54, %p55
    %s58 = sadd.s32 %s57, 1
    %p61 = scmp.eq.s32.totalorder %s23, 1
    %p62 = scmp.ne.s32.totalorder %s57, %s59
    %p63 = scmp.eq.s32.totalorder %s23, 0
    %p64 = por %p62, %p63
    %p65 = scmp.ne.s32.totalorder %s57, %s59
    %p66 = scmp.eq.s32.totalorder %s28, 1
    %p67 = por %p65, %p66
    %p68 = scmp.ne.s32.totalorder %s59, %s60
    %p69 = scmp.eq.s32.totalorder %s28, 0
    %p70 = por %p68, %p69
    %p71 = scmp.ne.s32.totalorder %s59, %s60
    %p72 = scmp.eq.s32.totalorder %s29, 1
    %p73 = por %p71, %p72
    %p75 = scmp.ne.s32.totalorder %s60, %s74
    %p76 = scmp.eq.s32.totalorder %s29, 0
    %p77 = por %p75, %p76
    %s79 = sadd.s32 %s78, 1
    %p82 = scmp.eq.s32.totalorder %s23, 1
    %p83 = scmp.ne.s32.totalorder %s78, %s80
    %p84 = scmp.eq.s32.totalorder %s23, 0
    %p85 = por %p83, %p84
    %p86 = scmp.ne.s32.totalorder %s78, %s80
    %p87 = scmp.eq.s32.totalorder %s28, 1
    %p88 = por %p86, %p87
    %p89 = scmp.ne.s32.totalorder %s80, %s81
    %p90 = scmp.eq.s32.totalorder %s28, 0
    %p91 = por %p89, %p90
    %p92 = scmp.ne.s32.totalorder %s80, %s81
    %p93 = scmp.eq.s32.totalorder %s29, 1
    %p94 = por %p92, %p93
    %p96 = scmp.ne.s32.totalorder %s81, %s95
    %p97 = scmp.eq.s32.totalorder %s29, 0
    %p98 = por %p96, %p97
    %s100 = sadd.s32 %s99, 1
    %p103 = scmp.eq.s32.totalorder %s23, 1
    %p104 = scmp.ne.s32.totalorder %s99, %s101
    %p105 = scmp.eq.s32.totalorder %s23, 0
    %p106 = por %p104, %p105
    %p107 = scmp.ne.s32.totalorder %s99, %s101
    %p108 = scmp.eq.s32.totalorder %s28, 1
    %p109 = por %p107, %p108
    %p110 = scmp.ne.s32.totalorder %s101, %s102
    %p111 = scmp.eq.s32.totalorder %s28, 0
    %p112 = por %p110, %p111
    %p113 = scmp.ne.s32.totalorder %s101, %s102
    %p114 = scmp.eq.s32.totalorder %s29, 1
    %p115 = por %p113, %p114
    %p117 = scmp.ne.s32.totalorder %s102, %s116
    %p118 = scmp.eq.s32.totalorder %s29, 0
    %p119 = por %p117, %p118
    %s121 = sadd.s32 %s120, 1
    %p124 = scmp.eq.s32.totalorder %s23, 1
    %p125 = scmp.ne.s32.totalorder %s120, %s122
    %p126 = scmp.eq.s32.totalorder %s23, 0
    %p127 = por %p125, %p126
    %p128 = scmp.ne.s32.totalorder %s120, %s122
    %p129 = scmp.eq.s32.totalorder %s28, 1
    %p130 = por %p128, %p129
    %p131 = scmp.ne.s32.totalorder %s122, %s123
    %p132 = scmp.eq.s32.totalorder %s28, 0
    %p133 = por %p131, %p132
    %p134 = scmp.ne.s32.totalorder %s122, %s123
    %p135 = scmp.eq.s32.totalorder %s29, 1
    %p136 = por %p134, %p135
    %p138 = scmp.ne.s32.totalorder %s123, %s137
    %p139 = scmp.eq.s32.totalorder %s29, 0
    %p140 = por %p138, %p139
    %s142 = sadd.s32 %s141, 1
    %p145 = scmp.eq.s32.totalorder %s23, 1
    %p146 = scmp.ne.s32.totalorder %s141, %s143
    %p147 = scmp.eq.s32.totalorder %s23, 0
    %p148 = por %p146, %p147
    %p149 = scmp.ne.s32.totalorder %s141, %s143
    %p150 = scmp.eq.s32.totalorder %s28, 1
    %p151 = por %p149, %p150
    %p152 = scmp.ne.s32.totalorder %s143, %s144
    %p153 = scmp.eq.s32.totalorder %s28, 0
    %p154 = por %p152, %p153
    %p155 = scmp.ne.s32.totalorder %s143, %s144
    %p156 = scmp.eq.s32.totalorder %s29, 1
    %p157 = por %p155, %p156
    %p159 = scmp.ne.s32.totalorder %s144, %s158
    %p160 = scmp.eq.s32.totalorder %s29, 0
    %p161 = por %p159, %p160
    %s163 = sadd.s32 %s162, 1
    %p166 = scmp.eq.s32.totalorder %s23, 1
    %p167 = scmp.ne.s32.totalorder %s162, %s164
    %p168 = scmp.eq.s32.totalorder %s23, 0
    %p169 = por %p167, %p168
    %p170 = scmp.ne.s32.totalorder %s162, %s164
    %p171 = scmp.eq.s32.totalorder %s28, 1
    %p172 = por %p170, %p171
    %p173 = scmp.ne.s32.totalorder %s164, %s165
    %p174 = scmp.eq.s32.totalorder %s28, 0
    %p175 = por %p173, %p174
    %p176 = scmp.ne.s32.totalorder %s164, %s165
    %p177 = scmp.eq.s32.totalorder %s29, 1
    %p178 = por %p176, %p177
    %p180 = scmp.ne.s32.totalorder %s165, %s179
    %p181 = scmp.eq.s32.totalorder %s29, 0
    %p182 = por %p180, %p181
    %s184 = sadd.s32 %s183, 1
    %p187 = scmp.eq.s32.totalorder %s23, 1
    %p188 = scmp.ne.s32.totalorder %s183, %s185
    %p189 = scmp.eq.s32.totalorder %s23, 0
    %p190 = por %p188, %p189
    %p191 = scmp.ne.s32.totalorder %s183, %s185
    %p192 = scmp.eq.s32.totalorder %s28, 1
    %p193 = por %p191, %p192
    %p194 = scmp.ne.s32.totalorder %s185, %s186
    %p195 = scmp.eq.s32.totalorder %s28, 0
    %p196 = por %p194, %p195
    %p197 = scmp.ne.s32.totalorder %s185, %s186
    %p198 = scmp.eq.s32.totalorder %s29, 1
    %p199 = por %p197, %p198
    %p201 = scmp.ne.s32.totalorder %s186, %s200
    %p202 = scmp.eq.s32.totalorder %s29, 0
    %p203 = por %p201, %p202
    %s205 = sadd.s32 %s204, 1
    %p208 = scmp.eq.s32.totalorder %s23, 1
    %p209 = scmp.ne.s32.totalorder %s204, %s206
    %p210 = scmp.eq.s32.totalorder %s23, 0
    %p211 = por %p209, %p210
    %p212 = scmp.ne.s32.totalorder %s204, %s206
    %p213 = scmp.eq.s32.totalorder %s28, 1
    %p214 = por %p212, %p213
    %p215 = scmp.ne.s32.totalorder %s206, %s207
    %p216 = scmp.eq.s32.totalorder %s28, 0
    %p217 = por %p215, %p216
    %p218 = scmp.ne.s32.totalorder %s206, %s207
    %p219 = scmp.eq.s32.totalorder %s29, 1
    %p220 = por %p218, %p219
    %p222 = scmp.ne.s32.totalorder %s207, %s221
    %p223 = scmp.eq.s32.totalorder %s29, 0
    %p224 = por %p222, %p223
    %s226 = sadd.s32 %s225, 1
    %p229 = scmp.eq.s32.totalorder %s23, 1
    %p230 = scmp.ne.s32.totalorder %s225, %s227
    %p231 = scmp.eq.s32.totalorder %s23, 0
    %p232 = por %p230, %p231
    %p233 = scmp.ne.s32.totalorder %s225, %s227
    %p234 = scmp.eq.s32.totalorder %s28, 1
    %p235 = por %p233, %p234
    %p236 = scmp.ne.s32.totalorder %s227, %s228
    %p237 = scmp.eq.s32.totalorder %s28, 0
    %p238 = por %p236, %p237
    %p239 = scmp.ne.s32.totalorder %s227, %s228
    %p240 = scmp.eq.s32.totalorder %s29, 1
    %p241 = por %p239, %p240
    %p243 = scmp.ne.s32.totalorder %s228, %s242
    %p244 = scmp.eq.s32.totalorder %s29, 0
    %p245 = por %p243, %p244
    %s247 = sadd.s32 %s246, 1
    %p250 = scmp.eq.s32.totalorder %s23, 1
    %p251 = scmp.ne.s32.totalorder %s246, %s248
    %p252 = scmp.eq.s32.totalorder %s23, 0
    %p253 = por %p251, %p252
    %p254 = scmp.ne.s32.totalorder %s246, %s248
    %p255 = scmp.eq.s32.totalorder %s28, 1
    %p256 = por %p254, %p255
    %p257 = scmp.ne.s32.totalorder %s248, %s249
    %p258 = scmp.eq.s32.totalorder %s28, 0
    %p259 = por %p257, %p258
    %p260 = scmp.ne.s32.totalorder %s248, %s249
    %p261 = scmp.eq.s32.totalorder %s29, 1
    %p262 = por %p260, %p261
    %p264 = scmp.ne.s32.totalorder %s249, %s263
    %p265 = scmp.eq.s32.totalorder %s29, 0
    %p266 = por %p264, %p265
    %s268 = sadd.s32 %s267, 1
    %p271 = scmp.eq.s32.totalorder %s23, 1
    %p272 = scmp.ne.s32.totalorder %s267, %s269
    %p273 = scmp.eq.s32.totalorder %s23, 0
    %p274 = por %p272, %p273
    %p275 = scmp.ne.s32.totalorder %s267, %s269
    %p276 = scmp.eq.s32.totalorder %s28, 1
    %p277 = por %p275, %p276
    %p278 = scmp.ne.s32.totalorder %s269, %s270
    %p279 = scmp.eq.s32.totalorder %s28, 0
    %p280 = por %p278, %p279
    %p281 = scmp.ne.s32.totalorder %s269, %s270
    %p282 = scmp.eq.s32.totalorder %s29, 1
    %p283 = por %p281, %p282
    %p285 = scmp.ne.s32.totalorder %s270, %s284
    %p286 = scmp.eq.s32.totalorder %s29, 0
    %p287 = por %p285, %p286
    %s289 = sadd.s32 %s288, 1
    %p292 = scmp.eq.s32.totalorder %s23, 1
    %p293 = scmp.ne.s32.totalorder %s288, %s290
    %p294 = scmp.eq.s32.totalorder %s23, 0
    %p295 = por %p293, %p294
    %p296 = scmp.ne.s32.totalorder %s288, %s290
    %p297 = scmp.eq.s32.totalorder %s28, 1
    %p298 = por %p296, %p297
    %p299 = scmp.ne.s32.totalorder %s290, %s291
    %p300 = scmp.eq.s32.totalorder %s28, 0
    %p301 = por %p299, %p300
    %p302 = scmp.ne.s32.totalorder %s290, %s291
    %p303 = scmp.eq.s32.totalorder %s29, 1
    %p304 = por %p302, %p303
    %p306 = scmp.ne.s32.totalorder %s291, %s305
    %p307 = scmp.eq.s32.totalorder %s29, 0
    %p308 = por %p306, %p307
    %s310 = sadd.s32 %s309, 1
    %p313 = scmp.eq.s32.totalorder %s23, 1
    %p314 = scmp.ne.s32.totalorder %s309, %s311
    %p315 = scmp.eq.s32.totalorder %s23, 0
    %p316 = por %p314, %p315
    %p317 = scmp.ne.s32.totalorder %s309, %s311
    %p318 = scmp.eq.s32.totalorder %s28, 1
    %p319 = por %p317, %p318
    %p320 = scmp.ne.s32.totalorder %s311, %s312
    %p321 = scmp.eq.s32.totalorder %s28, 0
    %p322 = por %p320, %p321
    %p323 = scmp.ne.s32.totalorder %s311, %s312
    %p324 = scmp.eq.s32.totalorder %s29, 1
    %p325 = por %p323, %p324
    %p327 = scmp.ne.s32.totalorder %s312, %s326
    %p328 = scmp.eq.s32.totalorder %s29, 0
    %p329 = por %p327, %p328
    %s331 = sadd.s32 %s330, 1
    %p334 = scmp.eq.s32.totalorder %s23, 1
    %p335 = scmp.ne.s32.totalorder %s330, %s332
    %p336 = scmp.eq.s32.totalorder %s23, 0
    %p337 = por %p335, %p336
    %p338 = scmp.ne.s32.totalorder %s330, %s332
    %p339 = scmp.eq.s32.totalorder %s28, 1
    %p340 = por %p338, %p339
    %p341 = scmp.ne.s32.totalorder %s332, %s333
    %p342 = scmp.eq.s32.totalorder %s28, 0
    %p343 = por %p341, %p342
    %p344 = scmp.ne.s32.totalorder %s332, %s333
    %p345 = scmp.eq.s32.totalorder %s29, 1
    %p346 = por %p344, %p345
    %p348 = scmp.ne.s32.totalorder %s333, %s347
    %p349 = scmp.eq.s32.totalorder %s29, 0
    %p350 = por %p348, %p349
    %s352 = sadd.s32 %s351, 1
    %p355 = scmp.eq.s32.totalorder %s23, 1
    %p356 = scmp.ne.s32.totalorder %s351, %s353
    %p357 = scmp.eq.s32.totalorder %s23, 0
    %p358 = por %p356, %p357
    %p359 = scmp.ne.s32.totalorder %s351, %s353
    %p360 = scmp.eq.s32.totalorder %s28, 1
    %p361 = por %p359, %p360
    %p362 = scmp.ne.s32.totalorder %s353, %s354
    %p363 = scmp.eq.s32.totalorder %s28, 0
    %p364 = por %p362, %p363
    %p365 = scmp.ne.s32.totalorder %s353, %s354
    %p366 = scmp.eq.s32.totalorder %s29, 1
    %p367 = por %p365, %p366
    %p369 = scmp.ne.s32.totalorder %s354, %s368
    %p370 = scmp.eq.s32.totalorder %s29, 0
    %p371 = por %p369, %p370
    %s373 = sadd.s32 %s372, 1
    %p376 = scmp.eq.s32.totalorder %s23, 1
    %p377 = scmp.ne.s32.totalorder %s372, %s374
    %p378 = scmp.eq.s32.totalorder %s23, 0
    %p379 = por %p377, %p378
    %p380 = scmp.ne.s32.totalorder %s372, %s374
    %p381 = scmp.eq.s32.totalorder %s28, 1
    %p382 = por %p380, %p381
    %p383 = scmp.ne.s32.totalorder %s374, %s375
    %p384 = scmp.eq.s32.totalorder %s28, 0
    %p385 = por %p383, %p384
    %p386 = scmp.ne.s32.totalorder %s374, %s375
    %p387 = scmp.eq.s32.totalorder %s29, 1
    %p388 = por %p386, %p387
    %p390 = scmp.ne.s32.totalorder %s375, %s389
    %p391 = scmp.eq.s32.totalorder %s29, 0
    %p392 = por %p390, %p391
    %s393 = ssub.s32 %s23, %s30
    %p394 = scmp.eq.s32.totalorder %s393, 0
    %s396 = sadd.s32 %s395, 1
    %s397 = scalar_select %p394, %s395, %s396
    %p400 = pneg %p394
    %p401 = scmp.eq.s32.totalorder %s23, 1
    %p402 = por %p400, %p401
    %p403 = scmp.ne.s32.totalorder %s395, %s398
    %p404 = scmp.eq.s32.totalorder %s23, 0
    %p405 = por %p403, %p404
    %p406 = scmp.ne.s32.totalorder %s395, %s398
    %p407 = scmp.eq.s32.totalorder %s28, 1
    %p408 = por %p406, %p407
    %p409 = scmp.ne.s32.totalorder %s398, %s399
    %p410 = scmp.eq.s32.totalorder %s28, 0
    %p411 = por %p409, %p410
    %p412 = scmp.ne.s32.totalorder %s398, %s399
    %p413 = scmp.eq.s32.totalorder %s29, 1
    %p414 = por %p412, %p413
    %p416 = scmp.ne.s32.totalorder %s399, %s415
    %p417 = scmp.eq.s32.totalorder %s29, 0
    %p418 = por %p416, %p417
    %p419 = scmp.le.s32.totalorder 1, %s23
    %p420 = scmp.lt.s32.totalorder %s23, 3
    %p421 = pnand %p419, %p420
    %p422 = pneg %p421
    // Predicated region
    $region9: #{encoder_forward.8} parent=5 // pred_check
      _
    $region10: #{encoder_forward.8} parent=5 // pred_check_branch
      %424 = sbr.rel (%p421) target = $region12
    $region11: #{encoder_forward.8} parent=5 // pred_region
      %s425 = ssub.s32 %s23, 1
      // Predicated region
      $region13: #{encoder_forward.8} parent=11 // pred_check
        %p426 = pneg %p70
      $region14: #{encoder_forward.8} parent=11 // pred_check_branch
        %428 = sbr.rel (%p426) target = $region16
      $region15: #{encoder_forward.8} parent=11 // pred_region
        _
      $region16: #{encoder_forward.8} parent=11 // pred_fallthru
        _
      // Predicated region
      $region17: #{encoder_forward.8} parent=11 // pred_check
        %p429 = pneg %p91
      $region18: #{encoder_forward.8} parent=11 // pred_check_branch
        %431 = sbr.rel (%p429) target = $region20
      $region19: #{encoder_forward.8} parent=11 // pred_region
        _
      $region20: #{encoder_forward.8} parent=11 // pred_fallthru
        _
      // Predicated region
      $region21: #{encoder_forward.8} parent=11 // pred_check
        %p432 = pneg %p112
      $region22: #{encoder_forward.8} parent=11 // pred_check_branch
        %434 = sbr.rel (%p432) target = $region24
      $region23: #{encoder_forward.8} parent=11 // pred_region
        _
      $region24: #{encoder_forward.8} parent=11 // pred_fallthru
        _
      // Predicated region
      $region25: #{encoder_forward.8} parent=11 // pred_check
        %p435 = pneg %p133
      $region26: #{encoder_forward.8} parent=11 // pred_check_branch
        %437 = sbr.rel (%p435) target = $region28
      $region27: #{encoder_forward.8} parent=11 // pred_region
        _
      $region28: #{encoder_forward.8} parent=11 // pred_fallthru
        _
      // Predicated region
      $region29: #{encoder_forward.8} parent=11 // pred_check
        %p438 = pneg %p154
      $region30: #{encoder_forward.8} parent=11 // pred_check_branch
        %440 = sbr.rel (%p438) target = $region32
      $region31: #{encoder_forward.8} parent=11 // pred_region
        _
      $region32: #{encoder_forward.8} parent=11 // pred_fallthru
        _
      // Predicated region
      $region33: #{encoder_forward.8} parent=11 // pred_check
        %p441 = pneg %p175
      $region34: #{encoder_forward.8} parent=11 // pred_check_branch
        %443 = sbr.rel (%p441) target = $region36
      $region35: #{encoder_forward.8} parent=11 // pred_region
        _
      $region36: #{encoder_forward.8} parent=11 // pred_fallthru
        _
      // Predicated region
      $region37: #{encoder_forward.8} parent=11 // pred_check
        %p444 = pneg %p196
      $region38: #{encoder_forward.8} parent=11 // pred_check_branch
        %446 = sbr.rel (%p444) target = $region40
      $region39: #{encoder_forward.8} parent=11 // pred_region
        _
      $region40: #{encoder_forward.8} parent=11 // pred_fallthru
        _
      // Predicated region
      $region41: #{encoder_forward.8} parent=11 // pred_check
        %p447 = pneg %p217
      $region42: #{encoder_forward.8} parent=11 // pred_check_branch
        %449 = sbr.rel (%p447) target = $region44
      $region43: #{encoder_forward.8} parent=11 // pred_region
        _
      $region44: #{encoder_forward.8} parent=11 // pred_fallthru
        _
      // Predicated region
      $region45: #{encoder_forward.8} parent=11 // pred_check
        %p450 = pneg %p238
      $region46: #{encoder_forward.8} parent=11 // pred_check_branch
        %452 = sbr.rel (%p450) target = $region48
      $region47: #{encoder_forward.8} parent=11 // pred_region
        _
      $region48: #{encoder_forward.8} parent=11 // pred_fallthru
        _
      // Predicated region
      $region49: #{encoder_forward.8} parent=11 // pred_check
        %p453 = pneg %p259
      $region50: #{encoder_forward.8} parent=11 // pred_check_branch
        %455 = sbr.rel (%p453) target = $region52
      $region51: #{encoder_forward.8} parent=11 // pred_region
        _
      $region52: #{encoder_forward.8} parent=11 // pred_fallthru
        _
      // Predicated region
      $region53: #{encoder_forward.8} parent=11 // pred_check
        %p456 = pneg %p280
      $region54: #{encoder_forward.8} parent=11 // pred_check_branch
        %458 = sbr.rel (%p456) target = $region56
      $region55: #{encoder_forward.8} parent=11 // pred_region
        _
      $region56: #{encoder_forward.8} parent=11 // pred_fallthru
        _
      // Predicated region
      $region57: #{encoder_forward.8} parent=11 // pred_check
        %p459 = pneg %p301
      $region58: #{encoder_forward.8} parent=11 // pred_check_branch
        %461 = sbr.rel (%p459) target = $region60
      $region59: #{encoder_forward.8} parent=11 // pred_region
        _
      $region60: #{encoder_forward.8} parent=11 // pred_fallthru
        _
      // Predicated region
      $region61: #{encoder_forward.8} parent=11 // pred_check
        %p462 = pneg %p322
      $region62: #{encoder_forward.8} parent=11 // pred_check_branch
        %464 = sbr.rel (%p462) target = $region64
      $region63: #{encoder_forward.8} parent=11 // pred_region
        _
      $region64: #{encoder_forward.8} parent=11 // pred_fallthru
        _
      // Predicated region
      $region65: #{encoder_forward.8} parent=11 // pred_check
        %p465 = pneg %p343
      $region66: #{encoder_forward.8} parent=11 // pred_check_branch
        %467 = sbr.rel (%p465) target = $region68
      $region67: #{encoder_forward.8} parent=11 // pred_region
        _
      $region68: #{encoder_forward.8} parent=11 // pred_fallthru
        _
      // Predicated region
      $region69: #{encoder_forward.8} parent=11 // pred_check
        %p468 = pneg %p364
      $region70: #{encoder_forward.8} parent=11 // pred_check_branch
        %470 = sbr.rel (%p468) target = $region72
      $region71: #{encoder_forward.8} parent=11 // pred_region
        _
      $region72: #{encoder_forward.8} parent=11 // pred_fallthru
        _
      // Predicated region
      $region73: #{encoder_forward.8} parent=11 // pred_check
        %p471 = pneg %p385
      $region74: #{encoder_forward.8} parent=11 // pred_check_branch
        %473 = sbr.rel (%p471) target = $region76
      $region75: #{encoder_forward.8} parent=11 // pred_region
        _
      $region76: #{encoder_forward.8} parent=11 // pred_fallthru
        _
    $region12: #{encoder_forward.8} parent=5 // pred_fallthru
      _
    %p474 = scmp.lt.s32.totalorder %s23, 2
    // Predicated region
    $region77: #{encoder_forward.8} parent=5 // pred_check
      %p475 = pneg %p474
    $region78: #{encoder_forward.8} parent=5 // pred_check_branch
      %477 = sbr.rel (%p475) target = $region80
    $region79: #{encoder_forward.8} parent=5 // pred_region
      // Predicated region
      $region81: #{encoder_forward.8} parent=79 // pred_check
        %p478 = pneg %p43
      $region82: #{encoder_forward.8} parent=79 // pred_check_branch
        %480 = sbr.rel (%p478) target = $region84
      $region83: #{encoder_forward.8} parent=79 // pred_region
        %p481 = scmp.lt.s32.totalorder %s23, 1
        %s482 = scalar_select %p481, %s23, 1
        %s483 = smul.addr %s482, 8
        %s484 = smul.addr %s483, 4
        %s485 = scalar_lea.vmem %s0, %s484
      $region84: #{encoder_forward.8} parent=79 // pred_fallthru
        _
    $region80: #{encoder_forward.8} parent=5 // pred_fallthru
      _
    %p486 = scmp.le.s32.totalorder 1, %s23
    %p487 = scmp.lt.s32.totalorder %s23, 3
    %p488 = pnand %p486, %p487
    %p489 = pneg %p488
    // Predicated region
    $region85: #{encoder_forward.8} parent=5 // pred_check
      _
    $region86: #{encoder_forward.8} parent=5 // pred_check_branch
      %491 = sbr.rel (%p488) target = $region88
    $region87: #{encoder_forward.8} parent=5 // pred_region
      %s492 = ssub.s32 %s23, 1
      %p493 = scmp.lt.s32.totalorder %s28, 1
      %s494 = scalar_select %p493, %s28, 1
      %s495 = smul.addr %s494, 8
      %s496 = smul.addr %s495, 4
      %s497 = scalar_lea.vmem %s0, %s496
      %p498 = pneg %p49
      %p499 = pneg %p46
      %p500 = pneg %p70
      %p501 = pneg %p67
      %p502 = pneg %p91
      %p503 = pneg %p88
      %p504 = pneg %p112
      %p505 = pneg %p109
      %p506 = pneg %p133
      %p507 = pneg %p130
      %p508 = pneg %p154
      %p509 = pneg %p151
      %p510 = pneg %p175
      %p511 = pneg %p172
      %p512 = pneg %p196
      %p513 = pneg %p193
      %p514 = pneg %p217
      %p515 = pneg %p214
      %p516 = pneg %p238
      %p517 = pneg %p235
      %p518 = pneg %p259
      %p519 = pneg %p256
      %p520 = pneg %p280
      %p521 = pneg %p277
      %p522 = pneg %p301
      %p523 = pneg %p298
      %p524 = pneg %p322
      %p525 = pneg %p319
      %p526 = pneg %p343
      %p527 = pneg %p340
      %p528 = pneg %p364
      %p529 = pneg %p361
      %p530 = pneg %p385
      %p531 = pneg %p382
      %p532 = pneg %p411
      %p533 = pneg %p408
      %p534 = scmp.lt.s32.totalorder %s28, 1
      %s535 = scalar_select %p534, %s28, 1
      %s536 = smul.addr %s535, 2
      %s537 = smul.addr %s536, 4
      %s538 = scalar_lea.vmem %s17, %s537
      %p539 = scmp.lt.s32.totalorder %s28, 1
      %s540 = scalar_select %p539, %s28, 1
      %s541 = smul.addr %s540, 8
      %s542 = smul.addr %s541, 4
      %s543 = scalar_lea.vmem %s0, %s542
      %p544 = scmp.lt.s32.totalorder %s28, 1
      %s545 = scalar_select %p544, %s28, 1
      %s546 = smul.addr %s545, 2
      %s547 = smul.addr %s546, 4
      %s548 = scalar_lea.vmem %s17, %s547
      %v550 = vld [vmem:[%s543] sm:$0xf]
      %v551 = vld [vmem:[%s543 + $0x4] sm:$0xf]
      %v552 = vld [vmem:[%s543 + $0x8] sm:$0xf]
      %v553 = vld [vmem:[%s543 + $0xc] sm:$0xf]
      %v554 = vld [vmem:[%s543 + $0x10] sm:$0xf]
      %v555 = vld [vmem:[%s543 + $0x14] sm:$0xf]
      %v556 = vld [vmem:[%s543 + $0x18] sm:$0xf]
      %v557 = vld [vmem:[%s543 + $0x1c] sm:$0xf]
      %v558 = vld [vmem:[%s1] sm:$0xf]
      %v559 = vld [vmem:[%s1 + $0x4] sm:$0xf]
      %v560 = vld [vmem:[%s1 + $0x8] sm:$0xf]
      %v561 = vld [vmem:[%s1 + $0xc] sm:$0xf]
      %v562 = vld [vmem:[%s1 + $0x10] sm:$0xf]
      %v563 = vld [vmem:[%s1 + $0x14] sm:$0xf]
      %v564 = vld [vmem:[%s1 + $0x18] sm:$0xf]
      %v565 = vld [vmem:[%s1 + $0x1c] sm:$0xf]
      %v574 = vunpack.c.l.b16 %v558
      %v575 = vunpack.c.l.b16 %v559
      %v576 = vunpack.c.l.b16 %v560
      %v577 = vunpack.c.l.b16 %v561
      %v578 = vunpack.c.l.b16 %v562
      %v579 = vunpack.c.l.b16 %v563
      %v580 = vunpack.c.l.b16 %v564
      %v581 = vunpack.c.l.b16 %v565
      %v582 = vpack.c.b16 %v575, %v574
      %v583 = vpack.c.b16 %v577, %v576
      %v584 = vpack.c.b16 %v579, %v578
      %v585 = vpack.c.b16 %v581, %v580
      %v594 = vunpack.c.l.b16 %v550
      %v595 = vunpack.c.l.b16 %v551
      %v596 = vunpack.c.l.b16 %v552
      %v597 = vunpack.c.l.b16 %v553
      %v598 = vunpack.c.l.b16 %v554
      %v599 = vunpack.c.l.b16 %v555
      %v600 = vunpack.c.l.b16 %v556
      %v601 = vunpack.c.l.b16 %v557
      %v602 = vpack.c.b16 %v595, %v594
      %v603 = vpack.c.b16 %v597, %v596
      %v604 = vpack.c.b16 %v599, %v598
      %v605 = vpack.c.b16 %v601, %v600
      %vm610 = vcmask 523264
      %v612 = vsel %vm610, %v582, 0
      %v615 = vsel %vm610, %v583, 0
      %v618 = vsel %vm610, %v584, 0
      %v621 = vsel %vm610, %v585, 0
      %623 = vmatprep.subr.bf16.mxu0 0
      %624 = vmatpush1.bf16.msra.mxu0 %v602
      %625 = vmatprep.subr.bf16.mxu0 0
      %626 = vmatpush1.bf16.msra.mxu0 %v603
      %627 = vmatprep.subr.bf16.mxu0 0
      %628 = vmatpush1.bf16.msra.mxu0 %v604
      %629 = vmatprep.subr.bf16.mxu0 0
      %630 = vmatpush1.bf16.msra.mxu0 %v605
      %631 = vmatprep.subr.bf16.mxu0 0
      %632 = vmatpush1.bf16.msra.mxu0 0
      %633 = vmatprep.subr.bf16.mxu0 0
      %634 = vmatpush1.bf16.msra.mxu0 0
      %635 = vmatprep.subr.bf16.mxu0 0
      %636 = vmatpush1.bf16.msra.mxu0 0
      %637 = vmatprep.subr.bf16.mxu0 0
      %638 = vmatpush1.bf16.msra.mxu0 0
      %639 = vmatprep.subr.bf16.mxu0 0
      %640 = vmatpush1.bf16.msra.mxu0 0
      %641 = vmatprep.subr.bf16.mxu0 0
      %642 = vmatpush1.bf16.msra.mxu0 0
      %643 = vmatprep.subr.bf16.mxu0 0
      %644 = vmatpush1.bf16.msra.mxu0 0
      %645 = vmatprep.subr.bf16.mxu0 0
      %646 = vmatpush1.bf16.msra.mxu0 0
      %647 = vmatprep.subr.bf16.mxu0 0
      %648 = vmatpush1.bf16.msra.mxu0 0
      %649 = vmatprep.subr.bf16.mxu0 0
      %650 = vmatpush1.bf16.msra.mxu0 0
      %651 = vmatprep.subr.bf16.mxu0 0
      %652 = vmatpush1.bf16.msra.mxu0 0
      %653 = vmatprep.subr.bf16.mxu0 0
      %654 = vmatpush1.bf16.msra.mxu0 0
      %655 = vmatprep.mubr.bf16.mxu0 0
      %656 = vmatmul.mubr.bf16.gmra.mrb[0].mxu0 %v612
      %v657 = vpop.f32.mrb[0].mxu0
      %v658 = vadd.f32 0.0, %v657
      %v659 = vpop.f32.mrb[0].mxu0
      %v660 = vpop.f32.mrb[0].mxu0
      %v661 = vadd.f32 0.0, %v660
      %v662 = vpop.f32.mrb[0].mxu0
      %663 = vmatprep.mubr.bf16.mxu0 0
      %664 = vmatmul.mubr.bf16.gmra.mrb[0].mxu0 %v615
      %v665 = vpop.f32.mrb[0].mxu0
      %v666 = vadd.f32 0.0, %v665
      %v667 = vpop.f32.mrb[0].mxu0
      %v668 = vpop.f32.mrb[0].mxu0
      %v669 = vadd.f32 0.0, %v668
      %v670 = vpop.f32.mrb[0].mxu0
      %671 = vmatprep.mubr.bf16.mxu0 0
      %672 = vmatmul.mubr.bf16.gmra.mrb[0].mxu0 %v618
      %v673 = vpop.f32.mrb[0].mxu0
      %v674 = vadd.f32 0.0, %v673
      %v675 = vpop.f32.mrb[0].mxu0
      %v676 = vpop.f32.mrb[0].mxu0
      %v677 = vadd.f32 0.0, %v676
      %v678 = vpop.f32.mrb[0].mxu0
      %679 = vmatprep.mubr.bf16.mxu0 0
      %680 = vmatmul.mubr.bf16.gmra.mrb[0].mxu0 %v621
      %v681 = vpop.f32.mrb[0].mxu0
      %v682 = vadd.f32 0.0, %v681
      %v683 = vpop.f32.mrb[0].mxu0
      %v684 = vpop.f32.mrb[0].mxu0
      %v685 = vadd.f32 0.0, %v684
      %v686 = vpop.f32.mrb[0].mxu0
      %687 = vdwg.mxu0
      %v688 = vld [vmem:[%s2] sm:$0xff]
      %v689 = vld [vmem:[%s2 + $0x8] sm:$0xff]
      %v690 = vld [vmem:[%s2 + $0x10] sm:$0xff]
      %v691 = vld [vmem:[%s2 + $0x18] sm:$0xff]
      %v692 = vld [vmem:[%s2 + $0x20] sm:$0xff]
      %v693 = vld [vmem:[%s2 + $0x28] sm:$0xff]
      %v694 = vld [vmem:[%s2 + $0x30] sm:$0xff]
      %v695 = vld [vmem:[%s2 + $0x38] sm:$0xff]
      %697 = vset.pattern.permute.xlu0 0
      %698 = vperm.xlu0 %697, %v688
      %v699 = vpop.permute.xlu0 %698
      %702 = vset.pattern.permute.xlu0 0
      %703 = vperm.xlu0 %702, %v689
      %v704 = vpop.permute.xlu0 %703
      %707 = vset.pattern.permute.xlu0 0
      %708 = vperm.xlu0 %707, %v690
      %v709 = vpop.permute.xlu0 %708
      %712 = vset.pattern.permute.xlu0 0
      %713 = vperm.xlu0 %712, %v691
      %v714 = vpop.permute.xlu0 %713
      %717 = vset.pattern.permute.xlu0 0
      %718 = vperm.xlu0 %717, %v692
      %v719 = vpop.permute.xlu0 %718
      %722 = vset.pattern.permute.xlu0 0
      %723 = vperm.xlu0 %722, %v693
      %v724 = vpop.permute.xlu0 %723
      %727 = vset.pattern.permute.xlu0 0
      %728 = vperm.xlu0 %727, %v694
      %v729 = vpop.permute.xlu0 %728
      %732 = vset.pattern.permute.xlu0 0
      %733 = vperm.xlu0 %732, %v695
      %v734 = vpop.permute.xlu0 %733
      %v736 = vmul.f32 %v658, %v699
      %v737 = vmul.f32 %v661, %v704
      %v738 = vmul.f32 %v666, %v709
      %v739 = vmul.f32 %v669, %v714
      %v740 = vmul.f32 %v674, %v719
      %v741 = vmul.f32 %v677, %v724
      %v742 = vmul.f32 %v682, %v729
      %v743 = vmul.f32 %v685, %v734
      %v744 = vld [vmem:[%s3] sm:$0xff]
      %v745 = vld [vmem:[%s3 + $0x8] sm:$0xff]
      %v746 = vld [vmem:[%s3 + $0x10] sm:$0xff]
      %v747 = vld [vmem:[%s3 + $0x18] sm:$0xff]
      %v748 = vld [vmem:[%s3 + $0x20] sm:$0xff]
      %v749 = vld [vmem:[%s3 + $0x28] sm:$0xff]
      %v750 = vld [vmem:[%s3 + $0x30] sm:$0xff]
      %v751 = vld [vmem:[%s3 + $0x38] sm:$0xff]
      %753 = vset.pattern.permute.xlu0 0
      %754 = vperm.xlu0 %753, %v744
      %v755 = vpop.permute.xlu0 %754
      %758 = vset.pattern.permute.xlu0 0
      %759 = vperm.xlu0 %758, %v745
      %v760 = vpop.permute.xlu0 %759
      %763 = vset.pattern.permute.xlu0 0
      %764 = vperm.xlu0 %763, %v746
      %v765 = vpop.permute.xlu0 %764
      %768 = vset.pattern.permute.xlu0 0
      %769 = vperm.xlu0 %768, %v747
      %v770 = vpop.permute.xlu0 %769
      %773 = vset.pattern.permute.xlu0 0
      %774 = vperm.xlu0 %773, %v748
      %v775 = vpop.permute.xlu0 %774
      %778 = vset.pattern.permute.xlu0 0
      %779 = vperm.xlu0 %778, %v749
      %v780 = vpop.permute.xlu0 %779
      %783 = vset.pattern.permute.xlu0 0
      %784 = vperm.xlu0 %783, %v750
      %v785 = vpop.permute.xlu0 %784
      %788 = vset.pattern.permute.xlu0 0
      %789 = vperm.xlu0 %788, %v751
      %v790 = vpop.permute.xlu0 %789
      %v792 = vadd.f32 %v736, %v755
      %v793 = vadd.f32 %v737, %v760
      %v794 = vadd.f32 %v738, %v765
      %v795 = vadd.f32 %v739, %v770
      %v796 = vadd.f32 %v740, %v775
      %v797 = vadd.f32 %v741, %v780
      %v798 = vadd.f32 %v742, %v785
      %v799 = vadd.f32 %v743, %v790
      %v800 = vmax.f32 %v792, 0.0
      %v801 = vmax.f32 %v793, 0.0
      %v802 = vmax.f32 %v794, 0.0
      %v803 = vmax.f32 %v795, 0.0
      %v804 = vmax.f32 %v796, 0.0
      %v805 = vmax.f32 %v797, 0.0
      %v806 = vmax.f32 %v798, 0.0
      %v807 = vmax.f32 %v799, 0.0
      %v808 = vld [vmem:[%s4] sm:$0xf]
      %v809 = vld [vmem:[%s4 + $0x4] sm:$0xf]
      %v810 = vld [vmem:[%s4 + $0x8] sm:$0xf]
      %v811 = vld [vmem:[%s4 + $0xc] sm:$0xf]
      %v812 = vld [vmem:[%s4 + $0x10] sm:$0xf]
      %v813 = vld [vmem:[%s4 + $0x14] sm:$0xf]
      %v814 = vld [vmem:[%s4 + $0x18] sm:$0xf]
      %v815 = vld [vmem:[%s4 + $0x1c] sm:$0xf]
      %v816 = vpack.c.bf16 %v801, %v800
      %v817 = vpack.c.bf16 %v803, %v802
      %v818 = vpack.c.bf16 %v805, %v804
      %v819 = vpack.c.bf16 %v807, %v806
      %v828 = vunpack.c.l.b16 %v808
      %v829 = vunpack.c.l.b16 %v809
      %v830 = vunpack.c.l.b16 %v810
      %v831 = vunpack.c.l.b16 %v811
      %v832 = vunpack.c.l.b16 %v812
      %v833 = vunpack.c.l.b16 %v813
      %v834 = vunpack.c.l.b16 %v814
      %v835 = vunpack.c.l.b16 %v815
      %v836 = vpack.c.b16 %v829, %v828
      %v837 = vpack.c.b16 %v831, %v830
      %v838 = vpack.c.b16 %v833, %v832
      %v839 = vpack.c.b16 %v835, %v834
      %v841 = vsel %vm610, %v836, 0
      %v844 = vsel %vm610, %v837, 0
      %v847 = vsel %vm610, %v838, 0
      %v850 = vsel %vm610, %v839, 0
      %852 = vmatprep.subr.bf16.mxu0 0
      %853 = vmatpush1.bf16.msra.mxu0 %v816
      %854 = vmatprep.subr.bf16.mxu0 0
      %855 = vmatpush1.bf16.msra.mxu0 %v817
      %856 = vmatprep.subr.bf16.mxu0 0
      %857 = vmatpush1.bf16.msra.mxu0 %v818
      %858 = vmatprep.subr.bf16.mxu0 0
      %859 = vmatpush1.bf16.msra.mxu0 %v819
      %860 = vmatprep.subr.bf16.mxu0 0
      %861 = vmatpush1.bf16.msra.mxu0 0
      %862 = vmatprep.subr.bf16.mxu0 0
      %863 = vmatpush1.bf16.msra.mxu0 0
      %864 = vmatprep.subr.bf16.mxu0 0
      %865 = vmatpush1.bf16.msra.mxu0 0
      %866 = vmatprep.subr.bf16.mxu0 0
      %867 = vmatpush1.bf16.msra.mxu0 0
      %868 = vmatprep.subr.bf16.mxu0 0
      %869 = vmatpush1.bf16.msra.mxu0 0
      %870 = vmatprep.subr.bf16.mxu0 0
      %871 = vmatpush1.bf16.msra.mxu0 0
      %872 = vmatprep.subr.bf16.mxu0 0
      %873 = vmatpush1.bf16.msra.mxu0 0
      %874 = vmatprep.subr.bf16.mxu0 0
      %875 = vmatpush1.bf16.msra.mxu0 0
      %876 = vmatprep.subr.bf16.mxu0 0
      %877 = vmatpush1.bf16.msra.mxu0 0
      %878 = vmatprep.subr.bf16.mxu0 0
      %879 = vmatpush1.bf16.msra.mxu0 0
      %880 = vmatprep.subr.bf16.mxu0 0
      %881 = vmatpush1.bf16.msra.mxu0 0
      %882 = vmatprep.subr.bf16.mxu0 0
      %883 = vmatpush1.bf16.msra.mxu0 0
      %884 = vmatprep.mubr.bf16.mxu0 0
      %885 = vmatmul.mubr.bf16.gmra.mrb[0].mxu0 %v841
      %v886 = vpop.f32.mrb[0].mxu0
      %v887 = vadd.f32 0.0, %v886
      %v888 = vpop.f32.mrb[0].mxu0
      %v889 = vpop.f32.mrb[0].mxu0
      %v890 = vadd.f32 0.0, %v889
      %v891 = vpop.f32.mrb[0].mxu0
      %892 = vmatprep.mubr.bf16.mxu0 0
      %893 = vmatmul.mubr.bf16.gmra.mrb[0].mxu0 %v844
      %v894 = vpop.f32.mrb[0].mxu0
      %v895 = vadd.f32 0.0, %v894
      %v896 = vpop.f32.mrb[0].mxu0
      %v897 = vpop.f32.mrb[0].mxu0
      %v898 = vadd.f32 0.0, %v897
      %v899 = vpop.f32.mrb[0].mxu0
      %900 = vmatprep.mubr.bf16.mxu0 0
      %901 = vmatmul.mubr.bf16.gmra.mrb[0].mxu0 %v847
      %v902 = vpop.f32.mrb[0].mxu0
      %v903 = vadd.f32 0.0, %v902
      %v904 = vpop.f32.mrb[0].mxu0
      %v905 = vpop.f32.mrb[0].mxu0
      %v906 = vadd.f32 0.0, %v905
      %v907 = vpop.f32.mrb[0].mxu0
      %908 = vmatprep.mubr.bf16.mxu0 0
      %909 = vmatmul.mubr.bf16.gmra.mrb[0].mxu0 %v850
      %v910 = vpop.f32.mrb[0].mxu0
      %v911 = vadd.f32 0.0, %v910
      %v912 = vpop.f32.mrb[0].mxu0
      %v913 = vpop.f32.mrb[0].mxu0
      %v914 = vadd.f32 0.0, %v913
      %v915 = vpop.f32.mrb[0].mxu0
      %916 = vdwg.mxu0
      %v917 = vlaneseq
      %v918 = vand.u32 %v917, 127
      %vm919 = vcmp.lt.s32.totalorder %v918, 0
      %v920 = vsub.s32 0, %v918
      %v921 = vsel %vm919, %v920, %v918
      %v922 = vshrl.u32 %v921, 2
      %v923 = vand.u32 %v921, 3
      %v924 = vsub.s32 0, %v923
      %v925 = vsel %vm919, %v924, %v923
      %vm926 = vcmp.ne.s32.totalorder %v925, 0
      %vm927 = vcmp.lt.s32.totalorder %v925, 0
      %vm928 = vmand %vm927, %vm926
      %v929 = vadd.s32 %v925, 4
      %v930 = vsel %vm928, %v929, %v925
      %vm931 = vcmp.ne.s32.totalorder %v930, 0
      %934 = vrot.lane.b32.xlu0 %v895, 1
      %v935 = vpop.permute.xlu0 %934
      %936 = vrot.lane.b32.xlu0 %v898, 1
      %v937 = vpop.permute.xlu0 %936
      %vm940 = vcmask 7168
      %v941 = vsel %vm940, 0.0, %v935
      %v942 = vsel %vm940, 0.0, %v937
      %v943 = vsel %vm931, 1, 0
      %vm944 = vcmp.eq.s32.totalorder %v943, 1
      %v945 = vsel %vm944, %v941, 0.0
      %v946 = vsel %vm944, %v942, 0.0
      %v947 = vadd.f32 %v887, %v945
      %v948 = vadd.f32 %v890, %v946
      %951 = vrot.lane.b32.xlu0 %v903, 4
      %v952 = vpop.permute.xlu0 %951
      %953 = vrot.lane.b32.xlu0 %v906, 4
      %v954 = vpop.permute.xlu0 %953
      %vm957 = vcmask 31744
      %v958 = vsel %vm957, 0.0, %v952
      %v959 = vsel %vm957, 0.0, %v954
      %v960 = vadd.f32 %v947, %v958
      %v961 = vadd.f32 %v948, %v959
      %964 = vrot.lane.b32.xlu0 %v911, 5
      %v965 = vpop.permute.xlu0 %964
      %966 = vrot.lane.b32.xlu0 %v914, 5
      %v967 = vpop.permute.xlu0 %966
      %vm970 = vcmask 39936
      %v971 = vsel %vm970, 0.0, %v965
      %v972 = vsel %vm970, 0.0, %v967
      %v973 = vsel %vm944, %v971, 0.0
      %v974 = vsel %vm944, %v972, 0.0
      %v975 = vadd.f32 %v960, %v973
      %v976 = vadd.f32 %v961, %v974
      %v977 = vld [vmem:[%s5] sm:$0xff]
      %v978 = vld [vmem:[%s5 + $0x8] sm:$0xff]
      %980 = vset.pattern.permute.xlu0 0
      %981 = vperm.xlu0 %980, %v977
      %v982 = vpop.permute.xlu0 %981
      %985 = vset.pattern.permute.xlu0 0
      %986 = vperm.xlu0 %985, %v978
      %v987 = vpop.permute.xlu0 %986
      %v989 = vmul.f32 %v975, %v982
      %v990 = vmul.f32 %v976, %v987
      %v991 = vld [vmem:[%s6] sm:$0xff]
      %v992 = vld [vmem:[%s6 + $0x8] sm:$0xff]
      %994 = vset.pattern.permute.xlu0 0
      %995 = vperm.xlu0 %994, %v991
      %v996 = vpop.permute.xlu0 %995
      %999 = vset.pattern.permute.xlu0 0
      %1000 = vperm.xlu0 %999, %v992
      %v1001 = vpop.permute.xlu0 %1000
      %v1003 = vadd.f32 %v989, %v996
      %v1004 = vadd.f32 %v990, %v1001
      %v1005 = vmax.f32 %v1003, 0.0
      %v1006 = vmax.f32 %v1004, 0.0
      %vm1007 = vcmask 130048
      %v1008 = vsel %vm1007, %v1005, 0.0
      %1009 = vadd.xlane.f32.xlu0 %v1008
      %v1010 = vpop.xlane.xlu0 %1009
      %v1011 = vsel %vm1007, %v1006, 0.0
      %1012 = vadd.xlane.f32.xlu0 %v1011
      %v1013 = vpop.xlane.xlu0 %1012
      %v1014 = vrcp.pop 16.0
      %v1015 = vmul.f32 %v1010, %v1014
      %v1016 = vmul.f32 %v1013, %v1014
      %v1017 = vld [vmem:[%s7] sm:$0xf]
      %v1018 = vld [vmem:[%s8] sm:$0xf]
      %v1020 = vsel %vm1007, %v1017, 0
      %1022 = vmatprep.subr.mxu0 0.0
      %1023 = vmatpush1.msra.mxu0 %v1015
      %1024 = vmatprep.subr.mxu0 0.0
      %1025 = vmatpush1.msra.mxu0 %v1016
      %1026 = vmatprep.subr.mxu0 0.0
      %1027 = vmatpush1.msra.mxu0 0.0
      %1028 = vmatprep.subr.mxu0 0.0
      %1029 = vmatpush1.msra.mxu0 0.0
      %1030 = vmatprep.subr.mxu0 0.0
      %1031 = vmatpush1.msra.mxu0 0.0
      %1032 = vmatprep.subr.mxu0 0.0
      %1033 = vmatpush1.msra.mxu0 0.0
      %1034 = vmatprep.subr.mxu0 0.0
      %1035 = vmatpush1.msra.mxu0 0.0
      %1036 = vmatprep.subr.mxu0 0.0
      %1037 = vmatpush1.msra.mxu0 0.0
      %1038 = vmatprep.subr.mxu0 0.0
      %1039 = vmatpush1.msra.mxu0 0.0
      %1040 = vmatprep.subr.mxu0 0.0
      %1041 = vmatpush1.msra.mxu0 0.0
      %1042 = vmatprep.subr.mxu0 0.0
      %1043 = vmatpush1.msra.mxu0 0.0
      %1044 = vmatprep.subr.mxu0 0.0
      %1045 = vmatpush1.msra.mxu0 0.0
      %1046 = vmatprep.subr.mxu0 0.0
      %1047 = vmatpush1.msra.mxu0 0.0
      %1048 = vmatprep.subr.mxu0 0.0
      %1049 = vmatpush1.msra.mxu0 0.0
      %1050 = vmatprep.subr.mxu0 0.0
      %1051 = vmatpush1.msra.mxu0 0.0
      %1052 = vmatprep.subr.mxu0 0.0
      %1053 = vmatpush1.msra.mxu0 0.0
      %1054 = vmatprep.subr.mxu0 0.0
      %1055 = vmatpush1.msra.mxu0 0.0
      %1056 = vmatprep.subr.mxu0 0.0
      %1057 = vmatpush1.msra.mxu0 0.0
      %1058 = vmatprep.subr.mxu0 0.0
      %1059 = vmatpush1.msra.mxu0 0.0
      %1060 = vmatprep.subr.mxu0 0.0
      %1061 = vmatpush1.msra.mxu0 0.0
      %1062 = vmatprep.subr.mxu0 0.0
      %1063 = vmatpush1.msra.mxu0 0.0
      %1064 = vmatprep.subr.mxu0 0.0
      %1065 = vmatpush1.msra.mxu0 0.0
      %1066 = vmatprep.subr.mxu0 0.0
      %1067 = vmatpush1.msra.mxu0 0.0
      %1068 = vmatprep.subr.mxu0 0.0
      %1069 = vmatpush1.msra.mxu0 0.0
      %1070 = vmatprep.subr.mxu0 0.0
      %1071 = vmatpush1.msra.mxu0 0.0
      %1072 = vmatprep.subr.mxu0 0.0
      %1073 = vmatpush1.msra.mxu0 0.0
      %1074 = vmatprep.subr.mxu0 0.0
      %1075 = vmatpush1.msra.mxu0 0.0
      %1076 = vmatprep.subr.mxu0 0.0
      %1077 = vmatpush1.msra.mxu0 0.0
      %1078 = vmatprep.subr.mxu0 0.0
      %1079 = vmatpush1.msra.mxu0 0.0
      %1080 = vmatprep.subr.mxu0 0.0
      %1081 = vmatpush1.msra.mxu0 0.0
      %1082 = vmatprep.subr.mxu0 0.0
      %1083 = vmatpush1.msra.mxu0 0.0
      %1084 = vmatprep.subr.mxu0 0.0
      %1085 = vmatpush1.msra.mxu0 0.0
      %1086 = vmatprep.mubr.f32.mxu0 0.0
      %1087 = vmatmul.mubr.f32.gmra.mrb[0].mxu0 %v1020
      %v1088 = vpop.f32.mrb[0].mxu0
      %v1089 = vadd.f32 %v1018, %v1088
      %v1090 = vpop.f32.mrb[0].mxu0
      %1091 = vdwg.mxu0
      %v1092 = vmax.f32 %v1089, 0.0
      %v1093 = vld [vmem:[%s9] sm:$0xff]
      %v1094 = vld [vmem:[%s9 + $0x8] sm:$0xff]
      %v1095 = vld [vmem:[%s10] sm:$0xff]
      %v1096 = vld [vmem:[%s10 + $0x8] sm:$0xff]
      %v1098 = vsel %vm957, %v1093, 0
      %v1101 = vsel %vm957, %v1094, 0
      %vm1103 = vcmask 1043456
      %v1105 = vsel %vm1103, %v1092, 0
      %1107 = vmatprep.subr.mxu0 0.0
      %1108 = vmatpush1.msra.mxu0 %v1105
      %1109 = vmatprep.subr.mxu0 0.0
      %1110 = vmatpush1.msra.mxu0 0.0
      %1111 = vmatprep.subr.mxu0 0.0
      %1112 = vmatpush1.msra.mxu0 0.0
      %1113 = vmatprep.subr.mxu0 0.0
      %1114 = vmatpush1.msra.mxu0 0.0
      %1115 = vmatprep.subr.mxu0 0.0
      %1116 = vmatpush1.msra.mxu0 0.0
      %1117 = vmatprep.subr.mxu0 0.0
      %1118 = vmatpush1.msra.mxu0 0.0
      %1119 = vmatprep.subr.mxu0 0.0
      %1120 = vmatpush1.msra.mxu0 0.0
      %1121 = vmatprep.subr.mxu0 0.0
      %1122 = vmatpush1.msra.mxu0 0.0
      %1123 = vmatprep.subr.mxu0 0.0
      %1124 = vmatpush1.msra.mxu0 0.0
      %1125 = vmatprep.subr.mxu0 0.0
      %1126 = vmatpush1.msra.mxu0 0.0
      %1127 = vmatprep.subr.mxu0 0.0
      %1128 = vmatpush1.msra.mxu0 0.0
      %1129 = vmatprep.subr.mxu0 0.0
      %1130 = vmatpush1.msra.mxu0 0.0
      %1131 = vmatprep.subr.mxu0 0.0
      %1132 = vmatpush1.msra.mxu0 0.0
      %1133 = vmatprep.subr.mxu0 0.0
      %1134 = vmatpush1.msra.mxu0 0.0
      %1135 = vmatprep.subr.mxu0 0.0
      %1136 = vmatpush1.msra.mxu0 0.0
      %1137 = vmatprep.subr.mxu0 0.0
      %1138 = vmatpush1.msra.mxu0 0.0
      %1139 = vmatprep.subr.mxu0 0.0
      %1140 = vmatpush1.msra.mxu0 0.0
      %1141 = vmatprep.subr.mxu0 0.0
      %1142 = vmatpush1.msra.mxu0 0.0
      %1143 = vmatprep.subr.mxu0 0.0
      %1144 = vmatpush1.msra.mxu0 0.0
      %1145 = vmatprep.subr.mxu0 0.0
      %1146 = vmatpush1.msra.mxu0 0.0
      %1147 = vmatprep.subr.mxu0 0.0
      %1148 = vmatpush1.msra.mxu0 0.0
      %1149 = vmatprep.subr.mxu0 0.0
      %1150 = vmatpush1.msra.mxu0 0.0
      %1151 = vmatprep.subr.mxu0 0.0
      %1152 = vmatpush1.msra.mxu0 0.0
      %1153 = vmatprep.subr.mxu0 0.0
      %1154 = vmatpush1.msra.mxu0 0.0
      %1155 = vmatprep.subr.mxu0 0.0
      %1156 = vmatpush1.msra.mxu0 0.0
      %1157 = vmatprep.subr.mxu0 0.0
      %1158 = vmatpush1.msra.mxu0 0.0
      %1159 = vmatprep.subr.mxu0 0.0
      %1160 = vmatpush1.msra.mxu0 0.0
      %1161 = vmatprep.subr.mxu0 0.0
      %1162 = vmatpush1.msra.mxu0 0.0
      %1163 = vmatprep.subr.mxu0 0.0
      %1164 = vmatpush1.msra.mxu0 0.0
      %1165 = vmatprep.subr.mxu0 0.0
      %1166 = vmatpush1.msra.mxu0 0.0
      %1167 = vmatprep.subr.mxu0 0.0
      %1168 = vmatpush1.msra.mxu0 0.0
      %1169 = vmatprep.subr.mxu0 0.0
      %1170 = vmatpush1.msra.mxu0 0.0
      %1171 = vmatprep.mubr.f32.mxu0 0.0
      %1172 = vmatmul.mubr.f32.gmra.mrb[0].mxu0 %v1098
      %v1173 = vpop.f32.mrb[0].mxu0
      %v1174 = vadd.f32 %v1095, %v1173
      %v1175 = vpop.f32.mrb[0].mxu0
      %1176 = vmatprep.mubr.f32.mxu0 0.0
      %1177 = vmatmul.mubr.f32.gmra.mrb[0].mxu0 %v1101
      %v1178 = vpop.f32.mrb[0].mxu0
      %v1179 = vadd.f32 %v1096, %v1178
      %v1180 = vpop.f32.mrb[0].mxu0
      %1181 = vdwg.mxu0
      %v1182 = vxor.u32 %v1174, 2147483648
      %v1183 = vxor.u32 %v1179, 2147483648
      %v1184 = vmul.f32 %v1182, 1.442695
      %v1185 = vpow.pop %v1184
      %v1186 = vmul.f32 %v1183, 1.442695
      %v1187 = vpow.pop %v1186
      %v1188 = vadd.f32 %v1185, 1.0
      %v1189 = vadd.f32 %v1187, 1.0
      %v1190 = vrcp.pop %v1188
      %v1191 = vmul.f32 1.0, %v1190
      %v1192 = vrcp.pop %v1189
      %v1193 = vmul.f32 1.0, %v1192
      %1195 = vset.pattern.permute.xlu0 0
      %1196 = vperm.xlu0 %1195, %v1191
      %v1197 = vpop.permute.xlu0 %1196
      %1200 = vset.pattern.permute.xlu0 0
      %1201 = vperm.xlu0 %1200, %v1193
      %v1202 = vpop.permute.xlu0 %1201
      %v1204 = vmul.f32 %v1005, %v1197
      %v1205 = vmul.f32 %v1006, %v1202
      %v1206 = vld [vmem:[%s11] sm:$0xf]
      %v1207 = vld [vmem:[%s11 + $0x4] sm:$0xf]
      %v1208 = vpack.c.bf16 %v1205, %v1204
      %v1211 = vunpack.c.l.b16 %v1206
      %v1212 = vunpack.c.l.b16 %v1207
      %v1213 = vpack.c.b16 %v1212, %v1211
      %v1215 = vsel %vm1007, %v1213, 0
      %1217 = vmatprep.subr.bf16.mxu0 0
      %1218 = vmatpush1.bf16.msra.mxu0 %v1208
      %1219 = vmatprep.subr.bf16.mxu0 0
      %1220 = vmatpush1.bf16.msra.mxu0 0
      %1221 = vmatprep.subr.bf16.mxu0 0
      %1222 = vmatpush1.bf16.msra.mxu0 0
      %1223 = vmatprep.subr.bf16.mxu0 0
      %1224 = vmatpush1.bf16.msra.mxu0 0
      %1225 = vmatprep.subr.bf16.mxu0 0
      %1226 = vmatpush1.bf16.msra.mxu0 0
      %1227 = vmatprep.subr.bf16.mxu0 0
      %1228 = vmatpush1.bf16.msra.mxu0 0
      %1229 = vmatprep.subr.bf16.mxu0 0
      %1230 = vmatpush1.bf16.msra.mxu0 0
      %1231 = vmatprep.subr.bf16.mxu0 0
      %1232 = vmatpush1.bf16.msra.mxu0 0
      %1233 = vmatprep.subr.bf16.mxu0 0
      %1234 = vmatpush1.bf16.msra.mxu0 0
      %1235 = vmatprep.subr.bf16.mxu0 0
      %1236 = vmatpush1.bf16.msra.mxu0 0
      %1237 = vmatprep.subr.bf16.mxu0 0
      %1238 = vmatpush1.bf16.msra.mxu0 0
      %1239 = vmatprep.subr.bf16.mxu0 0
      %1240 = vmatpush1.bf16.msra.mxu0 0
      %1241 = vmatprep.subr.bf16.mxu0 0
      %1242 = vmatpush1.bf16.msra.mxu0 0
      %1243 = vmatprep.subr.bf16.mxu0 0
      %1244 = vmatpush1.bf16.msra.mxu0 0
      %1245 = vmatprep.subr.bf16.mxu0 0
      %1246 = vmatpush1.bf16.msra.mxu0 0
      %1247 = vmatprep.subr.bf16.mxu0 0
      %1248 = vmatpush1.bf16.msra.mxu0 0
      %1249 = vmatprep.mubr.bf16.mxu0 0
      %1250 = vmatmul.mubr.bf16.gmra.mrb[0].mxu0 %v1215
      %v1251 = vpop.f32.mrb[0].mxu0
      %v1252 = vadd.f32 0.0, %v1251
      %v1253 = vpop.f32.mrb[0].mxu0
      %v1254 = vpop.f32.mrb[0].mxu0
      %v1255 = vadd.f32 0.0, %v1254
      %v1256 = vpop.f32.mrb[0].mxu0
      %1257 = vdwg.mxu0
      %v1258 = vld [vmem:[%s12] sm:$0xff]
      %v1259 = vld [vmem:[%s12 + $0x8] sm:$0xff]
      %1261 = vset.pattern.permute.xlu0 0
      %1262 = vperm.xlu0 %1261, %v1258
      %v1263 = vpop.permute.xlu0 %1262
      %1266 = vset.pattern.permute.xlu0 0
      %1267 = vperm.xlu0 %1266, %v1259
      %v1268 = vpop.permute.xlu0 %1267
      %v1270 = vmul.f32 %v1252, %v1263
      %v1271 = vmul.f32 %v1255, %v1268
      %v1272 = vld [vmem:[%s13] sm:$0xff]
      %v1273 = vld [vmem:[%s13 + $0x8] sm:$0xff]
      %1275 = vset.pattern.permute.xlu0 0
      %1276 = vperm.xlu0 %1275, %v1272
      %v1277 = vpop.permute.xlu0 %1276
      %1280 = vset.pattern.permute.xlu0 0
      %1281 = vperm.xlu0 %1280, %v1273
      %v1282 = vpop.permute.xlu0 %1281
      %v1284 = vadd.f32 %v1270, %v1277
      %v1285 = vadd.f32 %v1271, %v1282
      %v1286 = vld [vmem:[%s14] sm:$0xf]
      %v1287 = vld [vmem:[%s14 + $0x4] sm:$0xf]
      %v1290 = vunpack.c.l.b16 %v1286
      %v1291 = vunpack.c.l.b16 %v1287
      %v1292 = vpack.c.b16 %v1291, %v1290
      %v1294 = vsel %vm1007, %v1292, 0
      %1296 = vmatprep.subr.bf16.mxu0 0
      %1297 = vmatpush1.bf16.msra.mxu0 %v602
      %1298 = vmatprep.subr.bf16.mxu0 0
      %1299 = vmatpush1.bf16.msra.mxu0 0
      %1300 = vmatprep.subr.bf16.mxu0 0
      %1301 = vmatpush1.bf16.msra.mxu0 0
      %1302 = vmatprep.subr.bf16.mxu0 0
      %1303 = vmatpush1.bf16.msra.mxu0 0
      %1304 = vmatprep.subr.bf16.mxu0 0
      %1305 = vmatpush1.bf16.msra.mxu0 0
      %1306 = vmatprep.subr.bf16.mxu0 0
      %1307 = vmatpush1.bf16.msra.mxu0 0
      %1308 = vmatprep.subr.bf16.mxu0 0
      %1309 = vmatpush1.bf16.msra.mxu0 0
      %1310 = vmatprep.subr.bf16.mxu0 0
      %1311 = vmatpush1.bf16.msra.mxu0 0
      %1312 = vmatprep.subr.bf16.mxu0 0
      %1313 = vmatpush1.bf16.msra.mxu0 0
      %1314 = vmatprep.subr.bf16.mxu0 0
      %1315 = vmatpush1.bf16.msra.mxu0 0
      %1316 = vmatprep.subr.bf16.mxu0 0
      %1317 = vmatpush1.bf16.msra.mxu0 0
      %1318 = vmatprep.subr.bf16.mxu0 0
      %1319 = vmatpush1.bf16.msra.mxu0 0
      %1320 = vmatprep.subr.bf16.mxu0 0
      %1321 = vmatpush1.bf16.msra.mxu0 0
      %1322 = vmatprep.subr.bf16.mxu0 0
      %1323 = vmatpush1.bf16.msra.mxu0 0
      %1324 = vmatprep.subr.bf16.mxu0 0
      %1325 = vmatpush1.bf16.msra.mxu0 0
      %1326 = vmatprep.subr.bf16.mxu0 0
      %1327 = vmatpush1.bf16.msra.mxu0 0
      %1328 = vmatprep.mubr.bf16.mxu0 0
      %1329 = vmatmul.mubr.bf16.gmra.mrb[0].mxu0 %v1294
      %v1330 = vpop.f32.mrb[0].mxu0
      %v1331 = vadd.f32 0.0, %v1330
      %v1332 = vpop.f32.mrb[0].mxu0
      %v1333 = vpop.f32.mrb[0].mxu0
      %v1334 = vadd.f32 0.0, %v1333
      %v1335 = vpop.f32.mrb[0].mxu0
      %1336 = vdwg.mxu0
      %v1337 = vld [vmem:[%s15] sm:$0xff]
      %v1338 = vld [vmem:[%s15 + $0x8] sm:$0xff]
      %1340 = vset.pattern.permute.xlu0 0
      %1341 = vperm.xlu0 %1340, %v1337
      %v1342 = vpop.permute.xlu0 %1341
      %1345 = vset.pattern.permute.xlu0 0
      %1346 = vperm.xlu0 %1345, %v1338
      %v1347 = vpop.permute.xlu0 %1346
      %v1349 = vmul.f32 %v1331, %v1342
      %v1350 = vmul.f32 %v1334, %v1347
      %v1351 = vld [vmem:[%s16] sm:$0xff]
      %v1352 = vld [vmem:[%s16 + $0x8] sm:$0xff]
      %1354 = vset.pattern.permute.xlu0 0
      %1355 = vperm.xlu0 %1354, %v1351
      %v1356 = vpop.permute.xlu0 %1355
      %1359 = vset.pattern.permute.xlu0 0
      %1360 = vperm.xlu0 %1359, %v1352
      %v1361 = vpop.permute.xlu0 %1360
      %v1363 = vadd.f32 %v1349, %v1356
      %v1364 = vadd.f32 %v1350, %v1361
      %v1365 = vadd.f32 %v1284, %v1363
      %v1366 = vadd.f32 %v1285, %v1364
      %v1367 = vmax.f32 %v1365, 0.0
      %v1368 = vmax.f32 %v1366, 0.0
      %v1369 = vpack.c.bf16 %v1368, %v1367
      %v1371 = vunpack.c.l.b16 %v1369
      %v1372 = vunpack.c.h.b16 %v1369
      %v1373 = vpack.c.b16 %v1371, %v1371
      %v1374 = vpack.c.b16 %v1372, %v1372
      %vm1377 = vcmask 125952
      %1378 = vst.msk [vmem:[%s548] sm:$0xf] %vm1377, %v1373
      %1379 = vst.msk [vmem:[%s548 + $0x4] sm:$0xf] %vm1377, %v1374
      %p1380 = scmp.lt.s32.totalorder %s28, 1
      %s1381 = scalar_select %p1380, %s28, 1
      %s1382 = smul.addr %s1381, 2
      %s1383 = smul.addr %s1382, 4
      %s1384 = scalar_lea.vmem %s17, %s1383
      // Predicated region
      $region89: #{encoder_forward.8} parent=87 // pred_check
        %p1385 = pneg %p408
      $region90: #{encoder_forward.8} parent=87 // pred_check_branch
        %1387 = sbr.rel (%p1385) target = $region92
      $region91: #{encoder_forward.8} parent=87 // pred_region
        _
      $region92: #{encoder_forward.8} parent=87 // pred_fallthru
        _
    $region88: #{encoder_forward.8} parent=5 // pred_fallthru
      _
    %p1388 = scmp.le.s32.totalorder 2, %s23
    // Predicated region
    $region93: #{encoder_forward.8} parent=5 // pred_check
      %p1389 = pneg %p1388
    $region94: #{encoder_forward.8} parent=5 // pred_check_branch
      %1391 = sbr.rel (%p1389) target = $region96
    $region95: #{encoder_forward.8} parent=5 // pred_region
      %s1392 = ssub.s32 %s23, 2
      // Predicated region
      $region97: #{encoder_forward.8} parent=95 // pred_check
        %p1393 = pneg %p414
      $region98: #{encoder_forward.8} parent=95 // pred_check_branch
        %1395 = sbr.rel (%p1393) target = $region100
      $region99: #{encoder_forward.8} parent=95 // pred_region
        %p1396 = scmp.lt.s32.totalorder %s29, 1
        %s1397 = scalar_select %p1396, %s29, 1
        %s1398 = smul.addr %s1397, 2
        %s1399 = smul.addr %s1398, 4
        %s1400 = scalar_lea.vmem %s17, %s1399
      $region100: #{encoder_forward.8} parent=95 // pred_fallthru
        _
    $region96: #{encoder_forward.8} parent=5 // pred_fallthru
      _
  $region6: #{encoder_forward.8} parent=0 // loop_footer
    %s27 = sadd.s32 1, %s23
  $region7: #{encoder_forward.8} parent=0 // loop_footer_branch
    %22 = sbr.rel target = $region3
  $region8: #{encoder_forward.8} parent=0 // loop_exit
    _

// kernel: encoder_forward.9
$region0: #{encoder_forward.9}
  #allocation0 [shape = 'u32[]', space=smem, size = 0x4, offset = 0x4, fixed_abs, tag = 'smem constant byte address 0x4 - core index']
  #allocation1 [shape = 'u32[144,128]{1,0:T(1,128)}', space=vmem, size = 0x12000, scoped, tag = 'internal scratch']
  %s0 = inlined_call_operand.vmem [shape: bf16[2,64,4], index: 0, kind: input, shape index: {}]
  %s1 = inlined_call_operand.vmem [shape: bf16[128,64], index: 1, kind: input, shape index: {}]
  %s2 = inlined_call_operand.vmem [shape: f32[128,1], index: 2, kind: input, shape index: {}]
  %s3 = inlined_call_operand.vmem [shape: f32[128,1], index: 3, kind: input, shape index: {}]
  %s4 = inlined_call_operand.vmem [shape: bf16[128,128], index: 4, kind: input, shape index: {}]
  %s5 = inlined_call_operand.vmem [shape: f32[32,1], index: 5, kind: input, shape index: {}]
  %s6 = inlined_call_operand.vmem [shape: f32[32,1], index: 6, kind: input, shape index: {}]
  %s7 = inlined_call_operand.vmem [shape: f32[4,32], index: 7, kind: input, shape index: {}]
  %s8 = inlined_call_operand.vmem [shape: f32[4,1], index: 8, kind: input, shape index: {}]
  %s9 = inlined_call_operand.vmem [shape: f32[32,4], index: 9, kind: input, shape index: {}]
  %s10 = inlined_call_operand.vmem [shape: f32[32,1], index: 10, kind: input, shape index: {}]
  %s11 = inlined_call_operand.vmem [shape: bf16[32,32], index: 11, kind: input, shape index: {}]
  %s12 = inlined_call_operand.vmem [shape: f32[32,1], index: 12, kind: input, shape index: {}]
  %s13 = inlined_call_operand.vmem [shape: f32[32,1], index: 13, kind: input, shape index: {}]
  %s14 = inlined_call_operand.vmem [shape: bf16[32,16], index: 14, kind: input, shape index: {}]
  %s15 = inlined_call_operand.vmem [shape: f32[32,1], index: 15, kind: input, shape index: {}]
  %s16 = inlined_call_operand.vmem [shape: f32[32,1], index: 16, kind: input, shape index: {}]
  %s17 = inlined_call_operand.vmem [shape: f32[2,32,4], index: 17, kind: output, shape index: {}]
  %s18 = sld [smem:[#allocation0]]
  $region101: #{encoder_forward.9} parent=0
    _
  %s20 = ssub.s32 1, %s18
  %s21 = scalar_select 0, %s20, %s18
  loop: start=0, step=1, limit=4
  $region2: #{encoder_forward.9} parent=0 // loop_pre_header
    _
  $region3: #{encoder_forward.9} parent=0 // loop_header
    %s23 = sphi 0, %s27
    %p24 = scmp.ge.s32.totalorder %s23, 4
    %s33 = sphi 0, %s35
    %s36 = sphi 0, %s33
    %s37 = sphi 0, %s36
    %s53 = sphi 0, %s37
    %s57 = sphi 0, %s57
    %s59 = sphi 0, %s57
    %s60 = sphi 0, %s59
    %s74 = sphi 0, %s60
    %s78 = sphi 0, %s78
    %s80 = sphi 0, %s78
    %s81 = sphi 0, %s80
    %s95 = sphi 0, %s81
    %s99 = sphi 0, %s99
    %s101 = sphi 0, %s99
    %s102 = sphi 0, %s101
    %s116 = sphi 0, %s102
    %s120 = sphi 0, %s120
    %s122 = sphi 0, %s120
    %s123 = sphi 0, %s122
    %s137 = sphi 0, %s123
    %s141 = sphi 0, %s141
    %s143 = sphi 0, %s141
    %s144 = sphi 0, %s143
    %s158 = sphi 0, %s144
    %s162 = sphi 0, %s162
    %s164 = sphi 0, %s162
    %s165 = sphi 0, %s164
    %s179 = sphi 0, %s165
    %s183 = sphi 0, %s183
    %s185 = sphi 0, %s183
    %s186 = sphi 0, %s185
    %s200 = sphi 0, %s186
    %s204 = sphi 0, %s204
    %s206 = sphi 0, %s204
    %s207 = sphi 0, %s206
    %s221 = sphi 0, %s207
    %s225 = sphi 0, %s225
    %s227 = sphi 0, %s225
    %s228 = sphi 0, %s227
    %s242 = sphi 0, %s228
    %s246 = sphi 0, %s246
    %s248 = sphi 0, %s246
    %s249 = sphi 0, %s248
    %s263 = sphi 0, %s249
    %s267 = sphi 0, %s267
    %s269 = sphi 0, %s267
    %s270 = sphi 0, %s269
    %s284 = sphi 0, %s270
    %s288 = sphi 0, %s288
    %s290 = sphi 0, %s288
    %s291 = sphi 0, %s290
    %s305 = sphi 0, %s291
    %s309 = sphi 0, %s309
    %s311 = sphi 0, %s309
    %s312 = sphi 0, %s311
    %s326 = sphi 0, %s312
    %s330 = sphi 0, %s330
    %s332 = sphi 0, %s330
    %s333 = sphi 0, %s332
    %s347 = sphi 0, %s333
    %s351 = sphi 0, %s351
    %s353 = sphi 0, %s351
    %s354 = sphi 0, %s353
    %s368 = sphi 0, %s354
    %s372 = sphi 0, %s372
    %s374 = sphi 0, %s372
    %s375 = sphi 0, %s374
    %s389 = sphi 0, %s375
    %s395 = sphi 0, %s397
    %s398 = sphi 0, %s395
    %s399 = sphi 0, %s398
    %s415 = sphi 0, %s399
  $region4: #{encoder_forward.9} parent=0 // loop_header_branch
    %26 = sbr.rel (%p24) target = $region8
  $region5: #{encoder_forward.9} parent=0 // loop_body
    %s28 = ssub.s32 %s23, 1
    %s29 = ssub.s32 %s23, 2
    %s30 = sadd.s32 %s23, 1
    %s31 = ssub.s32 %s23, %s30
    %p32 = scmp.eq.s32.totalorder %s31, 0
    %s34 = sadd.s32 %s33, 1
    %s35 = scalar_select %p32, %s33, %s34
    %p38 = pneg %p32
    %p39 = scmp.eq.s32.totalorder %s23, 1
    %p40 = por %p38, %p39
    %p41 = scmp.ne.s32.totalorder %s33, %s36
    %p42 = scmp.eq.s32.totalorder %s23, 0
    %p43 = por %p41, %p42
    %p44 = scmp.ne.s32.totalorder %s33, %s36
    %p45 = scmp.eq.s32.totalorder %s28, 1
    %p46 = por %p44, %p45
    %p47 = scmp.ne.s32.totalorder %s36, %s37
    %p48 = scmp.eq.s32.totalorder %s28, 0
    %p49 = por %p47, %p48
    %p50 = scmp.ne.s32.totalorder %s36, %s37
    %p51 = scmp.eq.s32.totalorder %s29, 1
    %p52 = por %p50, %p51
    %p54 = scmp.ne.s32.totalorder %s37, %s53
    %p55 = scmp.eq.s32.totalorder %s29, 0
    %p56 = por %p54, %p55
    %s58 = sadd.s32 %s57, 1
    %p61 = scmp.eq.s32.totalorder %s23, 1
    %p62 = scmp.ne.s32.totalorder %s57, %s59
    %p63 = scmp.eq.s32.totalorder %s23, 0
    %p64 = por %p62, %p63
    %p65 = scmp.ne.s32.totalorder %s57, %s59
    %p66 = scmp.eq.s32.totalorder %s28, 1
    %p67 = por %p65, %p66
    %p68 = scmp.ne.s32.totalorder %s59, %s60
    %p69 = scmp.eq.s32.totalorder %s28, 0
    %p70 = por %p68, %p69
    %p71 = scmp.ne.s32.totalorder %s59, %s60
    %p72 = scmp.eq.s32.totalorder %s29, 1
    %p73 = por %p71, %p72
    %p75 = scmp.ne.s32.totalorder %s60, %s74
    %p76 = scmp.eq.s32.totalorder %s29, 0
    %p77 = por %p75, %p76
    %s79 = sadd.s32 %s78, 1
    %p82 = scmp.eq.s32.totalorder %s23, 1
    %p83 = scmp.ne.s32.totalorder %s78, %s80
    %p84 = scmp.eq.s32.totalorder %s23, 0
    %p85 = por %p83, %p84
    %p86 = scmp.ne.s32.totalorder %s78, %s80
    %p87 = scmp.eq.s32.totalorder %s28, 1
    %p88 = por %p86, %p87
    %p89 = scmp.ne.s32.totalorder %s80, %s81
    %p90 = scmp.eq.s32.totalorder %s28, 0
    %p91 = por %p89, %p90
    %p92 = scmp.ne.s32.totalorder %s80, %s81
    %p93 = scmp.eq.s32.totalorder %s29, 1
    %p94 = por %p92, %p93
    %p96 = scmp.ne.s32.totalorder %s81, %s95
    %p97 = scmp.eq.s32.totalorder %s29, 0
    %p98 = por %p96, %p97
    %s100 = sadd.s32 %s99, 1
    %p103 = scmp.eq.s32.totalorder %s23, 1
    %p104 = scmp.ne.s32.totalorder %s99, %s101
    %p105 = scmp.eq.s32.totalorder %s23, 0
    %p106 = por %p104, %p105
    %p107 = scmp.ne.s32.totalorder %s99, %s101
    %p108 = scmp.eq.s32.totalorder %s28, 1
    %p109 = por %p107, %p108
    %p110 = scmp.ne.s32.totalorder %s101, %s102
    %p111 = scmp.eq.s32.totalorder %s28, 0
    %p112 = por %p110, %p111
    %p113 = scmp.ne.s32.totalorder %s101, %s102
    %p114 = scmp.eq.s32.totalorder %s29, 1
    %p115 = por %p113, %p114
    %p117 = scmp.ne.s32.totalorder %s102, %s116
    %p118 = scmp.eq.s32.totalorder %s29, 0
    %p119 = por %p117, %p118
    %s121 = sadd.s32 %s120, 1
    %p124 = scmp.eq.s32.totalorder %s23, 1
    %p125 = scmp.ne.s32.totalorder %s120, %s122
    %p126 = scmp.eq.s32.totalorder %s23, 0
    %p127 = por %p125, %p126
    %p128 = scmp.ne.s32.totalorder %s120, %s122
    %p129 = scmp.eq.s32.totalorder %s28, 1
    %p130 = por %p128, %p129
    %p131 = scmp.ne.s32.totalorder %s122, %s123
    %p132 = scmp.eq.s32.totalorder %s28, 0
    %p133 = por %p131, %p132
    %p134 = scmp.ne.s32.totalorder %s122, %s123
    %p135 = scmp.eq.s32.totalorder %s29, 1
    %p136 = por %p134, %p135
    %p138 = scmp.ne.s32.totalorder %s123, %s137
    %p139 = scmp.eq.s32.totalorder %s29, 0
    %p140 = por %p138, %p139
    %s142 = sadd.s32 %s141, 1
    %p145 = scmp.eq.s32.totalorder %s23, 1
    %p146 = scmp.ne.s32.totalorder %s141, %s143
    %p147 = scmp.eq.s32.totalorder %s23, 0
    %p148 = por %p146, %p147
    %p149 = scmp.ne.s32.totalorder %s141, %s143
    %p150 = scmp.eq.s32.totalorder %s28, 1
    %p151 = por %p149, %p150
    %p152 = scmp.ne.s32.totalorder %s143, %s144
    %p153 = scmp.eq.s32.totalorder %s28, 0
    %p154 = por %p152, %p153
    %p155 = scmp.ne.s32.totalorder %s143, %s144
    %p156 = scmp.eq.s32.totalorder %s29, 1
    %p157 = por %p155, %p156
    %p159 = scmp.ne.s32.totalorder %s144, %s158
    %p160 = scmp.eq.s32.totalorder %s29, 0
    %p161 = por %p159, %p160
    %s163 = sadd.s32 %s162, 1
    %p166 = scmp.eq.s32.totalorder %s23, 1
    %p167 = scmp.ne.s32.totalorder %s162, %s164
    %p168 = scmp.eq.s32.totalorder %s23, 0
    %p169 = por %p167, %p168
    %p170 = scmp.ne.s32.totalorder %s162, %s164
    %p171 = scmp.eq.s32.totalorder %s28, 1
    %p172 = por %p170, %p171
    %p173 = scmp.ne.s32.totalorder %s164, %s165
    %p174 = scmp.eq.s32.totalorder %s28, 0
    %p175 = por %p173, %p174
    %p176 = scmp.ne.s32.totalorder %s164, %s165
    %p177 = scmp.eq.s32.totalorder %s29, 1
    %p178 = por %p176, %p177
    %p180 = scmp.ne.s32.totalorder %s165, %s179
    %p181 = scmp.eq.s32.totalorder %s29, 0
    %p182 = por %p180, %p181
    %s184 = sadd.s32 %s183, 1
    %p187 = scmp.eq.s32.totalorder %s23, 1
    %p188 = scmp.ne.s32.totalorder %s183, %s185
    %p189 = scmp.eq.s32.totalorder %s23, 0
    %p190 = por %p188, %p189
    %p191 = scmp.ne.s32.totalorder %s183, %s185
    %p192 = scmp.eq.s32.totalorder %s28, 1
    %p193 = por %p191, %p192
    %p194 = scmp.ne.s32.totalorder %s185, %s186
    %p195 = scmp.eq.s32.totalorder %s28, 0
    %p196 = por %p194, %p195
    %p197 = scmp.ne.s32.totalorder %s185, %s186
    %p198 = scmp.eq.s32.totalorder %s29, 1
    %p199 = por %p197, %p198
    %p201 = scmp.ne.s32.totalorder %s186, %s200
    %p202 = scmp.eq.s32.totalorder %s29, 0
    %p203 = por %p201, %p202
    %s205 = sadd.s32 %s204, 1
    %p208 = scmp.eq.s32.totalorder %s23, 1
    %p209 = scmp.ne.s32.totalorder %s204, %s206
    %p210 = scmp.eq.s32.totalorder %s23, 0
    %p211 = por %p209, %p210
    %p212 = scmp.ne.s32.totalorder %s204, %s206
    %p213 = scmp.eq.s32.totalorder %s28, 1
    %p214 = por %p212, %p213
    %p215 = scmp.ne.s32.totalorder %s206, %s207
    %p216 = scmp.eq.s32.totalorder %s28, 0
    %p217 = por %p215, %p216
    %p218 = scmp.ne.s32.totalorder %s206, %s207
    %p219 = scmp.eq.s32.totalorder %s29, 1
    %p220 = por %p218, %p219
    %p222 = scmp.ne.s32.totalorder %s207, %s221
    %p223 = scmp.eq.s32.totalorder %s29, 0
    %p224 = por %p222, %p223
    %s226 = sadd.s32 %s225, 1
    %p229 = scmp.eq.s32.totalorder %s23, 1
    %p230 = scmp.ne.s32.totalorder %s225, %s227
    %p231 = scmp.eq.s32.totalorder %s23, 0
    %p232 = por %p230, %p231
    %p233 = scmp.ne.s32.totalorder %s225, %s227
    %p234 = scmp.eq.s32.totalorder %s28, 1
    %p235 = por %p233, %p234
    %p236 = scmp.ne.s32.totalorder %s227, %s228
    %p237 = scmp.eq.s32.totalorder %s28, 0
    %p238 = por %p236, %p237
    %p239 = scmp.ne.s32.totalorder %s227, %s228
    %p240 = scmp.eq.s32.totalorder %s29, 1
    %p241 = por %p239, %p240
    %p243 = scmp.ne.s32.totalorder %s228, %s242
    %p244 = scmp.eq.s32.totalorder %s29, 0
    %p245 = por %p243, %p244
    %s247 = sadd.s32 %s246, 1
    %p250 = scmp.eq.s32.totalorder %s23, 1
    %p251 = scmp.ne.s32.totalorder %s246, %s248
    %p252 = scmp.eq.s32.totalorder %s23, 0
    %p253 = por %p251, %p252
    %p254 = scmp.ne.s32.totalorder %s246, %s248
    %p255 = scmp.eq.s32.totalorder %s28, 1
    %p256 = por %p254, %p255
    %p257 = scmp.ne.s32.totalorder %s248, %s249
    %p258 = scmp.eq.s32.totalorder %s28, 0
    %p259 = por %p257, %p258
    %p260 = scmp.ne.s32.totalorder %s248, %s249
    %p261 = scmp.eq.s32.totalorder %s29, 1
    %p262 = por %p260, %p261
    %p264 = scmp.ne.s32.totalorder %s249, %s263
    %p265 = scmp.eq.s32.totalorder %s29, 0
    %p266 = por %p264, %p265
    %s268 = sadd.s32 %s267, 1
    %p271 = scmp.eq.s32.totalorder %s23, 1
    %p272 = scmp.ne.s32.totalorder %s267, %s269
    %p273 = scmp.eq.s32.totalorder %s23, 0
    %p274 = por %p272, %p273
    %p275 = scmp.ne.s32.totalorder %s267, %s269
    %p276 = scmp.eq.s32.totalorder %s28, 1
    %p277 = por %p275, %p276
    %p278 = scmp.ne.s32.totalorder %s269, %s270
    %p279 = scmp.eq.s32.totalorder %s28, 0
    %p280 = por %p278, %p279
    %p281 = scmp.ne.s32.totalorder %s269, %s270
    %p282 = scmp.eq.s32.totalorder %s29, 1
    %p283 = por %p281, %p282
    %p285 = scmp.ne.s32.totalorder %s270, %s284
    %p286 = scmp.eq.s32.totalorder %s29, 0
    %p287 = por %p285, %p286
    %s289 = sadd.s32 %s288, 1
    %p292 = scmp.eq.s32.totalorder %s23, 1
    %p293 = scmp.ne.s32.totalorder %s288, %s290
    %p294 = scmp.eq.s32.totalorder %s23, 0
    %p295 = por %p293, %p294
    %p296 = scmp.ne.s32.totalorder %s288, %s290
    %p297 = scmp.eq.s32.totalorder %s28, 1
    %p298 = por %p296, %p297
    %p299 = scmp.ne.s32.totalorder %s290, %s291
    %p300 = scmp.eq.s32.totalorder %s28, 0
    %p301 = por %p299, %p300
    %p302 = scmp.ne.s32.totalorder %s290, %s291
    %p303 = scmp.eq.s32.totalorder %s29, 1
    %p304 = por %p302, %p303
    %p306 = scmp.ne.s32.totalorder %s291, %s305
    %p307 = scmp.eq.s32.totalorder %s29, 0
    %p308 = por %p306, %p307
    %s310 = sadd.s32 %s309, 1
    %p313 = scmp.eq.s32.totalorder %s23, 1
    %p314 = scmp.ne.s32.totalorder %s309, %s311
    %p315 = scmp.eq.s32.totalorder %s23, 0
    %p316 = por %p314, %p315
    %p317 = scmp.ne.s32.totalorder %s309, %s311
    %p318 = scmp.eq.s32.totalorder %s28, 1
    %p319 = por %p317, %p318
    %p320 = scmp.ne.s32.totalorder %s311, %s312
    %p321 = scmp.eq.s32.totalorder %s28, 0
    %p322 = por %p320, %p321
    %p323 = scmp.ne.s32.totalorder %s311, %s312
    %p324 = scmp.eq.s32.totalorder %s29, 1
    %p325 = por %p323, %p324
    %p327 = scmp.ne.s32.totalorder %s312, %s326
    %p328 = scmp.eq.s32.totalorder %s29, 0
    %p329 = por %p327, %p328
    %s331 = sadd.s32 %s330, 1
    %p334 = scmp.eq.s32.totalorder %s23, 1
    %p335 = scmp.ne.s32.totalorder %s330, %s332
    %p336 = scmp.eq.s32.totalorder %s23, 0
    %p337 = por %p335, %p336
    %p338 = scmp.ne.s32.totalorder %s330, %s332
    %p339 = scmp.eq.s32.totalorder %s28, 1
    %p340 = por %p338, %p339
    %p341 = scmp.ne.s32.totalorder %s332, %s333
    %p342 = scmp.eq.s32.totalorder %s28, 0
    %p343 = por %p341, %p342
    %p344 = scmp.ne.s32.totalorder %s332, %s333
    %p345 = scmp.eq.s32.totalorder %s29, 1
    %p346 = por %p344, %p345
    %p348 = scmp.ne.s32.totalorder %s333, %s347
    %p349 = scmp.eq.s32.totalorder %s29, 0
    %p350 = por %p348, %p349
    %s352 = sadd.s32 %s351, 1
    %p355 = scmp.eq.s32.totalorder %s23, 1
    %p356 = scmp.ne.s32.totalorder %s351, %s353
    %p357 = scmp.eq.s32.totalorder %s23, 0
    %p358 = por %p356, %p357
    %p359 = scmp.ne.s32.totalorder %s351, %s353
    %p360 = scmp.eq.s32.totalorder %s28, 1
    %p361 = por %p359, %p360
    %p362 = scmp.ne.s32.totalorder %s353, %s354
    %p363 = scmp.eq.s32.totalorder %s28, 0
    %p364 = por %p362, %p363
    %p365 = scmp.ne.s32.totalorder %s353, %s354
    %p366 = scmp.eq.s32.totalorder %s29, 1
    %p367 = por %p365, %p366
    %p369 = scmp.ne.s32.totalorder %s354, %s368
    %p370 = scmp.eq.s32.totalorder %s29, 0
    %p371 = por %p369, %p370
    %s373 = sadd.s32 %s372, 1
    %p376 = scmp.eq.s32.totalorder %s23, 1
    %p377 = scmp.ne.s32.totalorder %s372, %s374
    %p378 = scmp.eq.s32.totalorder %s23, 0
    %p379 = por %p377, %p378
    %p380 = scmp.ne.s32.totalorder %s372, %s374
    %p381 = scmp.eq.s32.totalorder %s28, 1
    %p382 = por %p380, %p381
    %p383 = scmp.ne.s32.totalorder %s374, %s375
    %p384 = scmp.eq.s32.totalorder %s28, 0
    %p385 = por %p383, %p384
    %p386 = scmp.ne.s32.totalorder %s374, %s375
    %p387 = scmp.eq.s32.totalorder %s29, 1
    %p388 = por %p386, %p387
    %p390 = scmp.ne.s32.totalorder %s375, %s389
    %p391 = scmp.eq.s32.totalorder %s29, 0
    %p392 = por %p390, %p391
    %s393 = ssub.s32 %s23, %s30
    %p394 = scmp.eq.s32.totalorder %s393, 0
    %s396 = sadd.s32 %s395, 1
    %s397 = scalar_select %p394, %s395, %s396
    %p400 = pneg %p394
    %p401 = scmp.eq.s32.totalorder %s23, 1
    %p402 = por %p400, %p401
    %p403 = scmp.ne.s32.totalorder %s395, %s398
    %p404 = scmp.eq.s32.totalorder %s23, 0
    %p405 = por %p403, %p404
    %p406 = scmp.ne.s32.totalorder %s395, %s398
    %p407 = scmp.eq.s32.totalorder %s28, 1
    %p408 = por %p406, %p407
    %p409 = scmp.ne.s32.totalorder %s398, %s399
    %p410 = scmp.eq.s32.totalorder %s28, 0
    %p411 = por %p409, %p410
    %p412 = scmp.ne.s32.totalorder %s398, %s399
    %p413 = scmp.eq.s32.totalorder %s29, 1
    %p414 = por %p412, %p413
    %p416 = scmp.ne.s32.totalorder %s399, %s415
    %p417 = scmp.eq.s32.totalorder %s29, 0
    %p418 = por %p416, %p417
    %p419 = scmp.le.s32.totalorder 1, %s23
    %p420 = scmp.lt.s32.totalorder %s23, 3
    %p421 = pnand %p419, %p420
    %p422 = pneg %p421
    // Predicated region
    $region9: #{encoder_forward.9} parent=5 // pred_check
      _
    $region10: #{encoder_forward.9} parent=5 // pred_check_branch
      %424 = sbr.rel (%p421) target = $region12
    $region11: #{encoder_forward.9} parent=5 // pred_region
      %s425 = ssub.s32 %s23, 1
      // Predicated region
      $region13: #{encoder_forward.9} parent=11 // pred_check
        %p426 = pneg %p70
      $region14: #{encoder_forward.9} parent=11 // pred_check_branch
        %428 = sbr.rel (%p426) target = $region16
      $region15: #{encoder_forward.9} parent=11 // pred_region
        _
      $region16: #{encoder_forward.9} parent=11 // pred_fallthru
        _
      // Predicated region
      $region17: #{encoder_forward.9} parent=11 // pred_check
        %p429 = pneg %p91
      $region18: #{encoder_forward.9} parent=11 // pred_check_branch
        %431 = sbr.rel (%p429) target = $region20
      $region19: #{encoder_forward.9} parent=11 // pred_region
        _
      $region20: #{encoder_forward.9} parent=11 // pred_fallthru
        _
      // Predicated region
      $region21: #{encoder_forward.9} parent=11 // pred_check
        %p432 = pneg %p112
      $region22: #{encoder_forward.9} parent=11 // pred_check_branch
        %434 = sbr.rel (%p432) target = $region24
      $region23: #{encoder_forward.9} parent=11 // pred_region
        _
      $region24: #{encoder_forward.9} parent=11 // pred_fallthru
        _
      // Predicated region
      $region25: #{encoder_forward.9} parent=11 // pred_check
        %p435 = pneg %p133
      $region26: #{encoder_forward.9} parent=11 // pred_check_branch
        %437 = sbr.rel (%p435) target = $region28
      $region27: #{encoder_forward.9} parent=11 // pred_region
        _
      $region28: #{encoder_forward.9} parent=11 // pred_fallthru
        _
      // Predicated region
      $region29: #{encoder_forward.9} parent=11 // pred_check
        %p438 = pneg %p154
      $region30: #{encoder_forward.9} parent=11 // pred_check_branch
        %440 = sbr.rel (%p438) target = $region32
      $region31: #{encoder_forward.9} parent=11 // pred_region
        _
      $region32: #{encoder_forward.9} parent=11 // pred_fallthru
        _
      // Predicated region
      $region33: #{encoder_forward.9} parent=11 // pred_check
        %p441 = pneg %p175
      $region34: #{encoder_forward.9} parent=11 // pred_check_branch
        %443 = sbr.rel (%p441) target = $region36
      $region35: #{encoder_forward.9} parent=11 // pred_region
        _
      $region36: #{encoder_forward.9} parent=11 // pred_fallthru
        _
      // Predicated region
      $region37: #{encoder_forward.9} parent=11 // pred_check
        %p444 = pneg %p196
      $region38: #{encoder_forward.9} parent=11 // pred_check_branch
        %446 = sbr.rel (%p444) target = $region40
      $region39: #{encoder_forward.9} parent=11 // pred_region
        _
      $region40: #{encoder_forward.9} parent=11 // pred_fallthru
        _
      // Predicated region
      $region41: #{encoder_forward.9} parent=11 // pred_check
        %p447 = pneg %p217
      $region42: #{encoder_forward.9} parent=11 // pred_check_branch
        %449 = sbr.rel (%p447) target = $region44
      $region43: #{encoder_forward.9} parent=11 // pred_region
        _
      $region44: #{encoder_forward.9} parent=11 // pred_fallthru
        _
      // Predicated region
      $region45: #{encoder_forward.9} parent=11 // pred_check
        %p450 = pneg %p238
      $region46: #{encoder_forward.9} parent=11 // pred_check_branch
        %452 = sbr.rel (%p450) target = $region48
      $region47: #{encoder_forward.9} parent=11 // pred_region
        _
      $region48: #{encoder_forward.9} parent=11 // pred_fallthru
        _
      // Predicated region
      $region49: #{encoder_forward.9} parent=11 // pred_check
        %p453 = pneg %p259
      $region50: #{encoder_forward.9} parent=11 // pred_check_branch
        %455 = sbr.rel (%p453) target = $region52
      $region51: #{encoder_forward.9} parent=11 // pred_region
        _
      $region52: #{encoder_forward.9} parent=11 // pred_fallthru
        _
      // Predicated region
      $region53: #{encoder_forward.9} parent=11 // pred_check
        %p456 = pneg %p280
      $region54: #{encoder_forward.9} parent=11 // pred_check_branch
        %458 = sbr.rel (%p456) target = $region56
      $region55: #{encoder_forward.9} parent=11 // pred_region
        _
      $region56: #{encoder_forward.9} parent=11 // pred_fallthru
        _
      // Predicated region
      $region57: #{encoder_forward.9} parent=11 // pred_check
        %p459 = pneg %p301
      $region58: #{encoder_forward.9} parent=11 // pred_check_branch
        %461 = sbr.rel (%p459) target = $region60
      $region59: #{encoder_forward.9} parent=11 // pred_region
        _
      $region60: #{encoder_forward.9} parent=11 // pred_fallthru
        _
      // Predicated region
      $region61: #{encoder_forward.9} parent=11 // pred_check
        %p462 = pneg %p322
      $region62: #{encoder_forward.9} parent=11 // pred_check_branch
        %464 = sbr.rel (%p462) target = $region64
      $region63: #{encoder_forward.9} parent=11 // pred_region
        _
      $region64: #{encoder_forward.9} parent=11 // pred_fallthru
        _
      // Predicated region
      $region65: #{encoder_forward.9} parent=11 // pred_check
        %p465 = pneg %p343
      $region66: #{encoder_forward.9} parent=11 // pred_check_branch
        %467 = sbr.rel (%p465) target = $region68
      $region67: #{encoder_forward.9} parent=11 // pred_region
        _
      $region68: #{encoder_forward.9} parent=11 // pred_fallthru
        _
      // Predicated region
      $region69: #{encoder_forward.9} parent=11 // pred_check
        %p468 = pneg %p364
      $region70: #{encoder_forward.9} parent=11 // pred_check_branch
        %470 = sbr.rel (%p468) target = $region72
      $region71: #{encoder_forward.9} parent=11 // pred_region
        _
      $region72: #{encoder_forward.9} parent=11 // pred_fallthru
        _
      // Predicated region
      $region73: #{encoder_forward.9} parent=11 // pred_check
        %p471 = pneg %p385
      $region74: #{encoder_forward.9} parent=11 // pred_check_branch
        %473 = sbr.rel (%p471) target = $region76
      $region75: #{encoder_forward.9} parent=11 // pred_region
        _
      $region76: #{encoder_forward.9} parent=11 // pred_fallthru
        _
    $region12: #{encoder_forward.9} parent=5 // pred_fallthru
      _
    %p474 = scmp.lt.s32.totalorder %s23, 2
    // Predicated region
    $region77: #{encoder_forward.9} parent=5 // pred_check
      %p475 = pneg %p474
    $region78: #{encoder_forward.9} parent=5 // pred_check_branch
      %477 = sbr.rel (%p475) target = $region80
    $region79: #{encoder_forward.9} parent=5 // pred_region
      // Predicated region
      $region81: #{encoder_forward.9} parent=79 // pred_check
        %p478 = pneg %p43
      $region82: #{encoder_forward.9} parent=79 // pred_check_branch
        %480 = sbr.rel (%p478) target = $region84
      $region83: #{encoder_forward.9} parent=79 // pred_region
        %p481 = scmp.lt.s32.totalorder %s23, 1
        %s482 = scalar_select %p481, %s23, 1
        %s483 = smul.addr %s482, 8
        %s484 = smul.addr %s483, 4
        %s485 = scalar_lea.vmem %s0, %s484
      $region84: #{encoder_forward.9} parent=79 // pred_fallthru
        _
    $region80: #{encoder_forward.9} parent=5 // pred_fallthru
      _
    %p486 = scmp.le.s32.totalorder 1, %s23
    %p487 = scmp.lt.s32.totalorder %s23, 3
    %p488 = pnand %p486, %p487
    %p489 = pneg %p488
    // Predicated region
    $region85: #{encoder_forward.9} parent=5 // pred_check
      _
    $region86: #{encoder_forward.9} parent=5 // pred_check_branch
      %491 = sbr.rel (%p488) target = $region88
    $region87: #{encoder_forward.9} parent=5 // pred_region
      %s492 = ssub.s32 %s23, 1
      %p493 = scmp.lt.s32.totalorder %s28, 1
      %s494 = scalar_select %p493, %s28, 1
      %s495 = smul.addr %s494, 8
      %s496 = smul.addr %s495, 4
      %s497 = scalar_lea.vmem %s0, %s496
      %p498 = pneg %p49
      %p499 = pneg %p46
      %p500 = pneg %p70
      %p501 = pneg %p67
      %p502 = pneg %p91
      %p503 = pneg %p88
      %p504 = pneg %p112
      %p505 = pneg %p109
      %p506 = pneg %p133
      %p507 = pneg %p130
      %p508 = pneg %p154
      %p509 = pneg %p151
      %p510 = pneg %p175
      %p511 = pneg %p172
      %p512 = pneg %p196
      %p513 = pneg %p193
      %p514 = pneg %p217
      %p515 = pneg %p214
      %p516 = pneg %p238
      %p517 = pneg %p235
      %p518 = pneg %p259
      %p519 = pneg %p256
      %p520 = pneg %p280
      %p521 = pneg %p277
      %p522 = pneg %p301
      %p523 = pneg %p298
      %p524 = pneg %p322
      %p525 = pneg %p319
      %p526 = pneg %p343
      %p527 = pneg %p340
      %p528 = pneg %p364
      %p529 = pneg %p361
      %p530 = pneg %p385
      %p531 = pneg %p382
      %p532 = pneg %p411
      %p533 = pneg %p408
      %p534 = scmp.lt.s32.totalorder %s28, 1
      %s535 = scalar_select %p534, %s28, 1
      %s536 = smul.addr %s535, 4
      %s537 = smul.addr %s536, 8
      %s538 = scalar_lea.vmem %s17, %s537
      %p539 = scmp.lt.s32.totalorder %s28, 1
      %s540 = scalar_select %p539, %s28, 1
      %s541 = smul.addr %s540, 8
      %s542 = smul.addr %s541, 4
      %s543 = scalar_lea.vmem %s0, %s542
      %p544 = scmp.lt.s32.totalorder %s28, 1
      %s545 = scalar_select %p544, %s28, 1
      %s546 = smul.addr %s545, 4
      %s547 = smul.addr %s546, 8
      %s548 = scalar_lea.vmem %s17, %s547
      %v550 = vld [vmem:[%s543] sm:$0xf]
      %v551 = vld [vmem:[%s543 + $0x4] sm:$0xf]
      %v552 = vld [vmem:[%s543 + $0x8] sm:$0xf]
      %v553 = vld [vmem:[%s543 + $0xc] sm:$0xf]
      %v554 = vld [vmem:[%s543 + $0x10] sm:$0xf]
      %v555 = vld [vmem:[%s543 + $0x14] sm:$0xf]
      %v556 = vld [vmem:[%s543 + $0x18] sm:$0xf]
      %v557 = vld [vmem:[%s543 + $0x1c] sm:$0xf]
      %v558 = vld [vmem:[%s1] sm:$0xf]
      %v559 = vld [vmem:[%s1 + $0x4] sm:$0xf]
      %v560 = vld [vmem:[%s1 + $0x8] sm:$0xf]
      %v561 = vld [vmem:[%s1 + $0xc] sm:$0xf]
      %v562 = vld [vmem:[%s1 + $0x10] sm:$0xf]
      %v563 = vld [vmem:[%s1 + $0x14] sm:$0xf]
      %v564 = vld [vmem:[%s1 + $0x18] sm:$0xf]
      %v565 = vld [vmem:[%s1 + $0x1c] sm:$0xf]
      %v566 = vld [vmem:[%s1 + $0x20] sm:$0xf]
      %v567 = vld [vmem:[%s1 + $0x24] sm:$0xf]
      %v568 = vld [vmem:[%s1 + $0x28] sm:$0xf]
      %v569 = vld [vmem:[%s1 + $0x2c] sm:$0xf]
      %v570 = vld [vmem:[%s1 + $0x30] sm:$0xf]
      %v571 = vld [vmem:[%s1 + $0x34] sm:$0xf]
      %v572 = vld [vmem:[%s1 + $0x38] sm:$0xf]
      %v573 = vld [vmem:[%s1 + $0x3c] sm:$0xf]
      %v590 = vunpack.c.l.b16 %v558
      %v591 = vunpack.c.l.b16 %v559
      %v592 = vunpack.c.l.b16 %v560
      %v593 = vunpack.c.l.b16 %v561
      %v594 = vunpack.c.l.b16 %v562
      %v595 = vunpack.c.l.b16 %v563
      %v596 = vunpack.c.l.b16 %v564
      %v597 = vunpack.c.l.b16 %v565
      %v598 = vunpack.c.l.b16 %v566
      %v599 = vunpack.c.l.b16 %v567
      %v600 = vunpack.c.l.b16 %v568
      %v601 = vunpack.c.l.b16 %v569
      %v602 = vunpack.c.l.b16 %v570
      %v603 = vunpack.c.l.b16 %v571
      %v604 = vunpack.c.l.b16 %v572
      %v605 = vunpack.c.l.b16 %v573
      %v606 = vpack.c.b16 %v591, %v590
      %v607 = vpack.c.b16 %v593, %v592
      %v608 = vpack.c.b16 %v595, %v594
      %v609 = vpack.c.b16 %v597, %v596
      %v610 = vpack.c.b16 %v599, %v598
      %v611 = vpack.c.b16 %v601, %v600
      %v612 = vpack.c.b16 %v603, %v602
      %v613 = vpack.c.b16 %v605, %v604
      %v622 = vunpack.c.l.b16 %v550
      %v623 = vunpack.c.l.b16 %v551
      %v624 = vunpack.c.l.b16 %v552
      %v625 = vunpack.c.l.b16 %v553
      %v626 = vunpack.c.l.b16 %v554
      %v627 = vunpack.c.l.b16 %v555
      %v628 = vunpack.c.l.b16 %v556
      %v629 = vunpack.c.l.b16 %v557
      %v630 = vpack.c.b16 %v623, %v622
      %v631 = vpack.c.b16 %v625, %v624
      %v632 = vpack.c.b16 %v627, %v626
      %v633 = vpack.c.b16 %v629, %v628
      %vm638 = vcmask 523264
      %v640 = vsel %vm638, %v606, 0
      %v643 = vsel %vm638, %v607, 0
      %v646 = vsel %vm638, %v608, 0
      %v649 = vsel %vm638, %v609, 0
      %v652 = vsel %vm638, %v610, 0
      %v655 = vsel %vm638, %v611, 0
      %v658 = vsel %vm638, %v612, 0
      %v661 = vsel %vm638, %v613, 0
      %663 = vmatprep.subr.bf16.mxu0 0
      %664 = vmatpush1.bf16.msra.mxu0 %v630
      %665 = vmatprep.subr.bf16.mxu0 0
      %666 = vmatpush1.bf16.msra.mxu0 %v631
      %667 = vmatprep.subr.bf16.mxu0 0
      %668 = vmatpush1.bf16.msra.mxu0 %v632
      %669 = vmatprep.subr.bf16.mxu0 0
      %670 = vmatpush1.bf16.msra.mxu0 %v633
      %671 = vmatprep.subr.bf16.mxu0 0
      %672 = vmatpush1.bf16.msra.mxu0 0
      %673 = vmatprep.subr.bf16.mxu0 0
      %674 = vmatpush1.bf16.msra.mxu0 0
      %675 = vmatprep.subr.bf16.mxu0 0
      %676 = vmatpush1.bf16.msra.mxu0 0
      %677 = vmatprep.subr.bf16.mxu0 0
      %678 = vmatpush1.bf16.msra.mxu0 0
      %679 = vmatprep.subr.bf16.mxu0 0
      %680 = vmatpush1.bf16.msra.mxu0 0
      %681 = vmatprep.subr.bf16.mxu0 0
      %682 = vmatpush1.bf16.msra.mxu0 0
      %683 = vmatprep.subr.bf16.mxu0 0
      %684 = vmatpush1.bf16.msra.mxu0 0
      %685 = vmatprep.subr.bf16.mxu0 0
      %686 = vmatpush1.bf16.msra.mxu0 0
      %687 = vmatprep.subr.bf16.mxu0 0
      %688 = vmatpush1.bf16.msra.mxu0 0
      %689 = vmatprep.subr.bf16.mxu0 0
      %690 = vmatpush1.bf16.msra.mxu0 0
      %691 = vmatprep.subr.bf16.mxu0 0
      %692 = vmatpush1.bf16.msra.mxu0 0
      %693 = vmatprep.subr.bf16.mxu0 0
      %694 = vmatpush1.bf16.msra.mxu0 0
      %695 = vmatprep.mubr.bf16.mxu0 0
      %696 = vmatmul.mubr.bf16.gmra.mrb[0].mxu0 %v640
      %v697 = vpop.f32.mrb[0].mxu0
      %v698 = vadd.f32 0.0, %v697
      %v699 = vpop.f32.mrb[0].mxu0
      %v700 = vpop.f32.mrb[0].mxu0
      %v701 = vadd.f32 0.0, %v700
      %v702 = vpop.f32.mrb[0].mxu0
      %703 = vmatprep.mubr.bf16.mxu0 0
      %704 = vmatmul.mubr.bf16.gmra.mrb[0].mxu0 %v643
      %v705 = vpop.f32.mrb[0].mxu0
      %v706 = vadd.f32 0.0, %v705
      %v707 = vpop.f32.mrb[0].mxu0
      %v708 = vpop.f32.mrb[0].mxu0
      %v709 = vadd.f32 0.0, %v708
      %v710 = vpop.f32.mrb[0].mxu0
      %711 = vmatprep.mubr.bf16.mxu0 0
      %712 = vmatmul.mubr.bf16.gmra.mrb[0].mxu0 %v646
      %v713 = vpop.f32.mrb[0].mxu0
      %v714 = vadd.f32 0.0, %v713
      %v715 = vpop.f32.mrb[0].mxu0
      %v716 = vpop.f32.mrb[0].mxu0
      %v717 = vadd.f32 0.0, %v716
      %v718 = vpop.f32.mrb[0].mxu0
      %719 = vmatprep.mubr.bf16.mxu0 0
      %720 = vmatmul.mubr.bf16.gmra.mrb[0].mxu0 %v649
      %v721 = vpop.f32.mrb[0].mxu0
      %v722 = vadd.f32 0.0, %v721
      %v723 = vpop.f32.mrb[0].mxu0
      %v724 = vpop.f32.mrb[0].mxu0
      %v725 = vadd.f32 0.0, %v724
      %v726 = vpop.f32.mrb[0].mxu0
      %727 = vmatprep.mubr.bf16.mxu0 0
      %728 = vmatmul.mubr.bf16.gmra.mrb[0].mxu0 %v652
      %v729 = vpop.f32.mrb[0].mxu0
      %v730 = vadd.f32 0.0, %v729
      %v731 = vpop.f32.mrb[0].mxu0
      %v732 = vpop.f32.mrb[0].mxu0
      %v733 = vadd.f32 0.0, %v732
      %v734 = vpop.f32.mrb[0].mxu0
      %735 = vmatprep.mubr.bf16.mxu0 0
      %736 = vmatmul.mubr.bf16.gmra.mrb[0].mxu0 %v655
      %v737 = vpop.f32.mrb[0].mxu0
      %v738 = vadd.f32 0.0, %v737
      %v739 = vpop.f32.mrb[0].mxu0
      %v740 = vpop.f32.mrb[0].mxu0
      %v741 = vadd.f32 0.0, %v740
      %v742 = vpop.f32.mrb[0].mxu0
      %743 = vmatprep.mubr.bf16.mxu0 0
      %744 = vmatmul.mubr.bf16.gmra.mrb[0].mxu0 %v658
      %v745 = vpop.f32.mrb[0].mxu0
      %v746 = vadd.f32 0.0, %v745
      %v747 = vpop.f32.mrb[0].mxu0
      %v748 = vpop.f32.mrb[0].mxu0
      %v749 = vadd.f32 0.0, %v748
      %v750 = vpop.f32.mrb[0].mxu0
      %751 = vmatprep.mubr.bf16.mxu0 0
      %752 = vmatmul.mubr.bf16.gmra.mrb[0].mxu0 %v661
      %v753 = vpop.f32.mrb[0].mxu0
      %v754 = vadd.f32 0.0, %v753
      %v755 = vpop.f32.mrb[0].mxu0
      %v756 = vpop.f32.mrb[0].mxu0
      %v757 = vadd.f32 0.0, %v756
      %v758 = vpop.f32.mrb[0].mxu0
      %759 = vdwg.mxu0
      %v760 = vld [vmem:[%s2] sm:$0xff]
      %v761 = vld [vmem:[%s2 + $0x8] sm:$0xff]
      %v762 = vld [vmem:[%s2 + $0x10] sm:$0xff]
      %v763 = vld [vmem:[%s2 + $0x18] sm:$0xff]
      %v764 = vld [vmem:[%s2 + $0x20] sm:$0xff]
      %v765 = vld [vmem:[%s2 + $0x28] sm:$0xff]
      %v766 = vld [vmem:[%s2 + $0x30] sm:$0xff]
      %v767 = vld [vmem:[%s2 + $0x38] sm:$0xff]
      %v768 = vld [vmem:[%s2 + $0x40] sm:$0xff]
      %v769 = vld [vmem:[%s2 + $0x48] sm:$0xff]
      %v770 = vld [vmem:[%s2 + $0x50] sm:$0xff]
      %v771 = vld [vmem:[%s2 + $0x58] sm:$0xff]
      %v772 = vld [vmem:[%s2 + $0x60] sm:$0xff]
      %v773 = vld [vmem:[%s2 + $0x68] sm:$0xff]
      %v774 = vld [vmem:[%s2 + $0x70] sm:$0xff]
      %v775 = vld [vmem:[%s2 + $0x78] sm:$0xff]
      %777 = vset.pattern.permute.xlu0 0
      %778 = vperm.xlu0 %777, %v760
      %v779 = vpop.permute.xlu0 %778
      %782 = vset.pattern.permute.xlu0 0
      %783 = vperm.xlu0 %782, %v761
      %v784 = vpop.permute.xlu0 %783
      %787 = vset.pattern.permute.xlu0 0
      %788 = vperm.xlu0 %787, %v762
      %v789 = vpop.permute.xlu0 %788
      %792 = vset.pattern.permute.xlu0 0
      %793 = vperm.xlu0 %792, %v763
      %v794 = vpop.permute.xlu0 %793
      %797 = vset.pattern.permute.xlu0 0
      %798 = vperm.xlu0 %797, %v764
      %v799 = vpop.permute.xlu0 %798
      %802 = vset.pattern.permute.xlu0 0
      %803 = vperm.xlu0 %802, %v765
      %v804 = vpop.permute.xlu0 %803
      %807 = vset.pattern.permute.xlu0 0
      %808 = vperm.xlu0 %807, %v766
      %v809 = vpop.permute.xlu0 %808
      %812 = vset.pattern.permute.xlu0 0
      %813 = vperm.xlu0 %812, %v767
      %v814 = vpop.permute.xlu0 %813
      %817 = vset.pattern.permute.xlu0 0
      %818 = vperm.xlu0 %817, %v768
      %v819 = vpop.permute.xlu0 %818
      %822 = vset.pattern.permute.xlu0 0
      %823 = vperm.xlu0 %822, %v769
      %v824 = vpop.permute.xlu0 %823
      %827 = vset.pattern.permute.xlu0 0
      %828 = vperm.xlu0 %827, %v770
      %v829 = vpop.permute.xlu0 %828
      %832 = vset.pattern.permute.xlu0 0
      %833 = vperm.xlu0 %832, %v771
      %v834 = vpop.permute.xlu0 %833
      %837 = vset.pattern.permute.xlu0 0
      %838 = vperm.xlu0 %837, %v772
      %v839 = vpop.permute.xlu0 %838
      %842 = vset.pattern.permute.xlu0 0
      %843 = vperm.xlu0 %842, %v773
      %v844 = vpop.permute.xlu0 %843
      %847 = vset.pattern.permute.xlu0 0
      %848 = vperm.xlu0 %847, %v774
      %v849 = vpop.permute.xlu0 %848
      %852 = vset.pattern.permute.xlu0 0
      %853 = vperm.xlu0 %852, %v775
      %v854 = vpop.permute.xlu0 %853
      %v856 = vmul.f32 %v698, %v779
      %v857 = vmul.f32 %v701, %v784
      %v858 = vmul.f32 %v706, %v789
      %v859 = vmul.f32 %v709, %v794
      %v860 = vmul.f32 %v714, %v799
      %v861 = vmul.f32 %v717, %v804
      %v862 = vmul.f32 %v722, %v809
      %v863 = vmul.f32 %v725, %v814
      %v864 = vmul.f32 %v730, %v819
      %v865 = vmul.f32 %v733, %v824
      %v866 = vmul.f32 %v738, %v829
      %v867 = vmul.f32 %v741, %v834
      %v868 = vmul.f32 %v746, %v839
      %v869 = vmul.f32 %v749, %v844
      %v870 = vmul.f32 %v754, %v849
      %v871 = vmul.f32 %v757, %v854
      %v872 = vld [vmem:[%s3] sm:$0xff]
      %v873 = vld [vmem:[%s3 + $0x8] sm:$0xff]
      %v874 = vld [vmem:[%s3 + $0x10] sm:$0xff]
      %v875 = vld [vmem:[%s3 + $0x18] sm:$0xff]
      %v876 = vld [vmem:[%s3 + $0x20] sm:$0xff]
      %v877 = vld [vmem:[%s3 + $0x28] sm:$0xff]
      %v878 = vld [vmem:[%s3 + $0x30] sm:$0xff]
      %v879 = vld [vmem:[%s3 + $0x38] sm:$0xff]
      %v880 = vld [vmem:[%s3 + $0x40] sm:$0xff]
      %v881 = vld [vmem:[%s3 + $0x48] sm:$0xff]
      %v882 = vld [vmem:[%s3 + $0x50] sm:$0xff]
      %v883 = vld [vmem:[%s3 + $0x58] sm:$0xff]
      %v884 = vld [vmem:[%s3 + $0x60] sm:$0xff]
      %v885 = vld [vmem:[%s3 + $0x68] sm:$0xff]
      %v886 = vld [vmem:[%s3 + $0x70] sm:$0xff]
      %v887 = vld [vmem:[%s3 + $0x78] sm:$0xff]
      %889 = vset.pattern.permute.xlu0 0
      %890 = vperm.xlu0 %889, %v872
      %v891 = vpop.permute.xlu0 %890
      %894 = vset.pattern.permute.xlu0 0
      %895 = vperm.xlu0 %894, %v873
      %v896 = vpop.permute.xlu0 %895
      %899 = vset.pattern.permute.xlu0 0
      %900 = vperm.xlu0 %899, %v874
      %v901 = vpop.permute.xlu0 %900
      %904 = vset.pattern.permute.xlu0 0
      %905 = vperm.xlu0 %904, %v875
      %v906 = vpop.permute.xlu0 %905
      %909 = vset.pattern.permute.xlu0 0
      %910 = vperm.xlu0 %909, %v876
      %v911 = vpop.permute.xlu0 %910
      %914 = vset.pattern.permute.xlu0 0
      %915 = vperm.xlu0 %914, %v877
      %v916 = vpop.permute.xlu0 %915
      %919 = vset.pattern.permute.xlu0 0
      %920 = vperm.xlu0 %919, %v878
      %v921 = vpop.permute.xlu0 %920
      %924 = vset.pattern.permute.xlu0 0
      %925 = vperm.xlu0 %924, %v879
      %v926 = vpop.permute.xlu0 %925
      %929 = vset.pattern.permute.xlu0 0
      %930 = vperm.xlu0 %929, %v880
      %v931 = vpop.permute.xlu0 %930
      %934 = vset.pattern.permute.xlu0 0
      %935 = vperm.xlu0 %934, %v881
      %v936 = vpop.permute.xlu0 %935
      %939 = vset.pattern.permute.xlu0 0
      %940 = vperm.xlu0 %939, %v882
      %v941 = vpop.permute.xlu0 %940
      %944 = vset.pattern.permute.xlu0 0
      %945 = vperm.xlu0 %944, %v883
      %v946 = vpop.permute.xlu0 %945
      %949 = vset.pattern.permute.xlu0 0
      %950 = vperm.xlu0 %949, %v884
      %v951 = vpop.permute.xlu0 %950
      %954 = vset.pattern.permute.xlu0 0
      %955 = vperm.xlu0 %954, %v885
      %v956 = vpop.permute.xlu0 %955
      %959 = vset.pattern.permute.xlu0 0
      %960 = vperm.xlu0 %959, %v886
      %v961 = vpop.permute.xlu0 %960
      %964 = vset.pattern.permute.xlu0 0
      %965 = vperm.xlu0 %964, %v887
      %v966 = vpop.permute.xlu0 %965
      %v968 = vadd.f32 %v856, %v891
      %v969 = vadd.f32 %v857, %v896
      %v970 = vadd.f32 %v858, %v901
      %v971 = vadd.f32 %v859, %v906
      %v972 = vadd.f32 %v860, %v911
      %v973 = vadd.f32 %v861, %v916
      %v974 = vadd.f32 %v862, %v921
      %v975 = vadd.f32 %v863, %v926
      %v976 = vadd.f32 %v864, %v931
      %v977 = vadd.f32 %v865, %v936
      %v978 = vadd.f32 %v866, %v941
      %v979 = vadd.f32 %v867, %v946
      %v980 = vadd.f32 %v868, %v951
      %v981 = vadd.f32 %v869, %v956
      %v982 = vadd.f32 %v870, %v961
      %v983 = vadd.f32 %v871, %v966
      %v984 = vmax.f32 %v968, 0.0
      %v985 = vmax.f32 %v969, 0.0
      %v986 = vmax.f32 %v970, 0.0
      %v987 = vmax.f32 %v971, 0.0
      %v988 = vmax.f32 %v972, 0.0
      %v989 = vmax.f32 %v973, 0.0
      %v990 = vmax.f32 %v974, 0.0
      %v991 = vmax.f32 %v975, 0.0
      %v992 = vmax.f32 %v976, 0.0
      %v993 = vmax.f32 %v977, 0.0
      %v994 = vmax.f32 %v978, 0.0
      %v995 = vmax.f32 %v979, 0.0
      %v996 = vmax.f32 %v980, 0.0
      %v997 = vmax.f32 %v981, 0.0
      %v998 = vmax.f32 %v982, 0.0
      %v999 = vmax.f32 %v983, 0.0
      %v1000 = vld [vmem:[%s4] sm:$0xf]
      %v1001 = vld [vmem:[%s4 + $0x4] sm:$0xf]
      %v1002 = vld [vmem:[%s4 + $0x8] sm:$0xf]
      %v1003 = vld [vmem:[%s4 + $0xc] sm:$0xf]
      %v1004 = vld [vmem:[%s4 + $0x10] sm:$0xf]
      %v1005 = vld [vmem:[%s4 + $0x14] sm:$0xf]
      %v1006 = vld [vmem:[%s4 + $0x18] sm:$0xf]
      %v1007 = vld [vmem:[%s4 + $0x1c] sm:$0xf]
      %v1008 = vld [vmem:[%s4 + $0x20] sm:$0xf]
      %v1009 = vld [vmem:[%s4 + $0x24] sm:$0xf]
      %v1010 = vld [vmem:[%s4 + $0x28] sm:$0xf]
      %v1011 = vld [vmem:[%s4 + $0x2c] sm:$0xf]
      %v1012 = vld [vmem:[%s4 + $0x30] sm:$0xf]
      %v1013 = vld [vmem:[%s4 + $0x34] sm:$0xf]
      %v1014 = vld [vmem:[%s4 + $0x38] sm:$0xf]
      %v1015 = vld [vmem:[%s4 + $0x3c] sm:$0xf]
      %v1016 = vpack.c.bf16 %v985, %v984
      %v1017 = vpack.c.bf16 %v987, %v986
      %v1018 = vpack.c.bf16 %v989, %v988
      %v1019 = vpack.c.bf16 %v991, %v990
      %v1020 = vpack.c.bf16 %v993, %v992
      %v1021 = vpack.c.bf16 %v995, %v994
      %v1022 = vpack.c.bf16 %v997, %v996
      %v1023 = vpack.c.bf16 %v999, %v998
      %v1040 = vunpack.c.l.b16 %v1000
      %v1041 = vunpack.c.l.b16 %v1001
      %v1042 = vunpack.c.l.b16 %v1002
      %v1043 = vunpack.c.l.b16 %v1003
      %v1044 = vunpack.c.l.b16 %v1004
      %v1045 = vunpack.c.l.b16 %v1005
      %v1046 = vunpack.c.l.b16 %v1006
      %v1047 = vunpack.c.l.b16 %v1007
      %v1048 = vunpack.c.l.b16 %v1008
      %v1049 = vunpack.c.l.b16 %v1009
      %v1050 = vunpack.c.l.b16 %v1010
      %v1051 = vunpack.c.l.b16 %v1011
      %v1052 = vunpack.c.l.b16 %v1012
      %v1053 = vunpack.c.l.b16 %v1013
      %v1054 = vunpack.c.l.b16 %v1014
      %v1055 = vunpack.c.l.b16 %v1015
      %v1056 = vpack.c.b16 %v1041, %v1040
      %v1057 = vpack.c.b16 %v1043, %v1042
      %v1058 = vpack.c.b16 %v1045, %v1044
      %v1059 = vpack.c.b16 %v1047, %v1046
      %v1060 = vpack.c.b16 %v1049, %v1048
      %v1061 = vpack.c.b16 %v1051, %v1050
      %v1062 = vpack.c.b16 %v1053, %v1052
      %v1063 = vpack.c.b16 %v1055, %v1054
      %1072 = vmatprep.subr.bf16.mxu0 0
      %1073 = vmatpush1.bf16.msra.mxu0 %v1016
      %1074 = vmatprep.subr.bf16.mxu0 0
      %1075 = vmatpush1.bf16.msra.mxu0 %v1017
      %1076 = vmatprep.subr.bf16.mxu0 0
      %1077 = vmatpush1.bf16.msra.mxu0 %v1018
      %1078 = vmatprep.subr.bf16.mxu0 0
      %1079 = vmatpush1.bf16.msra.mxu0 %v1019
      %1080 = vmatprep.subr.bf16.mxu0 0
      %1081 = vmatpush1.bf16.msra.mxu0 %v1020
      %1082 = vmatprep.subr.bf16.mxu0 0
      %1083 = vmatpush1.bf16.msra.mxu0 %v1021
      %1084 = vmatprep.subr.bf16.mxu0 0
      %1085 = vmatpush1.bf16.msra.mxu0 %v1022
      %1086 = vmatprep.subr.bf16.mxu0 0
      %1087 = vmatpush1.bf16.msra.mxu0 %v1023
      %1088 = vmatprep.subr.bf16.mxu0 0
      %1089 = vmatpush1.bf16.msra.mxu0 0
      %1090 = vmatprep.subr.bf16.mxu0 0
      %1091 = vmatpush1.bf16.msra.mxu0 0
      %1092 = vmatprep.subr.bf16.mxu0 0
      %1093 = vmatpush1.bf16.msra.mxu0 0
      %1094 = vmatprep.subr.bf16.mxu0 0
      %1095 = vmatpush1.bf16.msra.mxu0 0
      %1096 = vmatprep.subr.bf16.mxu0 0
      %1097 = vmatpush1.bf16.msra.mxu0 0
      %1098 = vmatprep.subr.bf16.mxu0 0
      %1099 = vmatpush1.bf16.msra.mxu0 0
      %1100 = vmatprep.subr.bf16.mxu0 0
      %1101 = vmatpush1.bf16.msra.mxu0 0
      %1102 = vmatprep.subr.bf16.mxu0 0
      %1103 = vmatpush1.bf16.msra.mxu0 0
      %1104 = vmatprep.mubr.bf16.mxu0 0
      %1105 = vmatmul.mubr.bf16.gmra.mrb[0].mxu0 %v1056
      %v1106 = vpop.f32.mrb[0].mxu0
      %v1107 = vadd.f32 0.0, %v1106
      %v1108 = vpop.f32.mrb[0].mxu0
      %v1109 = vpop.f32.mrb[0].mxu0
      %v1110 = vadd.f32 0.0, %v1109
      %v1111 = vpop.f32.mrb[0].mxu0
      %1112 = vmatprep.mubr.bf16.mxu0 0
      %1113 = vmatmul.mubr.bf16.gmra.mrb[0].mxu0 %v1057
      %v1114 = vpop.f32.mrb[0].mxu0
      %v1115 = vadd.f32 0.0, %v1114
      %v1116 = vpop.f32.mrb[0].mxu0
      %v1117 = vpop.f32.mrb[0].mxu0
      %v1118 = vadd.f32 0.0, %v1117
      %v1119 = vpop.f32.mrb[0].mxu0
      %1120 = vmatprep.mubr.bf16.mxu0 0
      %1121 = vmatmul.mubr.bf16.gmra.mrb[0].mxu0 %v1058
      %v1122 = vpop.f32.mrb[0].mxu0
      %v1123 = vadd.f32 0.0, %v1122
      %v1124 = vpop.f32.mrb[0].mxu0
      %v1125 = vpop.f32.mrb[0].mxu0
      %v1126 = vadd.f32 0.0, %v1125
      %v1127 = vpop.f32.mrb[0].mxu0
      %1128 = vmatprep.mubr.bf16.mxu0 0
      %1129 = vmatmul.mubr.bf16.gmra.mrb[0].mxu0 %v1059
      %v1130 = vpop.f32.mrb[0].mxu0
      %v1131 = vadd.f32 0.0, %v1130
      %v1132 = vpop.f32.mrb[0].mxu0
      %v1133 = vpop.f32.mrb[0].mxu0
      %v1134 = vadd.f32 0.0, %v1133
      %v1135 = vpop.f32.mrb[0].mxu0
      %1136 = vmatprep.mubr.bf16.mxu0 0
      %1137 = vmatmul.mubr.bf16.gmra.mrb[0].mxu0 %v1060
      %v1138 = vpop.f32.mrb[0].mxu0
      %v1139 = vadd.f32 0.0, %v1138
      %v1140 = vpop.f32.mrb[0].mxu0
      %v1141 = vpop.f32.mrb[0].mxu0
      %v1142 = vadd.f32 0.0, %v1141
      %v1143 = vpop.f32.mrb[0].mxu0
      %1144 = vmatprep.mubr.bf16.mxu0 0
      %1145 = vmatmul.mubr.bf16.gmra.mrb[0].mxu0 %v1061
      %v1146 = vpop.f32.mrb[0].mxu0
      %v1147 = vadd.f32 0.0, %v1146
      %v1148 = vpop.f32.mrb[0].mxu0
      %v1149 = vpop.f32.mrb[0].mxu0
      %v1150 = vadd.f32 0.0, %v1149
      %v1151 = vpop.f32.mrb[0].mxu0
      %1152 = vmatprep.mubr.bf16.mxu0 0
      %1153 = vmatmul.mubr.bf16.gmra.mrb[0].mxu0 %v1062
      %v1154 = vpop.f32.mrb[0].mxu0
      %v1155 = vadd.f32 0.0, %v1154
      %v1156 = vpop.f32.mrb[0].mxu0
      %v1157 = vpop.f32.mrb[0].mxu0
      %v1158 = vadd.f32 0.0, %v1157
      %v1159 = vpop.f32.mrb[0].mxu0
      %1160 = vmatprep.mubr.bf16.mxu0 0
      %1161 = vmatmul.mubr.bf16.gmra.mrb[0].mxu0 %v1063
      %v1162 = vpop.f32.mrb[0].mxu0
      %v1163 = vadd.f32 0.0, %v1162
      %v1164 = vpop.f32.mrb[0].mxu0
      %v1165 = vpop.f32.mrb[0].mxu0
      %v1166 = vadd.f32 0.0, %v1165
      %v1167 = vpop.f32.mrb[0].mxu0
      %1168 = vdwg.mxu0
      %v1169 = vlaneseq
      %v1170 = vand.u32 %v1169, 127
      %vm1171 = vcmp.lt.s32.totalorder %v1170, 0
      %v1172 = vsub.s32 0, %v1170
      %v1173 = vsel %vm1171, %v1172, %v1170
      %v1174 = vshrl.u32 %v1173, 1
      %v1175 = vand.u32 %v1173, 1
      %v1176 = vsub.s32 0, %v1175
      %v1177 = vsel %vm1171, %v1176, %v1175
      %vm1178 = vcmp.ne.s32.totalorder %v1177, 0
      %vm1179 = vcmp.lt.s32.totalorder %v1177, 0
      %vm1180 = vmand %vm1179, %vm1178
      %v1181 = vadd.s32 %v1177, 2
      %v1182 = vsel %vm1180, %v1181, %v1177
      %vm1183 = vcmp.ne.s32.totalorder %v1182, 0
      %1188 = vrot.lane.b32.xlu0 %v1123, 1
      %v1189 = vpop.permute.xlu0 %1188
      %1190 = vrot.lane.b32.xlu0 %v1126, 1
      %v1191 = vpop.permute.xlu0 %1190
      %1192 = vrot.lane.b32.xlu0 %v1131, 1
      %v1193 = vpop.permute.xlu0 %1192
      %1194 = vrot.lane.b32.xlu0 %v1134, 1
      %v1195 = vpop.permute.xlu0 %1194
      %vm1200 = vcmask 7168
      %v1201 = vsel %vm1200, 0.0, %v1189
      %v1202 = vsel %vm1200, 0.0, %v1191
      %v1203 = vsel %vm1200, 0.0, %v1193
      %v1204 = vsel %vm1200, 0.0, %v1195
      %v1205 = vsel %vm1183, 1, 0
      %vm1206 = vcmp.eq.s32.totalorder %v1205, 1
      %v1207 = vsel %vm1206, %v1201, 0.0
      %v1208 = vsel %vm1206, %v1202, 0.0
      %v1209 = vsel %vm1206, %v1203, 0.0
      %v1210 = vsel %vm1206, %v1204, 0.0
      %v1211 = vadd.f32 %v1107, %v1207
      %v1212 = vadd.f32 %v1110, %v1208
      %v1213 = vadd.f32 %v1115, %v1209
      %v1214 = vadd.f32 %v1118, %v1210
      %1219 = vrot.lane.b32.xlu0 %v1139, 2
      %v1220 = vpop.permute.xlu0 %1219
      %1221 = vrot.lane.b32.xlu0 %v1142, 2
      %v1222 = vpop.permute.xlu0 %1221
      %1223 = vrot.lane.b32.xlu0 %v1147, 2
      %v1224 = vpop.permute.xlu0 %1223
      %1225 = vrot.lane.b32.xlu0 %v1150, 2
      %v1226 = vpop.permute.xlu0 %1225
      %vm1231 = vcmask 15360
      %v1232 = vsel %vm1231, 0.0, %v1220
      %v1233 = vsel %vm1231, 0.0, %v1222
      %v1234 = vsel %vm1231, 0.0, %v1224
      %v1235 = vsel %vm1231, 0.0, %v1226
      %v1236 = vadd.f32 %v1211, %v1232
      %v1237 = vadd.f32 %v1212, %v1233
      %v1238 = vadd.f32 %v1213, %v1234
      %v1239 = vadd.f32 %v1214, %v1235
      %1244 = vrot.lane.b32.xlu0 %v1155, 3
      %v1245 = vpop.permute.xlu0 %1244
      %1246 = vrot.lane.b32.xlu0 %v1158, 3
      %v1247 = vpop.permute.xlu0 %1246
      %1248 = vrot.lane.b32.xlu0 %v1163, 3
      %v1249 = vpop.permute.xlu0 %1248
      %1250 = vrot.lane.b32.xlu0 %v1166, 3
      %v1251 = vpop.permute.xlu0 %1250
      %vm1256 = vcmask 23552
      %v1257 = vsel %vm1256, 0.0, %v1245
      %v1258 = vsel %vm1256, 0.0, %v1247
      %v1259 = vsel %vm1256, 0.0, %v1249
      %v1260 = vsel %vm1256, 0.0, %v1251
      %v1261 = vsel %vm1206, %v1257, 0.0
      %v1262 = vsel %vm1206, %v1258, 0.0
      %v1263 = vsel %vm1206, %v1259, 0.0
      %v1264 = vsel %vm1206, %v1260, 0.0
      %v1265 = vadd.f32 %v1236, %v1261
      %v1266 = vadd.f32 %v1237, %v1262
      %v1267 = vadd.f32 %v1238, %v1263
      %v1268 = vadd.f32 %v1239, %v1264
      %v1269 = vld [vmem:[%s5] sm:$0xff]
      %v1270 = vld [vmem:[%s5 + $0x8] sm:$0xff]
      %v1271 = vld [vmem:[%s5 + $0x10] sm:$0xff]
      %v1272 = vld [vmem:[%s5 + $0x18] sm:$0xff]
      %1274 = vset.pattern.permute.xlu0 0
      %1275 = vperm.xlu0 %1274, %v1269
      %v1276 = vpop.permute.xlu0 %1275
      %1279 = vset.pattern.permute.xlu0 0
      %1280 = vperm.xlu0 %1279, %v1270
      %v1281 = vpop.permute.xlu0 %1280
      %1284 = vset.pattern.permute.xlu0 0
      %1285 = vperm.xlu0 %1284, %v1271
      %v1286 = vpop.permute.xlu0 %1285
      %1289 = vset.pattern.permute.xlu0 0
      %1290 = vperm.xlu0 %1289, %v1272
      %v1291 = vpop.permute.xlu0 %1290
      %v1293 = vmul.f32 %v1265, %v1276
      %v1294 = vmul.f32 %v1266, %v1281
      %v1295 = vmul.f32 %v1267, %v1286
      %v1296 = vmul.f32 %v1268, %v1291
      %v1297 = vld [vmem:[%s6] sm:$0xff]
      %v1298 = vld [vmem:[%s6 + $0x8] sm:$0xff]
      %v1299 = vld [vmem:[%s6 + $0x10] sm:$0xff]
      %v1300 = vld [vmem:[%s6 + $0x18] sm:$0xff]
      %1302 = vset.pattern.permute.xlu0 0
      %1303 = vperm.xlu0 %1302, %v1297
      %v1304 = vpop.permute.xlu0 %1303
      %1307 = vset.pattern.permute.xlu0 0
      %1308 = vperm.xlu0 %1307, %v1298
      %v1309 = vpop.permute.xlu0 %1308
      %1312 = vset.pattern.permute.xlu0 0
      %1313 = vperm.xlu0 %1312, %v1299
      %v1314 = vpop.permute.xlu0 %1313
      %1317 = vset.pattern.permute.xlu0 0
      %1318 = vperm.xlu0 %1317, %v1300
      %v1319 = vpop.permute.xlu0 %1318
      %v1321 = vadd.f32 %v1293, %v1304
      %v1322 = vadd.f32 %v1294, %v1309
      %v1323 = vadd.f32 %v1295, %v1314
      %v1324 = vadd.f32 %v1296, %v1319
      %v1325 = vmax.f32 %v1321, 0.0
      %v1326 = vmax.f32 %v1322, 0.0
      %v1327 = vmax.f32 %v1323, 0.0
      %v1328 = vmax.f32 %v1324, 0.0
      %vm1329 = vcmask 31744
      %v1330 = vsel %vm1329, %v1325, 0.0
      %1331 = vadd.xlane.f32.xlu0 %v1330
      %v1332 = vpop.xlane.xlu0 %1331
      %v1333 = vsel %vm1329, %v1326, 0.0
      %1334 = vadd.xlane.f32.xlu0 %v1333
      %v1335 = vpop.xlane.xlu0 %1334
      %v1336 = vsel %vm1329, %v1327, 0.0
      %1337 = vadd.xlane.f32.xlu0 %v1336
      %v1338 = vpop.xlane.xlu0 %1337
      %v1339 = vsel %vm1329, %v1328, 0.0
      %1340 = vadd.xlane.f32.xlu0 %v1339
      %v1341 = vpop.xlane.xlu0 %1340
      %v1342 = vrcp.pop 4.0
      %v1343 = vmul.f32 %v1332, %v1342
      %v1344 = vmul.f32 %v1335, %v1342
      %v1345 = vmul.f32 %v1338, %v1342
      %v1346 = vmul.f32 %v1341, %v1342
      %v1347 = vld [vmem:[%s7] sm:$0xf]
      %v1348 = vld [vmem:[%s8] sm:$0xf]
      %vm1349 = vcmask 261120
      %v1351 = vsel %vm1349, %v1347, 0
      %1353 = vmatprep.subr.mxu0 0.0
      %1354 = vmatpush1.msra.mxu0 %v1343
      %1355 = vmatprep.subr.mxu0 0.0
      %1356 = vmatpush1.msra.mxu0 %v1344
      %1357 = vmatprep.subr.mxu0 0.0
      %1358 = vmatpush1.msra.mxu0 %v1345
      %1359 = vmatprep.subr.mxu0 0.0
      %1360 = vmatpush1.msra.mxu0 %v1346
      %1361 = vmatprep.subr.mxu0 0.0
      %1362 = vmatpush1.msra.mxu0 0.0
      %1363 = vmatprep.subr.mxu0 0.0
      %1364 = vmatpush1.msra.mxu0 0.0
      %1365 = vmatprep.subr.mxu0 0.0
      %1366 = vmatpush1.msra.mxu0 0.0
      %1367 = vmatprep.subr.mxu0 0.0
      %1368 = vmatpush1.msra.mxu0 0.0
      %1369 = vmatprep.subr.mxu0 0.0
      %1370 = vmatpush1.msra.mxu0 0.0
      %1371 = vmatprep.subr.mxu0 0.0
      %1372 = vmatpush1.msra.mxu0 0.0
      %1373 = vmatprep.subr.mxu0 0.0
      %1374 = vmatpush1.msra.mxu0 0.0
      %1375 = vmatprep.subr.mxu0 0.0
      %1376 = vmatpush1.msra.mxu0 0.0
      %1377 = vmatprep.subr.mxu0 0.0
      %1378 = vmatpush1.msra.mxu0 0.0
      %1379 = vmatprep.subr.mxu0 0.0
      %1380 = vmatpush1.msra.mxu0 0.0
      %1381 = vmatprep.subr.mxu0 0.0
      %1382 = vmatpush1.msra.mxu0 0.0
      %1383 = vmatprep.subr.mxu0 0.0
      %1384 = vmatpush1.msra.mxu0 0.0
      %1385 = vmatprep.subr.mxu0 0.0
      %1386 = vmatpush1.msra.mxu0 0.0
      %1387 = vmatprep.subr.mxu0 0.0
      %1388 = vmatpush1.msra.mxu0 0.0
      %1389 = vmatprep.subr.mxu0 0.0
      %1390 = vmatpush1.msra.mxu0 0.0
      %1391 = vmatprep.subr.mxu0 0.0
      %1392 = vmatpush1.msra.mxu0 0.0
      %1393 = vmatprep.subr.mxu0 0.0
      %1394 = vmatpush1.msra.mxu0 0.0
      %1395 = vmatprep.subr.mxu0 0.0
      %1396 = vmatpush1.msra.mxu0 0.0
      %1397 = vmatprep.subr.mxu0 0.0
      %1398 = vmatpush1.msra.mxu0 0.0
      %1399 = vmatprep.subr.mxu0 0.0
      %1400 = vmatpush1.msra.mxu0 0.0
      %1401 = vmatprep.subr.mxu0 0.0
      %1402 = vmatpush1.msra.mxu0 0.0
      %1403 = vmatprep.subr.mxu0 0.0
      %1404 = vmatpush1.msra.mxu0 0.0
      %1405 = vmatprep.subr.mxu0 0.0
      %1406 = vmatpush1.msra.mxu0 0.0
      %1407 = vmatprep.subr.mxu0 0.0
      %1408 = vmatpush1.msra.mxu0 0.0
      %1409 = vmatprep.subr.mxu0 0.0
      %1410 = vmatpush1.msra.mxu0 0.0
      %1411 = vmatprep.subr.mxu0 0.0
      %1412 = vmatpush1.msra.mxu0 0.0
      %1413 = vmatprep.subr.mxu0 0.0
      %1414 = vmatpush1.msra.mxu0 0.0
      %1415 = vmatprep.subr.mxu0 0.0
      %1416 = vmatpush1.msra.mxu0 0.0
      %1417 = vmatprep.mubr.f32.mxu0 0.0
      %1418 = vmatmul.mubr.f32.gmra.mrb[0].mxu0 %v1351
      %v1419 = vpop.f32.mrb[0].mxu0
      %v1420 = vadd.f32 %v1348, %v1419
      %v1421 = vpop.f32.mrb[0].mxu0
      %1422 = vdwg.mxu0
      %v1423 = vmax.f32 %v1420, 0.0
      %v1424 = vld [vmem:[%s9] sm:$0xff]
      %v1425 = vld [vmem:[%s9 + $0x8] sm:$0xff]
      %v1426 = vld [vmem:[%s9 + $0x10] sm:$0xff]
      %v1427 = vld [vmem:[%s9 + $0x18] sm:$0xff]
      %v1428 = vld [vmem:[%s10] sm:$0xff]
      %v1429 = vld [vmem:[%s10 + $0x8] sm:$0xff]
      %v1430 = vld [vmem:[%s10 + $0x10] sm:$0xff]
      %v1431 = vld [vmem:[%s10 + $0x18] sm:$0xff]
      %v1433 = vsel %vm1329, %v1424, 0
      %v1436 = vsel %vm1329, %v1425, 0
      %v1439 = vsel %vm1329, %v1426, 0
      %v1442 = vsel %vm1329, %v1427, 0
      %vm1444 = vcmask 1043456
      %v1446 = vsel %vm1444, %v1423, 0
      %1448 = vmatprep.subr.mxu0 0.0
      %1449 = vmatpush1.msra.mxu0 %v1446
      %1450 = vmatprep.subr.mxu0 0.0
      %1451 = vmatpush1.msra.mxu0 0.0
      %1452 = vmatprep.subr.mxu0 0.0
      %1453 = vmatpush1.msra.mxu0 0.0
      %1454 = vmatprep.subr.mxu0 0.0
      %1455 = vmatpush1.msra.mxu0 0.0
      %1456 = vmatprep.subr.mxu0 0.0
      %1457 = vmatpush1.msra.mxu0 0.0
      %1458 = vmatprep.subr.mxu0 0.0
      %1459 = vmatpush1.msra.mxu0 0.0
      %1460 = vmatprep.subr.mxu0 0.0
      %1461 = vmatpush1.msra.mxu0 0.0
      %1462 = vmatprep.subr.mxu0 0.0
      %1463 = vmatpush1.msra.mxu0 0.0
      %1464 = vmatprep.subr.mxu0 0.0
      %1465 = vmatpush1.msra.mxu0 0.0
      %1466 = vmatprep.subr.mxu0 0.0
      %1467 = vmatpush1.msra.mxu0 0.0
      %1468 = vmatprep.subr.mxu0 0.0
      %1469 = vmatpush1.msra.mxu0 0.0
      %1470 = vmatprep.subr.mxu0 0.0
      %1471 = vmatpush1.msra.mxu0 0.0
      %1472 = vmatprep.subr.mxu0 0.0
      %1473 = vmatpush1.msra.mxu0 0.0
      %1474 = vmatprep.subr.mxu0 0.0
      %1475 = vmatpush1.msra.mxu0 0.0
      %1476 = vmatprep.subr.mxu0 0.0
      %1477 = vmatpush1.msra.mxu0 0.0
      %1478 = vmatprep.subr.mxu0 0.0
      %1479 = vmatpush1.msra.mxu0 0.0
      %1480 = vmatprep.subr.mxu0 0.0
      %1481 = vmatpush1.msra.mxu0 0.0
      %1482 = vmatprep.subr.mxu0 0.0
      %1483 = vmatpush1.msra.mxu0 0.0
      %1484 = vmatprep.subr.mxu0 0.0
      %1485 = vmatpush1.msra.mxu0 0.0
      %1486 = vmatprep.subr.mxu0 0.0
      %1487 = vmatpush1.msra.mxu0 0.0
      %1488 = vmatprep.subr.mxu0 0.0
      %1489 = vmatpush1.msra.mxu0 0.0
      %1490 = vmatprep.subr.mxu0 0.0
      %1491 = vmatpush1.msra.mxu0 0.0
      %1492 = vmatprep.subr.mxu0 0.0
      %1493 = vmatpush1.msra.mxu0 0.0
      %1494 = vmatprep.subr.mxu0 0.0
      %1495 = vmatpush1.msra.mxu0 0.0
      %1496 = vmatprep.subr.mxu0 0.0
      %1497 = vmatpush1.msra.mxu0 0.0
      %1498 = vmatprep.subr.mxu0 0.0
      %1499 = vmatpush1.msra.mxu0 0.0
      %1500 = vmatprep.subr.mxu0 0.0
      %1501 = vmatpush1.msra.mxu0 0.0
      %1502 = vmatprep.subr.mxu0 0.0
      %1503 = vmatpush1.msra.mxu0 0.0
      %1504 = vmatprep.subr.mxu0 0.0
      %1505 = vmatpush1.msra.mxu0 0.0
      %1506 = vmatprep.subr.mxu0 0.0
      %1507 = vmatpush1.msra.mxu0 0.0
      %1508 = vmatprep.subr.mxu0 0.0
      %1509 = vmatpush1.msra.mxu0 0.0
      %1510 = vmatprep.subr.mxu0 0.0
      %1511 = vmatpush1.msra.mxu0 0.0
      %1512 = vmatprep.mubr.f32.mxu0 0.0
      %1513 = vmatmul.mubr.f32.gmra.mrb[0].mxu0 %v1433
      %v1514 = vpop.f32.mrb[0].mxu0
      %v1515 = vadd.f32 %v1428, %v1514
      %v1516 = vpop.f32.mrb[0].mxu0
      %1517 = vmatprep.mubr.f32.mxu0 0.0
      %1518 = vmatmul.mubr.f32.gmra.mrb[0].mxu0 %v1436
      %v1519 = vpop.f32.mrb[0].mxu0
      %v1520 = vadd.f32 %v1429, %v1519
      %v1521 = vpop.f32.mrb[0].mxu0
      %1522 = vmatprep.mubr.f32.mxu0 0.0
      %1523 = vmatmul.mubr.f32.gmra.mrb[0].mxu0 %v1439
      %v1524 = vpop.f32.mrb[0].mxu0
      %v1525 = vadd.f32 %v1430, %v1524
      %v1526 = vpop.f32.mrb[0].mxu0
      %1527 = vmatprep.mubr.f32.mxu0 0.0
      %1528 = vmatmul.mubr.f32.gmra.mrb[0].mxu0 %v1442
      %v1529 = vpop.f32.mrb[0].mxu0
      %v1530 = vadd.f32 %v1431, %v1529
      %v1531 = vpop.f32.mrb[0].mxu0
      %1532 = vdwg.mxu0
      %v1533 = vxor.u32 %v1515, 2147483648
      %v1534 = vxor.u32 %v1520, 2147483648
      %v1535 = vxor.u32 %v1525, 2147483648
      %v1536 = vxor.u32 %v1530, 2147483648
      %v1537 = vmul.f32 %v1533, 1.442695
      %v1538 = vpow.pop %v1537
      %v1539 = vmul.f32 %v1534, 1.442695
      %v1540 = vpow.pop %v1539
      %v1541 = vmul.f32 %v1535, 1.442695
      %v1542 = vpow.pop %v1541
      %v1543 = vmul.f32 %v1536, 1.442695
      %v1544 = vpow.pop %v1543
      %v1545 = vadd.f32 %v1538, 1.0
      %v1546 = vadd.f32 %v1540, 1.0
      %v1547 = vadd.f32 %v1542, 1.0
      %v1548 = vadd.f32 %v1544, 1.0
      %v1549 = vrcp.pop %v1545
      %v1550 = vmul.f32 1.0, %v1549
      %v1551 = vrcp.pop %v1546
      %v1552 = vmul.f32 1.0, %v1551
      %v1553 = vrcp.pop %v1547
      %v1554 = vmul.f32 1.0, %v1553
      %v1555 = vrcp.pop %v1548
      %v1556 = vmul.f32 1.0, %v1555
      %1558 = vset.pattern.permute.xlu0 0
      %1559 = vperm.xlu0 %1558, %v1550
      %v1560 = vpop.permute.xlu0 %1559
      %1563 = vset.pattern.permute.xlu0 0
      %1564 = vperm.xlu0 %1563, %v1552
      %v1565 = vpop.permute.xlu0 %1564
      %1568 = vset.pattern.permute.xlu0 0
      %1569 = vperm.xlu0 %1568, %v1554
      %v1570 = vpop.permute.xlu0 %1569
      %1573 = vset.pattern.permute.xlu0 0
      %1574 = vperm.xlu0 %1573, %v1556
      %v1575 = vpop.permute.xlu0 %1574
      %v1577 = vmul.f32 %v1325, %v1560
      %v1578 = vmul.f32 %v1326, %v1565
      %v1579 = vmul.f32 %v1327, %v1570
      %v1580 = vmul.f32 %v1328, %v1575
      %v1581 = vld [vmem:[%s11] sm:$0xf]
      %v1582 = vld [vmem:[%s11 + $0x4] sm:$0xf]
      %v1583 = vld [vmem:[%s11 + $0x8] sm:$0xf]
      %v1584 = vld [vmem:[%s11 + $0xc] sm:$0xf]
      %v1585 = vpack.c.bf16 %v1578, %v1577
      %v1586 = vpack.c.bf16 %v1580, %v1579
      %v1591 = vunpack.c.l.b16 %v1581
      %v1592 = vunpack.c.l.b16 %v1582
      %v1593 = vunpack.c.l.b16 %v1583
      %v1594 = vunpack.c.l.b16 %v1584
      %v1595 = vpack.c.b16 %v1592, %v1591
      %v1596 = vpack.c.b16 %v1594, %v1593
      %v1598 = vsel %vm1349, %v1595, 0
      %v1601 = vsel %vm1349, %v1596, 0
      %1603 = vmatprep.subr.bf16.mxu0 0
      %1604 = vmatpush1.bf16.msra.mxu0 %v1585
      %1605 = vmatprep.subr.bf16.mxu0 0
      %1606 = vmatpush1.bf16.msra.mxu0 %v1586
      %1607 = vmatprep.subr.bf16.mxu0 0
      %1608 = vmatpush1.bf16.msra.mxu0 0
      %1609 = vmatprep.subr.bf16.mxu0 0
      %1610 = vmatpush1.bf16.msra.mxu0 0
      %1611 = vmatprep.subr.bf16.mxu0 0
      %1612 = vmatpush1.bf16.msra.mxu0 0
      %1613 = vmatprep.subr.bf16.mxu0 0
      %1614 = vmatpush1.bf16.msra.mxu0 0
      %1615 = vmatprep.subr.bf16.mxu0 0
      %1616 = vmatpush1.bf16.msra.mxu0 0
      %1617 = vmatprep.subr.bf16.mxu0 0
      %1618 = vmatpush1.bf16.msra.mxu0 0
      %1619 = vmatprep.subr.bf16.mxu0 0
      %1620 = vmatpush1.bf16.msra.mxu0 0
      %1621 = vmatprep.subr.bf16.mxu0 0
      %1622 = vmatpush1.bf16.msra.mxu0 0
      %1623 = vmatprep.subr.bf16.mxu0 0
      %1624 = vmatpush1.bf16.msra.mxu0 0
      %1625 = vmatprep.subr.bf16.mxu0 0
      %1626 = vmatpush1.bf16.msra.mxu0 0
      %1627 = vmatprep.subr.bf16.mxu0 0
      %1628 = vmatpush1.bf16.msra.mxu0 0
      %1629 = vmatprep.subr.bf16.mxu0 0
      %1630 = vmatpush1.bf16.msra.mxu0 0
      %1631 = vmatprep.subr.bf16.mxu0 0
      %1632 = vmatpush1.bf16.msra.mxu0 0
      %1633 = vmatprep.subr.bf16.mxu0 0
      %1634 = vmatpush1.bf16.msra.mxu0 0
      %1635 = vmatprep.mubr.bf16.mxu0 0
      %1636 = vmatmul.mubr.bf16.gmra.mrb[0].mxu0 %v1598
      %v1637 = vpop.f32.mrb[0].mxu0
      %v1638 = vadd.f32 0.0, %v1637
      %v1639 = vpop.f32.mrb[0].mxu0
      %v1640 = vpop.f32.mrb[0].mxu0
      %v1641 = vadd.f32 0.0, %v1640
      %v1642 = vpop.f32.mrb[0].mxu0
      %1643 = vmatprep.mubr.bf16.mxu0 0
      %1644 = vmatmul.mubr.bf16.gmra.mrb[0].mxu0 %v1601
      %v1645 = vpop.f32.mrb[0].mxu0
      %v1646 = vadd.f32 0.0, %v1645
      %v1647 = vpop.f32.mrb[0].mxu0
      %v1648 = vpop.f32.mrb[0].mxu0
      %v1649 = vadd.f32 0.0, %v1648
      %v1650 = vpop.f32.mrb[0].mxu0
      %1651 = vdwg.mxu0
      %v1652 = vld [vmem:[%s12] sm:$0xff]
      %v1653 = vld [vmem:[%s12 + $0x8] sm:$0xff]
      %v1654 = vld [vmem:[%s12 + $0x10] sm:$0xff]
      %v1655 = vld [vmem:[%s12 + $0x18] sm:$0xff]
      %1657 = vset.pattern.permute.xlu0 0
      %1658 = vperm.xlu0 %1657, %v1652
      %v1659 = vpop.permute.xlu0 %1658
      %1662 = vset.pattern.permute.xlu0 0
      %1663 = vperm.xlu0 %1662, %v1653
      %v1664 = vpop.permute.xlu0 %1663
      %1667 = vset.pattern.permute.xlu0 0
      %1668 = vperm.xlu0 %1667, %v1654
      %v1669 = vpop.permute.xlu0 %1668
      %1672 = vset.pattern.permute.xlu0 0
      %1673 = vperm.xlu0 %1672, %v1655
      %v1674 = vpop.permute.xlu0 %1673
      %v1676 = vmul.f32 %v1638, %v1659
      %v1677 = vmul.f32 %v1641, %v1664
      %v1678 = vmul.f32 %v1646, %v1669
      %v1679 = vmul.f32 %v1649, %v1674
      %v1680 = vld [vmem:[%s13] sm:$0xff]
      %v1681 = vld [vmem:[%s13 + $0x8] sm:$0xff]
      %v1682 = vld [vmem:[%s13 + $0x10] sm:$0xff]
      %v1683 = vld [vmem:[%s13 + $0x18] sm:$0xff]
      %1685 = vset.pattern.permute.xlu0 0
      %1686 = vperm.xlu0 %1685, %v1680
      %v1687 = vpop.permute.xlu0 %1686
      %1690 = vset.pattern.permute.xlu0 0
      %1691 = vperm.xlu0 %1690, %v1681
      %v1692 = vpop.permute.xlu0 %1691
      %1695 = vset.pattern.permute.xlu0 0
      %1696 = vperm.xlu0 %1695, %v1682
      %v1697 = vpop.permute.xlu0 %1696
      %1700 = vset.pattern.permute.xlu0 0
      %1701 = vperm.xlu0 %1700, %v1683
      %v1702 = vpop.permute.xlu0 %1701
      %v1704 = vadd.f32 %v1676, %v1687
      %v1705 = vadd.f32 %v1677, %v1692
      %v1706 = vadd.f32 %v1678, %v1697
      %v1707 = vadd.f32 %v1679, %v1702
      %v1708 = vld [vmem:[%s14] sm:$0xf]
      %v1709 = vld [vmem:[%s14 + $0x4] sm:$0xf]
      %v1710 = vld [vmem:[%s14 + $0x8] sm:$0xf]
      %v1711 = vld [vmem:[%s14 + $0xc] sm:$0xf]
      %v1716 = vunpack.c.l.b16 %v1708
      %v1717 = vunpack.c.l.b16 %v1709
      %v1718 = vunpack.c.l.b16 %v1710
      %v1719 = vunpack.c.l.b16 %v1711
      %v1720 = vpack.c.b16 %v1717, %v1716
      %v1721 = vpack.c.b16 %v1719, %v1718
      %vm1722 = vcmask 130048
      %v1724 = vsel %vm1722, %v1720, 0
      %v1727 = vsel %vm1722, %v1721, 0
      %1729 = vmatprep.subr.bf16.mxu0 0
      %1730 = vmatpush1.bf16.msra.mxu0 %v630
      %1731 = vmatprep.subr.bf16.mxu0 0
      %1732 = vmatpush1.bf16.msra.mxu0 0
      %1733 = vmatprep.subr.bf16.mxu0 0
      %1734 = vmatpush1.bf16.msra.mxu0 0
      %1735 = vmatprep.subr.bf16.mxu0 0
      %1736 = vmatpush1.bf16.msra.mxu0 0
      %1737 = vmatprep.subr.bf16.mxu0 0
      %1738 = vmatpush1.bf16.msra.mxu0 0
      %1739 = vmatprep.subr.bf16.mxu0 0
      %1740 = vmatpush1.bf16.msra.mxu0 0
      %1741 = vmatprep.subr.bf16.mxu0 0
      %1742 = vmatpush1.bf16.msra.mxu0 0
      %1743 = vmatprep.subr.bf16.mxu0 0
      %1744 = vmatpush1.bf16.msra.mxu0 0
      %1745 = vmatprep.subr.bf16.mxu0 0
      %1746 = vmatpush1.bf16.msra.mxu0 0
      %1747 = vmatprep.subr.bf16.mxu0 0
      %1748 = vmatpush1.bf16.msra.mxu0 0
      %1749 = vmatprep.subr.bf16.mxu0 0
      %1750 = vmatpush1.bf16.msra.mxu0 0
      %1751 = vmatprep.subr.bf16.mxu0 0
      %1752 = vmatpush1.bf16.msra.mxu0 0
      %1753 = vmatprep.subr.bf16.mxu0 0
      %1754 = vmatpush1.bf16.msra.mxu0 0
      %1755 = vmatprep.subr.bf16.mxu0 0
      %1756 = vmatpush1.bf16.msra.mxu0 0
      %1757 = vmatprep.subr.bf16.mxu0 0
      %1758 = vmatpush1.bf16.msra.mxu0 0
      %1759 = vmatprep.subr.bf16.mxu0 0
      %1760 = vmatpush1.bf16.msra.mxu0 0
      %1761 = vmatprep.mubr.bf16.mxu0 0
      %1762 = vmatmul.mubr.bf16.gmra.mrb[0].mxu0 %v1724
      %v1763 = vpop.f32.mrb[0].mxu0
      %v1764 = vadd.f32 0.0, %v1763
      %v1765 = vpop.f32.mrb[0].mxu0
      %v1766 = vpop.f32.mrb[0].mxu0
      %v1767 = vadd.f32 0.0, %v1766
      %v1768 = vpop.f32.mrb[0].mxu0
      %1769 = vmatprep.mubr.bf16.mxu0 0
      %1770 = vmatmul.mubr.bf16.gmra.mrb[0].mxu0 %v1727
      %v1771 = vpop.f32.mrb[0].mxu0
      %v1772 = vadd.f32 0.0, %v1771
      %v1773 = vpop.f32.mrb[0].mxu0
      %v1774 = vpop.f32.mrb[0].mxu0
      %v1775 = vadd.f32 0.0, %v1774
      %v1776 = vpop.f32.mrb[0].mxu0
      %1777 = vdwg.mxu0
      %v1778 = vld [vmem:[%s15] sm:$0xff]
      %v1779 = vld [vmem:[%s15 + $0x8] sm:$0xff]
      %v1780 = vld [vmem:[%s15 + $0x10] sm:$0xff]
      %v1781 = vld [vmem:[%s15 + $0x18] sm:$0xff]
      %1783 = vset.pattern.permute.xlu0 0
      %1784 = vperm.xlu0 %1783, %v1778
      %v1785 = vpop.permute.xlu0 %1784
      %1788 = vset.pattern.permute.xlu0 0
      %1789 = vperm.xlu0 %1788, %v1779
      %v1790 = vpop.permute.xlu0 %1789
      %1793 = vset.pattern.permute.xlu0 0
      %1794 = vperm.xlu0 %1793, %v1780
      %v1795 = vpop.permute.xlu0 %1794
      %1798 = vset.pattern.permute.xlu0 0
      %1799 = vperm.xlu0 %1798, %v1781
      %v1800 = vpop.permute.xlu0 %1799
      %v1802 = vmul.f32 %v1764, %v1785
      %v1803 = vmul.f32 %v1767, %v1790
      %v1804 = vmul.f32 %v1772, %v1795
      %v1805 = vmul.f32 %v1775, %v1800
      %v1806 = vld [vmem:[%s16] sm:$0xff]
      %v1807 = vld [vmem:[%s16 + $0x8] sm:$0xff]
      %v1808 = vld [vmem:[%s16 + $0x10] sm:$0xff]
      %v1809 = vld [vmem:[%s16 + $0x18] sm:$0xff]
      %1811 = vset.pattern.permute.xlu0 0
      %1812 = vperm.xlu0 %1811, %v1806
      %v1813 = vpop.permute.xlu0 %1812
      %1816 = vset.pattern.permute.xlu0 0
      %1817 = vperm.xlu0 %1816, %v1807
      %v1818 = vpop.permute.xlu0 %1817
      %1821 = vset.pattern.permute.xlu0 0
      %1822 = vperm.xlu0 %1821, %v1808
      %v1823 = vpop.permute.xlu0 %1822
      %1826 = vset.pattern.permute.xlu0 0
      %1827 = vperm.xlu0 %1826, %v1809
      %v1828 = vpop.permute.xlu0 %1827
      %v1830 = vadd.f32 %v1802, %v1813
      %v1831 = vadd.f32 %v1803, %v1818
      %v1832 = vadd.f32 %v1804, %v1823
      %v1833 = vadd.f32 %v1805, %v1828
      %v1834 = vadd.f32 %v1704, %v1830
      %v1835 = vadd.f32 %v1705, %v1831
      %v1836 = vadd.f32 %v1706, %v1832
      %v1837 = vadd.f32 %v1707, %v1833
      %v1838 = vmax.f32 %v1834, 0.0
      %v1839 = vmax.f32 %v1835, 0.0
      %v1840 = vmax.f32 %v1836, 0.0
      %v1841 = vmax.f32 %v1837, 0.0
      %1842 = vst.msk [vmem:[%s548] sm:$0xff] %vm1329, %v1838
      %1843 = vst.msk [vmem:[%s548 + $0x8] sm:$0xff] %vm1329, %v1839
      %1844 = vst.msk [vmem:[%s548 + $0x10] sm:$0xff] %vm1329, %v1840
      %1845 = vst.msk [vmem:[%s548 + $0x18] sm:$0xff] %vm1329, %v1841
      %p1846 = scmp.lt.s32.totalorder %s28, 1
      %s1847 = scalar_select %p1846, %s28, 1
      %s1848 = smul.addr %s1847, 4
      %s1849 = smul.addr %s1848, 8
      %s1850 = scalar_lea.vmem %s17, %s1849
      // Predicated region
      $region89: #{encoder_forward.9} parent=87 // pred_check
        %p1851 = pneg %p408
      $region90: #{encoder_forward.9} parent=87 // pred_check_branch
        %1853 = sbr.rel (%p1851) target = $region92
      $region91: #{encoder_forward.9} parent=87 // pred_region
        _
      $region92: #{encoder_forward.9} parent=87 // pred_fallthru
        _
    $region88: #{encoder_forward.9} parent=5 // pred_fallthru
      _
    %p1854 = scmp.le.s32.totalorder 2, %s23
    // Predicated region
    $region93: #{encoder_forward.9} parent=5 // pred_check
      %p1855 = pneg %p1854
    $region94: #{encoder_forward.9} parent=5 // pred_check_branch
      %1857 = sbr.rel (%p1855) target = $region96
    $region95: #{encoder_forward.9} parent=5 // pred_region
      %s1858 = ssub.s32 %s23, 2
      // Predicated region
      $region97: #{encoder_forward.9} parent=95 // pred_check
        %p1859 = pneg %p414
      $region98: #{encoder_forward.9} parent=95 // pred_check_branch
        %1861 = sbr.rel (%p1859) target = $region100
      $region99: #{encoder_forward.9} parent=95 // pred_region
        %p1862 = scmp.lt.s32.totalorder %s29, 1
        %s1863 = scalar_select %p1862, %s29, 1
        %s1864 = smul.addr %s1863, 4
        %s1865 = smul.addr %s1864, 8
        %s1866 = scalar_lea.vmem %s17, %s1865
      $region100: #{encoder_forward.9} parent=95 // pred_fallthru
        _
    $region96: #{encoder_forward.9} parent=5 // pred_fallthru
      _
  $region6: #{encoder_forward.9} parent=0 // loop_footer
    %s27 = sadd.s32 1, %s23
  $region7: #{encoder_forward.9} parent=0 // loop_footer_branch
    %22 = sbr.rel target = $region3
  $region8: #{encoder_forward.9} parent=0 // loop_exit
    _

</llo_original>
